<compile_context>
chip_gen: v6e
topology: v6e:2x2x1
jax: 0.10.0
libtpu: 0.0.40
codegen_flags: <defaults>
</compile_context>

<pallas_src>
import jax
import jax.numpy as jnp
from jax.experimental import pallas as pl
from jax.experimental.pallas import tpu as pltpu


# ----------------------------------------------------------------------------
# Static graph matrices (computed once per graph, outside the kernel).
# ----------------------------------------------------------------------------
def build_graph_mats(edge_index, n_nodes, batch):
    src, tgt = edge_index[0], edge_index[1]
    e = int(src.shape[0])
    node_ids = jnp.arange(n_nodes)
    gt = (tgt[:, None] == node_ids[None, :]).astype(jnp.float32)        # [E, N] one-hot target
    gs = (src[:, None] == node_ids[None, :]).astype(jnp.float32)        # [E, N] one-hot source
    deg = jnp.maximum(gt.sum(axis=0), 1.0)                              # [N] in-degree
    agg1 = (gt / deg[None, :]).T                                        # [N, E] mean aggregation
    eye_b = jnp.eye(batch, dtype=jnp.float32)
    # Fused gather matrix: [Gt | Gs] so the message-net first layer is ONE matmul.
    gts = jnp.concatenate([jnp.kron(eye_b, gt), jnp.kron(eye_b, gs)], axis=1)   # [B*E, 2*B*N]
    agg = jnp.kron(eye_b, agg1)                                         # [B*N, B*E]
    red = jnp.kron(eye_b, jnp.ones((1, n_nodes), jnp.float32))          # [B,  B*N]
    # Per-edge-channel pooling over the batch (for train-mode BatchNorm stats).
    pool = jnp.kron(jnp.ones((batch, batch), jnp.float32) / batch,
                    jnp.eye(e, dtype=jnp.float32))                      # [B*E, B*E]
    return gts, agg, red, pool


# ----------------------------------------------------------------------------
# Parameter init (PyTorch nn.Linear / nn.BatchNorm1d default-style init).
# ----------------------------------------------------------------------------
def init_params(key, cfg):
    keys = iter(jax.random.split(key, 64))

    def lin(fi, fo):
        kw, kb = jax.random.split(next(keys))
        bound = 1.0 / float(fi) ** 0.5
        w = jax.random.uniform(kw, (fi, fo), jnp.float32, -bound, bound)
        b = jax.random.uniform(kb, (fo,), jnp.float32, -bound, bound)
        return w, b

    om, vh = cfg['omega_steps'], cfg['vec_emb_hidden_dim']
    mh, mo = cfg['message_hidden_dim'], cfg['message_out_dim']
    uin, uh, uo = cfg['update_in_dim'], cfg['update_hidden_dim'], cfg['update_out_dim']
    ph, ppo, poh = cfg['pre_pool_hidden_dim'], cfg['pre_pool_out_dim'], cfg['post_pool_hidden_dim']
    E = cfg['n_nodes'] ** 2
    bn = lambda: (jnp.ones((E,), jnp.float32), jnp.zeros((E,), jnp.float32))

    params = {
        'vec_emb': [lin(om, vh), lin(vh, vh), lin(vh, om)],
        'gnn': [],
        'pre_pool': [lin(uo, ph), lin(ph, ph), lin(ph, ph), lin(ph, ppo)],
        'post_pool': [lin(ppo, poh), lin(poh, 1)],
    }
    for _ in range(cfg['hidden_layer']):
        msg = dict(l1=lin(cfg['message_in_dim'], mh), bn1=bn(),
                   l2=lin(mh, mh), bn2=bn(),
                   l3=lin(mh, mh), bn3=bn(),
                   l4=lin(mh, mo))
        upd = [lin(uin, uh), lin(uh, uh), lin(uh, uh), lin(uh, uo)]
        params['gnn'].append(dict(msg=msg, upd=upd))
    return params


# ----------------------------------------------------------------------------
# Pack every parameter into three slabs (one weight slab, one bias slab, one BN
# slab).  Row offsets of weight blocks are aligned to multiples of 8 so in-kernel
# static ref slices are cheap; lane axis is the max fan-out (32).
# ----------------------------------------------------------------------------
def pack_params(params, cfg, batch):
    F, OM = cfg['in_dim'], cfg['omega_steps']

    fouts = [w.shape[1] for w, _ in
             params['vec_emb'] + params['pre_pool'] + params['post_pool']]
    for lyr in params['gnn']:
        fouts += [lyr['msg'][k][0].shape[1] for k in ('l1', 'l2', 'l3', 'l4')]
        fouts += [w.shape[1] for w, _ in lyr['upd']]
    lane_w = int(max(fouts))

    w_blocks, b_rows, entries = [], [], []
    row_off = 0

    def add(w, b):
        nonlocal row_off
        fi, fo = int(w.shape[0]), int(w.shape[1])
        fi_pad = ((fi + 7) // 8) * 8
        blk = jnp.zeros((fi_pad, lane_w), jnp.float32).at[:fi, :fo].set(w)
        row = jnp.zeros((1, lane_w), jnp.float32).at[0, :fo].set(b)
        w_blocks.append(blk)
        b_rows.append(row)
        entries.append((row_off, fi, fo))
        row_off += fi_pad
        return len(entries) - 1

    meta = {'vec_emb': [add(w, b) for w, b in params['vec_emb']], 'gnn': []}
    for lyr in params['gnn']:
        m = lyr['msg']
        w1, b1 = m['l1']
        wu, bu = lyr['upd'][0]
        lm = dict(
            # message_net layer 1 split into target / source halves (no concat).
            w1t=add(w1[:F], b1),
            w1b=add(w1[F:], jnp.zeros_like(b1)),
            w2=add(*m['l2']), w3=add(*m['l3']), w4=add(*m['l4']),
            # update_net layer 1 split into (v | x | agg_message) row blocks.
            uv=add(wu[:OM], bu),
            ux=add(wu[OM:OM + F], jnp.zeros_like(bu)),
            um=add(wu[OM + F:], jnp.zeros_like(bu)),
            u1=add(*lyr['upd'][1]), u2=add(*lyr['upd'][2]), u3=add(*lyr['upd'][3]),
        )
        meta['gnn'].append(lm)
    meta['pre_pool'] = [add(w, b) for w, b in params['pre_pool']]
    meta['post_pool'] = [add(w, b) for w, b in params['post_pool']]

    wslab = jnp.concatenate(w_blocks, axis=0)                   # [sum fan_in_pad, 32]
    bslab = jnp.concatenate(b_rows, axis=0)                     # [n_linear, 32]
    pad = (-bslab.shape[0]) % 8
    if pad:
        bslab = jnp.concatenate([bslab, jnp.zeros((pad, lane_w), jnp.float32)], axis=0)

    # All BatchNorm gamma/beta columns in ONE slab: [B*E, 6 * hidden_layer].
    cols = []
    for lyr in params['gnn']:
        for k in ('bn1', 'bn2', 'bn3'):
            g, bt = lyr['msg'][k]
            cols.append(jnp.tile(g.reshape(-1, 1), (batch, 1)))
            cols.append(jnp.tile(bt.reshape(-1, 1), (batch, 1)))
    bnslab = jnp.concatenate(cols, axis=1).astype(jnp.float32)

    return wslab, bslab, bnslab, entries, meta


# ----------------------------------------------------------------------------
# Builder: all host-side prep happens ONCE here; returns a jitted forward().
# ----------------------------------------------------------------------------
def make_gnn_forward(params, cfg, edge_index, batch):
    n_nodes, F, OM = cfg['n_nodes'], cfg['in_dim'], cfg['omega_steps']
    gts, agg, red, pool = build_graph_mats(edge_index, n_nodes, batch)
    wslab, bslab, bnslab, entries, meta = pack_params(params, cfg, batch)

    def swish(y):
        return y * jax.nn.sigmoid(y)

    def kernel(x2_ref, x1_ref, gts_ref, agg_ref, red_ref, pool_ref,
               w_ref, b_ref, bn_ref, out_ref):
        def w_of(idx):
            off, fi, fo = entries[idx]
            return w_ref[off:off + fi, 0:fo]

        def b_of(idx):
            _, _, fo = entries[idx]
            return b_ref[idx:idx + 1, 0:fo]

        def dense(h, idx, act):
            y = jnp.dot(h, w_of(idx), preferred_element_type=jnp.float32) + b_of(idx)
            return swish(y) if act else y

        def batchnorm(h, col):
            # Train-mode BatchNorm1d(E): per edge channel, stats over (batch, hidden).
            gamma = bn_ref[:, col:col + 1]
            beta = bn_ref[:, col + 1:col + 2]
            inv_h = 1.0 / h.shape[-1]
            row_m = jnp.sum(h, axis=-1, keepdims=True) * inv_h
            row_m2 = jnp.sum(h * h, axis=-1, keepdims=True) * inv_h
            mean = jnp.dot(pool_ref[...], row_m, preferred_element_type=jnp.float32)
            mean2 = jnp.dot(pool_ref[...], row_m2, preferred_element_type=jnp.float32)
            var = mean2 - mean * mean
            return (h - mean) * jax.lax.rsqrt(var + 1e-5) * gamma + beta

        x2 = x2_ref[...]            # [B*N, F]   node features
        x1 = x1_ref[...]            # [B*N, OM]  vectors
        gts_m = gts_ref[...]        # [B*E, 2*B*N]  fused [Gt | Gs] gather
        agg_m = agg_ref[...]        # [B*N, B*E]    mean aggregation at targets
        red_m = red_ref[...]        # [B,   B*N]    per-batch node sum

        # ---- vec_embedding_mlp: Linear+Swish, Linear+Swish, Linear ---------
        ve = meta['vec_emb']
        x1 = dense(x1, ve[0], True)
        x1 = dense(x1, ve[1], True)
        x1 = dense(x1, ve[2], False)

        # ---- green_gnn layers (fully unrolled) ------------------------------
        for li, lm in enumerate(meta['gnn']):
            # message_net layer 1 on cat(x_i, x_j) via one fused gather matmul:
            #   cat(x_i,x_j) @ W1 == [Gt|Gs] @ vstack(x @ W1_top, x @ W1_bot)
            zt = jnp.dot(x2, w_of(lm['w1t']), preferred_element_type=jnp.float32)
            zs = jnp.dot(x2, w_of(lm['w1b']), preferred_element_type=jnp.float32)
            z = jnp.concatenate([zt, zs], axis=0)                       # [2*B*N, H]
            h = jnp.dot(gts_m, z, preferred_element_type=jnp.float32) + b_of(lm['w1t'])
            h = batchnorm(swish(h), 2 * (3 * li + 0))
            h = batchnorm(dense(h, lm['w2'], True), 2 * (3 * li + 1))
            h = batchnorm(dense(h, lm['w3'], True), 2 * (3 * li + 2))
            msg = dense(h, lm['w4'], True)                              # [B*E, Mo]
            aggm = jnp.dot(agg_m, msg, preferred_element_type=jnp.float32)  # [B*N, Mo]

            # update_net(cat(v, x, agg_message)): first weight pre-split -> no concat.
            u = swish(jnp.dot(x1, w_of(lm['uv']), preferred_element_type=jnp.float32)
                      + jnp.dot(x2, w_of(lm['ux']), preferred_element_type=jnp.float32)
                      + jnp.dot(aggm, w_of(lm['um']), preferred_element_type=jnp.float32)
                      + b_of(lm['uv']))
            u = dense(u, lm['u1'], True)
            u = dense(u, lm['u2'], True)
            u = dense(u, lm['u3'], True)
            x2 = x2 + u                                                 # residual "x += ..."

        # ---- head_pre_pool: 3x (Linear+Swish) + Linear ----------------------
        pp = meta['pre_pool']
        h = dense(x2, pp[0], True)
        h = dense(h, pp[1], True)
        h = dense(h, pp[2], True)
        h = dense(h, pp[3], False)

        # ---- head_post_pool: Linear+Swish, Linear(->1) ----------------------
        qp = meta['post_pool']
        h = dense(h, qp[0], True)
        coeff = dense(h, qp[1], False)                                  # [B*N, 1]

        # ---- x3[b,:] = sum_n x1[b,n,:] * coefficients[b,n,0] ---------------
        # TODO(synk): PyTorch accumulates x3 in float64; TPU kernel uses float32.
        out_ref[...] = jnp.dot(red_m, x1 * coeff, preferred_element_type=jnp.float32)

    vspec = pl.BlockSpec(memory_space=pltpu.MemorySpace.VMEM)
    call = pl.pallas_call(
        kernel,
        in_specs=[vspec] * 9,
        out_specs=vspec,
        out_shape=jax.ShapeDtypeStruct((batch, OM), jnp.float32),
        compiler_params=pltpu.CompilerParams(vmem_limit_bytes=16 * 1024 * 1024),
    )

    @jax.jit
    def forward(node_feature, vectors):
        x2 = node_feature.reshape(batch * n_nodes, F).astype(jnp.float32)
        x1 = vectors.reshape(batch * n_nodes, OM).astype(jnp.float32)
        return call(x2, x1, gts, agg, red, pool, wslab, bslab, bnslab)

    return forward


# ----------------------------------------------------------------------------
# Pure-JAX reference (same math as the PyTorch module, train-mode BN), used to
# cross-check the fused kernel.
# ----------------------------------------------------------------------------
def reference_forward(params, cfg, edge_index, node_feature, vectors):
    hp = jax.lax.Precision.HIGHEST
    src, tgt = edge_index[0], edge_index[1]
    N = cfg['n_nodes']

    def swish(y):
        return y * jax.nn.sigmoid(y)

    def lin(h, wb):
        return jnp.dot(h, wb[0], precision=hp) + wb[1]

    def bn(h, gb, eps=1e-5):
        g, bt = gb
        mean = jnp.mean(h, axis=(0, 2), keepdims=True)
        var = jnp.mean((h - mean) ** 2, axis=(0, 2), keepdims=True)
        return (h - mean) * jax.lax.rsqrt(var + eps) * g[None, :, None] + bt[None, :, None]

    x2 = node_feature.astype(jnp.float32)
    x1 = vectors.astype(jnp.float32)
    x1 = swish(lin(x1, params['vec_emb'][0]))
    x1 = swish(lin(x1, params['vec_emb'][1]))
    x1 = lin(x1, params['vec_emb'][2])

    onehot_t = (tgt[:, None] == jnp.arange(N)[None, :]).astype(jnp.float32)   # [E, N]
    deg = jnp.maximum(onehot_t.sum(axis=0), 1.0)

    for lyr in params['gnn']:
        m = lyr['msg']
        x_i = x2[:, tgt, :]
        x_j = x2[:, src, :]
        h = swish(lin(jnp.concatenate([x_i, x_j], axis=-1), m['l1']))
        h = bn(h, m['bn1'])
        h = bn(swish(lin(h, m['l2'])), m['bn2'])
        h = bn(swish(lin(h, m['l3'])), m['bn3'])
        msg = swish(lin(h, m['l4']))
        aggm = jnp.einsum('en,bem->bnm', onehot_t, msg, precision=hp) / deg[None, :, None]
        u = jnp.concatenate([x1, x2, aggm], axis=-1)
        u = swish(lin(u, lyr['upd'][0]))
        u = swish(lin(u, lyr['upd'][1]))
        u = swish(lin(u, lyr['upd'][2]))
        u = swish(lin(u, lyr['upd'][3]))
        x2 = x2 + u

    h = swish(lin(x2, params['pre_pool'][0]))
    h = swish(lin(h, params['pre_pool'][1]))
    h = swish(lin(h, params['pre_pool'][2]))
    h = lin(h, params['pre_pool'][3])
    h = swish(lin(h, params['post_pool'][0]))
    coeff = lin(h, params['post_pool'][1])
    return jnp.sum(x1 * coeff, axis=1)


if __name__ == "__main__":
    cfg = dict(
        omega_steps=16, vec_emb_hidden_dim=32, out_dim=16,
        in_dim=4,                       # node_feature dim == update_out_dim (residual add)
        message_in_dim=8,               # == 2 * in_dim  (cat of x_i | x_j)
        message_hidden_dim=32, message_out_dim=16,
        update_in_dim=16 + 4 + 16,      # omega_steps + in_dim + message_out_dim
        update_hidden_dim=32, update_out_dim=4,
        nr_coefficients=8, hidden_layer=2,
        pre_pool_hidden_dim=32, pre_pool_out_dim=16, post_pool_hidden_dim=32,
        n_nodes=8,
    )
    B, N = 2, cfg['n_nodes']
    key = jax.random.PRNGKey(0)
    k_param, k_x, k_v = jax.random.split(key, 3)

    params = init_params(k_param, cfg)
    node_feature = jax.random.normal(k_x, (B, N, cfg['in_dim']), jnp.float32)
    vectors = jax.random.normal(k_v, (B, N, cfg['omega_steps']), jnp.float32)

    # Fully-connected graph (E = N*N, required by BatchNorm1d(n_nodes**2)).
    tgt = jnp.repeat(jnp.arange(N), N)
    src = jnp.tile(jnp.arange(N), N)
    edge_index = jnp.stack([src, tgt], axis=0)      # [2, E]; row 0 = source, row 1 = target

    # All host-side prep (graph matrices + parameter packing) happens once here;
    # the returned forward() is jitted and launches a single fused kernel.
    forward = make_gnn_forward(params, cfg, edge_index, B)

    x3 = jax.block_until_ready(forward(node_feature, vectors))
    assert x3.shape == (B, cfg['omega_steps'])
    assert bool(jnp.all(jnp.isfinite(x3)))

    # Cross-check against the pure-JAX reference of the same forward pass.
    ref = reference_forward(params, cfg, edge_index, node_feature, vectors)
    err = float(jnp.max(jnp.abs(x3 - ref)))
    assert err <= 1e-2 * (1.0 + float(jnp.max(jnp.abs(ref)))), f"mismatch vs reference: {err}"

    print("KERNEL_OK")
</pallas_src>

<mosaic_0001>
module attributes {stable_mosaic.version = 11 : i64} {
  func.func @kernel(%arg0: memref<16x4xf32, #tpu.memory_space<vmem>>, %arg1: memref<16x16xf32, #tpu.memory_space<vmem>>, %arg2: memref<128x32xf32, #tpu.memory_space<vmem>>, %arg3: memref<16x128xf32, #tpu.memory_space<vmem>>, %arg4: memref<2x16xf32, #tpu.memory_space<vmem>>, %arg5: memref<128x128xf32, #tpu.memory_space<vmem>>, %arg6: memref<728x32xf32, #tpu.memory_space<vmem>>, %arg7: memref<32x32xf32, #tpu.memory_space<vmem>>, %arg8: memref<128x12xf32, #tpu.memory_space<vmem>>, %arg9: memref<2x16xf32, #tpu.memory_space<vmem>>) attributes {dimension_semantics = [], scalar_prefetch = 0 : i64, scratch_operands = 0 : i64, tpu.core_type = #tpu.core_type<tc>} {
    %c0 = arith.constant 0 : index
    %c0_0 = arith.constant 0 : index
    %0 = vector.load %arg0[%c0, %c0_0] : memref<16x4xf32, #tpu.memory_space<vmem>>, vector<16x4xf32>
    %c0_1 = arith.constant 0 : index
    %c0_2 = arith.constant 0 : index
    %1 = vector.load %arg1[%c0_1, %c0_2] : memref<16x16xf32, #tpu.memory_space<vmem>>, vector<16x16xf32>
    %c0_3 = arith.constant 0 : index
    %c0_4 = arith.constant 0 : index
    %2 = vector.load %arg2[%c0_3, %c0_4] : memref<128x32xf32, #tpu.memory_space<vmem>>, vector<128x32xf32>
    %c0_5 = arith.constant 0 : index
    %c0_6 = arith.constant 0 : index
    %3 = vector.load %arg3[%c0_5, %c0_6] : memref<16x128xf32, #tpu.memory_space<vmem>>, vector<16x128xf32>
    %c0_7 = arith.constant 0 : index
    %c0_8 = arith.constant 0 : index
    %4 = vector.load %arg4[%c0_7, %c0_8] : memref<2x16xf32, #tpu.memory_space<vmem>>, vector<2x16xf32>
    %c0_9 = arith.constant 0 : index
    %c0_10 = arith.constant 0 : index
    %5 = vector.load %arg6[%c0_9, %c0_10] : memref<728x32xf32, #tpu.memory_space<vmem>>, vector<16x32xf32>
    %cst = arith.constant dense<0.000000e+00> : vector<16x32xf32>
    %6 = tpu.matmul %1, %5, %cst {dimension_numbers = #tpu.dot_dimension_numbers<[1], [0], [0], [1], [0, 0, 1, 1], [], []>} : vector<16x16xf32>, vector<16x32xf32>, vector<16x32xf32> -> vector<16x32xf32>
    %c0_11 = arith.constant 0 : index
    %c0_12 = arith.constant 0 : index
    %7 = vector.load %arg7[%c0_11, %c0_12] : memref<32x32xf32, #tpu.memory_space<vmem>>, vector<1x32xf32>
    %8 = vector.broadcast %7 : vector<1x32xf32> to vector<16x32xf32>
    %9 = arith.addf %6, %8 : vector<16x32xf32>
    %10 = arith.negf %9 : vector<16x32xf32>
    %11 = math.exp %10 : vector<16x32xf32>
    %cst_13 = arith.constant 1.000000e+00 : f32
    %12 = vector.broadcast %cst_13 : f32 to vector<16x32xf32>
    %13 = arith.addf %12, %11 : vector<16x32xf32>
    %14 = arith.divf %12, %13 : vector<16x32xf32>
    %15 = arith.mulf %9, %14 : vector<16x32xf32>
    %c16 = arith.constant 16 : index
    %c0_14 = arith.constant 0 : index
    %16 = vector.load %arg6[%c16, %c0_14] : memref<728x32xf32, #tpu.memory_space<vmem>>, vector<32x32xf32>
    %cst_15 = arith.constant dense<0.000000e+00> : vector<16x32xf32>
    %17 = tpu.matmul %15, %16, %cst_15 {dimension_numbers = #tpu.dot_dimension_numbers<[1], [0], [0], [1], [0, 0, 1, 1], [], []>} : vector<16x32xf32>, vector<32x32xf32>, vector<16x32xf32> -> vector<16x32xf32>
    %c1 = arith.constant 1 : index
    %c0_16 = arith.constant 0 : index
    %18 = vector.load %arg7[%c1, %c0_16] : memref<32x32xf32, #tpu.memory_space<vmem>>, vector<1x32xf32>
    %19 = vector.broadcast %18 : vector<1x32xf32> to vector<16x32xf32>
    %20 = arith.addf %17, %19 : vector<16x32xf32>
    %21 = arith.negf %20 : vector<16x32xf32>
    %22 = math.exp %21 : vector<16x32xf32>
    %cst_17 = arith.constant 1.000000e+00 : f32
    %23 = vector.broadcast %cst_17 : f32 to vector<16x32xf32>
    %24 = arith.addf %23, %22 : vector<16x32xf32>
    %25 = arith.divf %23, %24 : vector<16x32xf32>
    %26 = arith.mulf %20, %25 : vector<16x32xf32>
    %c48 = arith.constant 48 : index
    %c0_18 = arith.constant 0 : index
    %27 = vector.load %arg6[%c48, %c0_18] : memref<728x32xf32, #tpu.memory_space<vmem>>, vector<32x16xf32>
    %cst_19 = arith.constant dense<0.000000e+00> : vector<16x16xf32>
    %28 = tpu.matmul %26, %27, %cst_19 {dimension_numbers = #tpu.dot_dimension_numbers<[1], [0], [0], [1], [0, 0, 1, 1], [], []>} : vector<16x32xf32>, vector<32x16xf32>, vector<16x16xf32> -> vector<16x16xf32>
    %c2 = arith.constant 2 : index
    %c0_20 = arith.constant 0 : index
    %29 = vector.load %arg7[%c2, %c0_20] : memref<32x32xf32, #tpu.memory_space<vmem>>, vector<1x16xf32>
    %30 = vector.broadcast %29 : vector<1x16xf32> to vector<16x16xf32>
    %31 = arith.addf %28, %30 : vector<16x16xf32>
    %c80 = arith.constant 80 : index
    %c0_21 = arith.constant 0 : index
    %32 = vector.load %arg6[%c80, %c0_21] : memref<728x32xf32, #tpu.memory_space<vmem>>, vector<4x32xf32>
    %cst_22 = arith.constant dense<0.000000e+00> : vector<16x32xf32>
    %33 = tpu.matmul %0, %32, %cst_22 {dimension_numbers = #tpu.dot_dimension_numbers<[1], [0], [0], [1], [0, 0, 1, 1], [], []>} : vector<16x4xf32>, vector<4x32xf32>, vector<16x32xf32> -> vector<16x32xf32>
    %c88 = arith.constant 88 : index
    %c0_23 = arith.constant 0 : index
    %34 = vector.load %arg6[%c88, %c0_23] : memref<728x32xf32, #tpu.memory_space<vmem>>, vector<4x32xf32>
    %cst_24 = arith.constant dense<0.000000e+00> : vector<16x32xf32>
    %35 = tpu.matmul %0, %34, %cst_24 {dimension_numbers = #tpu.dot_dimension_numbers<[1], [0], [0], [1], [0, 0, 1, 1], [], []>} : vector<16x4xf32>, vector<4x32xf32>, vector<16x32xf32> -> vector<16x32xf32>
    %36 = tpu.concatenate %33, %35 in 0 : vector<16x32xf32>, vector<16x32xf32> -> vector<32x32xf32>
    %cst_25 = arith.constant dense<0.000000e+00> : vector<128x32xf32>
    %37 = tpu.matmul %2, %36, %cst_25 {dimension_numbers = #tpu.dot_dimension_numbers<[1], [0], [0], [1], [0, 0, 1, 1], [], []>} : vector<128x32xf32>, vector<32x32xf32>, vector<128x32xf32> -> vector<128x32xf32>
    %c3 = arith.constant 3 : index
    %c0_26 = arith.constant 0 : index
    %38 = vector.load %arg7[%c3, %c0_26] : memref<32x32xf32, #tpu.memory_space<vmem>>, vector<1x32xf32>
    %39 = vector.broadcast %38 : vector<1x32xf32> to vector<128x32xf32>
    %40 = arith.addf %37, %39 : vector<128x32xf32>
    %41 = arith.negf %40 : vector<128x32xf32>
    %42 = math.exp %41 : vector<128x32xf32>
    %cst_27 = arith.constant 1.000000e+00 : f32
    %43 = vector.broadcast %cst_27 : f32 to vector<128x32xf32>
    %44 = arith.addf %43, %42 : vector<128x32xf32>
    %45 = arith.divf %43, %44 : vector<128x32xf32>
    %46 = arith.mulf %40, %45 : vector<128x32xf32>
    %c0_28 = arith.constant 0 : index
    %c0_29 = arith.constant 0 : index
    %47 = vector.load %arg8[%c0_28, %c0_29] : memref<128x12xf32, #tpu.memory_space<vmem>>, vector<128x1xf32>
    %c0_30 = arith.constant 0 : index
    %c1_31 = arith.constant 1 : index
    %48 = vector.load %arg8[%c0_30, %c1_31] : memref<128x12xf32, #tpu.memory_space<vmem>>, vector<128x1xf32>
    %cst_32 = arith.constant dense<0.000000e+00> : vector<128xf32>
    %49 = vector.multi_reduction <add>, %46, %cst_32 [1] : vector<128x32xf32> to vector<128xf32>
    %50 = vector.shape_cast %49 : vector<128xf32> to vector<128x1xf32>
    %cst_33 = arith.constant 3.125000e-02 : f32
    %51 = vector.broadcast %cst_33 : f32 to vector<128x1xf32>
    %52 = arith.mulf %50, %51 : vector<128x1xf32>
    %53 = arith.mulf %46, %46 : vector<128x32xf32>
    %cst_34 = arith.constant dense<0.000000e+00> : vector<128xf32>
    %54 = vector.multi_reduction <add>, %53, %cst_34 [1] : vector<128x32xf32> to vector<128xf32>
    %55 = vector.shape_cast %54 : vector<128xf32> to vector<128x1xf32>
    %cst_35 = arith.constant 3.125000e-02 : f32
    %56 = vector.broadcast %cst_35 : f32 to vector<128x1xf32>
    %57 = arith.mulf %55, %56 : vector<128x1xf32>
    %c0_36 = arith.constant 0 : index
    %c0_37 = arith.constant 0 : index
    %58 = vector.load %arg5[%c0_36, %c0_37] : memref<128x128xf32, #tpu.memory_space<vmem>>, vector<128x128xf32>
    %cst_38 = arith.constant dense<0.000000e+00> : vector<128x1xf32>
    %59 = tpu.matmul %58, %52, %cst_38 {dimension_numbers = #tpu.dot_dimension_numbers<[1], [0], [0], [1], [0, 0, 1, 1], [], []>} : vector<128x128xf32>, vector<128x1xf32>, vector<128x1xf32> -> vector<128x1xf32>
    %c0_39 = arith.constant 0 : index
    %c0_40 = arith.constant 0 : index
    %60 = vector.load %arg5[%c0_39, %c0_40] : memref<128x128xf32, #tpu.memory_space<vmem>>, vector<128x128xf32>
    %cst_41 = arith.constant dense<0.000000e+00> : vector<128x1xf32>
    %61 = tpu.matmul %60, %57, %cst_41 {dimension_numbers = #tpu.dot_dimension_numbers<[1], [0], [0], [1], [0, 0, 1, 1], [], []>} : vector<128x128xf32>, vector<128x1xf32>, vector<128x1xf32> -> vector<128x1xf32>
    %62 = arith.mulf %59, %59 : vector<128x1xf32>
    %63 = arith.subf %61, %62 : vector<128x1xf32>
    %64 = vector.broadcast %59 : vector<128x1xf32> to vector<128x32xf32>
    %65 = arith.subf %46, %64 : vector<128x32xf32>
    %cst_42 = arith.constant 9.99999974E-6 : f32
    %66 = vector.broadcast %cst_42 : f32 to vector<128x1xf32>
    %67 = arith.addf %63, %66 : vector<128x1xf32>
    %68 = math.rsqrt %67 : vector<128x1xf32>
    %69 = vector.broadcast %68 : vector<128x1xf32> to vector<128x32xf32>
    %70 = arith.mulf %65, %69 : vector<128x32xf32>
    %71 = vector.broadcast %47 : vector<128x1xf32> to vector<128x32xf32>
    %72 = arith.mulf %70, %71 : vector<128x32xf32>
    %73 = vector.broadcast %48 : vector<128x1xf32> to vector<128x32xf32>
    %74 = arith.addf %72, %73 : vector<128x32xf32>
    %c96 = arith.constant 96 : index
    %c0_43 = arith.constant 0 : index
    %75 = vector.load %arg6[%c96, %c0_43] : memref<728x32xf32, #tpu.memory_space<vmem>>, vector<32x32xf32>
    %cst_44 = arith.constant dense<0.000000e+00> : vector<128x32xf32>
    %76 = tpu.matmul %74, %75, %cst_44 {dimension_numbers = #tpu.dot_dimension_numbers<[1], [0], [0], [1], [0, 0, 1, 1], [], []>} : vector<128x32xf32>, vector<32x32xf32>, vector<128x32xf32> -> vector<128x32xf32>
    %c5 = arith.constant 5 : index
    %c0_45 = arith.constant 0 : index
    %77 = vector.load %arg7[%c5, %c0_45] : memref<32x32xf32, #tpu.memory_space<vmem>>, vector<1x32xf32>
    %78 = vector.broadcast %77 : vector<1x32xf32> to vector<128x32xf32>
    %79 = arith.addf %76, %78 : vector<128x32xf32>
    %80 = arith.negf %79 : vector<128x32xf32>
    %81 = math.exp %80 : vector<128x32xf32>
    %cst_46 = arith.constant 1.000000e+00 : f32
    %82 = vector.broadcast %cst_46 : f32 to vector<128x32xf32>
    %83 = arith.addf %82, %81 : vector<128x32xf32>
    %84 = arith.divf %82, %83 : vector<128x32xf32>
    %85 = arith.mulf %79, %84 : vector<128x32xf32>
    %c0_47 = arith.constant 0 : index
    %c2_48 = arith.constant 2 : index
    %86 = vector.load %arg8[%c0_47, %c2_48] : memref<128x12xf32, #tpu.memory_space<vmem>>, vector<128x1xf32>
    %c0_49 = arith.constant 0 : index
    %c3_50 = arith.constant 3 : index
    %87 = vector.load %arg8[%c0_49, %c3_50] : memref<128x12xf32, #tpu.memory_space<vmem>>, vector<128x1xf32>
    %cst_51 = arith.constant dense<0.000000e+00> : vector<128xf32>
    %88 = vector.multi_reduction <add>, %85, %cst_51 [1] : vector<128x32xf32> to vector<128xf32>
    %89 = vector.shape_cast %88 : vector<128xf32> to vector<128x1xf32>
    %cst_52 = arith.constant 3.125000e-02 : f32
    %90 = vector.broadcast %cst_52 : f32 to vector<128x1xf32>
    %91 = arith.mulf %89, %90 : vector<128x1xf32>
    %92 = arith.mulf %85, %85 : vector<128x32xf32>
    %cst_53 = arith.constant dense<0.000000e+00> : vector<128xf32>
    %93 = vector.multi_reduction <add>, %92, %cst_53 [1] : vector<128x32xf32> to vector<128xf32>
    %94 = vector.shape_cast %93 : vector<128xf32> to vector<128x1xf32>
    %cst_54 = arith.constant 3.125000e-02 : f32
    %95 = vector.broadcast %cst_54 : f32 to vector<128x1xf32>
    %96 = arith.mulf %94, %95 : vector<128x1xf32>
    %c0_55 = arith.constant 0 : index
    %c0_56 = arith.constant 0 : index
    %97 = vector.load %arg5[%c0_55, %c0_56] : memref<128x128xf32, #tpu.memory_space<vmem>>, vector<128x128xf32>
    %cst_57 = arith.constant dense<0.000000e+00> : vector<128x1xf32>
    %98 = tpu.matmul %97, %91, %cst_57 {dimension_numbers = #tpu.dot_dimension_numbers<[1], [0], [0], [1], [0, 0, 1, 1], [], []>} : vector<128x128xf32>, vector<128x1xf32>, vector<128x1xf32> -> vector<128x1xf32>
    %c0_58 = arith.constant 0 : index
    %c0_59 = arith.constant 0 : index
    %99 = vector.load %arg5[%c0_58, %c0_59] : memref<128x128xf32, #tpu.memory_space<vmem>>, vector<128x128xf32>
    %cst_60 = arith.constant dense<0.000000e+00> : vector<128x1xf32>
    %100 = tpu.matmul %99, %96, %cst_60 {dimension_numbers = #tpu.dot_dimension_numbers<[1], [0], [0], [1], [0, 0, 1, 1], [], []>} : vector<128x128xf32>, vector<128x1xf32>, vector<128x1xf32> -> vector<128x1xf32>
    %101 = arith.mulf %98, %98 : vector<128x1xf32>
    %102 = arith.subf %100, %101 : vector<128x1xf32>
    %103 = vector.broadcast %98 : vector<128x1xf32> to vector<128x32xf32>
    %104 = arith.subf %85, %103 : vector<128x32xf32>
    %cst_61 = arith.constant 9.99999974E-6 : f32
    %105 = vector.broadcast %cst_61 : f32 to vector<128x1xf32>
    %106 = arith.addf %102, %105 : vector<128x1xf32>
    %107 = math.rsqrt %106 : vector<128x1xf32>
    %108 = vector.broadcast %107 : vector<128x1xf32> to vector<128x32xf32>
    %109 = arith.mulf %104, %108 : vector<128x32xf32>
    %110 = vector.broadcast %86 : vector<128x1xf32> to vector<128x32xf32>
    %111 = arith.mulf %109, %110 : vector<128x32xf32>
    %112 = vector.broadcast %87 : vector<128x1xf32> to vector<128x32xf32>
    %113 = arith.addf %111, %112 : vector<128x32xf32>
    %c128 = arith.constant 128 : index
    %c0_62 = arith.constant 0 : index
    %114 = vector.load %arg6[%c128, %c0_62] : memref<728x32xf32, #tpu.memory_space<vmem>>, vector<32x32xf32>
    %cst_63 = arith.constant dense<0.000000e+00> : vector<128x32xf32>
    %115 = tpu.matmul %113, %114, %cst_63 {dimension_numbers = #tpu.dot_dimension_numbers<[1], [0], [0], [1], [0, 0, 1, 1], [], []>} : vector<128x32xf32>, vector<32x32xf32>, vector<128x32xf32> -> vector<128x32xf32>
    %c6 = arith.constant 6 : index
    %c0_64 = arith.constant 0 : index
    %116 = vector.load %arg7[%c6, %c0_64] : memref<32x32xf32, #tpu.memory_space<vmem>>, vector<1x32xf32>
    %117 = vector.broadcast %116 : vector<1x32xf32> to vector<128x32xf32>
    %118 = arith.addf %115, %117 : vector<128x32xf32>
    %119 = arith.negf %118 : vector<128x32xf32>
    %120 = math.exp %119 : vector<128x32xf32>
    %cst_65 = arith.constant 1.000000e+00 : f32
    %121 = vector.broadcast %cst_65 : f32 to vector<128x32xf32>
    %122 = arith.addf %121, %120 : vector<128x32xf32>
    %123 = arith.divf %121, %122 : vector<128x32xf32>
    %124 = arith.mulf %118, %123 : vector<128x32xf32>
    %c0_66 = arith.constant 0 : index
    %c4 = arith.constant 4 : index
    %125 = vector.load %arg8[%c0_66, %c4] : memref<128x12xf32, #tpu.memory_space<vmem>>, vector<128x1xf32>
    %c0_67 = arith.constant 0 : index
    %c5_68 = arith.constant 5 : index
    %126 = vector.load %arg8[%c0_67, %c5_68] : memref<128x12xf32, #tpu.memory_space<vmem>>, vector<128x1xf32>
    %cst_69 = arith.constant dense<0.000000e+00> : vector<128xf32>
    %127 = vector.multi_reduction <add>, %124, %cst_69 [1] : vector<128x32xf32> to vector<128xf32>
    %128 = vector.shape_cast %127 : vector<128xf32> to vector<128x1xf32>
    %cst_70 = arith.constant 3.125000e-02 : f32
    %129 = vector.broadcast %cst_70 : f32 to vector<128x1xf32>
    %130 = arith.mulf %128, %129 : vector<128x1xf32>
    %131 = arith.mulf %124, %124 : vector<128x32xf32>
    %cst_71 = arith.constant dense<0.000000e+00> : vector<128xf32>
    %132 = vector.multi_reduction <add>, %131, %cst_71 [1] : vector<128x32xf32> to vector<128xf32>
    %133 = vector.shape_cast %132 : vector<128xf32> to vector<128x1xf32>
    %cst_72 = arith.constant 3.125000e-02 : f32
    %134 = vector.broadcast %cst_72 : f32 to vector<128x1xf32>
    %135 = arith.mulf %133, %134 : vector<128x1xf32>
    %c0_73 = arith.constant 0 : index
    %c0_74 = arith.constant 0 : index
    %136 = vector.load %arg5[%c0_73, %c0_74] : memref<128x128xf32, #tpu.memory_space<vmem>>, vector<128x128xf32>
    %cst_75 = arith.constant dense<0.000000e+00> : vector<128x1xf32>
    %137 = tpu.matmul %136, %130, %cst_75 {dimension_numbers = #tpu.dot_dimension_numbers<[1], [0], [0], [1], [0, 0, 1, 1], [], []>} : vector<128x128xf32>, vector<128x1xf32>, vector<128x1xf32> -> vector<128x1xf32>
    %c0_76 = arith.constant 0 : index
    %c0_77 = arith.constant 0 : index
    %138 = vector.load %arg5[%c0_76, %c0_77] : memref<128x128xf32, #tpu.memory_space<vmem>>, vector<128x128xf32>
    %cst_78 = arith.constant dense<0.000000e+00> : vector<128x1xf32>
    %139 = tpu.matmul %138, %135, %cst_78 {dimension_numbers = #tpu.dot_dimension_numbers<[1], [0], [0], [1], [0, 0, 1, 1], [], []>} : vector<128x128xf32>, vector<128x1xf32>, vector<128x1xf32> -> vector<128x1xf32>
    %140 = arith.mulf %137, %137 : vector<128x1xf32>
    %141 = arith.subf %139, %140 : vector<128x1xf32>
    %142 = vector.broadcast %137 : vector<128x1xf32> to vector<128x32xf32>
    %143 = arith.subf %124, %142 : vector<128x32xf32>
    %cst_79 = arith.constant 9.99999974E-6 : f32
    %144 = vector.broadcast %cst_79 : f32 to vector<128x1xf32>
    %145 = arith.addf %141, %144 : vector<128x1xf32>
    %146 = math.rsqrt %145 : vector<128x1xf32>
    %147 = vector.broadcast %146 : vector<128x1xf32> to vector<128x32xf32>
    %148 = arith.mulf %143, %147 : vector<128x32xf32>
    %149 = vector.broadcast %125 : vector<128x1xf32> to vector<128x32xf32>
    %150 = arith.mulf %148, %149 : vector<128x32xf32>
    %151 = vector.broadcast %126 : vector<128x1xf32> to vector<128x32xf32>
    %152 = arith.addf %150, %151 : vector<128x32xf32>
    %c160 = arith.constant 160 : index
    %c0_80 = arith.constant 0 : index
    %153 = vector.load %arg6[%c160, %c0_80] : memref<728x32xf32, #tpu.memory_space<vmem>>, vector<32x16xf32>
    %cst_81 = arith.constant dense<0.000000e+00> : vector<128x16xf32>
    %154 = tpu.matmul %152, %153, %cst_81 {dimension_numbers = #tpu.dot_dimension_numbers<[1], [0], [0], [1], [0, 0, 1, 1], [], []>} : vector<128x32xf32>, vector<32x16xf32>, vector<128x16xf32> -> vector<128x16xf32>
    %c7 = arith.constant 7 : index
    %c0_82 = arith.constant 0 : index
    %155 = vector.load %arg7[%c7, %c0_82] : memref<32x32xf32, #tpu.memory_space<vmem>>, vector<1x16xf32>
    %156 = vector.broadcast %155 : vector<1x16xf32> to vector<128x16xf32>
    %157 = arith.addf %154, %156 : vector<128x16xf32>
    %158 = arith.negf %157 : vector<128x16xf32>
    %159 = math.exp %158 : vector<128x16xf32>
    %cst_83 = arith.constant 1.000000e+00 : f32
    %160 = vector.broadcast %cst_83 : f32 to vector<128x16xf32>
    %161 = arith.addf %160, %159 : vector<128x16xf32>
    %162 = arith.divf %160, %161 : vector<128x16xf32>
    %163 = arith.mulf %157, %162 : vector<128x16xf32>
    %cst_84 = arith.constant dense<0.000000e+00> : vector<16x16xf32>
    %164 = tpu.matmul %3, %163, %cst_84 {dimension_numbers = #tpu.dot_dimension_numbers<[1], [0], [0], [1], [0, 0, 1, 1], [], []>} : vector<16x128xf32>, vector<128x16xf32>, vector<16x16xf32> -> vector<16x16xf32>
    %c192 = arith.constant 192 : index
    %c0_85 = arith.constant 0 : index
    %165 = vector.load %arg6[%c192, %c0_85] : memref<728x32xf32, #tpu.memory_space<vmem>>, vector<16x32xf32>
    %cst_86 = arith.constant dense<0.000000e+00> : vector<16x32xf32>
    %166 = tpu.matmul %31, %165, %cst_86 {dimension_numbers = #tpu.dot_dimension_numbers<[1], [0], [0], [1], [0, 0, 1, 1], [], []>} : vector<16x16xf32>, vector<16x32xf32>, vector<16x32xf32> -> vector<16x32xf32>
    %c208 = arith.constant 208 : index
    %c0_87 = arith.constant 0 : index
    %167 = vector.load %arg6[%c208, %c0_87] : memref<728x32xf32, #tpu.memory_space<vmem>>, vector<4x32xf32>
    %cst_88 = arith.constant dense<0.000000e+00> : vector<16x32xf32>
    %168 = tpu.matmul %0, %167, %cst_88 {dimension_numbers = #tpu.dot_dimension_numbers<[1], [0], [0], [1], [0, 0, 1, 1], [], []>} : vector<16x4xf32>, vector<4x32xf32>, vector<16x32xf32> -> vector<16x32xf32>
    %169 = arith.addf %166, %168 : vector<16x32xf32>
    %c216 = arith.constant 216 : index
    %c0_89 = arith.constant 0 : index
    %170 = vector.load %arg6[%c216, %c0_89] : memref<728x32xf32, #tpu.memory_space<vmem>>, vector<16x32xf32>
    %cst_90 = arith.constant dense<0.000000e+00> : vector<16x32xf32>
    %171 = tpu.matmul %164, %170, %cst_90 {dimension_numbers = #tpu.dot_dimension_numbers<[1], [0], [0], [1], [0, 0, 1, 1], [], []>} : vector<16x16xf32>, vector<16x32xf32>, vector<16x32xf32> -> vector<16x32xf32>
    %172 = arith.addf %169, %171 : vector<16x32xf32>
    %c8 = arith.constant 8 : index
    %c0_91 = arith.constant 0 : index
    %173 = vector.load %arg7[%c8, %c0_91] : memref<32x32xf32, #tpu.memory_space<vmem>>, vector<1x32xf32>
    %174 = vector.broadcast %173 : vector<1x32xf32> to vector<16x32xf32>
    %175 = arith.addf %172, %174 : vector<16x32xf32>
    %176 = arith.negf %175 : vector<16x32xf32>
    %177 = math.exp %176 : vector<16x32xf32>
    %cst_92 = arith.constant 1.000000e+00 : f32
    %178 = vector.broadcast %cst_92 : f32 to vector<16x32xf32>
    %179 = arith.addf %178, %177 : vector<16x32xf32>
    %180 = arith.divf %178, %179 : vector<16x32xf32>
    %181 = arith.mulf %175, %180 : vector<16x32xf32>
    %c232 = arith.constant 232 : index
    %c0_93 = arith.constant 0 : index
    %182 = vector.load %arg6[%c232, %c0_93] : memref<728x32xf32, #tpu.memory_space<vmem>>, vector<32x32xf32>
    %cst_94 = arith.constant dense<0.000000e+00> : vector<16x32xf32>
    %183 = tpu.matmul %181, %182, %cst_94 {dimension_numbers = #tpu.dot_dimension_numbers<[1], [0], [0], [1], [0, 0, 1, 1], [], []>} : vector<16x32xf32>, vector<32x32xf32>, vector<16x32xf32> -> vector<16x32xf32>
    %c11 = arith.constant 11 : index
    %c0_95 = arith.constant 0 : index
    %184 = vector.load %arg7[%c11, %c0_95] : memref<32x32xf32, #tpu.memory_space<vmem>>, vector<1x32xf32>
    %185 = vector.broadcast %184 : vector<1x32xf32> to vector<16x32xf32>
    %186 = arith.addf %183, %185 : vector<16x32xf32>
    %187 = arith.negf %186 : vector<16x32xf32>
    %188 = math.exp %187 : vector<16x32xf32>
    %cst_96 = arith.constant 1.000000e+00 : f32
    %189 = vector.broadcast %cst_96 : f32 to vector<16x32xf32>
    %190 = arith.addf %189, %188 : vector<16x32xf32>
    %191 = arith.divf %189, %190 : vector<16x32xf32>
    %192 = arith.mulf %186, %191 : vector<16x32xf32>
    %c264 = arith.constant 264 : index
    %c0_97 = arith.constant 0 : index
    %193 = vector.load %arg6[%c264, %c0_97] : memref<728x32xf32, #tpu.memory_space<vmem>>, vector<32x32xf32>
    %cst_98 = arith.constant dense<0.000000e+00> : vector<16x32xf32>
    %194 = tpu.matmul %192, %193, %cst_98 {dimension_numbers = #tpu.dot_dimension_numbers<[1], [0], [0], [1], [0, 0, 1, 1], [], []>} : vector<16x32xf32>, vector<32x32xf32>, vector<16x32xf32> -> vector<16x32xf32>
    %c12 = arith.constant 12 : index
    %c0_99 = arith.constant 0 : index
    %195 = vector.load %arg7[%c12, %c0_99] : memref<32x32xf32, #tpu.memory_space<vmem>>, vector<1x32xf32>
    %196 = vector.broadcast %195 : vector<1x32xf32> to vector<16x32xf32>
    %197 = arith.addf %194, %196 : vector<16x32xf32>
    %198 = arith.negf %197 : vector<16x32xf32>
    %199 = math.exp %198 : vector<16x32xf32>
    %cst_100 = arith.constant 1.000000e+00 : f32
    %200 = vector.broadcast %cst_100 : f32 to vector<16x32xf32>
    %201 = arith.addf %200, %199 : vector<16x32xf32>
    %202 = arith.divf %200, %201 : vector<16x32xf32>
    %203 = arith.mulf %197, %202 : vector<16x32xf32>
    %c296 = arith.constant 296 : index
    %c0_101 = arith.constant 0 : index
    %204 = vector.load %arg6[%c296, %c0_101] : memref<728x32xf32, #tpu.memory_space<vmem>>, vector<32x4xf32>
    %cst_102 = arith.constant dense<0.000000e+00> : vector<16x4xf32>
    %205 = tpu.matmul %203, %204, %cst_102 {dimension_numbers = #tpu.dot_dimension_numbers<[1], [0], [0], [1], [0, 0, 1, 1], [], []>} : vector<16x32xf32>, vector<32x4xf32>, vector<16x4xf32> -> vector<16x4xf32>
    %c13 = arith.constant 13 : index
    %c0_103 = arith.constant 0 : index
    %206 = vector.load %arg7[%c13, %c0_103] : memref<32x32xf32, #tpu.memory_space<vmem>>, vector<1x4xf32>
    %207 = vector.broadcast %206 : vector<1x4xf32> to vector<16x4xf32>
    %208 = arith.addf %205, %207 : vector<16x4xf32>
    %209 = arith.negf %208 : vector<16x4xf32>
    %210 = math.exp %209 : vector<16x4xf32>
    %cst_104 = arith.constant 1.000000e+00 : f32
    %211 = vector.broadcast %cst_104 : f32 to vector<16x4xf32>
    %212 = arith.addf %211, %210 : vector<16x4xf32>
    %213 = arith.divf %211, %212 : vector<16x4xf32>
    %214 = arith.mulf %208, %213 : vector<16x4xf32>
    %215 = arith.addf %0, %214 : vector<16x4xf32>
    %c328 = arith.constant 328 : index
    %c0_105 = arith.constant 0 : index
    %216 = vector.load %arg6[%c328, %c0_105] : memref<728x32xf32, #tpu.memory_space<vmem>>, vector<4x32xf32>
    %cst_106 = arith.constant dense<0.000000e+00> : vector<16x32xf32>
    %217 = tpu.matmul %215, %216, %cst_106 {dimension_numbers = #tpu.dot_dimension_numbers<[1], [0], [0], [1], [0, 0, 1, 1], [], []>} : vector<16x4xf32>, vector<4x32xf32>, vector<16x32xf32> -> vector<16x32xf32>
    %c336 = arith.constant 336 : index
    %c0_107 = arith.constant 0 : index
    %218 = vector.load %arg6[%c336, %c0_107] : memref<728x32xf32, #tpu.memory_space<vmem>>, vector<4x32xf32>
    %cst_108 = arith.constant dense<0.000000e+00> : vector<16x32xf32>
    %219 = tpu.matmul %215, %218, %cst_108 {dimension_numbers = #tpu.dot_dimension_numbers<[1], [0], [0], [1], [0, 0, 1, 1], [], []>} : vector<16x4xf32>, vector<4x32xf32>, vector<16x32xf32> -> vector<16x32xf32>
    %220 = tpu.concatenate %217, %219 in 0 : vector<16x32xf32>, vector<16x32xf32> -> vector<32x32xf32>
    %cst_109 = arith.constant dense<0.000000e+00> : vector<128x32xf32>
    %221 = tpu.matmul %2, %220, %cst_109 {dimension_numbers = #tpu.dot_dimension_numbers<[1], [0], [0], [1], [0, 0, 1, 1], [], []>} : vector<128x32xf32>, vector<32x32xf32>, vector<128x32xf32> -> vector<128x32xf32>
    %c14 = arith.constant 14 : index
    %c0_110 = arith.constant 0 : index
    %222 = vector.load %arg7[%c14, %c0_110] : memref<32x32xf32, #tpu.memory_space<vmem>>, vector<1x32xf32>
    %223 = vector.broadcast %222 : vector<1x32xf32> to vector<128x32xf32>
    %224 = arith.addf %221, %223 : vector<128x32xf32>
    %225 = arith.negf %224 : vector<128x32xf32>
    %226 = math.exp %225 : vector<128x32xf32>
    %cst_111 = arith.constant 1.000000e+00 : f32
    %227 = vector.broadcast %cst_111 : f32 to vector<128x32xf32>
    %228 = arith.addf %227, %226 : vector<128x32xf32>
    %229 = arith.divf %227, %228 : vector<128x32xf32>
    %230 = arith.mulf %224, %229 : vector<128x32xf32>
    %c0_112 = arith.constant 0 : index
    %c6_113 = arith.constant 6 : index
    %231 = vector.load %arg8[%c0_112, %c6_113] : memref<128x12xf32, #tpu.memory_space<vmem>>, vector<128x1xf32>
    %c0_114 = arith.constant 0 : index
    %c7_115 = arith.constant 7 : index
    %232 = vector.load %arg8[%c0_114, %c7_115] : memref<128x12xf32, #tpu.memory_space<vmem>>, vector<128x1xf32>
    %cst_116 = arith.constant dense<0.000000e+00> : vector<128xf32>
    %233 = vector.multi_reduction <add>, %230, %cst_116 [1] : vector<128x32xf32> to vector<128xf32>
    %234 = vector.shape_cast %233 : vector<128xf32> to vector<128x1xf32>
    %cst_117 = arith.constant 3.125000e-02 : f32
    %235 = vector.broadcast %cst_117 : f32 to vector<128x1xf32>
    %236 = arith.mulf %234, %235 : vector<128x1xf32>
    %237 = arith.mulf %230, %230 : vector<128x32xf32>
    %cst_118 = arith.constant dense<0.000000e+00> : vector<128xf32>
    %238 = vector.multi_reduction <add>, %237, %cst_118 [1] : vector<128x32xf32> to vector<128xf32>
    %239 = vector.shape_cast %238 : vector<128xf32> to vector<128x1xf32>
    %cst_119 = arith.constant 3.125000e-02 : f32
    %240 = vector.broadcast %cst_119 : f32 to vector<128x1xf32>
    %241 = arith.mulf %239, %240 : vector<128x1xf32>
    %c0_120 = arith.constant 0 : index
    %c0_121 = arith.constant 0 : index
    %242 = vector.load %arg5[%c0_120, %c0_121] : memref<128x128xf32, #tpu.memory_space<vmem>>, vector<128x128xf32>
    %cst_122 = arith.constant dense<0.000000e+00> : vector<128x1xf32>
    %243 = tpu.matmul %242, %236, %cst_122 {dimension_numbers = #tpu.dot_dimension_numbers<[1], [0], [0], [1], [0, 0, 1, 1], [], []>} : vector<128x128xf32>, vector<128x1xf32>, vector<128x1xf32> -> vector<128x1xf32>
    %c0_123 = arith.constant 0 : index
    %c0_124 = arith.constant 0 : index
    %244 = vector.load %arg5[%c0_123, %c0_124] : memref<128x128xf32, #tpu.memory_space<vmem>>, vector<128x128xf32>
    %cst_125 = arith.constant dense<0.000000e+00> : vector<128x1xf32>
    %245 = tpu.matmul %244, %241, %cst_125 {dimension_numbers = #tpu.dot_dimension_numbers<[1], [0], [0], [1], [0, 0, 1, 1], [], []>} : vector<128x128xf32>, vector<128x1xf32>, vector<128x1xf32> -> vector<128x1xf32>
    %246 = arith.mulf %243, %243 : vector<128x1xf32>
    %247 = arith.subf %245, %246 : vector<128x1xf32>
    %248 = vector.broadcast %243 : vector<128x1xf32> to vector<128x32xf32>
    %249 = arith.subf %230, %248 : vector<128x32xf32>
    %cst_126 = arith.constant 9.99999974E-6 : f32
    %250 = vector.broadcast %cst_126 : f32 to vector<128x1xf32>
    %251 = arith.addf %247, %250 : vector<128x1xf32>
    %252 = math.rsqrt %251 : vector<128x1xf32>
    %253 = vector.broadcast %252 : vector<128x1xf32> to vector<128x32xf32>
    %254 = arith.mulf %249, %253 : vector<128x32xf32>
    %255 = vector.broadcast %231 : vector<128x1xf32> to vector<128x32xf32>
    %256 = arith.mulf %254, %255 : vector<128x32xf32>
    %257 = vector.broadcast %232 : vector<128x1xf32> to vector<128x32xf32>
    %258 = arith.addf %256, %257 : vector<128x32xf32>
    %c344 = arith.constant 344 : index
    %c0_127 = arith.constant 0 : index
    %259 = vector.load %arg6[%c344, %c0_127] : memref<728x32xf32, #tpu.memory_space<vmem>>, vector<32x32xf32>
    %cst_128 = arith.constant dense<0.000000e+00> : vector<128x32xf32>
    %260 = tpu.matmul %258, %259, %cst_128 {dimension_numbers = #tpu.dot_dimension_numbers<[1], [0], [0], [1], [0, 0, 1, 1], [], []>} : vector<128x32xf32>, vector<32x32xf32>, vector<128x32xf32> -> vector<128x32xf32>
    %c16_129 = arith.constant 16 : index
    %c0_130 = arith.constant 0 : index
    %261 = vector.load %arg7[%c16_129, %c0_130] : memref<32x32xf32, #tpu.memory_space<vmem>>, vector<1x32xf32>
    %262 = vector.broadcast %261 : vector<1x32xf32> to vector<128x32xf32>
    %263 = arith.addf %260, %262 : vector<128x32xf32>
    %264 = arith.negf %263 : vector<128x32xf32>
    %265 = math.exp %264 : vector<128x32xf32>
    %cst_131 = arith.constant 1.000000e+00 : f32
    %266 = vector.broadcast %cst_131 : f32 to vector<128x32xf32>
    %267 = arith.addf %266, %265 : vector<128x32xf32>
    %268 = arith.divf %266, %267 : vector<128x32xf32>
    %269 = arith.mulf %263, %268 : vector<128x32xf32>
    %c0_132 = arith.constant 0 : index
    %c8_133 = arith.constant 8 : index
    %270 = vector.load %arg8[%c0_132, %c8_133] : memref<128x12xf32, #tpu.memory_space<vmem>>, vector<128x1xf32>
    %c0_134 = arith.constant 0 : index
    %c9 = arith.constant 9 : index
    %271 = vector.load %arg8[%c0_134, %c9] : memref<128x12xf32, #tpu.memory_space<vmem>>, vector<128x1xf32>
    %cst_135 = arith.constant dense<0.000000e+00> : vector<128xf32>
    %272 = vector.multi_reduction <add>, %269, %cst_135 [1] : vector<128x32xf32> to vector<128xf32>
    %273 = vector.shape_cast %272 : vector<128xf32> to vector<128x1xf32>
    %cst_136 = arith.constant 3.125000e-02 : f32
    %274 = vector.broadcast %cst_136 : f32 to vector<128x1xf32>
    %275 = arith.mulf %273, %274 : vector<128x1xf32>
    %276 = arith.mulf %269, %269 : vector<128x32xf32>
    %cst_137 = arith.constant dense<0.000000e+00> : vector<128xf32>
    %277 = vector.multi_reduction <add>, %276, %cst_137 [1] : vector<128x32xf32> to vector<128xf32>
    %278 = vector.shape_cast %277 : vector<128xf32> to vector<128x1xf32>
    %cst_138 = arith.constant 3.125000e-02 : f32
    %279 = vector.broadcast %cst_138 : f32 to vector<128x1xf32>
    %280 = arith.mulf %278, %279 : vector<128x1xf32>
    %c0_139 = arith.constant 0 : index
    %c0_140 = arith.constant 0 : index
    %281 = vector.load %arg5[%c0_139, %c0_140] : memref<128x128xf32, #tpu.memory_space<vmem>>, vector<128x128xf32>
    %cst_141 = arith.constant dense<0.000000e+00> : vector<128x1xf32>
    %282 = tpu.matmul %281, %275, %cst_141 {dimension_numbers = #tpu.dot_dimension_numbers<[1], [0], [0], [1], [0, 0, 1, 1], [], []>} : vector<128x128xf32>, vector<128x1xf32>, vector<128x1xf32> -> vector<128x1xf32>
    %c0_142 = arith.constant 0 : index
    %c0_143 = arith.constant 0 : index
    %283 = vector.load %arg5[%c0_142, %c0_143] : memref<128x128xf32, #tpu.memory_space<vmem>>, vector<128x128xf32>
    %cst_144 = arith.constant dense<0.000000e+00> : vector<128x1xf32>
    %284 = tpu.matmul %283, %280, %cst_144 {dimension_numbers = #tpu.dot_dimension_numbers<[1], [0], [0], [1], [0, 0, 1, 1], [], []>} : vector<128x128xf32>, vector<128x1xf32>, vector<128x1xf32> -> vector<128x1xf32>
    %285 = arith.mulf %282, %282 : vector<128x1xf32>
    %286 = arith.subf %284, %285 : vector<128x1xf32>
    %287 = vector.broadcast %282 : vector<128x1xf32> to vector<128x32xf32>
    %288 = arith.subf %269, %287 : vector<128x32xf32>
    %cst_145 = arith.constant 9.99999974E-6 : f32
    %289 = vector.broadcast %cst_145 : f32 to vector<128x1xf32>
    %290 = arith.addf %286, %289 : vector<128x1xf32>
    %291 = math.rsqrt %290 : vector<128x1xf32>
    %292 = vector.broadcast %291 : vector<128x1xf32> to vector<128x32xf32>
    %293 = arith.mulf %288, %292 : vector<128x32xf32>
    %294 = vector.broadcast %270 : vector<128x1xf32> to vector<128x32xf32>
    %295 = arith.mulf %293, %294 : vector<128x32xf32>
    %296 = vector.broadcast %271 : vector<128x1xf32> to vector<128x32xf32>
    %297 = arith.addf %295, %296 : vector<128x32xf32>
    %c376 = arith.constant 376 : index
    %c0_146 = arith.constant 0 : index
    %298 = vector.load %arg6[%c376, %c0_146] : memref<728x32xf32, #tpu.memory_space<vmem>>, vector<32x32xf32>
    %cst_147 = arith.constant dense<0.000000e+00> : vector<128x32xf32>
    %299 = tpu.matmul %297, %298, %cst_147 {dimension_numbers = #tpu.dot_dimension_numbers<[1], [0], [0], [1], [0, 0, 1, 1], [], []>} : vector<128x32xf32>, vector<32x32xf32>, vector<128x32xf32> -> vector<128x32xf32>
    %c17 = arith.constant 17 : index
    %c0_148 = arith.constant 0 : index
    %300 = vector.load %arg7[%c17, %c0_148] : memref<32x32xf32, #tpu.memory_space<vmem>>, vector<1x32xf32>
    %301 = vector.broadcast %300 : vector<1x32xf32> to vector<128x32xf32>
    %302 = arith.addf %299, %301 : vector<128x32xf32>
    %303 = arith.negf %302 : vector<128x32xf32>
    %304 = math.exp %303 : vector<128x32xf32>
    %cst_149 = arith.constant 1.000000e+00 : f32
    %305 = vector.broadcast %cst_149 : f32 to vector<128x32xf32>
    %306 = arith.addf %305, %304 : vector<128x32xf32>
    %307 = arith.divf %305, %306 : vector<128x32xf32>
    %308 = arith.mulf %302, %307 : vector<128x32xf32>
    %c0_150 = arith.constant 0 : index
    %c10 = arith.constant 10 : index
    %309 = vector.load %arg8[%c0_150, %c10] : memref<128x12xf32, #tpu.memory_space<vmem>>, vector<128x1xf32>
    %c0_151 = arith.constant 0 : index
    %c11_152 = arith.constant 11 : index
    %310 = vector.load %arg8[%c0_151, %c11_152] : memref<128x12xf32, #tpu.memory_space<vmem>>, vector<128x1xf32>
    %cst_153 = arith.constant dense<0.000000e+00> : vector<128xf32>
    %311 = vector.multi_reduction <add>, %308, %cst_153 [1] : vector<128x32xf32> to vector<128xf32>
    %312 = vector.shape_cast %311 : vector<128xf32> to vector<128x1xf32>
    %cst_154 = arith.constant 3.125000e-02 : f32
    %313 = vector.broadcast %cst_154 : f32 to vector<128x1xf32>
    %314 = arith.mulf %312, %313 : vector<128x1xf32>
    %315 = arith.mulf %308, %308 : vector<128x32xf32>
    %cst_155 = arith.constant dense<0.000000e+00> : vector<128xf32>
    %316 = vector.multi_reduction <add>, %315, %cst_155 [1] : vector<128x32xf32> to vector<128xf32>
    %317 = vector.shape_cast %316 : vector<128xf32> to vector<128x1xf32>
    %cst_156 = arith.constant 3.125000e-02 : f32
    %318 = vector.broadcast %cst_156 : f32 to vector<128x1xf32>
    %319 = arith.mulf %317, %318 : vector<128x1xf32>
    %c0_157 = arith.constant 0 : index
    %c0_158 = arith.constant 0 : index
    %320 = vector.load %arg5[%c0_157, %c0_158] : memref<128x128xf32, #tpu.memory_space<vmem>>, vector<128x128xf32>
    %cst_159 = arith.constant dense<0.000000e+00> : vector<128x1xf32>
    %321 = tpu.matmul %320, %314, %cst_159 {dimension_numbers = #tpu.dot_dimension_numbers<[1], [0], [0], [1], [0, 0, 1, 1], [], []>} : vector<128x128xf32>, vector<128x1xf32>, vector<128x1xf32> -> vector<128x1xf32>
    %c0_160 = arith.constant 0 : index
    %c0_161 = arith.constant 0 : index
    %322 = vector.load %arg5[%c0_160, %c0_161] : memref<128x128xf32, #tpu.memory_space<vmem>>, vector<128x128xf32>
    %cst_162 = arith.constant dense<0.000000e+00> : vector<128x1xf32>
    %323 = tpu.matmul %322, %319, %cst_162 {dimension_numbers = #tpu.dot_dimension_numbers<[1], [0], [0], [1], [0, 0, 1, 1], [], []>} : vector<128x128xf32>, vector<128x1xf32>, vector<128x1xf32> -> vector<128x1xf32>
    %324 = arith.mulf %321, %321 : vector<128x1xf32>
    %325 = arith.subf %323, %324 : vector<128x1xf32>
    %326 = vector.broadcast %321 : vector<128x1xf32> to vector<128x32xf32>
    %327 = arith.subf %308, %326 : vector<128x32xf32>
    %cst_163 = arith.constant 9.99999974E-6 : f32
    %328 = vector.broadcast %cst_163 : f32 to vector<128x1xf32>
    %329 = arith.addf %325, %328 : vector<128x1xf32>
    %330 = math.rsqrt %329 : vector<128x1xf32>
    %331 = vector.broadcast %330 : vector<128x1xf32> to vector<128x32xf32>
    %332 = arith.mulf %327, %331 : vector<128x32xf32>
    %333 = vector.broadcast %309 : vector<128x1xf32> to vector<128x32xf32>
    %334 = arith.mulf %332, %333 : vector<128x32xf32>
    %335 = vector.broadcast %310 : vector<128x1xf32> to vector<128x32xf32>
    %336 = arith.addf %334, %335 : vector<128x32xf32>
    %c408 = arith.constant 408 : index
    %c0_164 = arith.constant 0 : index
    %337 = vector.load %arg6[%c408, %c0_164] : memref<728x32xf32, #tpu.memory_space<vmem>>, vector<32x16xf32>
    %cst_165 = arith.constant dense<0.000000e+00> : vector<128x16xf32>
    %338 = tpu.matmul %336, %337, %cst_165 {dimension_numbers = #tpu.dot_dimension_numbers<[1], [0], [0], [1], [0, 0, 1, 1], [], []>} : vector<128x32xf32>, vector<32x16xf32>, vector<128x16xf32> -> vector<128x16xf32>
    %c18 = arith.constant 18 : index
    %c0_166 = arith.constant 0 : index
    %339 = vector.load %arg7[%c18, %c0_166] : memref<32x32xf32, #tpu.memory_space<vmem>>, vector<1x16xf32>
    %340 = vector.broadcast %339 : vector<1x16xf32> to vector<128x16xf32>
    %341 = arith.addf %338, %340 : vector<128x16xf32>
    %342 = arith.negf %341 : vector<128x16xf32>
    %343 = math.exp %342 : vector<128x16xf32>
    %cst_167 = arith.constant 1.000000e+00 : f32
    %344 = vector.broadcast %cst_167 : f32 to vector<128x16xf32>
    %345 = arith.addf %344, %343 : vector<128x16xf32>
    %346 = arith.divf %344, %345 : vector<128x16xf32>
    %347 = arith.mulf %341, %346 : vector<128x16xf32>
    %cst_168 = arith.constant dense<0.000000e+00> : vector<16x16xf32>
    %348 = tpu.matmul %3, %347, %cst_168 {dimension_numbers = #tpu.dot_dimension_numbers<[1], [0], [0], [1], [0, 0, 1, 1], [], []>} : vector<16x128xf32>, vector<128x16xf32>, vector<16x16xf32> -> vector<16x16xf32>
    %c440 = arith.constant 440 : index
    %c0_169 = arith.constant 0 : index
    %349 = vector.load %arg6[%c440, %c0_169] : memref<728x32xf32, #tpu.memory_space<vmem>>, vector<16x32xf32>
    %cst_170 = arith.constant dense<0.000000e+00> : vector<16x32xf32>
    %350 = tpu.matmul %31, %349, %cst_170 {dimension_numbers = #tpu.dot_dimension_numbers<[1], [0], [0], [1], [0, 0, 1, 1], [], []>} : vector<16x16xf32>, vector<16x32xf32>, vector<16x32xf32> -> vector<16x32xf32>
    %c456 = arith.constant 456 : index
    %c0_171 = arith.constant 0 : index
    %351 = vector.load %arg6[%c456, %c0_171] : memref<728x32xf32, #tpu.memory_space<vmem>>, vector<4x32xf32>
    %cst_172 = arith.constant dense<0.000000e+00> : vector<16x32xf32>
    %352 = tpu.matmul %215, %351, %cst_172 {dimension_numbers = #tpu.dot_dimension_numbers<[1], [0], [0], [1], [0, 0, 1, 1], [], []>} : vector<16x4xf32>, vector<4x32xf32>, vector<16x32xf32> -> vector<16x32xf32>
    %353 = arith.addf %350, %352 : vector<16x32xf32>
    %c464 = arith.constant 464 : index
    %c0_173 = arith.constant 0 : index
    %354 = vector.load %arg6[%c464, %c0_173] : memref<728x32xf32, #tpu.memory_space<vmem>>, vector<16x32xf32>
    %cst_174 = arith.constant dense<0.000000e+00> : vector<16x32xf32>
    %355 = tpu.matmul %348, %354, %cst_174 {dimension_numbers = #tpu.dot_dimension_numbers<[1], [0], [0], [1], [0, 0, 1, 1], [], []>} : vector<16x16xf32>, vector<16x32xf32>, vector<16x32xf32> -> vector<16x32xf32>
    %356 = arith.addf %353, %355 : vector<16x32xf32>
    %c19 = arith.constant 19 : index
    %c0_175 = arith.constant 0 : index
    %357 = vector.load %arg7[%c19, %c0_175] : memref<32x32xf32, #tpu.memory_space<vmem>>, vector<1x32xf32>
    %358 = vector.broadcast %357 : vector<1x32xf32> to vector<16x32xf32>
    %359 = arith.addf %356, %358 : vector<16x32xf32>
    %360 = arith.negf %359 : vector<16x32xf32>
    %361 = math.exp %360 : vector<16x32xf32>
    %cst_176 = arith.constant 1.000000e+00 : f32
    %362 = vector.broadcast %cst_176 : f32 to vector<16x32xf32>
    %363 = arith.addf %362, %361 : vector<16x32xf32>
    %364 = arith.divf %362, %363 : vector<16x32xf32>
    %365 = arith.mulf %359, %364 : vector<16x32xf32>
    %c480 = arith.constant 480 : index
    %c0_177 = arith.constant 0 : index
    %366 = vector.load %arg6[%c480, %c0_177] : memref<728x32xf32, #tpu.memory_space<vmem>>, vector<32x32xf32>
    %cst_178 = arith.constant dense<0.000000e+00> : vector<16x32xf32>
    %367 = tpu.matmul %365, %366, %cst_178 {dimension_numbers = #tpu.dot_dimension_numbers<[1], [0], [0], [1], [0, 0, 1, 1], [], []>} : vector<16x32xf32>, vector<32x32xf32>, vector<16x32xf32> -> vector<16x32xf32>
    %c22 = arith.constant 22 : index
    %c0_179 = arith.constant 0 : index
    %368 = vector.load %arg7[%c22, %c0_179] : memref<32x32xf32, #tpu.memory_space<vmem>>, vector<1x32xf32>
    %369 = vector.broadcast %368 : vector<1x32xf32> to vector<16x32xf32>
    %370 = arith.addf %367, %369 : vector<16x32xf32>
    %371 = arith.negf %370 : vector<16x32xf32>
    %372 = math.exp %371 : vector<16x32xf32>
    %cst_180 = arith.constant 1.000000e+00 : f32
    %373 = vector.broadcast %cst_180 : f32 to vector<16x32xf32>
    %374 = arith.addf %373, %372 : vector<16x32xf32>
    %375 = arith.divf %373, %374 : vector<16x32xf32>
    %376 = arith.mulf %370, %375 : vector<16x32xf32>
    %c512 = arith.constant 512 : index
    %c0_181 = arith.constant 0 : index
    %377 = vector.load %arg6[%c512, %c0_181] : memref<728x32xf32, #tpu.memory_space<vmem>>, vector<32x32xf32>
    %cst_182 = arith.constant dense<0.000000e+00> : vector<16x32xf32>
    %378 = tpu.matmul %376, %377, %cst_182 {dimension_numbers = #tpu.dot_dimension_numbers<[1], [0], [0], [1], [0, 0, 1, 1], [], []>} : vector<16x32xf32>, vector<32x32xf32>, vector<16x32xf32> -> vector<16x32xf32>
    %c23 = arith.constant 23 : index
    %c0_183 = arith.constant 0 : index
    %379 = vector.load %arg7[%c23, %c0_183] : memref<32x32xf32, #tpu.memory_space<vmem>>, vector<1x32xf32>
    %380 = vector.broadcast %379 : vector<1x32xf32> to vector<16x32xf32>
    %381 = arith.addf %378, %380 : vector<16x32xf32>
    %382 = arith.negf %381 : vector<16x32xf32>
    %383 = math.exp %382 : vector<16x32xf32>
    %cst_184 = arith.constant 1.000000e+00 : f32
    %384 = vector.broadcast %cst_184 : f32 to vector<16x32xf32>
    %385 = arith.addf %384, %383 : vector<16x32xf32>
    %386 = arith.divf %384, %385 : vector<16x32xf32>
    %387 = arith.mulf %381, %386 : vector<16x32xf32>
    %c544 = arith.constant 544 : index
    %c0_185 = arith.constant 0 : index
    %388 = vector.load %arg6[%c544, %c0_185] : memref<728x32xf32, #tpu.memory_space<vmem>>, vector<32x4xf32>
    %cst_186 = arith.constant dense<0.000000e+00> : vector<16x4xf32>
    %389 = tpu.matmul %387, %388, %cst_186 {dimension_numbers = #tpu.dot_dimension_numbers<[1], [0], [0], [1], [0, 0, 1, 1], [], []>} : vector<16x32xf32>, vector<32x4xf32>, vector<16x4xf32> -> vector<16x4xf32>
    %c24 = arith.constant 24 : index
    %c0_187 = arith.constant 0 : index
    %390 = vector.load %arg7[%c24, %c0_187] : memref<32x32xf32, #tpu.memory_space<vmem>>, vector<1x4xf32>
    %391 = vector.broadcast %390 : vector<1x4xf32> to vector<16x4xf32>
    %392 = arith.addf %389, %391 : vector<16x4xf32>
    %393 = arith.negf %392 : vector<16x4xf32>
    %394 = math.exp %393 : vector<16x4xf32>
    %cst_188 = arith.constant 1.000000e+00 : f32
    %395 = vector.broadcast %cst_188 : f32 to vector<16x4xf32>
    %396 = arith.addf %395, %394 : vector<16x4xf32>
    %397 = arith.divf %395, %396 : vector<16x4xf32>
    %398 = arith.mulf %392, %397 : vector<16x4xf32>
    %399 = arith.addf %215, %398 : vector<16x4xf32>
    %c576 = arith.constant 576 : index
    %c0_189 = arith.constant 0 : index
    %400 = vector.load %arg6[%c576, %c0_189] : memref<728x32xf32, #tpu.memory_space<vmem>>, vector<4x32xf32>
    %cst_190 = arith.constant dense<0.000000e+00> : vector<16x32xf32>
    %401 = tpu.matmul %399, %400, %cst_190 {dimension_numbers = #tpu.dot_dimension_numbers<[1], [0], [0], [1], [0, 0, 1, 1], [], []>} : vector<16x4xf32>, vector<4x32xf32>, vector<16x32xf32> -> vector<16x32xf32>
    %c25 = arith.constant 25 : index
    %c0_191 = arith.constant 0 : index
    %402 = vector.load %arg7[%c25, %c0_191] : memref<32x32xf32, #tpu.memory_space<vmem>>, vector<1x32xf32>
    %403 = vector.broadcast %402 : vector<1x32xf32> to vector<16x32xf32>
    %404 = arith.addf %401, %403 : vector<16x32xf32>
    %405 = arith.negf %404 : vector<16x32xf32>
    %406 = math.exp %405 : vector<16x32xf32>
    %cst_192 = arith.constant 1.000000e+00 : f32
    %407 = vector.broadcast %cst_192 : f32 to vector<16x32xf32>
    %408 = arith.addf %407, %406 : vector<16x32xf32>
    %409 = arith.divf %407, %408 : vector<16x32xf32>
    %410 = arith.mulf %404, %409 : vector<16x32xf32>
    %c584 = arith.constant 584 : index
    %c0_193 = arith.constant 0 : index
    %411 = vector.load %arg6[%c584, %c0_193] : memref<728x32xf32, #tpu.memory_space<vmem>>, vector<32x32xf32>
    %cst_194 = arith.constant dense<0.000000e+00> : vector<16x32xf32>
    %412 = tpu.matmul %410, %411, %cst_194 {dimension_numbers = #tpu.dot_dimension_numbers<[1], [0], [0], [1], [0, 0, 1, 1], [], []>} : vector<16x32xf32>, vector<32x32xf32>, vector<16x32xf32> -> vector<16x32xf32>
    %c26 = arith.constant 26 : index
    %c0_195 = arith.constant 0 : index
    %413 = vector.load %arg7[%c26, %c0_195] : memref<32x32xf32, #tpu.memory_space<vmem>>, vector<1x32xf32>
    %414 = vector.broadcast %413 : vector<1x32xf32> to vector<16x32xf32>
    %415 = arith.addf %412, %414 : vector<16x32xf32>
    %416 = arith.negf %415 : vector<16x32xf32>
    %417 = math.exp %416 : vector<16x32xf32>
    %cst_196 = arith.constant 1.000000e+00 : f32
    %418 = vector.broadcast %cst_196 : f32 to vector<16x32xf32>
    %419 = arith.addf %418, %417 : vector<16x32xf32>
    %420 = arith.divf %418, %419 : vector<16x32xf32>
    %421 = arith.mulf %415, %420 : vector<16x32xf32>
    %c616 = arith.constant 616 : index
    %c0_197 = arith.constant 0 : index
    %422 = vector.load %arg6[%c616, %c0_197] : memref<728x32xf32, #tpu.memory_space<vmem>>, vector<32x32xf32>
    %cst_198 = arith.constant dense<0.000000e+00> : vector<16x32xf32>
    %423 = tpu.matmul %421, %422, %cst_198 {dimension_numbers = #tpu.dot_dimension_numbers<[1], [0], [0], [1], [0, 0, 1, 1], [], []>} : vector<16x32xf32>, vector<32x32xf32>, vector<16x32xf32> -> vector<16x32xf32>
    %c27 = arith.constant 27 : index
    %c0_199 = arith.constant 0 : index
    %424 = vector.load %arg7[%c27, %c0_199] : memref<32x32xf32, #tpu.memory_space<vmem>>, vector<1x32xf32>
    %425 = vector.broadcast %424 : vector<1x32xf32> to vector<16x32xf32>
    %426 = arith.addf %423, %425 : vector<16x32xf32>
    %427 = arith.negf %426 : vector<16x32xf32>
    %428 = math.exp %427 : vector<16x32xf32>
    %cst_200 = arith.constant 1.000000e+00 : f32
    %429 = vector.broadcast %cst_200 : f32 to vector<16x32xf32>
    %430 = arith.addf %429, %428 : vector<16x32xf32>
    %431 = arith.divf %429, %430 : vector<16x32xf32>
    %432 = arith.mulf %426, %431 : vector<16x32xf32>
    %c648 = arith.constant 648 : index
    %c0_201 = arith.constant 0 : index
    %433 = vector.load %arg6[%c648, %c0_201] : memref<728x32xf32, #tpu.memory_space<vmem>>, vector<32x16xf32>
    %cst_202 = arith.constant dense<0.000000e+00> : vector<16x16xf32>
    %434 = tpu.matmul %432, %433, %cst_202 {dimension_numbers = #tpu.dot_dimension_numbers<[1], [0], [0], [1], [0, 0, 1, 1], [], []>} : vector<16x32xf32>, vector<32x16xf32>, vector<16x16xf32> -> vector<16x16xf32>
    %c28 = arith.constant 28 : index
    %c0_203 = arith.constant 0 : index
    %435 = vector.load %arg7[%c28, %c0_203] : memref<32x32xf32, #tpu.memory_space<vmem>>, vector<1x16xf32>
    %436 = vector.broadcast %435 : vector<1x16xf32> to vector<16x16xf32>
    %437 = arith.addf %434, %436 : vector<16x16xf32>
    %c680 = arith.constant 680 : index
    %c0_204 = arith.constant 0 : index
    %438 = vector.load %arg6[%c680, %c0_204] : memref<728x32xf32, #tpu.memory_space<vmem>>, vector<16x32xf32>
    %cst_205 = arith.constant dense<0.000000e+00> : vector<16x32xf32>
    %439 = tpu.matmul %437, %438, %cst_205 {dimension_numbers = #tpu.dot_dimension_numbers<[1], [0], [0], [1], [0, 0, 1, 1], [], []>} : vector<16x16xf32>, vector<16x32xf32>, vector<16x32xf32> -> vector<16x32xf32>
    %c29 = arith.constant 29 : index
    %c0_206 = arith.constant 0 : index
    %440 = vector.load %arg7[%c29, %c0_206] : memref<32x32xf32, #tpu.memory_space<vmem>>, vector<1x32xf32>
    %441 = vector.broadcast %440 : vector<1x32xf32> to vector<16x32xf32>
    %442 = arith.addf %439, %441 : vector<16x32xf32>
    %443 = arith.negf %442 : vector<16x32xf32>
    %444 = math.exp %443 : vector<16x32xf32>
    %cst_207 = arith.constant 1.000000e+00 : f32
    %445 = vector.broadcast %cst_207 : f32 to vector<16x32xf32>
    %446 = arith.addf %445, %444 : vector<16x32xf32>
    %447 = arith.divf %445, %446 : vector<16x32xf32>
    %448 = arith.mulf %442, %447 : vector<16x32xf32>
    %c696 = arith.constant 696 : index
    %c0_208 = arith.constant 0 : index
    %449 = vector.load %arg6[%c696, %c0_208] : memref<728x32xf32, #tpu.memory_space<vmem>>, vector<32x1xf32>
    %cst_209 = arith.constant dense<0.000000e+00> : vector<16x1xf32>
    %450 = tpu.matmul %448, %449, %cst_209 {dimension_numbers = #tpu.dot_dimension_numbers<[1], [0], [0], [1], [0, 0, 1, 1], [], []>} : vector<16x32xf32>, vector<32x1xf32>, vector<16x1xf32> -> vector<16x1xf32>
    %c30 = arith.constant 30 : index
    %c0_210 = arith.constant 0 : index
    %451 = vector.load %arg7[%c30, %c0_210] : memref<32x32xf32, #tpu.memory_space<vmem>>, vector<1x1xf32>
    %452 = vector.broadcast %451 : vector<1x1xf32> to vector<16x1xf32>
    %453 = arith.addf %450, %452 : vector<16x1xf32>
    %454 = vector.broadcast %453 : vector<16x1xf32> to vector<16x16xf32>
    %455 = arith.mulf %31, %454 : vector<16x16xf32>
    %cst_211 = arith.constant dense<0.000000e+00> : vector<2x16xf32>
    %456 = tpu.matmul %4, %455, %cst_211 {dimension_numbers = #tpu.dot_dimension_numbers<[1], [0], [0], [1], [0, 0, 1, 1], [], []>} : vector<2x16xf32>, vector<16x16xf32>, vector<2x16xf32> -> vector<2x16xf32>
    %c0_212 = arith.constant 0 : index
    %c0_213 = arith.constant 0 : index
    %457 = vector.load %arg9[%c0_212, %c0_213] : memref<2x16xf32, #tpu.memory_space<vmem>>, vector<2x16xf32>
    tpu.vector_store %arg9[%c0_212, %c0_213], %456 {strides = array<i32>} : memref<2x16xf32, #tpu.memory_space<vmem>>, vector<2x16xf32>,
    return
  }
}

</mosaic_0001>

<llo_original>
// kernel: forward.1
$region0: #{forward.1}
  #allocation0 [shape = 'u32[]', space=smem, size = 0x4, offset = 0x4, fixed_abs, tag = 'smem constant byte address 0x4 - core index']
  #allocation1 [shape = 'u32[144,128]{1,0:T(1,128)}', space=vmem, size = 0x12000, scoped, tag = 'internal scratch']
  %s0 = inlined_call_operand.vmem [shape: f32[16,4], index: 0, kind: input, shape index: {}]
  %s1 = inlined_call_operand.hbm [shape: f32[16,16], index: 1, kind: input, shape index: {}]
  %s2 = inlined_call_operand.hbm [shape: f32[128,32], index: 2, kind: input, shape index: {}]
  %s3 = inlined_call_operand.hbm [shape: f32[16,128], index: 3, kind: input, shape index: {}]
  %s4 = inlined_call_operand.vmem [shape: f32[2,16], index: 4, kind: input, shape index: {}]
  %s5 = inlined_call_operand.hbm [shape: f32[128,128], index: 5, kind: input, shape index: {}]
  %s6 = inlined_call_operand.hbm [shape: f32[728,32], index: 6, kind: input, shape index: {}]
  %s7 = inlined_call_operand.vmem [shape: f32[32,32], index: 7, kind: input, shape index: {}]
  %s8 = inlined_call_operand.hbm [shape: f32[128,12], index: 8, kind: input, shape index: {}]
  %s9 = inlined_call_operand.hbm [shape: f32[2,16], index: 9, kind: output, shape index: {}]
  %s10 = sld [smem:[#allocation0]]
  $region70: #{forward.1} parent=0
    _
  %s12 = ssub.s32 1, %s10
  %s13 = scalar_select 0, %s12, %s10
  $region1: #{forward.1} parent=0
    #allocation2 [shape = 'u8[8192]{0}', space=vmem, size = 0x2000, scoped, tag = 'input window, operand 1, single buffered']
    #allocation3 [shape = 's32[1]{0}', space=sflag, size = 0x4, scoped, tag = 'scoped memory for forward.1']
    #allocation4 [shape = 's32[1]{0}', space=sflag, size = 0x4, scoped, tag = 'scoped memory for forward.1']
    #allocation5 [shape = 'u8[65536]{0}', space=vmem, size = 0x10000, scoped, tag = 'input window, operand 2, single buffered']
    #allocation6 [shape = 's32[1]{0}', space=sflag, size = 0x4, scoped, tag = 'scoped memory for forward.1']
    #allocation7 [shape = 'u8[8192]{0}', space=vmem, size = 0x2000, scoped, tag = 'input window, operand 3, single buffered']
    #allocation8 [shape = 'u8[65536]{0}', space=vmem, size = 0x10000, scoped, tag = 'input window, operand 5, single buffered']
    #allocation9 [shape = 's32[1]{0}', space=sflag, size = 0x4, scoped, tag = 'scoped memory for forward.1']
    #allocation10 [shape = 'u8[372736]{0}', space=vmem, size = 0x5b000, scoped, tag = 'input window, operand 6, single buffered']
    #allocation11 [shape = 'u8[65536]{0}', space=vmem, size = 0x10000, scoped, tag = 'input window, operand 8, single buffered']
    #allocation12 [shape = 's32[1]{0}', space=sflag, size = 0x4, scoped, tag = 'scoped memory for forward.1']
    #allocation13 [shape = 'u8[1024]{0}', space=vmem, size = 0x400, scoped, tag = 'output window, operand 0, single buffered']
    %14 = vsyncpa [#allocation3], 0
    %15 = vsyncpa [#allocation6], 0
    %16 = vsyncpa [#allocation9], 0
    %17 = vsyncpa [#allocation12], 0
    %18 = vsyncpa [#allocation4], 0
    // Predicated region
    $region2: #{forward.1} parent=1 // pred_check
      _
    $region3: #{forward.1} parent=1 // pred_check_branch
      %20 = sbr.rel (0) target = $region5
    $region4: #{forward.1} parent=1 // pred_region
      _
    $region5: #{forward.1} parent=1 // pred_fallthru
      _
    // Predicated region
    $region6: #{forward.1} parent=1 // pred_check
      _
    $region7: #{forward.1} parent=1 // pred_check_branch
      %22 = sbr.rel (0) target = $region9
    $region8: #{forward.1} parent=1 // pred_region
      %s24 = ssub.s32 256, 256
      %25 = vsyncadd [#allocation3], %s24
      %s26 = sshll.u32 [#allocation2], 4
      %s27 = int_to_ptr.vmem [resolvable:$true] %s26
      %32 = dma.hbm_to_vmem [thread:$0]  %s1, 256, %s27, [#allocation3], 128, 128, 8
    $region9: #{forward.1} parent=1 // pred_fallthru
      _
    // Predicated region
    $region10: #{forward.1} parent=1 // pred_check
      _
    $region11: #{forward.1} parent=1 // pred_check_branch
      %34 = sbr.rel (0) target = $region13
    $region12: #{forward.1} parent=1 // pred_region
      %s36 = ssub.s32 2048, 2048
      %37 = vsyncadd [#allocation6], %s36
      %s38 = sshll.u32 [#allocation5], 4
      %s39 = int_to_ptr.vmem [resolvable:$true] %s38
      %44 = dma.hbm_to_vmem [thread:$0]  %s2, 2048, %s39, [#allocation6], 128, 128, 8
    $region13: #{forward.1} parent=1 // pred_fallthru
      _
    // Predicated region
    $region14: #{forward.1} parent=1 // pred_check
      _
    $region15: #{forward.1} parent=1 // pred_check_branch
      %46 = sbr.rel (0) target = $region17
    $region16: #{forward.1} parent=1 // pred_region
      %s48 = ssub.s32 256, 256
      %49 = vsyncadd [#allocation6], %s48
      %s50 = sshll.u32 [#allocation7], 4
      %s51 = int_to_ptr.vmem [resolvable:$true] %s50
      %56 = dma.hbm_to_vmem [thread:$0]  %s3, 256, %s51, [#allocation6], 128, 128, 8
    $region17: #{forward.1} parent=1 // pred_fallthru
      _
    // Predicated region
    $region18: #{forward.1} parent=1 // pred_check
      _
    $region19: #{forward.1} parent=1 // pred_check_branch
      %58 = sbr.rel (0) target = $region21
    $region20: #{forward.1} parent=1 // pred_region
      _
    $region21: #{forward.1} parent=1 // pred_fallthru
      _
    // Predicated region
    $region22: #{forward.1} parent=1 // pred_check
      _
    $region23: #{forward.1} parent=1 // pred_check_branch
      %60 = sbr.rel (0) target = $region25
    $region24: #{forward.1} parent=1 // pred_region
      %s62 = ssub.s32 2048, 2048
      %63 = vsyncadd [#allocation9], %s62
      %s64 = sshll.u32 [#allocation8], 4
      %s65 = int_to_ptr.vmem [resolvable:$true] %s64
      %70 = dma.hbm_to_vmem [thread:$0]  %s5, 2048, %s65, [#allocation9], 128, 128, 8
    $region25: #{forward.1} parent=1 // pred_fallthru
      _
    // Predicated region
    $region26: #{forward.1} parent=1 // pred_check
      _
    $region27: #{forward.1} parent=1 // pred_check_branch
      %72 = sbr.rel (0) target = $region29
    $region28: #{forward.1} parent=1 // pred_region
      %s74 = ssub.s32 11648, 11648
      %75 = vsyncadd [#allocation9], %s74
      %s76 = sshll.u32 [#allocation10], 4
      %s77 = int_to_ptr.vmem [resolvable:$true] %s76
      %82 = dma.hbm_to_vmem [thread:$0]  %s6, 11648, %s77, [#allocation9], 128, 128, 8
    $region29: #{forward.1} parent=1 // pred_fallthru
      _
    // Predicated region
    $region30: #{forward.1} parent=1 // pred_check
      _
    $region31: #{forward.1} parent=1 // pred_check_branch
      %84 = sbr.rel (0) target = $region33
    $region32: #{forward.1} parent=1 // pred_region
      _
    $region33: #{forward.1} parent=1 // pred_fallthru
      _
    // Predicated region
    $region34: #{forward.1} parent=1 // pred_check
      _
    $region35: #{forward.1} parent=1 // pred_check_branch
      %86 = sbr.rel (0) target = $region37
    $region36: #{forward.1} parent=1 // pred_region
      %s88 = ssub.s32 2048, 2048
      %89 = vsyncadd [#allocation12], %s88
      %s90 = sshll.u32 [#allocation11], 4
      %s91 = int_to_ptr.vmem [resolvable:$true] %s90
      %96 = dma.hbm_to_vmem [thread:$0]  %s8, 2048, %s91, [#allocation12], 128, 128, 8
    $region37: #{forward.1} parent=1 // pred_fallthru
      _
    // Predicated region
    $region38: #{forward.1} parent=1 // pred_check
      _
    $region39: #{forward.1} parent=1 // pred_check_branch
      %98 = sbr.rel (0) target = $region41
    $region40: #{forward.1} parent=1 // pred_region
      %99 = dma.done [#allocation3], 256
    $region41: #{forward.1} parent=1 // pred_fallthru
      _
    // Predicated region
    $region42: #{forward.1} parent=1 // pred_check
      _
    $region43: #{forward.1} parent=1 // pred_check_branch
      %101 = sbr.rel (0) target = $region45
    $region44: #{forward.1} parent=1 // pred_region
      %102 = dma.done [#allocation6], 2048
    $region45: #{forward.1} parent=1 // pred_fallthru
      _
    // Predicated region
    $region46: #{forward.1} parent=1 // pred_check
      _
    $region47: #{forward.1} parent=1 // pred_check_branch
      %104 = sbr.rel (0) target = $region49
    $region48: #{forward.1} parent=1 // pred_region
      %105 = dma.done [#allocation6], 256
    $region49: #{forward.1} parent=1 // pred_fallthru
      _
    // Predicated region
    $region50: #{forward.1} parent=1 // pred_check
      _
    $region51: #{forward.1} parent=1 // pred_check_branch
      %107 = sbr.rel (0) target = $region53
    $region52: #{forward.1} parent=1 // pred_region
      %108 = dma.done [#allocation9], 2048
    $region53: #{forward.1} parent=1 // pred_fallthru
      _
    // Predicated region
    $region54: #{forward.1} parent=1 // pred_check
      _
    $region55: #{forward.1} parent=1 // pred_check_branch
      %110 = sbr.rel (0) target = $region57
    $region56: #{forward.1} parent=1 // pred_region
      %111 = dma.done [#allocation9], 11648
    $region57: #{forward.1} parent=1 // pred_fallthru
      _
    // Predicated region
    $region58: #{forward.1} parent=1 // pred_check
      _
    $region59: #{forward.1} parent=1 // pred_check_branch
      %113 = sbr.rel (0) target = $region61
    $region60: #{forward.1} parent=1 // pred_region
      %114 = dma.done [#allocation12], 2048
    $region61: #{forward.1} parent=1 // pred_fallthru
      _
    %v115 = vld [vmem:[%s0] sm:$0xff]
    %v116 = vld [vmem:[%s0 + $0x8] sm:$0xff]
    %v117 = vld [vmem:[#allocation2] sm:$0xff]
    %v118 = vld [vmem:[#allocation2 + $0x8] sm:$0xff]
    %v119 = vld [vmem:[#allocation5] sm:$0xff]
    %v120 = vld [vmem:[#allocation5 + $0x8] sm:$0xff]
    %v121 = vld [vmem:[#allocation5 + $0x10] sm:$0xff]
    %v122 = vld [vmem:[#allocation5 + $0x18] sm:$0xff]
    %v123 = vld [vmem:[#allocation5 + $0x20] sm:$0xff]
    %v124 = vld [vmem:[#allocation5 + $0x28] sm:$0xff]
    %v125 = vld [vmem:[#allocation5 + $0x30] sm:$0xff]
    %v126 = vld [vmem:[#allocation5 + $0x38] sm:$0xff]
    %v127 = vld [vmem:[#allocation5 + $0x40] sm:$0xff]
    %v128 = vld [vmem:[#allocation5 + $0x48] sm:$0xff]
    %v129 = vld [vmem:[#allocation5 + $0x50] sm:$0xff]
    %v130 = vld [vmem:[#allocation5 + $0x58] sm:$0xff]
    %v131 = vld [vmem:[#allocation5 + $0x60] sm:$0xff]
    %v132 = vld [vmem:[#allocation5 + $0x68] sm:$0xff]
    %v133 = vld [vmem:[#allocation5 + $0x70] sm:$0xff]
    %v134 = vld [vmem:[#allocation5 + $0x78] sm:$0xff]
    %v135 = vld [vmem:[#allocation7] sm:$0xff]
    %v136 = vld [vmem:[#allocation7 + $0x8] sm:$0xff]
    %v137 = vld [vmem:[%s4] sm:$0x3]
    %v138 = vld [vmem:[#allocation10] sm:$0xff]
    %v139 = vld [vmem:[#allocation10 + $0x8] sm:$0xff]
    %v140 = vld [vmem:[%s7] sm:$0x1]
    %v141 = vlaneseq
    %v142 = vshrl.u32 %v141, 7
    %v143 = vsub.s32 0, %v142
    %v144 = vrot.slane %v140, %v143
    %vm145 = vcmask 130048
    %v147 = vsel %vm145, %v117, 0
    %v150 = vsel %vm145, %v118, 0
    %152 = vmatprep.subr.mxu0 0.0
    %153 = vmatpush1.msra.mxu0 0.0
    %154 = vmatprep.subr.mxu0 0.0
    %155 = vmatpush1.msra.mxu0 0.0
    %156 = vmatprep.subr.mxu0 0.0
    %157 = vmatpush1.msra.mxu0 0.0
    %158 = vmatprep.subr.mxu0 0.0
    %159 = vmatpush1.msra.mxu0 0.0
    %160 = vmatprep.subr.mxu0 0.0
    %161 = vmatpush1.msra.mxu0 0.0
    %162 = vmatprep.subr.mxu0 0.0
    %163 = vmatpush1.msra.mxu0 0.0
    %164 = vmatprep.subr.mxu0 0.0
    %165 = vmatpush1.msra.mxu0 0.0
    %166 = vmatprep.subr.mxu0 0.0
    %167 = vmatpush1.msra.mxu0 0.0
    %168 = vmatprep.subr.mxu0 0.0
    %169 = vmatpush1.msra.mxu0 0.0
    %170 = vmatprep.subr.mxu0 0.0
    %171 = vmatpush1.msra.mxu0 0.0
    %172 = vmatprep.subr.mxu0 0.0
    %173 = vmatpush1.msra.mxu0 0.0
    %174 = vmatprep.subr.mxu0 0.0
    %175 = vmatpush1.msra.mxu0 0.0
    %176 = vmatprep.subr.mxu0 0.0
    %177 = vmatpush1.msra.mxu0 0.0
    %178 = vmatprep.subr.mxu0 0.0
    %179 = vmatpush1.msra.mxu0 0.0
    %180 = vmatprep.subr.mxu0 0.0
    %181 = vmatpush1.msra.mxu0 %v139
    %182 = vmatprep.subr.mxu0 0.0
    %183 = vmatpush1.msra.mxu0 %v138
    %184 = vmatprep.subr.mxu0 0.0
    %185 = vmatpush2.msra.mxu0 0.0
    %186 = vmatprep.subr.mxu0 0.0
    %187 = vmatpush2.msra.mxu0 0.0
    %188 = vmatprep.subr.mxu0 0.0
    %189 = vmatpush2.msra.mxu0 0.0
    %190 = vmatprep.subr.mxu0 0.0
    %191 = vmatpush2.msra.mxu0 0.0
    %192 = vmatprep.subr.mxu0 0.0
    %193 = vmatpush2.msra.mxu0 0.0
    %194 = vmatprep.subr.mxu0 0.0
    %195 = vmatpush2.msra.mxu0 0.0
    %196 = vmatprep.subr.mxu0 0.0
    %197 = vmatpush2.msra.mxu0 0.0
    %198 = vmatprep.subr.mxu0 0.0
    %199 = vmatpush2.msra.mxu0 0.0
    %200 = vmatprep.subr.mxu0 0.0
    %201 = vmatpush2.msra.mxu0 0.0
    %202 = vmatprep.subr.mxu0 0.0
    %203 = vmatpush2.msra.mxu0 0.0
    %204 = vmatprep.subr.mxu0 0.0
    %205 = vmatpush2.msra.mxu0 0.0
    %206 = vmatprep.subr.mxu0 0.0
    %207 = vmatpush2.msra.mxu0 0.0
    %208 = vmatprep.subr.mxu0 0.0
    %209 = vmatpush2.msra.mxu0 0.0
    %210 = vmatprep.subr.mxu0 0.0
    %211 = vmatpush2.msra.mxu0 0.0
    %212 = vmatprep.subr.mxu0 0.0
    %213 = vmatpush2.msra.mxu0 0.0
    %214 = vmatprep.subr.mxu0 0.0
    %215 = vmatpush2.msra.mxu0 0.0
    %216 = vmatprep.mubr.f32.mxu0 0.0
    %217 = vmatmul.mubr.f32.gmra.mxu0 %v147
    %v218 = vpop.f32.mrf.mxu0
    %v219 = vadd.f32 %v144, %v218
    %v220 = vpop.f32.mrf.mxu0
    %221 = vmatprep.mubr.f32.mxu0 0.0
    %222 = vmatmul.mubr.f32.gmra.mxu0 %v150
    %v223 = vpop.f32.mrf.mxu0
    %v224 = vadd.f32 %v144, %v223
    %v225 = vpop.f32.mrf.mxu0
    %226 = vdwg.mxu0
    %v227 = vxor.u32 %v219, 2147483648
    %v228 = vxor.u32 %v224, 2147483648
    %v229 = vmul.f32 %v227, 1.442695
    %v230 = vpow.pop %v229
    %v231 = vmul.f32 %v228, 1.442695
    %v232 = vpow.pop %v231
    %v233 = vadd.f32 %v230, 1.0
    %v234 = vadd.f32 %v232, 1.0
    %v235 = vrcp.pop %v233
    %v236 = vmul.f32 1.0, %v235
    %v237 = vrcp.pop %v234
    %v238 = vmul.f32 1.0, %v237
    %v239 = vmul.f32 %v219, %v236
    %v240 = vmul.f32 %v224, %v238
    %v241 = vld [vmem:[#allocation10 + $0x10] sm:$0xff]
    %v242 = vld [vmem:[#allocation10 + $0x18] sm:$0xff]
    %v243 = vld [vmem:[#allocation10 + $0x20] sm:$0xff]
    %v244 = vld [vmem:[#allocation10 + $0x28] sm:$0xff]
    %v245 = vld [vmem:[%s7 + $0x1] sm:$0x1]
    %v246 = vlaneseq
    %v247 = vshrl.u32 %v246, 7
    %v248 = vsub.s32 0, %v247
    %v249 = vrot.slane %v245, %v248
    %vm250 = vcmask 261120
    %v252 = vsel %vm250, %v239, 0
    %v255 = vsel %vm250, %v240, 0
    %257 = vmatprep.subr.mxu0 0.0
    %258 = vmatpush1.msra.mxu0 0.0
    %259 = vmatprep.subr.mxu0 0.0
    %260 = vmatpush1.msra.mxu0 0.0
    %261 = vmatprep.subr.mxu0 0.0
    %262 = vmatpush1.msra.mxu0 0.0
    %263 = vmatprep.subr.mxu0 0.0
    %264 = vmatpush1.msra.mxu0 0.0
    %265 = vmatprep.subr.mxu0 0.0
    %266 = vmatpush1.msra.mxu0 0.0
    %267 = vmatprep.subr.mxu0 0.0
    %268 = vmatpush1.msra.mxu0 0.0
    %269 = vmatprep.subr.mxu0 0.0
    %270 = vmatpush1.msra.mxu0 0.0
    %271 = vmatprep.subr.mxu0 0.0
    %272 = vmatpush1.msra.mxu0 0.0
    %273 = vmatprep.subr.mxu0 0.0
    %274 = vmatpush1.msra.mxu0 0.0
    %275 = vmatprep.subr.mxu0 0.0
    %276 = vmatpush1.msra.mxu0 0.0
    %277 = vmatprep.subr.mxu0 0.0
    %278 = vmatpush1.msra.mxu0 0.0
    %279 = vmatprep.subr.mxu0 0.0
    %280 = vmatpush1.msra.mxu0 0.0
    %281 = vmatprep.subr.mxu0 0.0
    %282 = vmatpush1.msra.mxu0 %v244
    %283 = vmatprep.subr.mxu0 0.0
    %284 = vmatpush1.msra.mxu0 %v243
    %285 = vmatprep.subr.mxu0 0.0
    %286 = vmatpush1.msra.mxu0 %v242
    %287 = vmatprep.subr.mxu0 0.0
    %288 = vmatpush1.msra.mxu0 %v241
    %289 = vmatprep.subr.mxu0 0.0
    %290 = vmatpush2.msra.mxu0 0.0
    %291 = vmatprep.subr.mxu0 0.0
    %292 = vmatpush2.msra.mxu0 0.0
    %293 = vmatprep.subr.mxu0 0.0
    %294 = vmatpush2.msra.mxu0 0.0
    %295 = vmatprep.subr.mxu0 0.0
    %296 = vmatpush2.msra.mxu0 0.0
    %297 = vmatprep.subr.mxu0 0.0
    %298 = vmatpush2.msra.mxu0 0.0
    %299 = vmatprep.subr.mxu0 0.0
    %300 = vmatpush2.msra.mxu0 0.0
    %301 = vmatprep.subr.mxu0 0.0
    %302 = vmatpush2.msra.mxu0 0.0
    %303 = vmatprep.subr.mxu0 0.0
    %304 = vmatpush2.msra.mxu0 0.0
    %305 = vmatprep.subr.mxu0 0.0
    %306 = vmatpush2.msra.mxu0 0.0
    %307 = vmatprep.subr.mxu0 0.0
    %308 = vmatpush2.msra.mxu0 0.0
    %309 = vmatprep.subr.mxu0 0.0
    %310 = vmatpush2.msra.mxu0 0.0
    %311 = vmatprep.subr.mxu0 0.0
    %312 = vmatpush2.msra.mxu0 0.0
    %313 = vmatprep.subr.mxu0 0.0
    %314 = vmatpush2.msra.mxu0 0.0
    %315 = vmatprep.subr.mxu0 0.0
    %316 = vmatpush2.msra.mxu0 0.0
    %317 = vmatprep.subr.mxu0 0.0
    %318 = vmatpush2.msra.mxu0 0.0
    %319 = vmatprep.subr.mxu0 0.0
    %320 = vmatpush2.msra.mxu0 0.0
    %321 = vmatprep.mubr.f32.mxu0 0.0
    %322 = vmatmul.mubr.f32.gmra.mxu0 %v252
    %v323 = vpop.f32.mrf.mxu0
    %v324 = vadd.f32 %v249, %v323
    %v325 = vpop.f32.mrf.mxu0
    %326 = vmatprep.mubr.f32.mxu0 0.0
    %327 = vmatmul.mubr.f32.gmra.mxu0 %v255
    %v328 = vpop.f32.mrf.mxu0
    %v329 = vadd.f32 %v249, %v328
    %v330 = vpop.f32.mrf.mxu0
    %331 = vdwg.mxu0
    %v332 = vxor.u32 %v324, 2147483648
    %v333 = vxor.u32 %v329, 2147483648
    %v334 = vmul.f32 %v332, 1.442695
    %v335 = vpow.pop %v334
    %v336 = vmul.f32 %v333, 1.442695
    %v337 = vpow.pop %v336
    %v338 = vadd.f32 %v335, 1.0
    %v339 = vadd.f32 %v337, 1.0
    %v340 = vrcp.pop %v338
    %v341 = vmul.f32 1.0, %v340
    %v342 = vrcp.pop %v339
    %v343 = vmul.f32 1.0, %v342
    %v344 = vmul.f32 %v324, %v341
    %v345 = vmul.f32 %v329, %v343
    %v346 = vld [vmem:[#allocation10 + $0x30] sm:$0xff]
    %v347 = vld [vmem:[#allocation10 + $0x38] sm:$0xff]
    %v348 = vld [vmem:[#allocation10 + $0x40] sm:$0xff]
    %v349 = vld [vmem:[#allocation10 + $0x48] sm:$0xff]
    %v350 = vld [vmem:[%s7 + $0x2] sm:$0x1]
    %v351 = vlaneseq
    %v352 = vshrl.u32 %v351, 7
    %v353 = vsub.s32 0, %v352
    %v354 = vrot.slane %v350, %v353
    %v356 = vsel %vm250, %v344, 0
    %v359 = vsel %vm250, %v345, 0
    %361 = vmatprep.subr.mxu0 0.0
    %362 = vmatpush1.msra.mxu0 0.0
    %363 = vmatprep.subr.mxu0 0.0
    %364 = vmatpush1.msra.mxu0 0.0
    %365 = vmatprep.subr.mxu0 0.0
    %366 = vmatpush1.msra.mxu0 0.0
    %367 = vmatprep.subr.mxu0 0.0
    %368 = vmatpush1.msra.mxu0 0.0
    %369 = vmatprep.subr.mxu0 0.0
    %370 = vmatpush1.msra.mxu0 0.0
    %371 = vmatprep.subr.mxu0 0.0
    %372 = vmatpush1.msra.mxu0 0.0
    %373 = vmatprep.subr.mxu0 0.0
    %374 = vmatpush1.msra.mxu0 0.0
    %375 = vmatprep.subr.mxu0 0.0
    %376 = vmatpush1.msra.mxu0 0.0
    %377 = vmatprep.subr.mxu0 0.0
    %378 = vmatpush1.msra.mxu0 0.0
    %379 = vmatprep.subr.mxu0 0.0
    %380 = vmatpush1.msra.mxu0 0.0
    %381 = vmatprep.subr.mxu0 0.0
    %382 = vmatpush1.msra.mxu0 0.0
    %383 = vmatprep.subr.mxu0 0.0
    %384 = vmatpush1.msra.mxu0 0.0
    %385 = vmatprep.subr.mxu0 0.0
    %386 = vmatpush1.msra.mxu0 %v349
    %387 = vmatprep.subr.mxu0 0.0
    %388 = vmatpush1.msra.mxu0 %v348
    %389 = vmatprep.subr.mxu0 0.0
    %390 = vmatpush1.msra.mxu0 %v347
    %391 = vmatprep.subr.mxu0 0.0
    %392 = vmatpush1.msra.mxu0 %v346
    %393 = vmatprep.subr.mxu0 0.0
    %394 = vmatpush2.msra.mxu0 0.0
    %395 = vmatprep.subr.mxu0 0.0
    %396 = vmatpush2.msra.mxu0 0.0
    %397 = vmatprep.subr.mxu0 0.0
    %398 = vmatpush2.msra.mxu0 0.0
    %399 = vmatprep.subr.mxu0 0.0
    %400 = vmatpush2.msra.mxu0 0.0
    %401 = vmatprep.subr.mxu0 0.0
    %402 = vmatpush2.msra.mxu0 0.0
    %403 = vmatprep.subr.mxu0 0.0
    %404 = vmatpush2.msra.mxu0 0.0
    %405 = vmatprep.subr.mxu0 0.0
    %406 = vmatpush2.msra.mxu0 0.0
    %407 = vmatprep.subr.mxu0 0.0
    %408 = vmatpush2.msra.mxu0 0.0
    %409 = vmatprep.subr.mxu0 0.0
    %410 = vmatpush2.msra.mxu0 0.0
    %411 = vmatprep.subr.mxu0 0.0
    %412 = vmatpush2.msra.mxu0 0.0
    %413 = vmatprep.subr.mxu0 0.0
    %414 = vmatpush2.msra.mxu0 0.0
    %415 = vmatprep.subr.mxu0 0.0
    %416 = vmatpush2.msra.mxu0 0.0
    %417 = vmatprep.subr.mxu0 0.0
    %418 = vmatpush2.msra.mxu0 0.0
    %419 = vmatprep.subr.mxu0 0.0
    %420 = vmatpush2.msra.mxu0 0.0
    %421 = vmatprep.subr.mxu0 0.0
    %422 = vmatpush2.msra.mxu0 0.0
    %423 = vmatprep.subr.mxu0 0.0
    %424 = vmatpush2.msra.mxu0 0.0
    %425 = vmatprep.mubr.f32.mxu0 0.0
    %426 = vmatmul.mubr.f32.gmra.mxu0 %v356
    %v427 = vpop.f32.mrf.mxu0
    %v428 = vadd.f32 %v354, %v427
    %v429 = vpop.f32.mrf.mxu0
    %430 = vmatprep.mubr.f32.mxu0 0.0
    %431 = vmatmul.mubr.f32.gmra.mxu0 %v359
    %v432 = vpop.f32.mrf.mxu0
    %v433 = vadd.f32 %v354, %v432
    %v434 = vpop.f32.mrf.mxu0
    %435 = vdwg.mxu0
    %v436 = vld [vmem:[#allocation10 + $0x50] sm:$0xf]
    %vm437 = vcmask 31744
    %v439 = vsel %vm437, %v115, 0
    %v442 = vsel %vm437, %v116, 0
    %vm444 = vcmask 1043456
    %v446 = vsel %vm444, %v436, 0
    %448 = vmatprep.subr.mxu0 0.0
    %449 = vmatpush1.msra.mxu0 0.0
    %450 = vmatprep.subr.mxu0 0.0
    %451 = vmatpush1.msra.mxu0 0.0
    %452 = vmatprep.subr.mxu0 0.0
    %453 = vmatpush1.msra.mxu0 0.0
    %454 = vmatprep.subr.mxu0 0.0
    %455 = vmatpush1.msra.mxu0 0.0
    %456 = vmatprep.subr.mxu0 0.0
    %457 = vmatpush1.msra.mxu0 0.0
    %458 = vmatprep.subr.mxu0 0.0
    %459 = vmatpush1.msra.mxu0 0.0
    %460 = vmatprep.subr.mxu0 0.0
    %461 = vmatpush1.msra.mxu0 0.0
    %462 = vmatprep.subr.mxu0 0.0
    %463 = vmatpush1.msra.mxu0 0.0
    %464 = vmatprep.subr.mxu0 0.0
    %465 = vmatpush1.msra.mxu0 0.0
    %466 = vmatprep.subr.mxu0 0.0
    %467 = vmatpush1.msra.mxu0 0.0
    %468 = vmatprep.subr.mxu0 0.0
    %469 = vmatpush1.msra.mxu0 0.0
    %470 = vmatprep.subr.mxu0 0.0
    %471 = vmatpush1.msra.mxu0 0.0
    %472 = vmatprep.subr.mxu0 0.0
    %473 = vmatpush1.msra.mxu0 0.0
    %474 = vmatprep.subr.mxu0 0.0
    %475 = vmatpush1.msra.mxu0 0.0
    %476 = vmatprep.subr.mxu0 0.0
    %477 = vmatpush1.msra.mxu0 0.0
    %478 = vmatprep.subr.mxu0 0.0
    %479 = vmatpush1.msra.mxu0 %v446
    %480 = vmatprep.subr.mxu0 0.0
    %481 = vmatpush2.msra.mxu0 0.0
    %482 = vmatprep.subr.mxu0 0.0
    %483 = vmatpush2.msra.mxu0 0.0
    %484 = vmatprep.subr.mxu0 0.0
    %485 = vmatpush2.msra.mxu0 0.0
    %486 = vmatprep.subr.mxu0 0.0
    %487 = vmatpush2.msra.mxu0 0.0
    %488 = vmatprep.subr.mxu0 0.0
    %489 = vmatpush2.msra.mxu0 0.0
    %490 = vmatprep.subr.mxu0 0.0
    %491 = vmatpush2.msra.mxu0 0.0
    %492 = vmatprep.subr.mxu0 0.0
    %493 = vmatpush2.msra.mxu0 0.0
    %494 = vmatprep.subr.mxu0 0.0
    %495 = vmatpush2.msra.mxu0 0.0
    %496 = vmatprep.subr.mxu0 0.0
    %497 = vmatpush2.msra.mxu0 0.0
    %498 = vmatprep.subr.mxu0 0.0
    %499 = vmatpush2.msra.mxu0 0.0
    %500 = vmatprep.subr.mxu0 0.0
    %501 = vmatpush2.msra.mxu0 0.0
    %502 = vmatprep.subr.mxu0 0.0
    %503 = vmatpush2.msra.mxu0 0.0
    %504 = vmatprep.subr.mxu0 0.0
    %505 = vmatpush2.msra.mxu0 0.0
    %506 = vmatprep.subr.mxu0 0.0
    %507 = vmatpush2.msra.mxu0 0.0
    %508 = vmatprep.subr.mxu0 0.0
    %509 = vmatpush2.msra.mxu0 0.0
    %510 = vmatprep.subr.mxu0 0.0
    %511 = vmatpush2.msra.mxu0 0.0
    %512 = vmatprep.mubr.f32.mxu0 0.0
    %513 = vmatmul.mubr.f32.gmra.mxu0 %v439
    %v514 = vpop.f32.mrf.mxu0
    %v515 = vadd.f32 0.0, %v514
    %v516 = vpop.f32.mrf.mxu0
    %517 = vmatprep.mubr.f32.mxu0 0.0
    %518 = vmatmul.mubr.f32.gmra.mxu0 %v442
    %v519 = vpop.f32.mrf.mxu0
    %v520 = vadd.f32 0.0, %v519
    %v521 = vpop.f32.mrf.mxu0
    %522 = vdwg.mxu0
    %v523 = vld [vmem:[#allocation10 + $0x58] sm:$0xf]
    %v525 = vsel %vm444, %v523, 0
    %527 = vmatprep.subr.mxu0 0.0
    %528 = vmatpush1.msra.mxu0 0.0
    %529 = vmatprep.subr.mxu0 0.0
    %530 = vmatpush1.msra.mxu0 0.0
    %531 = vmatprep.subr.mxu0 0.0
    %532 = vmatpush1.msra.mxu0 0.0
    %533 = vmatprep.subr.mxu0 0.0
    %534 = vmatpush1.msra.mxu0 0.0
    %535 = vmatprep.subr.mxu0 0.0
    %536 = vmatpush1.msra.mxu0 0.0
    %537 = vmatprep.subr.mxu0 0.0
    %538 = vmatpush1.msra.mxu0 0.0
    %539 = vmatprep.subr.mxu0 0.0
    %540 = vmatpush1.msra.mxu0 0.0
    %541 = vmatprep.subr.mxu0 0.0
    %542 = vmatpush1.msra.mxu0 0.0
    %543 = vmatprep.subr.mxu0 0.0
    %544 = vmatpush1.msra.mxu0 0.0
    %545 = vmatprep.subr.mxu0 0.0
    %546 = vmatpush1.msra.mxu0 0.0
    %547 = vmatprep.subr.mxu0 0.0
    %548 = vmatpush1.msra.mxu0 0.0
    %549 = vmatprep.subr.mxu0 0.0
    %550 = vmatpush1.msra.mxu0 0.0
    %551 = vmatprep.subr.mxu0 0.0
    %552 = vmatpush1.msra.mxu0 0.0
    %553 = vmatprep.subr.mxu0 0.0
    %554 = vmatpush1.msra.mxu0 0.0
    %555 = vmatprep.subr.mxu0 0.0
    %556 = vmatpush1.msra.mxu0 0.0
    %557 = vmatprep.subr.mxu0 0.0
    %558 = vmatpush1.msra.mxu0 %v525
    %559 = vmatprep.subr.mxu0 0.0
    %560 = vmatpush2.msra.mxu0 0.0
    %561 = vmatprep.subr.mxu0 0.0
    %562 = vmatpush2.msra.mxu0 0.0
    %563 = vmatprep.subr.mxu0 0.0
    %564 = vmatpush2.msra.mxu0 0.0
    %565 = vmatprep.subr.mxu0 0.0
    %566 = vmatpush2.msra.mxu0 0.0
    %567 = vmatprep.subr.mxu0 0.0
    %568 = vmatpush2.msra.mxu0 0.0
    %569 = vmatprep.subr.mxu0 0.0
    %570 = vmatpush2.msra.mxu0 0.0
    %571 = vmatprep.subr.mxu0 0.0
    %572 = vmatpush2.msra.mxu0 0.0
    %573 = vmatprep.subr.mxu0 0.0
    %574 = vmatpush2.msra.mxu0 0.0
    %575 = vmatprep.subr.mxu0 0.0
    %576 = vmatpush2.msra.mxu0 0.0
    %577 = vmatprep.subr.mxu0 0.0
    %578 = vmatpush2.msra.mxu0 0.0
    %579 = vmatprep.subr.mxu0 0.0
    %580 = vmatpush2.msra.mxu0 0.0
    %581 = vmatprep.subr.mxu0 0.0
    %582 = vmatpush2.msra.mxu0 0.0
    %583 = vmatprep.subr.mxu0 0.0
    %584 = vmatpush2.msra.mxu0 0.0
    %585 = vmatprep.subr.mxu0 0.0
    %586 = vmatpush2.msra.mxu0 0.0
    %587 = vmatprep.subr.mxu0 0.0
    %588 = vmatpush2.msra.mxu0 0.0
    %589 = vmatprep.subr.mxu0 0.0
    %590 = vmatpush2.msra.mxu0 0.0
    %591 = vmatprep.mubr.f32.mxu0 0.0
    %592 = vmatmul.mubr.f32.gmra.mxu0 %v439
    %v593 = vpop.f32.mrf.mxu0
    %v594 = vadd.f32 0.0, %v593
    %v595 = vpop.f32.mrf.mxu0
    %596 = vmatprep.mubr.f32.mxu0 0.0
    %597 = vmatmul.mubr.f32.gmra.mxu0 %v442
    %v598 = vpop.f32.mrf.mxu0
    %v599 = vadd.f32 0.0, %v598
    %v600 = vpop.f32.mrf.mxu0
    %601 = vdwg.mxu0
    %v602 = vld [vmem:[%s7 + $0x3] sm:$0x1]
    %v603 = vlaneseq
    %v604 = vshrl.u32 %v603, 7
    %v605 = vsub.s32 0, %v604
    %v606 = vrot.slane %v602, %v605
    %v608 = vsel %vm250, %v119, 0
    %v611 = vsel %vm250, %v120, 0
    %v614 = vsel %vm250, %v121, 0
    %v617 = vsel %vm250, %v122, 0
    %v620 = vsel %vm250, %v123, 0
    %v623 = vsel %vm250, %v124, 0
    %v626 = vsel %vm250, %v125, 0
    %v629 = vsel %vm250, %v126, 0
    %v632 = vsel %vm250, %v127, 0
    %v635 = vsel %vm250, %v128, 0
    %v638 = vsel %vm250, %v129, 0
    %v641 = vsel %vm250, %v130, 0
    %v644 = vsel %vm250, %v131, 0
    %v647 = vsel %vm250, %v132, 0
    %v650 = vsel %vm250, %v133, 0
    %v653 = vsel %vm250, %v134, 0
    %655 = vmatprep.subr.mxu0 0.0
    %656 = vmatpush1.msra.mxu0 0.0
    %657 = vmatprep.subr.mxu0 0.0
    %658 = vmatpush1.msra.mxu0 0.0
    %659 = vmatprep.subr.mxu0 0.0
    %660 = vmatpush1.msra.mxu0 0.0
    %661 = vmatprep.subr.mxu0 0.0
    %662 = vmatpush1.msra.mxu0 0.0
    %663 = vmatprep.subr.mxu0 0.0
    %664 = vmatpush1.msra.mxu0 0.0
    %665 = vmatprep.subr.mxu0 0.0
    %666 = vmatpush1.msra.mxu0 0.0
    %667 = vmatprep.subr.mxu0 0.0
    %668 = vmatpush1.msra.mxu0 0.0
    %669 = vmatprep.subr.mxu0 0.0
    %670 = vmatpush1.msra.mxu0 0.0
    %671 = vmatprep.subr.mxu0 0.0
    %672 = vmatpush1.msra.mxu0 0.0
    %673 = vmatprep.subr.mxu0 0.0
    %674 = vmatpush1.msra.mxu0 0.0
    %675 = vmatprep.subr.mxu0 0.0
    %676 = vmatpush1.msra.mxu0 0.0
    %677 = vmatprep.subr.mxu0 0.0
    %678 = vmatpush1.msra.mxu0 0.0
    %679 = vmatprep.subr.mxu0 0.0
    %680 = vmatpush1.msra.mxu0 %v599
    %681 = vmatprep.subr.mxu0 0.0
    %682 = vmatpush1.msra.mxu0 %v594
    %683 = vmatprep.subr.mxu0 0.0
    %684 = vmatpush1.msra.mxu0 %v520
    %685 = vmatprep.subr.mxu0 0.0
    %686 = vmatpush1.msra.mxu0 %v515
    %687 = vmatprep.subr.mxu0 0.0
    %688 = vmatpush2.msra.mxu0 0.0
    %689 = vmatprep.subr.mxu0 0.0
    %690 = vmatpush2.msra.mxu0 0.0
    %691 = vmatprep.subr.mxu0 0.0
    %692 = vmatpush2.msra.mxu0 0.0
    %693 = vmatprep.subr.mxu0 0.0
    %694 = vmatpush2.msra.mxu0 0.0
    %695 = vmatprep.subr.mxu0 0.0
    %696 = vmatpush2.msra.mxu0 0.0
    %697 = vmatprep.subr.mxu0 0.0
    %698 = vmatpush2.msra.mxu0 0.0
    %699 = vmatprep.subr.mxu0 0.0
    %700 = vmatpush2.msra.mxu0 0.0
    %701 = vmatprep.subr.mxu0 0.0
    %702 = vmatpush2.msra.mxu0 0.0
    %703 = vmatprep.subr.mxu0 0.0
    %704 = vmatpush2.msra.mxu0 0.0
    %705 = vmatprep.subr.mxu0 0.0
    %706 = vmatpush2.msra.mxu0 0.0
    %707 = vmatprep.subr.mxu0 0.0
    %708 = vmatpush2.msra.mxu0 0.0
    %709 = vmatprep.subr.mxu0 0.0
    %710 = vmatpush2.msra.mxu0 0.0
    %711 = vmatprep.subr.mxu0 0.0
    %712 = vmatpush2.msra.mxu0 0.0
    %713 = vmatprep.subr.mxu0 0.0
    %714 = vmatpush2.msra.mxu0 0.0
    %715 = vmatprep.subr.mxu0 0.0
    %716 = vmatpush2.msra.mxu0 0.0
    %717 = vmatprep.subr.mxu0 0.0
    %718 = vmatpush2.msra.mxu0 0.0
    %719 = vmatprep.mubr.f32.mxu0 0.0
    %720 = vmatmul.mubr.f32.gmra.mxu0 %v608
    %v721 = vpop.f32.mrf.mxu0
    %v722 = vadd.f32 %v606, %v721
    %v723 = vpop.f32.mrf.mxu0
    %724 = vmatprep.mubr.f32.mxu0 0.0
    %725 = vmatmul.mubr.f32.gmra.mxu0 %v611
    %v726 = vpop.f32.mrf.mxu0
    %v727 = vadd.f32 %v606, %v726
    %v728 = vpop.f32.mrf.mxu0
    %729 = vmatprep.mubr.f32.mxu0 0.0
    %730 = vmatmul.mubr.f32.gmra.mxu0 %v614
    %v731 = vpop.f32.mrf.mxu0
    %v732 = vadd.f32 %v606, %v731
    %v733 = vpop.f32.mrf.mxu0
    %734 = vmatprep.mubr.f32.mxu0 0.0
    %735 = vmatmul.mubr.f32.gmra.mxu0 %v617
    %v736 = vpop.f32.mrf.mxu0
    %v737 = vadd.f32 %v606, %v736
    %v738 = vpop.f32.mrf.mxu0
    %739 = vmatprep.mubr.f32.mxu0 0.0
    %740 = vmatmul.mubr.f32.gmra.mxu0 %v620
    %v741 = vpop.f32.mrf.mxu0
    %v742 = vadd.f32 %v606, %v741
    %v743 = vpop.f32.mrf.mxu0
    %744 = vmatprep.mubr.f32.mxu0 0.0
    %745 = vmatmul.mubr.f32.gmra.mxu0 %v623
    %v746 = vpop.f32.mrf.mxu0
    %v747 = vadd.f32 %v606, %v746
    %v748 = vpop.f32.mrf.mxu0
    %749 = vmatprep.mubr.f32.mxu0 0.0
    %750 = vmatmul.mubr.f32.gmra.mxu0 %v626
    %v751 = vpop.f32.mrf.mxu0
    %v752 = vadd.f32 %v606, %v751
    %v753 = vpop.f32.mrf.mxu0
    %754 = vmatprep.mubr.f32.mxu0 0.0
    %755 = vmatmul.mubr.f32.gmra.mxu0 %v629
    %v756 = vpop.f32.mrf.mxu0
    %v757 = vadd.f32 %v606, %v756
    %v758 = vpop.f32.mrf.mxu0
    %759 = vmatprep.mubr.f32.mxu0 0.0
    %760 = vmatmul.mubr.f32.gmra.mxu0 %v632
    %v761 = vpop.f32.mrf.mxu0
    %v762 = vadd.f32 %v606, %v761
    %v763 = vpop.f32.mrf.mxu0
    %764 = vmatprep.mubr.f32.mxu0 0.0
    %765 = vmatmul.mubr.f32.gmra.mxu0 %v635
    %v766 = vpop.f32.mrf.mxu0
    %v767 = vadd.f32 %v606, %v766
    %v768 = vpop.f32.mrf.mxu0
    %769 = vmatprep.mubr.f32.mxu0 0.0
    %770 = vmatmul.mubr.f32.gmra.mxu0 %v638
    %v771 = vpop.f32.mrf.mxu0
    %v772 = vadd.f32 %v606, %v771
    %v773 = vpop.f32.mrf.mxu0
    %774 = vmatprep.mubr.f32.mxu0 0.0
    %775 = vmatmul.mubr.f32.gmra.mxu0 %v641
    %v776 = vpop.f32.mrf.mxu0
    %v777 = vadd.f32 %v606, %v776
    %v778 = vpop.f32.mrf.mxu0
    %779 = vmatprep.mubr.f32.mxu0 0.0
    %780 = vmatmul.mubr.f32.gmra.mxu0 %v644
    %v781 = vpop.f32.mrf.mxu0
    %v782 = vadd.f32 %v606, %v781
    %v783 = vpop.f32.mrf.mxu0
    %784 = vmatprep.mubr.f32.mxu0 0.0
    %785 = vmatmul.mubr.f32.gmra.mxu0 %v647
    %v786 = vpop.f32.mrf.mxu0
    %v787 = vadd.f32 %v606, %v786
    %v788 = vpop.f32.mrf.mxu0
    %789 = vmatprep.mubr.f32.mxu0 0.0
    %790 = vmatmul.mubr.f32.gmra.mxu0 %v650
    %v791 = vpop.f32.mrf.mxu0
    %v792 = vadd.f32 %v606, %v791
    %v793 = vpop.f32.mrf.mxu0
    %794 = vmatprep.mubr.f32.mxu0 0.0
    %795 = vmatmul.mubr.f32.gmra.mxu0 %v653
    %v796 = vpop.f32.mrf.mxu0
    %v797 = vadd.f32 %v606, %v796
    %v798 = vpop.f32.mrf.mxu0
    %799 = vdwg.mxu0
    %v800 = vxor.u32 %v722, 2147483648
    %v801 = vxor.u32 %v727, 2147483648
    %v802 = vxor.u32 %v732, 2147483648
    %v803 = vxor.u32 %v737, 2147483648
    %v804 = vxor.u32 %v742, 2147483648
    %v805 = vxor.u32 %v747, 2147483648
    %v806 = vxor.u32 %v752, 2147483648
    %v807 = vxor.u32 %v757, 2147483648
    %v808 = vxor.u32 %v762, 2147483648
    %v809 = vxor.u32 %v767, 2147483648
    %v810 = vxor.u32 %v772, 2147483648
    %v811 = vxor.u32 %v777, 2147483648
    %v812 = vxor.u32 %v782, 2147483648
    %v813 = vxor.u32 %v787, 2147483648
    %v814 = vxor.u32 %v792, 2147483648
    %v815 = vxor.u32 %v797, 2147483648
    %v816 = vmul.f32 %v800, 1.442695
    %v817 = vpow.pop %v816
    %v818 = vmul.f32 %v801, 1.442695
    %v819 = vpow.pop %v818
    %v820 = vmul.f32 %v802, 1.442695
    %v821 = vpow.pop %v820
    %v822 = vmul.f32 %v803, 1.442695
    %v823 = vpow.pop %v822
    %v824 = vmul.f32 %v804, 1.442695
    %v825 = vpow.pop %v824
    %v826 = vmul.f32 %v805, 1.442695
    %v827 = vpow.pop %v826
    %v828 = vmul.f32 %v806, 1.442695
    %v829 = vpow.pop %v828
    %v830 = vmul.f32 %v807, 1.442695
    %v831 = vpow.pop %v830
    %v832 = vmul.f32 %v808, 1.442695
    %v833 = vpow.pop %v832
    %v834 = vmul.f32 %v809, 1.442695
    %v835 = vpow.pop %v834
    %v836 = vmul.f32 %v810, 1.442695
    %v837 = vpow.pop %v836
    %v838 = vmul.f32 %v811, 1.442695
    %v839 = vpow.pop %v838
    %v840 = vmul.f32 %v812, 1.442695
    %v841 = vpow.pop %v840
    %v842 = vmul.f32 %v813, 1.442695
    %v843 = vpow.pop %v842
    %v844 = vmul.f32 %v814, 1.442695
    %v845 = vpow.pop %v844
    %v846 = vmul.f32 %v815, 1.442695
    %v847 = vpow.pop %v846
    %v848 = vadd.f32 %v817, 1.0
    %v849 = vadd.f32 %v819, 1.0
    %v850 = vadd.f32 %v821, 1.0
    %v851 = vadd.f32 %v823, 1.0
    %v852 = vadd.f32 %v825, 1.0
    %v853 = vadd.f32 %v827, 1.0
    %v854 = vadd.f32 %v829, 1.0
    %v855 = vadd.f32 %v831, 1.0
    %v856 = vadd.f32 %v833, 1.0
    %v857 = vadd.f32 %v835, 1.0
    %v858 = vadd.f32 %v837, 1.0
    %v859 = vadd.f32 %v839, 1.0
    %v860 = vadd.f32 %v841, 1.0
    %v861 = vadd.f32 %v843, 1.0
    %v862 = vadd.f32 %v845, 1.0
    %v863 = vadd.f32 %v847, 1.0
    %v864 = vrcp.pop %v848
    %v865 = vmul.f32 1.0, %v864
    %v866 = vrcp.pop %v849
    %v867 = vmul.f32 1.0, %v866
    %v868 = vrcp.pop %v850
    %v869 = vmul.f32 1.0, %v868
    %v870 = vrcp.pop %v851
    %v871 = vmul.f32 1.0, %v870
    %v872 = vrcp.pop %v852
    %v873 = vmul.f32 1.0, %v872
    %v874 = vrcp.pop %v853
    %v875 = vmul.f32 1.0, %v874
    %v876 = vrcp.pop %v854
    %v877 = vmul.f32 1.0, %v876
    %v878 = vrcp.pop %v855
    %v879 = vmul.f32 1.0, %v878
    %v880 = vrcp.pop %v856
    %v881 = vmul.f32 1.0, %v880
    %v882 = vrcp.pop %v857
    %v883 = vmul.f32 1.0, %v882
    %v884 = vrcp.pop %v858
    %v885 = vmul.f32 1.0, %v884
    %v886 = vrcp.pop %v859
    %v887 = vmul.f32 1.0, %v886
    %v888 = vrcp.pop %v860
    %v889 = vmul.f32 1.0, %v888
    %v890 = vrcp.pop %v861
    %v891 = vmul.f32 1.0, %v890
    %v892 = vrcp.pop %v862
    %v893 = vmul.f32 1.0, %v892
    %v894 = vrcp.pop %v863
    %v895 = vmul.f32 1.0, %v894
    %v896 = vmul.f32 %v722, %v865
    %v897 = vmul.f32 %v727, %v867
    %v898 = vmul.f32 %v732, %v869
    %v899 = vmul.f32 %v737, %v871
    %v900 = vmul.f32 %v742, %v873
    %v901 = vmul.f32 %v747, %v875
    %v902 = vmul.f32 %v752, %v877
    %v903 = vmul.f32 %v757, %v879
    %v904 = vmul.f32 %v762, %v881
    %v905 = vmul.f32 %v767, %v883
    %v906 = vmul.f32 %v772, %v885
    %v907 = vmul.f32 %v777, %v887
    %v908 = vmul.f32 %v782, %v889
    %v909 = vmul.f32 %v787, %v891
    %v910 = vmul.f32 %v792, %v893
    %v911 = vmul.f32 %v797, %v895
    %v912 = vld [vmem:[#allocation11] sm:$0xff]
    %v913 = vld [vmem:[#allocation11 + $0x8] sm:$0xff]
    %v914 = vld [vmem:[#allocation11 + $0x10] sm:$0xff]
    %v915 = vld [vmem:[#allocation11 + $0x18] sm:$0xff]
    %v916 = vld [vmem:[#allocation11 + $0x20] sm:$0xff]
    %v917 = vld [vmem:[#allocation11 + $0x28] sm:$0xff]
    %v918 = vld [vmem:[#allocation11 + $0x30] sm:$0xff]
    %v919 = vld [vmem:[#allocation11 + $0x38] sm:$0xff]
    %v920 = vld [vmem:[#allocation11 + $0x40] sm:$0xff]
    %v921 = vld [vmem:[#allocation11 + $0x48] sm:$0xff]
    %v922 = vld [vmem:[#allocation11 + $0x50] sm:$0xff]
    %v923 = vld [vmem:[#allocation11 + $0x58] sm:$0xff]
    %v924 = vld [vmem:[#allocation11 + $0x60] sm:$0xff]
    %v925 = vld [vmem:[#allocation11 + $0x68] sm:$0xff]
    %v926 = vld [vmem:[#allocation11 + $0x70] sm:$0xff]
    %v927 = vld [vmem:[#allocation11 + $0x78] sm:$0xff]
    %v928 = vsel %vm250, %v896, 0.0
    %929 = vadd.xlane.f32.xlu0 %v928
    %v930 = vpop.xlane.xlu0 %929
    %v931 = vsel %vm250, %v897, 0.0
    %932 = vadd.xlane.f32.xlu0 %v931
    %v933 = vpop.xlane.xlu0 %932
    %v934 = vsel %vm250, %v898, 0.0
    %935 = vadd.xlane.f32.xlu0 %v934
    %v936 = vpop.xlane.xlu0 %935
    %v937 = vsel %vm250, %v899, 0.0
    %938 = vadd.xlane.f32.xlu0 %v937
    %v939 = vpop.xlane.xlu0 %938
    %v940 = vsel %vm250, %v900, 0.0
    %941 = vadd.xlane.f32.xlu0 %v940
    %v942 = vpop.xlane.xlu0 %941
    %v943 = vsel %vm250, %v901, 0.0
    %944 = vadd.xlane.f32.xlu0 %v943
    %v945 = vpop.xlane.xlu0 %944
    %v946 = vsel %vm250, %v902, 0.0
    %947 = vadd.xlane.f32.xlu0 %v946
    %v948 = vpop.xlane.xlu0 %947
    %v949 = vsel %vm250, %v903, 0.0
    %950 = vadd.xlane.f32.xlu0 %v949
    %v951 = vpop.xlane.xlu0 %950
    %v952 = vsel %vm250, %v904, 0.0
    %953 = vadd.xlane.f32.xlu0 %v952
    %v954 = vpop.xlane.xlu0 %953
    %v955 = vsel %vm250, %v905, 0.0
    %956 = vadd.xlane.f32.xlu0 %v955
    %v957 = vpop.xlane.xlu0 %956
    %v958 = vsel %vm250, %v906, 0.0
    %959 = vadd.xlane.f32.xlu0 %v958
    %v960 = vpop.xlane.xlu0 %959
    %v961 = vsel %vm250, %v907, 0.0
    %962 = vadd.xlane.f32.xlu0 %v961
    %v963 = vpop.xlane.xlu0 %962
    %v964 = vsel %vm250, %v908, 0.0
    %965 = vadd.xlane.f32.xlu0 %v964
    %v966 = vpop.xlane.xlu0 %965
    %v967 = vsel %vm250, %v909, 0.0
    %968 = vadd.xlane.f32.xlu0 %v967
    %v969 = vpop.xlane.xlu0 %968
    %v970 = vsel %vm250, %v910, 0.0
    %971 = vadd.xlane.f32.xlu0 %v970
    %v972 = vpop.xlane.xlu0 %971
    %v973 = vsel %vm250, %v911, 0.0
    %974 = vadd.xlane.f32.xlu0 %v973
    %v975 = vpop.xlane.xlu0 %974
    %v976 = vmul.f32 %v930, 0.03125
    %v977 = vmul.f32 %v933, 0.03125
    %v978 = vmul.f32 %v936, 0.03125
    %v979 = vmul.f32 %v939, 0.03125
    %v980 = vmul.f32 %v942, 0.03125
    %v981 = vmul.f32 %v945, 0.03125
    %v982 = vmul.f32 %v948, 0.03125
    %v983 = vmul.f32 %v951, 0.03125
    %v984 = vmul.f32 %v954, 0.03125
    %v985 = vmul.f32 %v957, 0.03125
    %v986 = vmul.f32 %v960, 0.03125
    %v987 = vmul.f32 %v963, 0.03125
    %v988 = vmul.f32 %v966, 0.03125
    %v989 = vmul.f32 %v969, 0.03125
    %v990 = vmul.f32 %v972, 0.03125
    %v991 = vmul.f32 %v975, 0.03125
    %v992 = vmul.f32 %v896, %v896
    %v993 = vmul.f32 %v897, %v897
    %v994 = vmul.f32 %v898, %v898
    %v995 = vmul.f32 %v899, %v899
    %v996 = vmul.f32 %v900, %v900
    %v997 = vmul.f32 %v901, %v901
    %v998 = vmul.f32 %v902, %v902
    %v999 = vmul.f32 %v903, %v903
    %v1000 = vmul.f32 %v904, %v904
    %v1001 = vmul.f32 %v905, %v905
    %v1002 = vmul.f32 %v906, %v906
    %v1003 = vmul.f32 %v907, %v907
    %v1004 = vmul.f32 %v908, %v908
    %v1005 = vmul.f32 %v909, %v909
    %v1006 = vmul.f32 %v910, %v910
    %v1007 = vmul.f32 %v911, %v911
    %v1008 = vsel %vm250, %v992, 0.0
    %1009 = vadd.xlane.f32.xlu0 %v1008
    %v1010 = vpop.xlane.xlu0 %1009
    %v1011 = vsel %vm250, %v993, 0.0
    %1012 = vadd.xlane.f32.xlu0 %v1011
    %v1013 = vpop.xlane.xlu0 %1012
    %v1014 = vsel %vm250, %v994, 0.0
    %1015 = vadd.xlane.f32.xlu0 %v1014
    %v1016 = vpop.xlane.xlu0 %1015
    %v1017 = vsel %vm250, %v995, 0.0
    %1018 = vadd.xlane.f32.xlu0 %v1017
    %v1019 = vpop.xlane.xlu0 %1018
    %v1020 = vsel %vm250, %v996, 0.0
    %1021 = vadd.xlane.f32.xlu0 %v1020
    %v1022 = vpop.xlane.xlu0 %1021
    %v1023 = vsel %vm250, %v997, 0.0
    %1024 = vadd.xlane.f32.xlu0 %v1023
    %v1025 = vpop.xlane.xlu0 %1024
    %v1026 = vsel %vm250, %v998, 0.0
    %1027 = vadd.xlane.f32.xlu0 %v1026
    %v1028 = vpop.xlane.xlu0 %1027
    %v1029 = vsel %vm250, %v999, 0.0
    %1030 = vadd.xlane.f32.xlu0 %v1029
    %v1031 = vpop.xlane.xlu0 %1030
    %v1032 = vsel %vm250, %v1000, 0.0
    %1033 = vadd.xlane.f32.xlu0 %v1032
    %v1034 = vpop.xlane.xlu0 %1033
    %v1035 = vsel %vm250, %v1001, 0.0
    %1036 = vadd.xlane.f32.xlu0 %v1035
    %v1037 = vpop.xlane.xlu0 %1036
    %v1038 = vsel %vm250, %v1002, 0.0
    %1039 = vadd.xlane.f32.xlu0 %v1038
    %v1040 = vpop.xlane.xlu0 %1039
    %v1041 = vsel %vm250, %v1003, 0.0
    %1042 = vadd.xlane.f32.xlu0 %v1041
    %v1043 = vpop.xlane.xlu0 %1042
    %v1044 = vsel %vm250, %v1004, 0.0
    %1045 = vadd.xlane.f32.xlu0 %v1044
    %v1046 = vpop.xlane.xlu0 %1045
    %v1047 = vsel %vm250, %v1005, 0.0
    %1048 = vadd.xlane.f32.xlu0 %v1047
    %v1049 = vpop.xlane.xlu0 %1048
    %v1050 = vsel %vm250, %v1006, 0.0
    %1051 = vadd.xlane.f32.xlu0 %v1050
    %v1052 = vpop.xlane.xlu0 %1051
    %v1053 = vsel %vm250, %v1007, 0.0
    %1054 = vadd.xlane.f32.xlu0 %v1053
    %v1055 = vpop.xlane.xlu0 %1054
    %v1056 = vmul.f32 %v1010, 0.03125
    %v1057 = vmul.f32 %v1013, 0.03125
    %v1058 = vmul.f32 %v1016, 0.03125
    %v1059 = vmul.f32 %v1019, 0.03125
    %v1060 = vmul.f32 %v1022, 0.03125
    %v1061 = vmul.f32 %v1025, 0.03125
    %v1062 = vmul.f32 %v1028, 0.03125
    %v1063 = vmul.f32 %v1031, 0.03125
    %v1064 = vmul.f32 %v1034, 0.03125
    %v1065 = vmul.f32 %v1037, 0.03125
    %v1066 = vmul.f32 %v1040, 0.03125
    %v1067 = vmul.f32 %v1043, 0.03125
    %v1068 = vmul.f32 %v1046, 0.03125
    %v1069 = vmul.f32 %v1049, 0.03125
    %v1070 = vmul.f32 %v1052, 0.03125
    %v1071 = vmul.f32 %v1055, 0.03125
    %v1072 = vld [vmem:[#allocation8] sm:$0xff]
    %v1073 = vld [vmem:[#allocation8 + $0x8] sm:$0xff]
    %v1074 = vld [vmem:[#allocation8 + $0x10] sm:$0xff]
    %v1075 = vld [vmem:[#allocation8 + $0x18] sm:$0xff]
    %v1076 = vld [vmem:[#allocation8 + $0x20] sm:$0xff]
    %v1077 = vld [vmem:[#allocation8 + $0x28] sm:$0xff]
    %v1078 = vld [vmem:[#allocation8 + $0x30] sm:$0xff]
    %v1079 = vld [vmem:[#allocation8 + $0x38] sm:$0xff]
    %v1080 = vld [vmem:[#allocation8 + $0x40] sm:$0xff]
    %v1081 = vld [vmem:[#allocation8 + $0x48] sm:$0xff]
    %v1082 = vld [vmem:[#allocation8 + $0x50] sm:$0xff]
    %v1083 = vld [vmem:[#allocation8 + $0x58] sm:$0xff]
    %v1084 = vld [vmem:[#allocation8 + $0x60] sm:$0xff]
    %v1085 = vld [vmem:[#allocation8 + $0x68] sm:$0xff]
    %v1086 = vld [vmem:[#allocation8 + $0x70] sm:$0xff]
    %v1087 = vld [vmem:[#allocation8 + $0x78] sm:$0xff]
    %1088 = vmatprep.subr.mxu0 0.0
    %1089 = vmatpush1.msra.mxu0 %v991
    %1090 = vmatprep.subr.mxu0 0.0
    %1091 = vmatpush1.msra.mxu0 %v990
    %1092 = vmatprep.subr.mxu0 0.0
    %1093 = vmatpush1.msra.mxu0 %v989
    %1094 = vmatprep.subr.mxu0 0.0
    %1095 = vmatpush1.msra.mxu0 %v988
    %1096 = vmatprep.subr.mxu0 0.0
    %1097 = vmatpush1.msra.mxu0 %v987
    %1098 = vmatprep.subr.mxu0 0.0
    %1099 = vmatpush1.msra.mxu0 %v986
    %1100 = vmatprep.subr.mxu0 0.0
    %1101 = vmatpush1.msra.mxu0 %v985
    %1102 = vmatprep.subr.mxu0 0.0
    %1103 = vmatpush1.msra.mxu0 %v984
    %1104 = vmatprep.subr.mxu0 0.0
    %1105 = vmatpush1.msra.mxu0 %v983
    %1106 = vmatprep.subr.mxu0 0.0
    %1107 = vmatpush1.msra.mxu0 %v982
    %1108 = vmatprep.subr.mxu0 0.0
    %1109 = vmatpush1.msra.mxu0 %v981
    %1110 = vmatprep.subr.mxu0 0.0
    %1111 = vmatpush1.msra.mxu0 %v980
    %1112 = vmatprep.subr.mxu0 0.0
    %1113 = vmatpush1.msra.mxu0 %v979
    %1114 = vmatprep.subr.mxu0 0.0
    %1115 = vmatpush1.msra.mxu0 %v978
    %1116 = vmatprep.subr.mxu0 0.0
    %1117 = vmatpush1.msra.mxu0 %v977
    %1118 = vmatprep.subr.mxu0 0.0
    %1119 = vmatpush1.msra.mxu0 %v976
    %1120 = vmatprep.subr.mxu0 0.0
    %1121 = vmatpush2.msra.mxu0 0.0
    %1122 = vmatprep.subr.mxu0 0.0
    %1123 = vmatpush2.msra.mxu0 0.0
    %1124 = vmatprep.subr.mxu0 0.0
    %1125 = vmatpush2.msra.mxu0 0.0
    %1126 = vmatprep.subr.mxu0 0.0
    %1127 = vmatpush2.msra.mxu0 0.0
    %1128 = vmatprep.subr.mxu0 0.0
    %1129 = vmatpush2.msra.mxu0 0.0
    %1130 = vmatprep.subr.mxu0 0.0
    %1131 = vmatpush2.msra.mxu0 0.0
    %1132 = vmatprep.subr.mxu0 0.0
    %1133 = vmatpush2.msra.mxu0 0.0
    %1134 = vmatprep.subr.mxu0 0.0
    %1135 = vmatpush2.msra.mxu0 0.0
    %1136 = vmatprep.subr.mxu0 0.0
    %1137 = vmatpush2.msra.mxu0 0.0
    %1138 = vmatprep.subr.mxu0 0.0
    %1139 = vmatpush2.msra.mxu0 0.0
    %1140 = vmatprep.subr.mxu0 0.0
    %1141 = vmatpush2.msra.mxu0 0.0
    %1142 = vmatprep.subr.mxu0 0.0
    %1143 = vmatpush2.msra.mxu0 0.0
    %1144 = vmatprep.subr.mxu0 0.0
    %1145 = vmatpush2.msra.mxu0 0.0
    %1146 = vmatprep.subr.mxu0 0.0
    %1147 = vmatpush2.msra.mxu0 0.0
    %1148 = vmatprep.subr.mxu0 0.0
    %1149 = vmatpush2.msra.mxu0 0.0
    %1150 = vmatprep.subr.mxu0 0.0
    %1151 = vmatpush2.msra.mxu0 0.0
    %1152 = vmatprep.mubr.f32.mxu0 0.0
    %1153 = vmatmul.mubr.f32.gmra.mxu0 %v1072
    %v1154 = vpop.f32.mrf.mxu0
    %v1155 = vadd.f32 0.0, %v1154
    %v1156 = vpop.f32.mrf.mxu0
    %1157 = vmatprep.mubr.f32.mxu0 0.0
    %1158 = vmatmul.mubr.f32.gmra.mxu0 %v1073
    %v1159 = vpop.f32.mrf.mxu0
    %v1160 = vadd.f32 0.0, %v1159
    %v1161 = vpop.f32.mrf.mxu0
    %1162 = vmatprep.mubr.f32.mxu0 0.0
    %1163 = vmatmul.mubr.f32.gmra.mxu0 %v1074
    %v1164 = vpop.f32.mrf.mxu0
    %v1165 = vadd.f32 0.0, %v1164
    %v1166 = vpop.f32.mrf.mxu0
    %1167 = vmatprep.mubr.f32.mxu0 0.0
    %1168 = vmatmul.mubr.f32.gmra.mxu0 %v1075
    %v1169 = vpop.f32.mrf.mxu0
    %v1170 = vadd.f32 0.0, %v1169
    %v1171 = vpop.f32.mrf.mxu0
    %1172 = vmatprep.mubr.f32.mxu0 0.0
    %1173 = vmatmul.mubr.f32.gmra.mxu0 %v1076
    %v1174 = vpop.f32.mrf.mxu0
    %v1175 = vadd.f32 0.0, %v1174
    %v1176 = vpop.f32.mrf.mxu0
    %1177 = vmatprep.mubr.f32.mxu0 0.0
    %1178 = vmatmul.mubr.f32.gmra.mxu0 %v1077
    %v1179 = vpop.f32.mrf.mxu0
    %v1180 = vadd.f32 0.0, %v1179
    %v1181 = vpop.f32.mrf.mxu0
    %1182 = vmatprep.mubr.f32.mxu0 0.0
    %1183 = vmatmul.mubr.f32.gmra.mxu0 %v1078
    %v1184 = vpop.f32.mrf.mxu0
    %v1185 = vadd.f32 0.0, %v1184
    %v1186 = vpop.f32.mrf.mxu0
    %1187 = vmatprep.mubr.f32.mxu0 0.0
    %1188 = vmatmul.mubr.f32.gmra.mxu0 %v1079
    %v1189 = vpop.f32.mrf.mxu0
    %v1190 = vadd.f32 0.0, %v1189
    %v1191 = vpop.f32.mrf.mxu0
    %1192 = vmatprep.mubr.f32.mxu0 0.0
    %1193 = vmatmul.mubr.f32.gmra.mxu0 %v1080
    %v1194 = vpop.f32.mrf.mxu0
    %v1195 = vadd.f32 0.0, %v1194
    %v1196 = vpop.f32.mrf.mxu0
    %1197 = vmatprep.mubr.f32.mxu0 0.0
    %1198 = vmatmul.mubr.f32.gmra.mxu0 %v1081
    %v1199 = vpop.f32.mrf.mxu0
    %v1200 = vadd.f32 0.0, %v1199
    %v1201 = vpop.f32.mrf.mxu0
    %1202 = vmatprep.mubr.f32.mxu0 0.0
    %1203 = vmatmul.mubr.f32.gmra.mxu0 %v1082
    %v1204 = vpop.f32.mrf.mxu0
    %v1205 = vadd.f32 0.0, %v1204
    %v1206 = vpop.f32.mrf.mxu0
    %1207 = vmatprep.mubr.f32.mxu0 0.0
    %1208 = vmatmul.mubr.f32.gmra.mxu0 %v1083
    %v1209 = vpop.f32.mrf.mxu0
    %v1210 = vadd.f32 0.0, %v1209
    %v1211 = vpop.f32.mrf.mxu0
    %1212 = vmatprep.mubr.f32.mxu0 0.0
    %1213 = vmatmul.mubr.f32.gmra.mxu0 %v1084
    %v1214 = vpop.f32.mrf.mxu0
    %v1215 = vadd.f32 0.0, %v1214
    %v1216 = vpop.f32.mrf.mxu0
    %1217 = vmatprep.mubr.f32.mxu0 0.0
    %1218 = vmatmul.mubr.f32.gmra.mxu0 %v1085
    %v1219 = vpop.f32.mrf.mxu0
    %v1220 = vadd.f32 0.0, %v1219
    %v1221 = vpop.f32.mrf.mxu0
    %1222 = vmatprep.mubr.f32.mxu0 0.0
    %1223 = vmatmul.mubr.f32.gmra.mxu0 %v1086
    %v1224 = vpop.f32.mrf.mxu0
    %v1225 = vadd.f32 0.0, %v1224
    %v1226 = vpop.f32.mrf.mxu0
    %1227 = vmatprep.mubr.f32.mxu0 0.0
    %1228 = vmatmul.mubr.f32.gmra.mxu0 %v1087
    %v1229 = vpop.f32.mrf.mxu0
    %v1230 = vadd.f32 0.0, %v1229
    %v1231 = vpop.f32.mrf.mxu0
    %1232 = vdwg.mxu0
    %1233 = vmatprep.subr.mxu0 0.0
    %1234 = vmatpush1.msra.mxu0 %v1071
    %1235 = vmatprep.subr.mxu0 0.0
    %1236 = vmatpush1.msra.mxu0 %v1070
    %1237 = vmatprep.subr.mxu0 0.0
    %1238 = vmatpush1.msra.mxu0 %v1069
    %1239 = vmatprep.subr.mxu0 0.0
    %1240 = vmatpush1.msra.mxu0 %v1068
    %1241 = vmatprep.subr.mxu0 0.0
    %1242 = vmatpush1.msra.mxu0 %v1067
    %1243 = vmatprep.subr.mxu0 0.0
    %1244 = vmatpush1.msra.mxu0 %v1066
    %1245 = vmatprep.subr.mxu0 0.0
    %1246 = vmatpush1.msra.mxu0 %v1065
    %1247 = vmatprep.subr.mxu0 0.0
    %1248 = vmatpush1.msra.mxu0 %v1064
    %1249 = vmatprep.subr.mxu0 0.0
    %1250 = vmatpush1.msra.mxu0 %v1063
    %1251 = vmatprep.subr.mxu0 0.0
    %1252 = vmatpush1.msra.mxu0 %v1062
    %1253 = vmatprep.subr.mxu0 0.0
    %1254 = vmatpush1.msra.mxu0 %v1061
    %1255 = vmatprep.subr.mxu0 0.0
    %1256 = vmatpush1.msra.mxu0 %v1060
    %1257 = vmatprep.subr.mxu0 0.0
    %1258 = vmatpush1.msra.mxu0 %v1059
    %1259 = vmatprep.subr.mxu0 0.0
    %1260 = vmatpush1.msra.mxu0 %v1058
    %1261 = vmatprep.subr.mxu0 0.0
    %1262 = vmatpush1.msra.mxu0 %v1057
    %1263 = vmatprep.subr.mxu0 0.0
    %1264 = vmatpush1.msra.mxu0 %v1056
    %1265 = vmatprep.subr.mxu0 0.0
    %1266 = vmatpush2.msra.mxu0 0.0
    %1267 = vmatprep.subr.mxu0 0.0
    %1268 = vmatpush2.msra.mxu0 0.0
    %1269 = vmatprep.subr.mxu0 0.0
    %1270 = vmatpush2.msra.mxu0 0.0
    %1271 = vmatprep.subr.mxu0 0.0
    %1272 = vmatpush2.msra.mxu0 0.0
    %1273 = vmatprep.subr.mxu0 0.0
    %1274 = vmatpush2.msra.mxu0 0.0
    %1275 = vmatprep.subr.mxu0 0.0
    %1276 = vmatpush2.msra.mxu0 0.0
    %1277 = vmatprep.subr.mxu0 0.0
    %1278 = vmatpush2.msra.mxu0 0.0
    %1279 = vmatprep.subr.mxu0 0.0
    %1280 = vmatpush2.msra.mxu0 0.0
    %1281 = vmatprep.subr.mxu0 0.0
    %1282 = vmatpush2.msra.mxu0 0.0
    %1283 = vmatprep.subr.mxu0 0.0
    %1284 = vmatpush2.msra.mxu0 0.0
    %1285 = vmatprep.subr.mxu0 0.0
    %1286 = vmatpush2.msra.mxu0 0.0
    %1287 = vmatprep.subr.mxu0 0.0
    %1288 = vmatpush2.msra.mxu0 0.0
    %1289 = vmatprep.subr.mxu0 0.0
    %1290 = vmatpush2.msra.mxu0 0.0
    %1291 = vmatprep.subr.mxu0 0.0
    %1292 = vmatpush2.msra.mxu0 0.0
    %1293 = vmatprep.subr.mxu0 0.0
    %1294 = vmatpush2.msra.mxu0 0.0
    %1295 = vmatprep.subr.mxu0 0.0
    %1296 = vmatpush2.msra.mxu0 0.0
    %1297 = vmatprep.mubr.f32.mxu0 0.0
    %1298 = vmatmul.mubr.f32.gmra.mxu0 %v1072
    %v1299 = vpop.f32.mrf.mxu0
    %v1300 = vadd.f32 0.0, %v1299
    %v1301 = vpop.f32.mrf.mxu0
    %1302 = vmatprep.mubr.f32.mxu0 0.0
    %1303 = vmatmul.mubr.f32.gmra.mxu0 %v1073
    %v1304 = vpop.f32.mrf.mxu0
    %v1305 = vadd.f32 0.0, %v1304
    %v1306 = vpop.f32.mrf.mxu0
    %1307 = vmatprep.mubr.f32.mxu0 0.0
    %1308 = vmatmul.mubr.f32.gmra.mxu0 %v1074
    %v1309 = vpop.f32.mrf.mxu0
    %v1310 = vadd.f32 0.0, %v1309
    %v1311 = vpop.f32.mrf.mxu0
    %1312 = vmatprep.mubr.f32.mxu0 0.0
    %1313 = vmatmul.mubr.f32.gmra.mxu0 %v1075
    %v1314 = vpop.f32.mrf.mxu0
    %v1315 = vadd.f32 0.0, %v1314
    %v1316 = vpop.f32.mrf.mxu0
    %1317 = vmatprep.mubr.f32.mxu0 0.0
    %1318 = vmatmul.mubr.f32.gmra.mxu0 %v1076
    %v1319 = vpop.f32.mrf.mxu0
    %v1320 = vadd.f32 0.0, %v1319
    %v1321 = vpop.f32.mrf.mxu0
    %1322 = vmatprep.mubr.f32.mxu0 0.0
    %1323 = vmatmul.mubr.f32.gmra.mxu0 %v1077
    %v1324 = vpop.f32.mrf.mxu0
    %v1325 = vadd.f32 0.0, %v1324
    %v1326 = vpop.f32.mrf.mxu0
    %1327 = vmatprep.mubr.f32.mxu0 0.0
    %1328 = vmatmul.mubr.f32.gmra.mxu0 %v1078
    %v1329 = vpop.f32.mrf.mxu0
    %v1330 = vadd.f32 0.0, %v1329
    %v1331 = vpop.f32.mrf.mxu0
    %1332 = vmatprep.mubr.f32.mxu0 0.0
    %1333 = vmatmul.mubr.f32.gmra.mxu0 %v1079
    %v1334 = vpop.f32.mrf.mxu0
    %v1335 = vadd.f32 0.0, %v1334
    %v1336 = vpop.f32.mrf.mxu0
    %1337 = vmatprep.mubr.f32.mxu0 0.0
    %1338 = vmatmul.mubr.f32.gmra.mxu0 %v1080
    %v1339 = vpop.f32.mrf.mxu0
    %v1340 = vadd.f32 0.0, %v1339
    %v1341 = vpop.f32.mrf.mxu0
    %1342 = vmatprep.mubr.f32.mxu0 0.0
    %1343 = vmatmul.mubr.f32.gmra.mxu0 %v1081
    %v1344 = vpop.f32.mrf.mxu0
    %v1345 = vadd.f32 0.0, %v1344
    %v1346 = vpop.f32.mrf.mxu0
    %1347 = vmatprep.mubr.f32.mxu0 0.0
    %1348 = vmatmul.mubr.f32.gmra.mxu0 %v1082
    %v1349 = vpop.f32.mrf.mxu0
    %v1350 = vadd.f32 0.0, %v1349
    %v1351 = vpop.f32.mrf.mxu0
    %1352 = vmatprep.mubr.f32.mxu0 0.0
    %1353 = vmatmul.mubr.f32.gmra.mxu0 %v1083
    %v1354 = vpop.f32.mrf.mxu0
    %v1355 = vadd.f32 0.0, %v1354
    %v1356 = vpop.f32.mrf.mxu0
    %1357 = vmatprep.mubr.f32.mxu0 0.0
    %1358 = vmatmul.mubr.f32.gmra.mxu0 %v1084
    %v1359 = vpop.f32.mrf.mxu0
    %v1360 = vadd.f32 0.0, %v1359
    %v1361 = vpop.f32.mrf.mxu0
    %1362 = vmatprep.mubr.f32.mxu0 0.0
    %1363 = vmatmul.mubr.f32.gmra.mxu0 %v1085
    %v1364 = vpop.f32.mrf.mxu0
    %v1365 = vadd.f32 0.0, %v1364
    %v1366 = vpop.f32.mrf.mxu0
    %1367 = vmatprep.mubr.f32.mxu0 0.0
    %1368 = vmatmul.mubr.f32.gmra.mxu0 %v1086
    %v1369 = vpop.f32.mrf.mxu0
    %v1370 = vadd.f32 0.0, %v1369
    %v1371 = vpop.f32.mrf.mxu0
    %1372 = vmatprep.mubr.f32.mxu0 0.0
    %1373 = vmatmul.mubr.f32.gmra.mxu0 %v1087
    %v1374 = vpop.f32.mrf.mxu0
    %v1375 = vadd.f32 0.0, %v1374
    %v1376 = vpop.f32.mrf.mxu0
    %1377 = vdwg.mxu0
    %v1378 = vmul.f32 %v1155, %v1155
    %v1379 = vmul.f32 %v1160, %v1160
    %v1380 = vmul.f32 %v1165, %v1165
    %v1381 = vmul.f32 %v1170, %v1170
    %v1382 = vmul.f32 %v1175, %v1175
    %v1383 = vmul.f32 %v1180, %v1180
    %v1384 = vmul.f32 %v1185, %v1185
    %v1385 = vmul.f32 %v1190, %v1190
    %v1386 = vmul.f32 %v1195, %v1195
    %v1387 = vmul.f32 %v1200, %v1200
    %v1388 = vmul.f32 %v1205, %v1205
    %v1389 = vmul.f32 %v1210, %v1210
    %v1390 = vmul.f32 %v1215, %v1215
    %v1391 = vmul.f32 %v1220, %v1220
    %v1392 = vmul.f32 %v1225, %v1225
    %v1393 = vmul.f32 %v1230, %v1230
    %v1394 = vsub.f32 %v1300, %v1378
    %v1395 = vsub.f32 %v1305, %v1379
    %v1396 = vsub.f32 %v1310, %v1380
    %v1397 = vsub.f32 %v1315, %v1381
    %v1398 = vsub.f32 %v1320, %v1382
    %v1399 = vsub.f32 %v1325, %v1383
    %v1400 = vsub.f32 %v1330, %v1384
    %v1401 = vsub.f32 %v1335, %v1385
    %v1402 = vsub.f32 %v1340, %v1386
    %v1403 = vsub.f32 %v1345, %v1387
    %v1404 = vsub.f32 %v1350, %v1388
    %v1405 = vsub.f32 %v1355, %v1389
    %v1406 = vsub.f32 %v1360, %v1390
    %v1407 = vsub.f32 %v1365, %v1391
    %v1408 = vsub.f32 %v1370, %v1392
    %v1409 = vsub.f32 %v1375, %v1393
    %1411 = vset.pattern.permute.xlu0 0
    %1412 = vperm.xlu0 %1411, %v1155
    %v1413 = vpop.permute.xlu0 %1412
    %1416 = vset.pattern.permute.xlu0 0
    %1417 = vperm.xlu0 %1416, %v1160
    %v1418 = vpop.permute.xlu0 %1417
    %1421 = vset.pattern.permute.xlu0 0
    %1422 = vperm.xlu0 %1421, %v1165
    %v1423 = vpop.permute.xlu0 %1422
    %1426 = vset.pattern.permute.xlu0 0
    %1427 = vperm.xlu0 %1426, %v1170
    %v1428 = vpop.permute.xlu0 %1427
    %1431 = vset.pattern.permute.xlu0 0
    %1432 = vperm.xlu0 %1431, %v1175
    %v1433 = vpop.permute.xlu0 %1432
    %1436 = vset.pattern.permute.xlu0 0
    %1437 = vperm.xlu0 %1436, %v1180
    %v1438 = vpop.permute.xlu0 %1437
    %1441 = vset.pattern.permute.xlu0 0
    %1442 = vperm.xlu0 %1441, %v1185
    %v1443 = vpop.permute.xlu0 %1442
    %1446 = vset.pattern.permute.xlu0 0
    %1447 = vperm.xlu0 %1446, %v1190
    %v1448 = vpop.permute.xlu0 %1447
    %1451 = vset.pattern.permute.xlu0 0
    %1452 = vperm.xlu0 %1451, %v1195
    %v1453 = vpop.permute.xlu0 %1452
    %1456 = vset.pattern.permute.xlu0 0
    %1457 = vperm.xlu0 %1456, %v1200
    %v1458 = vpop.permute.xlu0 %1457
    %1461 = vset.pattern.permute.xlu0 0
    %1462 = vperm.xlu0 %1461, %v1205
    %v1463 = vpop.permute.xlu0 %1462
    %1466 = vset.pattern.permute.xlu0 0
    %1467 = vperm.xlu0 %1466, %v1210
    %v1468 = vpop.permute.xlu0 %1467
    %1471 = vset.pattern.permute.xlu0 0
    %1472 = vperm.xlu0 %1471, %v1215
    %v1473 = vpop.permute.xlu0 %1472
    %1476 = vset.pattern.permute.xlu0 0
    %1477 = vperm.xlu0 %1476, %v1220
    %v1478 = vpop.permute.xlu0 %1477
    %1481 = vset.pattern.permute.xlu0 0
    %1482 = vperm.xlu0 %1481, %v1225
    %v1483 = vpop.permute.xlu0 %1482
    %1486 = vset.pattern.permute.xlu0 0
    %1487 = vperm.xlu0 %1486, %v1230
    %v1488 = vpop.permute.xlu0 %1487
    %v1490 = vsub.f32 %v896, %v1413
    %v1491 = vsub.f32 %v897, %v1418
    %v1492 = vsub.f32 %v898, %v1423
    %v1493 = vsub.f32 %v899, %v1428
    %v1494 = vsub.f32 %v900, %v1433
    %v1495 = vsub.f32 %v901, %v1438
    %v1496 = vsub.f32 %v902, %v1443
    %v1497 = vsub.f32 %v903, %v1448
    %v1498 = vsub.f32 %v904, %v1453
    %v1499 = vsub.f32 %v905, %v1458
    %v1500 = vsub.f32 %v906, %v1463
    %v1501 = vsub.f32 %v907, %v1468
    %v1502 = vsub.f32 %v908, %v1473
    %v1503 = vsub.f32 %v909, %v1478
    %v1504 = vsub.f32 %v910, %v1483
    %v1505 = vsub.f32 %v911, %v1488
    %v1506 = vadd.f32 %v1394, 1e-05
    %v1507 = vadd.f32 %v1395, 1e-05
    %v1508 = vadd.f32 %v1396, 1e-05
    %v1509 = vadd.f32 %v1397, 1e-05
    %v1510 = vadd.f32 %v1398, 1e-05
    %v1511 = vadd.f32 %v1399, 1e-05
    %v1512 = vadd.f32 %v1400, 1e-05
    %v1513 = vadd.f32 %v1401, 1e-05
    %v1514 = vadd.f32 %v1402, 1e-05
    %v1515 = vadd.f32 %v1403, 1e-05
    %v1516 = vadd.f32 %v1404, 1e-05
    %v1517 = vadd.f32 %v1405, 1e-05
    %v1518 = vadd.f32 %v1406, 1e-05
    %v1519 = vadd.f32 %v1407, 1e-05
    %v1520 = vadd.f32 %v1408, 1e-05
    %v1521 = vadd.f32 %v1409, 1e-05
    %v1522 = vrsqrt.pop %v1506
    %v1523 = vrsqrt.pop %v1507
    %v1524 = vrsqrt.pop %v1508
    %v1525 = vrsqrt.pop %v1509
    %v1526 = vrsqrt.pop %v1510
    %v1527 = vrsqrt.pop %v1511
    %v1528 = vrsqrt.pop %v1512
    %v1529 = vrsqrt.pop %v1513
    %v1530 = vrsqrt.pop %v1514
    %v1531 = vrsqrt.pop %v1515
    %v1532 = vrsqrt.pop %v1516
    %v1533 = vrsqrt.pop %v1517
    %v1534 = vrsqrt.pop %v1518
    %v1535 = vrsqrt.pop %v1519
    %v1536 = vrsqrt.pop %v1520
    %v1537 = vrsqrt.pop %v1521
    %1539 = vset.pattern.permute.xlu0 0
    %1540 = vperm.xlu0 %1539, %v1522
    %v1541 = vpop.permute.xlu0 %1540
    %1544 = vset.pattern.permute.xlu0 0
    %1545 = vperm.xlu0 %1544, %v1523
    %v1546 = vpop.permute.xlu0 %1545
    %1549 = vset.pattern.permute.xlu0 0
    %1550 = vperm.xlu0 %1549, %v1524
    %v1551 = vpop.permute.xlu0 %1550
    %1554 = vset.pattern.permute.xlu0 0
    %1555 = vperm.xlu0 %1554, %v1525
    %v1556 = vpop.permute.xlu0 %1555
    %1559 = vset.pattern.permute.xlu0 0
    %1560 = vperm.xlu0 %1559, %v1526
    %v1561 = vpop.permute.xlu0 %1560
    %1564 = vset.pattern.permute.xlu0 0
    %1565 = vperm.xlu0 %1564, %v1527
    %v1566 = vpop.permute.xlu0 %1565
    %1569 = vset.pattern.permute.xlu0 0
    %1570 = vperm.xlu0 %1569, %v1528
    %v1571 = vpop.permute.xlu0 %1570
    %1574 = vset.pattern.permute.xlu0 0
    %1575 = vperm.xlu0 %1574, %v1529
    %v1576 = vpop.permute.xlu0 %1575
    %1579 = vset.pattern.permute.xlu0 0
    %1580 = vperm.xlu0 %1579, %v1530
    %v1581 = vpop.permute.xlu0 %1580
    %1584 = vset.pattern.permute.xlu0 0
    %1585 = vperm.xlu0 %1584, %v1531
    %v1586 = vpop.permute.xlu0 %1585
    %1589 = vset.pattern.permute.xlu0 0
    %1590 = vperm.xlu0 %1589, %v1532
    %v1591 = vpop.permute.xlu0 %1590
    %1594 = vset.pattern.permute.xlu0 0
    %1595 = vperm.xlu0 %1594, %v1533
    %v1596 = vpop.permute.xlu0 %1595
    %1599 = vset.pattern.permute.xlu0 0
    %1600 = vperm.xlu0 %1599, %v1534
    %v1601 = vpop.permute.xlu0 %1600
    %1604 = vset.pattern.permute.xlu0 0
    %1605 = vperm.xlu0 %1604, %v1535
    %v1606 = vpop.permute.xlu0 %1605
    %1609 = vset.pattern.permute.xlu0 0
    %1610 = vperm.xlu0 %1609, %v1536
    %v1611 = vpop.permute.xlu0 %1610
    %1614 = vset.pattern.permute.xlu0 0
    %1615 = vperm.xlu0 %1614, %v1537
    %v1616 = vpop.permute.xlu0 %1615
    %v1618 = vmul.f32 %v1490, %v1541
    %v1619 = vmul.f32 %v1491, %v1546
    %v1620 = vmul.f32 %v1492, %v1551
    %v1621 = vmul.f32 %v1493, %v1556
    %v1622 = vmul.f32 %v1494, %v1561
    %v1623 = vmul.f32 %v1495, %v1566
    %v1624 = vmul.f32 %v1496, %v1571
    %v1625 = vmul.f32 %v1497, %v1576
    %v1626 = vmul.f32 %v1498, %v1581
    %v1627 = vmul.f32 %v1499, %v1586
    %v1628 = vmul.f32 %v1500, %v1591
    %v1629 = vmul.f32 %v1501, %v1596
    %v1630 = vmul.f32 %v1502, %v1601
    %v1631 = vmul.f32 %v1503, %v1606
    %v1632 = vmul.f32 %v1504, %v1611
    %v1633 = vmul.f32 %v1505, %v1616
    %1635 = vset.pattern.permute.xlu0 0
    %1636 = vperm.xlu0 %1635, %v912
    %v1637 = vpop.permute.xlu0 %1636
    %1640 = vset.pattern.permute.xlu0 0
    %1641 = vperm.xlu0 %1640, %v913
    %v1642 = vpop.permute.xlu0 %1641
    %1645 = vset.pattern.permute.xlu0 0
    %1646 = vperm.xlu0 %1645, %v914
    %v1647 = vpop.permute.xlu0 %1646
    %1650 = vset.pattern.permute.xlu0 0
    %1651 = vperm.xlu0 %1650, %v915
    %v1652 = vpop.permute.xlu0 %1651
    %1655 = vset.pattern.permute.xlu0 0
    %1656 = vperm.xlu0 %1655, %v916
    %v1657 = vpop.permute.xlu0 %1656
    %1660 = vset.pattern.permute.xlu0 0
    %1661 = vperm.xlu0 %1660, %v917
    %v1662 = vpop.permute.xlu0 %1661
    %1665 = vset.pattern.permute.xlu0 0
    %1666 = vperm.xlu0 %1665, %v918
    %v1667 = vpop.permute.xlu0 %1666
    %1670 = vset.pattern.permute.xlu0 0
    %1671 = vperm.xlu0 %1670, %v919
    %v1672 = vpop.permute.xlu0 %1671
    %1675 = vset.pattern.permute.xlu0 0
    %1676 = vperm.xlu0 %1675, %v920
    %v1677 = vpop.permute.xlu0 %1676
    %1680 = vset.pattern.permute.xlu0 0
    %1681 = vperm.xlu0 %1680, %v921
    %v1682 = vpop.permute.xlu0 %1681
    %1685 = vset.pattern.permute.xlu0 0
    %1686 = vperm.xlu0 %1685, %v922
    %v1687 = vpop.permute.xlu0 %1686
    %1690 = vset.pattern.permute.xlu0 0
    %1691 = vperm.xlu0 %1690, %v923
    %v1692 = vpop.permute.xlu0 %1691
    %1695 = vset.pattern.permute.xlu0 0
    %1696 = vperm.xlu0 %1695, %v924
    %v1697 = vpop.permute.xlu0 %1696
    %1700 = vset.pattern.permute.xlu0 0
    %1701 = vperm.xlu0 %1700, %v925
    %v1702 = vpop.permute.xlu0 %1701
    %1705 = vset.pattern.permute.xlu0 0
    %1706 = vperm.xlu0 %1705, %v926
    %v1707 = vpop.permute.xlu0 %1706
    %1710 = vset.pattern.permute.xlu0 0
    %1711 = vperm.xlu0 %1710, %v927
    %v1712 = vpop.permute.xlu0 %1711
    %v1714 = vmul.f32 %v1618, %v1637
    %v1715 = vmul.f32 %v1619, %v1642
    %v1716 = vmul.f32 %v1620, %v1647
    %v1717 = vmul.f32 %v1621, %v1652
    %v1718 = vmul.f32 %v1622, %v1657
    %v1719 = vmul.f32 %v1623, %v1662
    %v1720 = vmul.f32 %v1624, %v1667
    %v1721 = vmul.f32 %v1625, %v1672
    %v1722 = vmul.f32 %v1626, %v1677
    %v1723 = vmul.f32 %v1627, %v1682
    %v1724 = vmul.f32 %v1628, %v1687
    %v1725 = vmul.f32 %v1629, %v1692
    %v1726 = vmul.f32 %v1630, %v1697
    %v1727 = vmul.f32 %v1631, %v1702
    %v1728 = vmul.f32 %v1632, %v1707
    %v1729 = vmul.f32 %v1633, %v1712
    %1730 = vset.pattern.permute.xlu0 1
    %1731 = vperm.xlu0 %1730, %v912
    %v1732 = vpop.permute.xlu0 %1731
    %1734 = vset.pattern.permute.xlu0 1
    %1735 = vperm.xlu0 %1734, %v913
    %v1736 = vpop.permute.xlu0 %1735
    %1738 = vset.pattern.permute.xlu0 1
    %1739 = vperm.xlu0 %1738, %v914
    %v1740 = vpop.permute.xlu0 %1739
    %1742 = vset.pattern.permute.xlu0 1
    %1743 = vperm.xlu0 %1742, %v915
    %v1744 = vpop.permute.xlu0 %1743
    %1746 = vset.pattern.permute.xlu0 1
    %1747 = vperm.xlu0 %1746, %v916
    %v1748 = vpop.permute.xlu0 %1747
    %1750 = vset.pattern.permute.xlu0 1
    %1751 = vperm.xlu0 %1750, %v917
    %v1752 = vpop.permute.xlu0 %1751
    %1754 = vset.pattern.permute.xlu0 1
    %1755 = vperm.xlu0 %1754, %v918
    %v1756 = vpop.permute.xlu0 %1755
    %1758 = vset.pattern.permute.xlu0 1
    %1759 = vperm.xlu0 %1758, %v919
    %v1760 = vpop.permute.xlu0 %1759
    %1762 = vset.pattern.permute.xlu0 1
    %1763 = vperm.xlu0 %1762, %v920
    %v1764 = vpop.permute.xlu0 %1763
    %1766 = vset.pattern.permute.xlu0 1
    %1767 = vperm.xlu0 %1766, %v921
    %v1768 = vpop.permute.xlu0 %1767
    %1770 = vset.pattern.permute.xlu0 1
    %1771 = vperm.xlu0 %1770, %v922
    %v1772 = vpop.permute.xlu0 %1771
    %1774 = vset.pattern.permute.xlu0 1
    %1775 = vperm.xlu0 %1774, %v923
    %v1776 = vpop.permute.xlu0 %1775
    %1778 = vset.pattern.permute.xlu0 1
    %1779 = vperm.xlu0 %1778, %v924
    %v1780 = vpop.permute.xlu0 %1779
    %1782 = vset.pattern.permute.xlu0 1
    %1783 = vperm.xlu0 %1782, %v925
    %v1784 = vpop.permute.xlu0 %1783
    %1786 = vset.pattern.permute.xlu0 1
    %1787 = vperm.xlu0 %1786, %v926
    %v1788 = vpop.permute.xlu0 %1787
    %1790 = vset.pattern.permute.xlu0 1
    %1791 = vperm.xlu0 %1790, %v927
    %v1792 = vpop.permute.xlu0 %1791
    %v1794 = vadd.f32 %v1714, %v1732
    %v1795 = vadd.f32 %v1715, %v1736
    %v1796 = vadd.f32 %v1716, %v1740
    %v1797 = vadd.f32 %v1717, %v1744
    %v1798 = vadd.f32 %v1718, %v1748
    %v1799 = vadd.f32 %v1719, %v1752
    %v1800 = vadd.f32 %v1720, %v1756
    %v1801 = vadd.f32 %v1721, %v1760
    %v1802 = vadd.f32 %v1722, %v1764
    %v1803 = vadd.f32 %v1723, %v1768
    %v1804 = vadd.f32 %v1724, %v1772
    %v1805 = vadd.f32 %v1725, %v1776
    %v1806 = vadd.f32 %v1726, %v1780
    %v1807 = vadd.f32 %v1727, %v1784
    %v1808 = vadd.f32 %v1728, %v1788
    %v1809 = vadd.f32 %v1729, %v1792
    %v1810 = vld [vmem:[#allocation10 + $0x60] sm:$0xff]
    %v1811 = vld [vmem:[#allocation10 + $0x68] sm:$0xff]
    %v1812 = vld [vmem:[#allocation10 + $0x70] sm:$0xff]
    %v1813 = vld [vmem:[#allocation10 + $0x78] sm:$0xff]
    %v1814 = vld [vmem:[%s7 + $0x5] sm:$0x1]
    %v1815 = vlaneseq
    %v1816 = vshrl.u32 %v1815, 7
    %v1817 = vsub.s32 0, %v1816
    %v1818 = vrot.slane %v1814, %v1817
    %v1820 = vsel %vm250, %v1794, 0
    %v1823 = vsel %vm250, %v1795, 0
    %v1826 = vsel %vm250, %v1796, 0
    %v1829 = vsel %vm250, %v1797, 0
    %v1832 = vsel %vm250, %v1798, 0
    %v1835 = vsel %vm250, %v1799, 0
    %v1838 = vsel %vm250, %v1800, 0
    %v1841 = vsel %vm250, %v1801, 0
    %v1844 = vsel %vm250, %v1802, 0
    %v1847 = vsel %vm250, %v1803, 0
    %v1850 = vsel %vm250, %v1804, 0
    %v1853 = vsel %vm250, %v1805, 0
    %v1856 = vsel %vm250, %v1806, 0
    %v1859 = vsel %vm250, %v1807, 0
    %v1862 = vsel %vm250, %v1808, 0
    %v1865 = vsel %vm250, %v1809, 0
    %1867 = vmatprep.subr.mxu0 0.0
    %1868 = vmatpush1.msra.mxu0 0.0
    %1869 = vmatprep.subr.mxu0 0.0
    %1870 = vmatpush1.msra.mxu0 0.0
    %1871 = vmatprep.subr.mxu0 0.0
    %1872 = vmatpush1.msra.mxu0 0.0
    %1873 = vmatprep.subr.mxu0 0.0
    %1874 = vmatpush1.msra.mxu0 0.0
    %1875 = vmatprep.subr.mxu0 0.0
    %1876 = vmatpush1.msra.mxu0 0.0
    %1877 = vmatprep.subr.mxu0 0.0
    %1878 = vmatpush1.msra.mxu0 0.0
    %1879 = vmatprep.subr.mxu0 0.0
    %1880 = vmatpush1.msra.mxu0 0.0
    %1881 = vmatprep.subr.mxu0 0.0
    %1882 = vmatpush1.msra.mxu0 0.0
    %1883 = vmatprep.subr.mxu0 0.0
    %1884 = vmatpush1.msra.mxu0 0.0
    %1885 = vmatprep.subr.mxu0 0.0
    %1886 = vmatpush1.msra.mxu0 0.0
    %1887 = vmatprep.subr.mxu0 0.0
    %1888 = vmatpush1.msra.mxu0 0.0
    %1889 = vmatprep.subr.mxu0 0.0
    %1890 = vmatpush1.msra.mxu0 0.0
    %1891 = vmatprep.subr.mxu0 0.0
    %1892 = vmatpush1.msra.mxu0 %v1813
    %1893 = vmatprep.subr.mxu0 0.0
    %1894 = vmatpush1.msra.mxu0 %v1812
    %1895 = vmatprep.subr.mxu0 0.0
    %1896 = vmatpush1.msra.mxu0 %v1811
    %1897 = vmatprep.subr.mxu0 0.0
    %1898 = vmatpush1.msra.mxu0 %v1810
    %1899 = vmatprep.subr.mxu0 0.0
    %1900 = vmatpush2.msra.mxu0 0.0
    %1901 = vmatprep.subr.mxu0 0.0
    %1902 = vmatpush2.msra.mxu0 0.0
    %1903 = vmatprep.subr.mxu0 0.0
    %1904 = vmatpush2.msra.mxu0 0.0
    %1905 = vmatprep.subr.mxu0 0.0
    %1906 = vmatpush2.msra.mxu0 0.0
    %1907 = vmatprep.subr.mxu0 0.0
    %1908 = vmatpush2.msra.mxu0 0.0
    %1909 = vmatprep.subr.mxu0 0.0
    %1910 = vmatpush2.msra.mxu0 0.0
    %1911 = vmatprep.subr.mxu0 0.0
    %1912 = vmatpush2.msra.mxu0 0.0
    %1913 = vmatprep.subr.mxu0 0.0
    %1914 = vmatpush2.msra.mxu0 0.0
    %1915 = vmatprep.subr.mxu0 0.0
    %1916 = vmatpush2.msra.mxu0 0.0
    %1917 = vmatprep.subr.mxu0 0.0
    %1918 = vmatpush2.msra.mxu0 0.0
    %1919 = vmatprep.subr.mxu0 0.0
    %1920 = vmatpush2.msra.mxu0 0.0
    %1921 = vmatprep.subr.mxu0 0.0
    %1922 = vmatpush2.msra.mxu0 0.0
    %1923 = vmatprep.subr.mxu0 0.0
    %1924 = vmatpush2.msra.mxu0 0.0
    %1925 = vmatprep.subr.mxu0 0.0
    %1926 = vmatpush2.msra.mxu0 0.0
    %1927 = vmatprep.subr.mxu0 0.0
    %1928 = vmatpush2.msra.mxu0 0.0
    %1929 = vmatprep.subr.mxu0 0.0
    %1930 = vmatpush2.msra.mxu0 0.0
    %1931 = vmatprep.mubr.f32.mxu0 0.0
    %1932 = vmatmul.mubr.f32.gmra.mxu0 %v1820
    %v1933 = vpop.f32.mrf.mxu0
    %v1934 = vadd.f32 %v1818, %v1933
    %v1935 = vpop.f32.mrf.mxu0
    %1936 = vmatprep.mubr.f32.mxu0 0.0
    %1937 = vmatmul.mubr.f32.gmra.mxu0 %v1823
    %v1938 = vpop.f32.mrf.mxu0
    %v1939 = vadd.f32 %v1818, %v1938
    %v1940 = vpop.f32.mrf.mxu0
    %1941 = vmatprep.mubr.f32.mxu0 0.0
    %1942 = vmatmul.mubr.f32.gmra.mxu0 %v1826
    %v1943 = vpop.f32.mrf.mxu0
    %v1944 = vadd.f32 %v1818, %v1943
    %v1945 = vpop.f32.mrf.mxu0
    %1946 = vmatprep.mubr.f32.mxu0 0.0
    %1947 = vmatmul.mubr.f32.gmra.mxu0 %v1829
    %v1948 = vpop.f32.mrf.mxu0
    %v1949 = vadd.f32 %v1818, %v1948
    %v1950 = vpop.f32.mrf.mxu0
    %1951 = vmatprep.mubr.f32.mxu0 0.0
    %1952 = vmatmul.mubr.f32.gmra.mxu0 %v1832
    %v1953 = vpop.f32.mrf.mxu0
    %v1954 = vadd.f32 %v1818, %v1953
    %v1955 = vpop.f32.mrf.mxu0
    %1956 = vmatprep.mubr.f32.mxu0 0.0
    %1957 = vmatmul.mubr.f32.gmra.mxu0 %v1835
    %v1958 = vpop.f32.mrf.mxu0
    %v1959 = vadd.f32 %v1818, %v1958
    %v1960 = vpop.f32.mrf.mxu0
    %1961 = vmatprep.mubr.f32.mxu0 0.0
    %1962 = vmatmul.mubr.f32.gmra.mxu0 %v1838
    %v1963 = vpop.f32.mrf.mxu0
    %v1964 = vadd.f32 %v1818, %v1963
    %v1965 = vpop.f32.mrf.mxu0
    %1966 = vmatprep.mubr.f32.mxu0 0.0
    %1967 = vmatmul.mubr.f32.gmra.mxu0 %v1841
    %v1968 = vpop.f32.mrf.mxu0
    %v1969 = vadd.f32 %v1818, %v1968
    %v1970 = vpop.f32.mrf.mxu0
    %1971 = vmatprep.mubr.f32.mxu0 0.0
    %1972 = vmatmul.mubr.f32.gmra.mxu0 %v1844
    %v1973 = vpop.f32.mrf.mxu0
    %v1974 = vadd.f32 %v1818, %v1973
    %v1975 = vpop.f32.mrf.mxu0
    %1976 = vmatprep.mubr.f32.mxu0 0.0
    %1977 = vmatmul.mubr.f32.gmra.mxu0 %v1847
    %v1978 = vpop.f32.mrf.mxu0
    %v1979 = vadd.f32 %v1818, %v1978
    %v1980 = vpop.f32.mrf.mxu0
    %1981 = vmatprep.mubr.f32.mxu0 0.0
    %1982 = vmatmul.mubr.f32.gmra.mxu0 %v1850
    %v1983 = vpop.f32.mrf.mxu0
    %v1984 = vadd.f32 %v1818, %v1983
    %v1985 = vpop.f32.mrf.mxu0
    %1986 = vmatprep.mubr.f32.mxu0 0.0
    %1987 = vmatmul.mubr.f32.gmra.mxu0 %v1853
    %v1988 = vpop.f32.mrf.mxu0
    %v1989 = vadd.f32 %v1818, %v1988
    %v1990 = vpop.f32.mrf.mxu0
    %1991 = vmatprep.mubr.f32.mxu0 0.0
    %1992 = vmatmul.mubr.f32.gmra.mxu0 %v1856
    %v1993 = vpop.f32.mrf.mxu0
    %v1994 = vadd.f32 %v1818, %v1993
    %v1995 = vpop.f32.mrf.mxu0
    %1996 = vmatprep.mubr.f32.mxu0 0.0
    %1997 = vmatmul.mubr.f32.gmra.mxu0 %v1859
    %v1998 = vpop.f32.mrf.mxu0
    %v1999 = vadd.f32 %v1818, %v1998
    %v2000 = vpop.f32.mrf.mxu0
    %2001 = vmatprep.mubr.f32.mxu0 0.0
    %2002 = vmatmul.mubr.f32.gmra.mxu0 %v1862
    %v2003 = vpop.f32.mrf.mxu0
    %v2004 = vadd.f32 %v1818, %v2003
    %v2005 = vpop.f32.mrf.mxu0
    %2006 = vmatprep.mubr.f32.mxu0 0.0
    %2007 = vmatmul.mubr.f32.gmra.mxu0 %v1865
    %v2008 = vpop.f32.mrf.mxu0
    %v2009 = vadd.f32 %v1818, %v2008
    %v2010 = vpop.f32.mrf.mxu0
    %2011 = vdwg.mxu0
    %v2012 = vxor.u32 %v1934, 2147483648
    %v2013 = vxor.u32 %v1939, 2147483648
    %v2014 = vxor.u32 %v1944, 2147483648
    %v2015 = vxor.u32 %v1949, 2147483648
    %v2016 = vxor.u32 %v1954, 2147483648
    %v2017 = vxor.u32 %v1959, 2147483648
    %v2018 = vxor.u32 %v1964, 2147483648
    %v2019 = vxor.u32 %v1969, 2147483648
    %v2020 = vxor.u32 %v1974, 2147483648
    %v2021 = vxor.u32 %v1979, 2147483648
    %v2022 = vxor.u32 %v1984, 2147483648
    %v2023 = vxor.u32 %v1989, 2147483648
    %v2024 = vxor.u32 %v1994, 2147483648
    %v2025 = vxor.u32 %v1999, 2147483648
    %v2026 = vxor.u32 %v2004, 2147483648
    %v2027 = vxor.u32 %v2009, 2147483648
    %v2028 = vmul.f32 %v2012, 1.442695
    %v2029 = vpow.pop %v2028
    %v2030 = vmul.f32 %v2013, 1.442695
    %v2031 = vpow.pop %v2030
    %v2032 = vmul.f32 %v2014, 1.442695
    %v2033 = vpow.pop %v2032
    %v2034 = vmul.f32 %v2015, 1.442695
    %v2035 = vpow.pop %v2034
    %v2036 = vmul.f32 %v2016, 1.442695
    %v2037 = vpow.pop %v2036
    %v2038 = vmul.f32 %v2017, 1.442695
    %v2039 = vpow.pop %v2038
    %v2040 = vmul.f32 %v2018, 1.442695
    %v2041 = vpow.pop %v2040
    %v2042 = vmul.f32 %v2019, 1.442695
    %v2043 = vpow.pop %v2042
    %v2044 = vmul.f32 %v2020, 1.442695
    %v2045 = vpow.pop %v2044
    %v2046 = vmul.f32 %v2021, 1.442695
    %v2047 = vpow.pop %v2046
    %v2048 = vmul.f32 %v2022, 1.442695
    %v2049 = vpow.pop %v2048
    %v2050 = vmul.f32 %v2023, 1.442695
    %v2051 = vpow.pop %v2050
    %v2052 = vmul.f32 %v2024, 1.442695
    %v2053 = vpow.pop %v2052
    %v2054 = vmul.f32 %v2025, 1.442695
    %v2055 = vpow.pop %v2054
    %v2056 = vmul.f32 %v2026, 1.442695
    %v2057 = vpow.pop %v2056
    %v2058 = vmul.f32 %v2027, 1.442695
    %v2059 = vpow.pop %v2058
    %v2060 = vadd.f32 %v2029, 1.0
    %v2061 = vadd.f32 %v2031, 1.0
    %v2062 = vadd.f32 %v2033, 1.0
    %v2063 = vadd.f32 %v2035, 1.0
    %v2064 = vadd.f32 %v2037, 1.0
    %v2065 = vadd.f32 %v2039, 1.0
    %v2066 = vadd.f32 %v2041, 1.0
    %v2067 = vadd.f32 %v2043, 1.0
    %v2068 = vadd.f32 %v2045, 1.0
    %v2069 = vadd.f32 %v2047, 1.0
    %v2070 = vadd.f32 %v2049, 1.0
    %v2071 = vadd.f32 %v2051, 1.0
    %v2072 = vadd.f32 %v2053, 1.0
    %v2073 = vadd.f32 %v2055, 1.0
    %v2074 = vadd.f32 %v2057, 1.0
    %v2075 = vadd.f32 %v2059, 1.0
    %v2076 = vrcp.pop %v2060
    %v2077 = vmul.f32 1.0, %v2076
    %v2078 = vrcp.pop %v2061
    %v2079 = vmul.f32 1.0, %v2078
    %v2080 = vrcp.pop %v2062
    %v2081 = vmul.f32 1.0, %v2080
    %v2082 = vrcp.pop %v2063
    %v2083 = vmul.f32 1.0, %v2082
    %v2084 = vrcp.pop %v2064
    %v2085 = vmul.f32 1.0, %v2084
    %v2086 = vrcp.pop %v2065
    %v2087 = vmul.f32 1.0, %v2086
    %v2088 = vrcp.pop %v2066
    %v2089 = vmul.f32 1.0, %v2088
    %v2090 = vrcp.pop %v2067
    %v2091 = vmul.f32 1.0, %v2090
    %v2092 = vrcp.pop %v2068
    %v2093 = vmul.f32 1.0, %v2092
    %v2094 = vrcp.pop %v2069
    %v2095 = vmul.f32 1.0, %v2094
    %v2096 = vrcp.pop %v2070
    %v2097 = vmul.f32 1.0, %v2096
    %v2098 = vrcp.pop %v2071
    %v2099 = vmul.f32 1.0, %v2098
    %v2100 = vrcp.pop %v2072
    %v2101 = vmul.f32 1.0, %v2100
    %v2102 = vrcp.pop %v2073
    %v2103 = vmul.f32 1.0, %v2102
    %v2104 = vrcp.pop %v2074
    %v2105 = vmul.f32 1.0, %v2104
    %v2106 = vrcp.pop %v2075
    %v2107 = vmul.f32 1.0, %v2106
    %v2108 = vmul.f32 %v1934, %v2077
    %v2109 = vmul.f32 %v1939, %v2079
    %v2110 = vmul.f32 %v1944, %v2081
    %v2111 = vmul.f32 %v1949, %v2083
    %v2112 = vmul.f32 %v1954, %v2085
    %v2113 = vmul.f32 %v1959, %v2087
    %v2114 = vmul.f32 %v1964, %v2089
    %v2115 = vmul.f32 %v1969, %v2091
    %v2116 = vmul.f32 %v1974, %v2093
    %v2117 = vmul.f32 %v1979, %v2095
    %v2118 = vmul.f32 %v1984, %v2097
    %v2119 = vmul.f32 %v1989, %v2099
    %v2120 = vmul.f32 %v1994, %v2101
    %v2121 = vmul.f32 %v1999, %v2103
    %v2122 = vmul.f32 %v2004, %v2105
    %v2123 = vmul.f32 %v2009, %v2107
    %v2124 = vsel %vm250, %v2108, 0.0
    %2125 = vadd.xlane.f32.xlu0 %v2124
    %v2126 = vpop.xlane.xlu0 %2125
    %v2127 = vsel %vm250, %v2109, 0.0
    %2128 = vadd.xlane.f32.xlu0 %v2127
    %v2129 = vpop.xlane.xlu0 %2128
    %v2130 = vsel %vm250, %v2110, 0.0
    %2131 = vadd.xlane.f32.xlu0 %v2130
    %v2132 = vpop.xlane.xlu0 %2131
    %v2133 = vsel %vm250, %v2111, 0.0
    %2134 = vadd.xlane.f32.xlu0 %v2133
    %v2135 = vpop.xlane.xlu0 %2134
    %v2136 = vsel %vm250, %v2112, 0.0
    %2137 = vadd.xlane.f32.xlu0 %v2136
    %v2138 = vpop.xlane.xlu0 %2137
    %v2139 = vsel %vm250, %v2113, 0.0
    %2140 = vadd.xlane.f32.xlu0 %v2139
    %v2141 = vpop.xlane.xlu0 %2140
    %v2142 = vsel %vm250, %v2114, 0.0
    %2143 = vadd.xlane.f32.xlu0 %v2142
    %v2144 = vpop.xlane.xlu0 %2143
    %v2145 = vsel %vm250, %v2115, 0.0
    %2146 = vadd.xlane.f32.xlu0 %v2145
    %v2147 = vpop.xlane.xlu0 %2146
    %v2148 = vsel %vm250, %v2116, 0.0
    %2149 = vadd.xlane.f32.xlu0 %v2148
    %v2150 = vpop.xlane.xlu0 %2149
    %v2151 = vsel %vm250, %v2117, 0.0
    %2152 = vadd.xlane.f32.xlu0 %v2151
    %v2153 = vpop.xlane.xlu0 %2152
    %v2154 = vsel %vm250, %v2118, 0.0
    %2155 = vadd.xlane.f32.xlu0 %v2154
    %v2156 = vpop.xlane.xlu0 %2155
    %v2157 = vsel %vm250, %v2119, 0.0
    %2158 = vadd.xlane.f32.xlu0 %v2157
    %v2159 = vpop.xlane.xlu0 %2158
    %v2160 = vsel %vm250, %v2120, 0.0
    %2161 = vadd.xlane.f32.xlu0 %v2160
    %v2162 = vpop.xlane.xlu0 %2161
    %v2163 = vsel %vm250, %v2121, 0.0
    %2164 = vadd.xlane.f32.xlu0 %v2163
    %v2165 = vpop.xlane.xlu0 %2164
    %v2166 = vsel %vm250, %v2122, 0.0
    %2167 = vadd.xlane.f32.xlu0 %v2166
    %v2168 = vpop.xlane.xlu0 %2167
    %v2169 = vsel %vm250, %v2123, 0.0
    %2170 = vadd.xlane.f32.xlu0 %v2169
    %v2171 = vpop.xlane.xlu0 %2170
    %v2172 = vmul.f32 %v2126, 0.03125
    %v2173 = vmul.f32 %v2129, 0.03125
    %v2174 = vmul.f32 %v2132, 0.03125
    %v2175 = vmul.f32 %v2135, 0.03125
    %v2176 = vmul.f32 %v2138, 0.03125
    %v2177 = vmul.f32 %v2141, 0.03125
    %v2178 = vmul.f32 %v2144, 0.03125
    %v2179 = vmul.f32 %v2147, 0.03125
    %v2180 = vmul.f32 %v2150, 0.03125
    %v2181 = vmul.f32 %v2153, 0.03125
    %v2182 = vmul.f32 %v2156, 0.03125
    %v2183 = vmul.f32 %v2159, 0.03125
    %v2184 = vmul.f32 %v2162, 0.03125
    %v2185 = vmul.f32 %v2165, 0.03125
    %v2186 = vmul.f32 %v2168, 0.03125
    %v2187 = vmul.f32 %v2171, 0.03125
    %v2188 = vmul.f32 %v2108, %v2108
    %v2189 = vmul.f32 %v2109, %v2109
    %v2190 = vmul.f32 %v2110, %v2110
    %v2191 = vmul.f32 %v2111, %v2111
    %v2192 = vmul.f32 %v2112, %v2112
    %v2193 = vmul.f32 %v2113, %v2113
    %v2194 = vmul.f32 %v2114, %v2114
    %v2195 = vmul.f32 %v2115, %v2115
    %v2196 = vmul.f32 %v2116, %v2116
    %v2197 = vmul.f32 %v2117, %v2117
    %v2198 = vmul.f32 %v2118, %v2118
    %v2199 = vmul.f32 %v2119, %v2119
    %v2200 = vmul.f32 %v2120, %v2120
    %v2201 = vmul.f32 %v2121, %v2121
    %v2202 = vmul.f32 %v2122, %v2122
    %v2203 = vmul.f32 %v2123, %v2123
    %v2204 = vsel %vm250, %v2188, 0.0
    %2205 = vadd.xlane.f32.xlu0 %v2204
    %v2206 = vpop.xlane.xlu0 %2205
    %v2207 = vsel %vm250, %v2189, 0.0
    %2208 = vadd.xlane.f32.xlu0 %v2207
    %v2209 = vpop.xlane.xlu0 %2208
    %v2210 = vsel %vm250, %v2190, 0.0
    %2211 = vadd.xlane.f32.xlu0 %v2210
    %v2212 = vpop.xlane.xlu0 %2211
    %v2213 = vsel %vm250, %v2191, 0.0
    %2214 = vadd.xlane.f32.xlu0 %v2213
    %v2215 = vpop.xlane.xlu0 %2214
    %v2216 = vsel %vm250, %v2192, 0.0
    %2217 = vadd.xlane.f32.xlu0 %v2216
    %v2218 = vpop.xlane.xlu0 %2217
    %v2219 = vsel %vm250, %v2193, 0.0
    %2220 = vadd.xlane.f32.xlu0 %v2219
    %v2221 = vpop.xlane.xlu0 %2220
    %v2222 = vsel %vm250, %v2194, 0.0
    %2223 = vadd.xlane.f32.xlu0 %v2222
    %v2224 = vpop.xlane.xlu0 %2223
    %v2225 = vsel %vm250, %v2195, 0.0
    %2226 = vadd.xlane.f32.xlu0 %v2225
    %v2227 = vpop.xlane.xlu0 %2226
    %v2228 = vsel %vm250, %v2196, 0.0
    %2229 = vadd.xlane.f32.xlu0 %v2228
    %v2230 = vpop.xlane.xlu0 %2229
    %v2231 = vsel %vm250, %v2197, 0.0
    %2232 = vadd.xlane.f32.xlu0 %v2231
    %v2233 = vpop.xlane.xlu0 %2232
    %v2234 = vsel %vm250, %v2198, 0.0
    %2235 = vadd.xlane.f32.xlu0 %v2234
    %v2236 = vpop.xlane.xlu0 %2235
    %v2237 = vsel %vm250, %v2199, 0.0
    %2238 = vadd.xlane.f32.xlu0 %v2237
    %v2239 = vpop.xlane.xlu0 %2238
    %v2240 = vsel %vm250, %v2200, 0.0
    %2241 = vadd.xlane.f32.xlu0 %v2240
    %v2242 = vpop.xlane.xlu0 %2241
    %v2243 = vsel %vm250, %v2201, 0.0
    %2244 = vadd.xlane.f32.xlu0 %v2243
    %v2245 = vpop.xlane.xlu0 %2244
    %v2246 = vsel %vm250, %v2202, 0.0
    %2247 = vadd.xlane.f32.xlu0 %v2246
    %v2248 = vpop.xlane.xlu0 %2247
    %v2249 = vsel %vm250, %v2203, 0.0
    %2250 = vadd.xlane.f32.xlu0 %v2249
    %v2251 = vpop.xlane.xlu0 %2250
    %v2252 = vmul.f32 %v2206, 0.03125
    %v2253 = vmul.f32 %v2209, 0.03125
    %v2254 = vmul.f32 %v2212, 0.03125
    %v2255 = vmul.f32 %v2215, 0.03125
    %v2256 = vmul.f32 %v2218, 0.03125
    %v2257 = vmul.f32 %v2221, 0.03125
    %v2258 = vmul.f32 %v2224, 0.03125
    %v2259 = vmul.f32 %v2227, 0.03125
    %v2260 = vmul.f32 %v2230, 0.03125
    %v2261 = vmul.f32 %v2233, 0.03125
    %v2262 = vmul.f32 %v2236, 0.03125
    %v2263 = vmul.f32 %v2239, 0.03125
    %v2264 = vmul.f32 %v2242, 0.03125
    %v2265 = vmul.f32 %v2245, 0.03125
    %v2266 = vmul.f32 %v2248, 0.03125
    %v2267 = vmul.f32 %v2251, 0.03125
    %2268 = vmatprep.subr.mxu0 0.0
    %2269 = vmatpush1.msra.mxu0 %v2187
    %2270 = vmatprep.subr.mxu0 0.0
    %2271 = vmatpush1.msra.mxu0 %v2186
    %2272 = vmatprep.subr.mxu0 0.0
    %2273 = vmatpush1.msra.mxu0 %v2185
    %2274 = vmatprep.subr.mxu0 0.0
    %2275 = vmatpush1.msra.mxu0 %v2184
    %2276 = vmatprep.subr.mxu0 0.0
    %2277 = vmatpush1.msra.mxu0 %v2183
    %2278 = vmatprep.subr.mxu0 0.0
    %2279 = vmatpush1.msra.mxu0 %v2182
    %2280 = vmatprep.subr.mxu0 0.0
    %2281 = vmatpush1.msra.mxu0 %v2181
    %2282 = vmatprep.subr.mxu0 0.0
    %2283 = vmatpush1.msra.mxu0 %v2180
    %2284 = vmatprep.subr.mxu0 0.0
    %2285 = vmatpush1.msra.mxu0 %v2179
    %2286 = vmatprep.subr.mxu0 0.0
    %2287 = vmatpush1.msra.mxu0 %v2178
    %2288 = vmatprep.subr.mxu0 0.0
    %2289 = vmatpush1.msra.mxu0 %v2177
    %2290 = vmatprep.subr.mxu0 0.0
    %2291 = vmatpush1.msra.mxu0 %v2176
    %2292 = vmatprep.subr.mxu0 0.0
    %2293 = vmatpush1.msra.mxu0 %v2175
    %2294 = vmatprep.subr.mxu0 0.0
    %2295 = vmatpush1.msra.mxu0 %v2174
    %2296 = vmatprep.subr.mxu0 0.0
    %2297 = vmatpush1.msra.mxu0 %v2173
    %2298 = vmatprep.subr.mxu0 0.0
    %2299 = vmatpush1.msra.mxu0 %v2172
    %2300 = vmatprep.subr.mxu0 0.0
    %2301 = vmatpush2.msra.mxu0 0.0
    %2302 = vmatprep.subr.mxu0 0.0
    %2303 = vmatpush2.msra.mxu0 0.0
    %2304 = vmatprep.subr.mxu0 0.0
    %2305 = vmatpush2.msra.mxu0 0.0
    %2306 = vmatprep.subr.mxu0 0.0
    %2307 = vmatpush2.msra.mxu0 0.0
    %2308 = vmatprep.subr.mxu0 0.0
    %2309 = vmatpush2.msra.mxu0 0.0
    %2310 = vmatprep.subr.mxu0 0.0
    %2311 = vmatpush2.msra.mxu0 0.0
    %2312 = vmatprep.subr.mxu0 0.0
    %2313 = vmatpush2.msra.mxu0 0.0
    %2314 = vmatprep.subr.mxu0 0.0
    %2315 = vmatpush2.msra.mxu0 0.0
    %2316 = vmatprep.subr.mxu0 0.0
    %2317 = vmatpush2.msra.mxu0 0.0
    %2318 = vmatprep.subr.mxu0 0.0
    %2319 = vmatpush2.msra.mxu0 0.0
    %2320 = vmatprep.subr.mxu0 0.0
    %2321 = vmatpush2.msra.mxu0 0.0
    %2322 = vmatprep.subr.mxu0 0.0
    %2323 = vmatpush2.msra.mxu0 0.0
    %2324 = vmatprep.subr.mxu0 0.0
    %2325 = vmatpush2.msra.mxu0 0.0
    %2326 = vmatprep.subr.mxu0 0.0
    %2327 = vmatpush2.msra.mxu0 0.0
    %2328 = vmatprep.subr.mxu0 0.0
    %2329 = vmatpush2.msra.mxu0 0.0
    %2330 = vmatprep.subr.mxu0 0.0
    %2331 = vmatpush2.msra.mxu0 0.0
    %2332 = vmatprep.mubr.f32.mxu0 0.0
    %2333 = vmatmul.mubr.f32.gmra.mxu0 %v1072
    %v2334 = vpop.f32.mrf.mxu0
    %v2335 = vadd.f32 0.0, %v2334
    %v2336 = vpop.f32.mrf.mxu0
    %2337 = vmatprep.mubr.f32.mxu0 0.0
    %2338 = vmatmul.mubr.f32.gmra.mxu0 %v1073
    %v2339 = vpop.f32.mrf.mxu0
    %v2340 = vadd.f32 0.0, %v2339
    %v2341 = vpop.f32.mrf.mxu0
    %2342 = vmatprep.mubr.f32.mxu0 0.0
    %2343 = vmatmul.mubr.f32.gmra.mxu0 %v1074
    %v2344 = vpop.f32.mrf.mxu0
    %v2345 = vadd.f32 0.0, %v2344
    %v2346 = vpop.f32.mrf.mxu0
    %2347 = vmatprep.mubr.f32.mxu0 0.0
    %2348 = vmatmul.mubr.f32.gmra.mxu0 %v1075
    %v2349 = vpop.f32.mrf.mxu0
    %v2350 = vadd.f32 0.0, %v2349
    %v2351 = vpop.f32.mrf.mxu0
    %2352 = vmatprep.mubr.f32.mxu0 0.0
    %2353 = vmatmul.mubr.f32.gmra.mxu0 %v1076
    %v2354 = vpop.f32.mrf.mxu0
    %v2355 = vadd.f32 0.0, %v2354
    %v2356 = vpop.f32.mrf.mxu0
    %2357 = vmatprep.mubr.f32.mxu0 0.0
    %2358 = vmatmul.mubr.f32.gmra.mxu0 %v1077
    %v2359 = vpop.f32.mrf.mxu0
    %v2360 = vadd.f32 0.0, %v2359
    %v2361 = vpop.f32.mrf.mxu0
    %2362 = vmatprep.mubr.f32.mxu0 0.0
    %2363 = vmatmul.mubr.f32.gmra.mxu0 %v1078
    %v2364 = vpop.f32.mrf.mxu0
    %v2365 = vadd.f32 0.0, %v2364
    %v2366 = vpop.f32.mrf.mxu0
    %2367 = vmatprep.mubr.f32.mxu0 0.0
    %2368 = vmatmul.mubr.f32.gmra.mxu0 %v1079
    %v2369 = vpop.f32.mrf.mxu0
    %v2370 = vadd.f32 0.0, %v2369
    %v2371 = vpop.f32.mrf.mxu0
    %2372 = vmatprep.mubr.f32.mxu0 0.0
    %2373 = vmatmul.mubr.f32.gmra.mxu0 %v1080
    %v2374 = vpop.f32.mrf.mxu0
    %v2375 = vadd.f32 0.0, %v2374
    %v2376 = vpop.f32.mrf.mxu0
    %2377 = vmatprep.mubr.f32.mxu0 0.0
    %2378 = vmatmul.mubr.f32.gmra.mxu0 %v1081
    %v2379 = vpop.f32.mrf.mxu0
    %v2380 = vadd.f32 0.0, %v2379
    %v2381 = vpop.f32.mrf.mxu0
    %2382 = vmatprep.mubr.f32.mxu0 0.0
    %2383 = vmatmul.mubr.f32.gmra.mxu0 %v1082
    %v2384 = vpop.f32.mrf.mxu0
    %v2385 = vadd.f32 0.0, %v2384
    %v2386 = vpop.f32.mrf.mxu0
    %2387 = vmatprep.mubr.f32.mxu0 0.0
    %2388 = vmatmul.mubr.f32.gmra.mxu0 %v1083
    %v2389 = vpop.f32.mrf.mxu0
    %v2390 = vadd.f32 0.0, %v2389
    %v2391 = vpop.f32.mrf.mxu0
    %2392 = vmatprep.mubr.f32.mxu0 0.0
    %2393 = vmatmul.mubr.f32.gmra.mxu0 %v1084
    %v2394 = vpop.f32.mrf.mxu0
    %v2395 = vadd.f32 0.0, %v2394
    %v2396 = vpop.f32.mrf.mxu0
    %2397 = vmatprep.mubr.f32.mxu0 0.0
    %2398 = vmatmul.mubr.f32.gmra.mxu0 %v1085
    %v2399 = vpop.f32.mrf.mxu0
    %v2400 = vadd.f32 0.0, %v2399
    %v2401 = vpop.f32.mrf.mxu0
    %2402 = vmatprep.mubr.f32.mxu0 0.0
    %2403 = vmatmul.mubr.f32.gmra.mxu0 %v1086
    %v2404 = vpop.f32.mrf.mxu0
    %v2405 = vadd.f32 0.0, %v2404
    %v2406 = vpop.f32.mrf.mxu0
    %2407 = vmatprep.mubr.f32.mxu0 0.0
    %2408 = vmatmul.mubr.f32.gmra.mxu0 %v1087
    %v2409 = vpop.f32.mrf.mxu0
    %v2410 = vadd.f32 0.0, %v2409
    %v2411 = vpop.f32.mrf.mxu0
    %2412 = vdwg.mxu0
    %2413 = vmatprep.subr.mxu0 0.0
    %2414 = vmatpush1.msra.mxu0 %v2267
    %2415 = vmatprep.subr.mxu0 0.0
    %2416 = vmatpush1.msra.mxu0 %v2266
    %2417 = vmatprep.subr.mxu0 0.0
    %2418 = vmatpush1.msra.mxu0 %v2265
    %2419 = vmatprep.subr.mxu0 0.0
    %2420 = vmatpush1.msra.mxu0 %v2264
    %2421 = vmatprep.subr.mxu0 0.0
    %2422 = vmatpush1.msra.mxu0 %v2263
    %2423 = vmatprep.subr.mxu0 0.0
    %2424 = vmatpush1.msra.mxu0 %v2262
    %2425 = vmatprep.subr.mxu0 0.0
    %2426 = vmatpush1.msra.mxu0 %v2261
    %2427 = vmatprep.subr.mxu0 0.0
    %2428 = vmatpush1.msra.mxu0 %v2260
    %2429 = vmatprep.subr.mxu0 0.0
    %2430 = vmatpush1.msra.mxu0 %v2259
    %2431 = vmatprep.subr.mxu0 0.0
    %2432 = vmatpush1.msra.mxu0 %v2258
    %2433 = vmatprep.subr.mxu0 0.0
    %2434 = vmatpush1.msra.mxu0 %v2257
    %2435 = vmatprep.subr.mxu0 0.0
    %2436 = vmatpush1.msra.mxu0 %v2256
    %2437 = vmatprep.subr.mxu0 0.0
    %2438 = vmatpush1.msra.mxu0 %v2255
    %2439 = vmatprep.subr.mxu0 0.0
    %2440 = vmatpush1.msra.mxu0 %v2254
    %2441 = vmatprep.subr.mxu0 0.0
    %2442 = vmatpush1.msra.mxu0 %v2253
    %2443 = vmatprep.subr.mxu0 0.0
    %2444 = vmatpush1.msra.mxu0 %v2252
    %2445 = vmatprep.subr.mxu0 0.0
    %2446 = vmatpush2.msra.mxu0 0.0
    %2447 = vmatprep.subr.mxu0 0.0
    %2448 = vmatpush2.msra.mxu0 0.0
    %2449 = vmatprep.subr.mxu0 0.0
    %2450 = vmatpush2.msra.mxu0 0.0
    %2451 = vmatprep.subr.mxu0 0.0
    %2452 = vmatpush2.msra.mxu0 0.0
    %2453 = vmatprep.subr.mxu0 0.0
    %2454 = vmatpush2.msra.mxu0 0.0
    %2455 = vmatprep.subr.mxu0 0.0
    %2456 = vmatpush2.msra.mxu0 0.0
    %2457 = vmatprep.subr.mxu0 0.0
    %2458 = vmatpush2.msra.mxu0 0.0
    %2459 = vmatprep.subr.mxu0 0.0
    %2460 = vmatpush2.msra.mxu0 0.0
    %2461 = vmatprep.subr.mxu0 0.0
    %2462 = vmatpush2.msra.mxu0 0.0
    %2463 = vmatprep.subr.mxu0 0.0
    %2464 = vmatpush2.msra.mxu0 0.0
    %2465 = vmatprep.subr.mxu0 0.0
    %2466 = vmatpush2.msra.mxu0 0.0
    %2467 = vmatprep.subr.mxu0 0.0
    %2468 = vmatpush2.msra.mxu0 0.0
    %2469 = vmatprep.subr.mxu0 0.0
    %2470 = vmatpush2.msra.mxu0 0.0
    %2471 = vmatprep.subr.mxu0 0.0
    %2472 = vmatpush2.msra.mxu0 0.0
    %2473 = vmatprep.subr.mxu0 0.0
    %2474 = vmatpush2.msra.mxu0 0.0
    %2475 = vmatprep.subr.mxu0 0.0
    %2476 = vmatpush2.msra.mxu0 0.0
    %2477 = vmatprep.mubr.f32.mxu0 0.0
    %2478 = vmatmul.mubr.f32.gmra.mxu0 %v1072
    %v2479 = vpop.f32.mrf.mxu0
    %v2480 = vadd.f32 0.0, %v2479
    %v2481 = vpop.f32.mrf.mxu0
    %2482 = vmatprep.mubr.f32.mxu0 0.0
    %2483 = vmatmul.mubr.f32.gmra.mxu0 %v1073
    %v2484 = vpop.f32.mrf.mxu0
    %v2485 = vadd.f32 0.0, %v2484
    %v2486 = vpop.f32.mrf.mxu0
    %2487 = vmatprep.mubr.f32.mxu0 0.0
    %2488 = vmatmul.mubr.f32.gmra.mxu0 %v1074
    %v2489 = vpop.f32.mrf.mxu0
    %v2490 = vadd.f32 0.0, %v2489
    %v2491 = vpop.f32.mrf.mxu0
    %2492 = vmatprep.mubr.f32.mxu0 0.0
    %2493 = vmatmul.mubr.f32.gmra.mxu0 %v1075
    %v2494 = vpop.f32.mrf.mxu0
    %v2495 = vadd.f32 0.0, %v2494
    %v2496 = vpop.f32.mrf.mxu0
    %2497 = vmatprep.mubr.f32.mxu0 0.0
    %2498 = vmatmul.mubr.f32.gmra.mxu0 %v1076
    %v2499 = vpop.f32.mrf.mxu0
    %v2500 = vadd.f32 0.0, %v2499
    %v2501 = vpop.f32.mrf.mxu0
    %2502 = vmatprep.mubr.f32.mxu0 0.0
    %2503 = vmatmul.mubr.f32.gmra.mxu0 %v1077
    %v2504 = vpop.f32.mrf.mxu0
    %v2505 = vadd.f32 0.0, %v2504
    %v2506 = vpop.f32.mrf.mxu0
    %2507 = vmatprep.mubr.f32.mxu0 0.0
    %2508 = vmatmul.mubr.f32.gmra.mxu0 %v1078
    %v2509 = vpop.f32.mrf.mxu0
    %v2510 = vadd.f32 0.0, %v2509
    %v2511 = vpop.f32.mrf.mxu0
    %2512 = vmatprep.mubr.f32.mxu0 0.0
    %2513 = vmatmul.mubr.f32.gmra.mxu0 %v1079
    %v2514 = vpop.f32.mrf.mxu0
    %v2515 = vadd.f32 0.0, %v2514
    %v2516 = vpop.f32.mrf.mxu0
    %2517 = vmatprep.mubr.f32.mxu0 0.0
    %2518 = vmatmul.mubr.f32.gmra.mxu0 %v1080
    %v2519 = vpop.f32.mrf.mxu0
    %v2520 = vadd.f32 0.0, %v2519
    %v2521 = vpop.f32.mrf.mxu0
    %2522 = vmatprep.mubr.f32.mxu0 0.0
    %2523 = vmatmul.mubr.f32.gmra.mxu0 %v1081
    %v2524 = vpop.f32.mrf.mxu0
    %v2525 = vadd.f32 0.0, %v2524
    %v2526 = vpop.f32.mrf.mxu0
    %2527 = vmatprep.mubr.f32.mxu0 0.0
    %2528 = vmatmul.mubr.f32.gmra.mxu0 %v1082
    %v2529 = vpop.f32.mrf.mxu0
    %v2530 = vadd.f32 0.0, %v2529
    %v2531 = vpop.f32.mrf.mxu0
    %2532 = vmatprep.mubr.f32.mxu0 0.0
    %2533 = vmatmul.mubr.f32.gmra.mxu0 %v1083
    %v2534 = vpop.f32.mrf.mxu0
    %v2535 = vadd.f32 0.0, %v2534
    %v2536 = vpop.f32.mrf.mxu0
    %2537 = vmatprep.mubr.f32.mxu0 0.0
    %2538 = vmatmul.mubr.f32.gmra.mxu0 %v1084
    %v2539 = vpop.f32.mrf.mxu0
    %v2540 = vadd.f32 0.0, %v2539
    %v2541 = vpop.f32.mrf.mxu0
    %2542 = vmatprep.mubr.f32.mxu0 0.0
    %2543 = vmatmul.mubr.f32.gmra.mxu0 %v1085
    %v2544 = vpop.f32.mrf.mxu0
    %v2545 = vadd.f32 0.0, %v2544
    %v2546 = vpop.f32.mrf.mxu0
    %2547 = vmatprep.mubr.f32.mxu0 0.0
    %2548 = vmatmul.mubr.f32.gmra.mxu0 %v1086
    %v2549 = vpop.f32.mrf.mxu0
    %v2550 = vadd.f32 0.0, %v2549
    %v2551 = vpop.f32.mrf.mxu0
    %2552 = vmatprep.mubr.f32.mxu0 0.0
    %2553 = vmatmul.mubr.f32.gmra.mxu0 %v1087
    %v2554 = vpop.f32.mrf.mxu0
    %v2555 = vadd.f32 0.0, %v2554
    %v2556 = vpop.f32.mrf.mxu0
    %2557 = vdwg.mxu0
    %v2558 = vmul.f32 %v2335, %v2335
    %v2559 = vmul.f32 %v2340, %v2340
    %v2560 = vmul.f32 %v2345, %v2345
    %v2561 = vmul.f32 %v2350, %v2350
    %v2562 = vmul.f32 %v2355, %v2355
    %v2563 = vmul.f32 %v2360, %v2360
    %v2564 = vmul.f32 %v2365, %v2365
    %v2565 = vmul.f32 %v2370, %v2370
    %v2566 = vmul.f32 %v2375, %v2375
    %v2567 = vmul.f32 %v2380, %v2380
    %v2568 = vmul.f32 %v2385, %v2385
    %v2569 = vmul.f32 %v2390, %v2390
    %v2570 = vmul.f32 %v2395, %v2395
    %v2571 = vmul.f32 %v2400, %v2400
    %v2572 = vmul.f32 %v2405, %v2405
    %v2573 = vmul.f32 %v2410, %v2410
    %v2574 = vsub.f32 %v2480, %v2558
    %v2575 = vsub.f32 %v2485, %v2559
    %v2576 = vsub.f32 %v2490, %v2560
    %v2577 = vsub.f32 %v2495, %v2561
    %v2578 = vsub.f32 %v2500, %v2562
    %v2579 = vsub.f32 %v2505, %v2563
    %v2580 = vsub.f32 %v2510, %v2564
    %v2581 = vsub.f32 %v2515, %v2565
    %v2582 = vsub.f32 %v2520, %v2566
    %v2583 = vsub.f32 %v2525, %v2567
    %v2584 = vsub.f32 %v2530, %v2568
    %v2585 = vsub.f32 %v2535, %v2569
    %v2586 = vsub.f32 %v2540, %v2570
    %v2587 = vsub.f32 %v2545, %v2571
    %v2588 = vsub.f32 %v2550, %v2572
    %v2589 = vsub.f32 %v2555, %v2573
    %2591 = vset.pattern.permute.xlu0 0
    %2592 = vperm.xlu0 %2591, %v2335
    %v2593 = vpop.permute.xlu0 %2592
    %2596 = vset.pattern.permute.xlu0 0
    %2597 = vperm.xlu0 %2596, %v2340
    %v2598 = vpop.permute.xlu0 %2597
    %2601 = vset.pattern.permute.xlu0 0
    %2602 = vperm.xlu0 %2601, %v2345
    %v2603 = vpop.permute.xlu0 %2602
    %2606 = vset.pattern.permute.xlu0 0
    %2607 = vperm.xlu0 %2606, %v2350
    %v2608 = vpop.permute.xlu0 %2607
    %2611 = vset.pattern.permute.xlu0 0
    %2612 = vperm.xlu0 %2611, %v2355
    %v2613 = vpop.permute.xlu0 %2612
    %2616 = vset.pattern.permute.xlu0 0
    %2617 = vperm.xlu0 %2616, %v2360
    %v2618 = vpop.permute.xlu0 %2617
    %2621 = vset.pattern.permute.xlu0 0
    %2622 = vperm.xlu0 %2621, %v2365
    %v2623 = vpop.permute.xlu0 %2622
    %2626 = vset.pattern.permute.xlu0 0
    %2627 = vperm.xlu0 %2626, %v2370
    %v2628 = vpop.permute.xlu0 %2627
    %2631 = vset.pattern.permute.xlu0 0
    %2632 = vperm.xlu0 %2631, %v2375
    %v2633 = vpop.permute.xlu0 %2632
    %2636 = vset.pattern.permute.xlu0 0
    %2637 = vperm.xlu0 %2636, %v2380
    %v2638 = vpop.permute.xlu0 %2637
    %2641 = vset.pattern.permute.xlu0 0
    %2642 = vperm.xlu0 %2641, %v2385
    %v2643 = vpop.permute.xlu0 %2642
    %2646 = vset.pattern.permute.xlu0 0
    %2647 = vperm.xlu0 %2646, %v2390
    %v2648 = vpop.permute.xlu0 %2647
    %2651 = vset.pattern.permute.xlu0 0
    %2652 = vperm.xlu0 %2651, %v2395
    %v2653 = vpop.permute.xlu0 %2652
    %2656 = vset.pattern.permute.xlu0 0
    %2657 = vperm.xlu0 %2656, %v2400
    %v2658 = vpop.permute.xlu0 %2657
    %2661 = vset.pattern.permute.xlu0 0
    %2662 = vperm.xlu0 %2661, %v2405
    %v2663 = vpop.permute.xlu0 %2662
    %2666 = vset.pattern.permute.xlu0 0
    %2667 = vperm.xlu0 %2666, %v2410
    %v2668 = vpop.permute.xlu0 %2667
    %v2670 = vsub.f32 %v2108, %v2593
    %v2671 = vsub.f32 %v2109, %v2598
    %v2672 = vsub.f32 %v2110, %v2603
    %v2673 = vsub.f32 %v2111, %v2608
    %v2674 = vsub.f32 %v2112, %v2613
    %v2675 = vsub.f32 %v2113, %v2618
    %v2676 = vsub.f32 %v2114, %v2623
    %v2677 = vsub.f32 %v2115, %v2628
    %v2678 = vsub.f32 %v2116, %v2633
    %v2679 = vsub.f32 %v2117, %v2638
    %v2680 = vsub.f32 %v2118, %v2643
    %v2681 = vsub.f32 %v2119, %v2648
    %v2682 = vsub.f32 %v2120, %v2653
    %v2683 = vsub.f32 %v2121, %v2658
    %v2684 = vsub.f32 %v2122, %v2663
    %v2685 = vsub.f32 %v2123, %v2668
    %v2686 = vadd.f32 %v2574, 1e-05
    %v2687 = vadd.f32 %v2575, 1e-05
    %v2688 = vadd.f32 %v2576, 1e-05
    %v2689 = vadd.f32 %v2577, 1e-05
    %v2690 = vadd.f32 %v2578, 1e-05
    %v2691 = vadd.f32 %v2579, 1e-05
    %v2692 = vadd.f32 %v2580, 1e-05
    %v2693 = vadd.f32 %v2581, 1e-05
    %v2694 = vadd.f32 %v2582, 1e-05
    %v2695 = vadd.f32 %v2583, 1e-05
    %v2696 = vadd.f32 %v2584, 1e-05
    %v2697 = vadd.f32 %v2585, 1e-05
    %v2698 = vadd.f32 %v2586, 1e-05
    %v2699 = vadd.f32 %v2587, 1e-05
    %v2700 = vadd.f32 %v2588, 1e-05
    %v2701 = vadd.f32 %v2589, 1e-05
    %v2702 = vrsqrt.pop %v2686
    %v2703 = vrsqrt.pop %v2687
    %v2704 = vrsqrt.pop %v2688
    %v2705 = vrsqrt.pop %v2689
    %v2706 = vrsqrt.pop %v2690
    %v2707 = vrsqrt.pop %v2691
    %v2708 = vrsqrt.pop %v2692
    %v2709 = vrsqrt.pop %v2693
    %v2710 = vrsqrt.pop %v2694
    %v2711 = vrsqrt.pop %v2695
    %v2712 = vrsqrt.pop %v2696
    %v2713 = vrsqrt.pop %v2697
    %v2714 = vrsqrt.pop %v2698
    %v2715 = vrsqrt.pop %v2699
    %v2716 = vrsqrt.pop %v2700
    %v2717 = vrsqrt.pop %v2701
    %2719 = vset.pattern.permute.xlu0 0
    %2720 = vperm.xlu0 %2719, %v2702
    %v2721 = vpop.permute.xlu0 %2720
    %2724 = vset.pattern.permute.xlu0 0
    %2725 = vperm.xlu0 %2724, %v2703
    %v2726 = vpop.permute.xlu0 %2725
    %2729 = vset.pattern.permute.xlu0 0
    %2730 = vperm.xlu0 %2729, %v2704
    %v2731 = vpop.permute.xlu0 %2730
    %2734 = vset.pattern.permute.xlu0 0
    %2735 = vperm.xlu0 %2734, %v2705
    %v2736 = vpop.permute.xlu0 %2735
    %2739 = vset.pattern.permute.xlu0 0
    %2740 = vperm.xlu0 %2739, %v2706
    %v2741 = vpop.permute.xlu0 %2740
    %2744 = vset.pattern.permute.xlu0 0
    %2745 = vperm.xlu0 %2744, %v2707
    %v2746 = vpop.permute.xlu0 %2745
    %2749 = vset.pattern.permute.xlu0 0
    %2750 = vperm.xlu0 %2749, %v2708
    %v2751 = vpop.permute.xlu0 %2750
    %2754 = vset.pattern.permute.xlu0 0
    %2755 = vperm.xlu0 %2754, %v2709
    %v2756 = vpop.permute.xlu0 %2755
    %2759 = vset.pattern.permute.xlu0 0
    %2760 = vperm.xlu0 %2759, %v2710
    %v2761 = vpop.permute.xlu0 %2760
    %2764 = vset.pattern.permute.xlu0 0
    %2765 = vperm.xlu0 %2764, %v2711
    %v2766 = vpop.permute.xlu0 %2765
    %2769 = vset.pattern.permute.xlu0 0
    %2770 = vperm.xlu0 %2769, %v2712
    %v2771 = vpop.permute.xlu0 %2770
    %2774 = vset.pattern.permute.xlu0 0
    %2775 = vperm.xlu0 %2774, %v2713
    %v2776 = vpop.permute.xlu0 %2775
    %2779 = vset.pattern.permute.xlu0 0
    %2780 = vperm.xlu0 %2779, %v2714
    %v2781 = vpop.permute.xlu0 %2780
    %2784 = vset.pattern.permute.xlu0 0
    %2785 = vperm.xlu0 %2784, %v2715
    %v2786 = vpop.permute.xlu0 %2785
    %2789 = vset.pattern.permute.xlu0 0
    %2790 = vperm.xlu0 %2789, %v2716
    %v2791 = vpop.permute.xlu0 %2790
    %2794 = vset.pattern.permute.xlu0 0
    %2795 = vperm.xlu0 %2794, %v2717
    %v2796 = vpop.permute.xlu0 %2795
    %v2798 = vmul.f32 %v2670, %v2721
    %v2799 = vmul.f32 %v2671, %v2726
    %v2800 = vmul.f32 %v2672, %v2731
    %v2801 = vmul.f32 %v2673, %v2736
    %v2802 = vmul.f32 %v2674, %v2741
    %v2803 = vmul.f32 %v2675, %v2746
    %v2804 = vmul.f32 %v2676, %v2751
    %v2805 = vmul.f32 %v2677, %v2756
    %v2806 = vmul.f32 %v2678, %v2761
    %v2807 = vmul.f32 %v2679, %v2766
    %v2808 = vmul.f32 %v2680, %v2771
    %v2809 = vmul.f32 %v2681, %v2776
    %v2810 = vmul.f32 %v2682, %v2781
    %v2811 = vmul.f32 %v2683, %v2786
    %v2812 = vmul.f32 %v2684, %v2791
    %v2813 = vmul.f32 %v2685, %v2796
    %2814 = vset.pattern.permute.xlu0 2
    %2815 = vperm.xlu0 %2814, %v912
    %v2816 = vpop.permute.xlu0 %2815
    %2818 = vset.pattern.permute.xlu0 2
    %2819 = vperm.xlu0 %2818, %v913
    %v2820 = vpop.permute.xlu0 %2819
    %2822 = vset.pattern.permute.xlu0 2
    %2823 = vperm.xlu0 %2822, %v914
    %v2824 = vpop.permute.xlu0 %2823
    %2826 = vset.pattern.permute.xlu0 2
    %2827 = vperm.xlu0 %2826, %v915
    %v2828 = vpop.permute.xlu0 %2827
    %2830 = vset.pattern.permute.xlu0 2
    %2831 = vperm.xlu0 %2830, %v916
    %v2832 = vpop.permute.xlu0 %2831
    %2834 = vset.pattern.permute.xlu0 2
    %2835 = vperm.xlu0 %2834, %v917
    %v2836 = vpop.permute.xlu0 %2835
    %2838 = vset.pattern.permute.xlu0 2
    %2839 = vperm.xlu0 %2838, %v918
    %v2840 = vpop.permute.xlu0 %2839
    %2842 = vset.pattern.permute.xlu0 2
    %2843 = vperm.xlu0 %2842, %v919
    %v2844 = vpop.permute.xlu0 %2843
    %2846 = vset.pattern.permute.xlu0 2
    %2847 = vperm.xlu0 %2846, %v920
    %v2848 = vpop.permute.xlu0 %2847
    %2850 = vset.pattern.permute.xlu0 2
    %2851 = vperm.xlu0 %2850, %v921
    %v2852 = vpop.permute.xlu0 %2851
    %2854 = vset.pattern.permute.xlu0 2
    %2855 = vperm.xlu0 %2854, %v922
    %v2856 = vpop.permute.xlu0 %2855
    %2858 = vset.pattern.permute.xlu0 2
    %2859 = vperm.xlu0 %2858, %v923
    %v2860 = vpop.permute.xlu0 %2859
    %2862 = vset.pattern.permute.xlu0 2
    %2863 = vperm.xlu0 %2862, %v924
    %v2864 = vpop.permute.xlu0 %2863
    %2866 = vset.pattern.permute.xlu0 2
    %2867 = vperm.xlu0 %2866, %v925
    %v2868 = vpop.permute.xlu0 %2867
    %2870 = vset.pattern.permute.xlu0 2
    %2871 = vperm.xlu0 %2870, %v926
    %v2872 = vpop.permute.xlu0 %2871
    %2874 = vset.pattern.permute.xlu0 2
    %2875 = vperm.xlu0 %2874, %v927
    %v2876 = vpop.permute.xlu0 %2875
    %v2878 = vmul.f32 %v2798, %v2816
    %v2879 = vmul.f32 %v2799, %v2820
    %v2880 = vmul.f32 %v2800, %v2824
    %v2881 = vmul.f32 %v2801, %v2828
    %v2882 = vmul.f32 %v2802, %v2832
    %v2883 = vmul.f32 %v2803, %v2836
    %v2884 = vmul.f32 %v2804, %v2840
    %v2885 = vmul.f32 %v2805, %v2844
    %v2886 = vmul.f32 %v2806, %v2848
    %v2887 = vmul.f32 %v2807, %v2852
    %v2888 = vmul.f32 %v2808, %v2856
    %v2889 = vmul.f32 %v2809, %v2860
    %v2890 = vmul.f32 %v2810, %v2864
    %v2891 = vmul.f32 %v2811, %v2868
    %v2892 = vmul.f32 %v2812, %v2872
    %v2893 = vmul.f32 %v2813, %v2876
    %2894 = vset.pattern.permute.xlu0 3
    %2895 = vperm.xlu0 %2894, %v912
    %v2896 = vpop.permute.xlu0 %2895
    %2898 = vset.pattern.permute.xlu0 3
    %2899 = vperm.xlu0 %2898, %v913
    %v2900 = vpop.permute.xlu0 %2899
    %2902 = vset.pattern.permute.xlu0 3
    %2903 = vperm.xlu0 %2902, %v914
    %v2904 = vpop.permute.xlu0 %2903
    %2906 = vset.pattern.permute.xlu0 3
    %2907 = vperm.xlu0 %2906, %v915
    %v2908 = vpop.permute.xlu0 %2907
    %2910 = vset.pattern.permute.xlu0 3
    %2911 = vperm.xlu0 %2910, %v916
    %v2912 = vpop.permute.xlu0 %2911
    %2914 = vset.pattern.permute.xlu0 3
    %2915 = vperm.xlu0 %2914, %v917
    %v2916 = vpop.permute.xlu0 %2915
    %2918 = vset.pattern.permute.xlu0 3
    %2919 = vperm.xlu0 %2918, %v918
    %v2920 = vpop.permute.xlu0 %2919
    %2922 = vset.pattern.permute.xlu0 3
    %2923 = vperm.xlu0 %2922, %v919
    %v2924 = vpop.permute.xlu0 %2923
    %2926 = vset.pattern.permute.xlu0 3
    %2927 = vperm.xlu0 %2926, %v920
    %v2928 = vpop.permute.xlu0 %2927
    %2930 = vset.pattern.permute.xlu0 3
    %2931 = vperm.xlu0 %2930, %v921
    %v2932 = vpop.permute.xlu0 %2931
    %2934 = vset.pattern.permute.xlu0 3
    %2935 = vperm.xlu0 %2934, %v922
    %v2936 = vpop.permute.xlu0 %2935
    %2938 = vset.pattern.permute.xlu0 3
    %2939 = vperm.xlu0 %2938, %v923
    %v2940 = vpop.permute.xlu0 %2939
    %2942 = vset.pattern.permute.xlu0 3
    %2943 = vperm.xlu0 %2942, %v924
    %v2944 = vpop.permute.xlu0 %2943
    %2946 = vset.pattern.permute.xlu0 3
    %2947 = vperm.xlu0 %2946, %v925
    %v2948 = vpop.permute.xlu0 %2947
    %2950 = vset.pattern.permute.xlu0 3
    %2951 = vperm.xlu0 %2950, %v926
    %v2952 = vpop.permute.xlu0 %2951
    %2954 = vset.pattern.permute.xlu0 3
    %2955 = vperm.xlu0 %2954, %v927
    %v2956 = vpop.permute.xlu0 %2955
    %v2958 = vadd.f32 %v2878, %v2896
    %v2959 = vadd.f32 %v2879, %v2900
    %v2960 = vadd.f32 %v2880, %v2904
    %v2961 = vadd.f32 %v2881, %v2908
    %v2962 = vadd.f32 %v2882, %v2912
    %v2963 = vadd.f32 %v2883, %v2916
    %v2964 = vadd.f32 %v2884, %v2920
    %v2965 = vadd.f32 %v2885, %v2924
    %v2966 = vadd.f32 %v2886, %v2928
    %v2967 = vadd.f32 %v2887, %v2932
    %v2968 = vadd.f32 %v2888, %v2936
    %v2969 = vadd.f32 %v2889, %v2940
    %v2970 = vadd.f32 %v2890, %v2944
    %v2971 = vadd.f32 %v2891, %v2948
    %v2972 = vadd.f32 %v2892, %v2952
    %v2973 = vadd.f32 %v2893, %v2956
    %v2974 = vld [vmem:[#allocation10 + $0x80] sm:$0xff]
    %v2975 = vld [vmem:[#allocation10 + $0x88] sm:$0xff]
    %v2976 = vld [vmem:[#allocation10 + $0x90] sm:$0xff]
    %v2977 = vld [vmem:[#allocation10 + $0x98] sm:$0xff]
    %v2978 = vld [vmem:[%s7 + $0x6] sm:$0x1]
    %v2979 = vlaneseq
    %v2980 = vshrl.u32 %v2979, 7
    %v2981 = vsub.s32 0, %v2980
    %v2982 = vrot.slane %v2978, %v2981
    %v2984 = vsel %vm250, %v2958, 0
    %v2987 = vsel %vm250, %v2959, 0
    %v2990 = vsel %vm250, %v2960, 0
    %v2993 = vsel %vm250, %v2961, 0
    %v2996 = vsel %vm250, %v2962, 0
    %v2999 = vsel %vm250, %v2963, 0
    %v3002 = vsel %vm250, %v2964, 0
    %v3005 = vsel %vm250, %v2965, 0
    %v3008 = vsel %vm250, %v2966, 0
    %v3011 = vsel %vm250, %v2967, 0
    %v3014 = vsel %vm250, %v2968, 0
    %v3017 = vsel %vm250, %v2969, 0
    %v3020 = vsel %vm250, %v2970, 0
    %v3023 = vsel %vm250, %v2971, 0
    %v3026 = vsel %vm250, %v2972, 0
    %v3029 = vsel %vm250, %v2973, 0
    %3031 = vmatprep.subr.mxu0 0.0
    %3032 = vmatpush1.msra.mxu0 0.0
    %3033 = vmatprep.subr.mxu0 0.0
    %3034 = vmatpush1.msra.mxu0 0.0
    %3035 = vmatprep.subr.mxu0 0.0
    %3036 = vmatpush1.msra.mxu0 0.0
    %3037 = vmatprep.subr.mxu0 0.0
    %3038 = vmatpush1.msra.mxu0 0.0
    %3039 = vmatprep.subr.mxu0 0.0
    %3040 = vmatpush1.msra.mxu0 0.0
    %3041 = vmatprep.subr.mxu0 0.0
    %3042 = vmatpush1.msra.mxu0 0.0
    %3043 = vmatprep.subr.mxu0 0.0
    %3044 = vmatpush1.msra.mxu0 0.0
    %3045 = vmatprep.subr.mxu0 0.0
    %3046 = vmatpush1.msra.mxu0 0.0
    %3047 = vmatprep.subr.mxu0 0.0
    %3048 = vmatpush1.msra.mxu0 0.0
    %3049 = vmatprep.subr.mxu0 0.0
    %3050 = vmatpush1.msra.mxu0 0.0
    %3051 = vmatprep.subr.mxu0 0.0
    %3052 = vmatpush1.msra.mxu0 0.0
    %3053 = vmatprep.subr.mxu0 0.0
    %3054 = vmatpush1.msra.mxu0 0.0
    %3055 = vmatprep.subr.mxu0 0.0
    %3056 = vmatpush1.msra.mxu0 %v2977
    %3057 = vmatprep.subr.mxu0 0.0
    %3058 = vmatpush1.msra.mxu0 %v2976
    %3059 = vmatprep.subr.mxu0 0.0
    %3060 = vmatpush1.msra.mxu0 %v2975
    %3061 = vmatprep.subr.mxu0 0.0
    %3062 = vmatpush1.msra.mxu0 %v2974
    %3063 = vmatprep.subr.mxu0 0.0
    %3064 = vmatpush2.msra.mxu0 0.0
    %3065 = vmatprep.subr.mxu0 0.0
    %3066 = vmatpush2.msra.mxu0 0.0
    %3067 = vmatprep.subr.mxu0 0.0
    %3068 = vmatpush2.msra.mxu0 0.0
    %3069 = vmatprep.subr.mxu0 0.0
    %3070 = vmatpush2.msra.mxu0 0.0
    %3071 = vmatprep.subr.mxu0 0.0
    %3072 = vmatpush2.msra.mxu0 0.0
    %3073 = vmatprep.subr.mxu0 0.0
    %3074 = vmatpush2.msra.mxu0 0.0
    %3075 = vmatprep.subr.mxu0 0.0
    %3076 = vmatpush2.msra.mxu0 0.0
    %3077 = vmatprep.subr.mxu0 0.0
    %3078 = vmatpush2.msra.mxu0 0.0
    %3079 = vmatprep.subr.mxu0 0.0
    %3080 = vmatpush2.msra.mxu0 0.0
    %3081 = vmatprep.subr.mxu0 0.0
    %3082 = vmatpush2.msra.mxu0 0.0
    %3083 = vmatprep.subr.mxu0 0.0
    %3084 = vmatpush2.msra.mxu0 0.0
    %3085 = vmatprep.subr.mxu0 0.0
    %3086 = vmatpush2.msra.mxu0 0.0
    %3087 = vmatprep.subr.mxu0 0.0
    %3088 = vmatpush2.msra.mxu0 0.0
    %3089 = vmatprep.subr.mxu0 0.0
    %3090 = vmatpush2.msra.mxu0 0.0
    %3091 = vmatprep.subr.mxu0 0.0
    %3092 = vmatpush2.msra.mxu0 0.0
    %3093 = vmatprep.subr.mxu0 0.0
    %3094 = vmatpush2.msra.mxu0 0.0
    %3095 = vmatprep.mubr.f32.mxu0 0.0
    %3096 = vmatmul.mubr.f32.gmra.mxu0 %v2984
    %v3097 = vpop.f32.mrf.mxu0
    %v3098 = vadd.f32 %v2982, %v3097
    %v3099 = vpop.f32.mrf.mxu0
    %3100 = vmatprep.mubr.f32.mxu0 0.0
    %3101 = vmatmul.mubr.f32.gmra.mxu0 %v2987
    %v3102 = vpop.f32.mrf.mxu0
    %v3103 = vadd.f32 %v2982, %v3102
    %v3104 = vpop.f32.mrf.mxu0
    %3105 = vmatprep.mubr.f32.mxu0 0.0
    %3106 = vmatmul.mubr.f32.gmra.mxu0 %v2990
    %v3107 = vpop.f32.mrf.mxu0
    %v3108 = vadd.f32 %v2982, %v3107
    %v3109 = vpop.f32.mrf.mxu0
    %3110 = vmatprep.mubr.f32.mxu0 0.0
    %3111 = vmatmul.mubr.f32.gmra.mxu0 %v2993
    %v3112 = vpop.f32.mrf.mxu0
    %v3113 = vadd.f32 %v2982, %v3112
    %v3114 = vpop.f32.mrf.mxu0
    %3115 = vmatprep.mubr.f32.mxu0 0.0
    %3116 = vmatmul.mubr.f32.gmra.mxu0 %v2996
    %v3117 = vpop.f32.mrf.mxu0
    %v3118 = vadd.f32 %v2982, %v3117
    %v3119 = vpop.f32.mrf.mxu0
    %3120 = vmatprep.mubr.f32.mxu0 0.0
    %3121 = vmatmul.mubr.f32.gmra.mxu0 %v2999
    %v3122 = vpop.f32.mrf.mxu0
    %v3123 = vadd.f32 %v2982, %v3122
    %v3124 = vpop.f32.mrf.mxu0
    %3125 = vmatprep.mubr.f32.mxu0 0.0
    %3126 = vmatmul.mubr.f32.gmra.mxu0 %v3002
    %v3127 = vpop.f32.mrf.mxu0
    %v3128 = vadd.f32 %v2982, %v3127
    %v3129 = vpop.f32.mrf.mxu0
    %3130 = vmatprep.mubr.f32.mxu0 0.0
    %3131 = vmatmul.mubr.f32.gmra.mxu0 %v3005
    %v3132 = vpop.f32.mrf.mxu0
    %v3133 = vadd.f32 %v2982, %v3132
    %v3134 = vpop.f32.mrf.mxu0
    %3135 = vmatprep.mubr.f32.mxu0 0.0
    %3136 = vmatmul.mubr.f32.gmra.mxu0 %v3008
    %v3137 = vpop.f32.mrf.mxu0
    %v3138 = vadd.f32 %v2982, %v3137
    %v3139 = vpop.f32.mrf.mxu0
    %3140 = vmatprep.mubr.f32.mxu0 0.0
    %3141 = vmatmul.mubr.f32.gmra.mxu0 %v3011
    %v3142 = vpop.f32.mrf.mxu0
    %v3143 = vadd.f32 %v2982, %v3142
    %v3144 = vpop.f32.mrf.mxu0
    %3145 = vmatprep.mubr.f32.mxu0 0.0
    %3146 = vmatmul.mubr.f32.gmra.mxu0 %v3014
    %v3147 = vpop.f32.mrf.mxu0
    %v3148 = vadd.f32 %v2982, %v3147
    %v3149 = vpop.f32.mrf.mxu0
    %3150 = vmatprep.mubr.f32.mxu0 0.0
    %3151 = vmatmul.mubr.f32.gmra.mxu0 %v3017
    %v3152 = vpop.f32.mrf.mxu0
    %v3153 = vadd.f32 %v2982, %v3152
    %v3154 = vpop.f32.mrf.mxu0
    %3155 = vmatprep.mubr.f32.mxu0 0.0
    %3156 = vmatmul.mubr.f32.gmra.mxu0 %v3020
    %v3157 = vpop.f32.mrf.mxu0
    %v3158 = vadd.f32 %v2982, %v3157
    %v3159 = vpop.f32.mrf.mxu0
    %3160 = vmatprep.mubr.f32.mxu0 0.0
    %3161 = vmatmul.mubr.f32.gmra.mxu0 %v3023
    %v3162 = vpop.f32.mrf.mxu0
    %v3163 = vadd.f32 %v2982, %v3162
    %v3164 = vpop.f32.mrf.mxu0
    %3165 = vmatprep.mubr.f32.mxu0 0.0
    %3166 = vmatmul.mubr.f32.gmra.mxu0 %v3026
    %v3167 = vpop.f32.mrf.mxu0
    %v3168 = vadd.f32 %v2982, %v3167
    %v3169 = vpop.f32.mrf.mxu0
    %3170 = vmatprep.mubr.f32.mxu0 0.0
    %3171 = vmatmul.mubr.f32.gmra.mxu0 %v3029
    %v3172 = vpop.f32.mrf.mxu0
    %v3173 = vadd.f32 %v2982, %v3172
    %v3174 = vpop.f32.mrf.mxu0
    %3175 = vdwg.mxu0
    %v3176 = vxor.u32 %v3098, 2147483648
    %v3177 = vxor.u32 %v3103, 2147483648
    %v3178 = vxor.u32 %v3108, 2147483648
    %v3179 = vxor.u32 %v3113, 2147483648
    %v3180 = vxor.u32 %v3118, 2147483648
    %v3181 = vxor.u32 %v3123, 2147483648
    %v3182 = vxor.u32 %v3128, 2147483648
    %v3183 = vxor.u32 %v3133, 2147483648
    %v3184 = vxor.u32 %v3138, 2147483648
    %v3185 = vxor.u32 %v3143, 2147483648
    %v3186 = vxor.u32 %v3148, 2147483648
    %v3187 = vxor.u32 %v3153, 2147483648
    %v3188 = vxor.u32 %v3158, 2147483648
    %v3189 = vxor.u32 %v3163, 2147483648
    %v3190 = vxor.u32 %v3168, 2147483648
    %v3191 = vxor.u32 %v3173, 2147483648
    %v3192 = vmul.f32 %v3176, 1.442695
    %v3193 = vpow.pop %v3192
    %v3194 = vmul.f32 %v3177, 1.442695
    %v3195 = vpow.pop %v3194
    %v3196 = vmul.f32 %v3178, 1.442695
    %v3197 = vpow.pop %v3196
    %v3198 = vmul.f32 %v3179, 1.442695
    %v3199 = vpow.pop %v3198
    %v3200 = vmul.f32 %v3180, 1.442695
    %v3201 = vpow.pop %v3200
    %v3202 = vmul.f32 %v3181, 1.442695
    %v3203 = vpow.pop %v3202
    %v3204 = vmul.f32 %v3182, 1.442695
    %v3205 = vpow.pop %v3204
    %v3206 = vmul.f32 %v3183, 1.442695
    %v3207 = vpow.pop %v3206
    %v3208 = vmul.f32 %v3184, 1.442695
    %v3209 = vpow.pop %v3208
    %v3210 = vmul.f32 %v3185, 1.442695
    %v3211 = vpow.pop %v3210
    %v3212 = vmul.f32 %v3186, 1.442695
    %v3213 = vpow.pop %v3212
    %v3214 = vmul.f32 %v3187, 1.442695
    %v3215 = vpow.pop %v3214
    %v3216 = vmul.f32 %v3188, 1.442695
    %v3217 = vpow.pop %v3216
    %v3218 = vmul.f32 %v3189, 1.442695
    %v3219 = vpow.pop %v3218
    %v3220 = vmul.f32 %v3190, 1.442695
    %v3221 = vpow.pop %v3220
    %v3222 = vmul.f32 %v3191, 1.442695
    %v3223 = vpow.pop %v3222
    %v3224 = vadd.f32 %v3193, 1.0
    %v3225 = vadd.f32 %v3195, 1.0
    %v3226 = vadd.f32 %v3197, 1.0
    %v3227 = vadd.f32 %v3199, 1.0
    %v3228 = vadd.f32 %v3201, 1.0
    %v3229 = vadd.f32 %v3203, 1.0
    %v3230 = vadd.f32 %v3205, 1.0
    %v3231 = vadd.f32 %v3207, 1.0
    %v3232 = vadd.f32 %v3209, 1.0
    %v3233 = vadd.f32 %v3211, 1.0
    %v3234 = vadd.f32 %v3213, 1.0
    %v3235 = vadd.f32 %v3215, 1.0
    %v3236 = vadd.f32 %v3217, 1.0
    %v3237 = vadd.f32 %v3219, 1.0
    %v3238 = vadd.f32 %v3221, 1.0
    %v3239 = vadd.f32 %v3223, 1.0
    %v3240 = vrcp.pop %v3224
    %v3241 = vmul.f32 1.0, %v3240
    %v3242 = vrcp.pop %v3225
    %v3243 = vmul.f32 1.0, %v3242
    %v3244 = vrcp.pop %v3226
    %v3245 = vmul.f32 1.0, %v3244
    %v3246 = vrcp.pop %v3227
    %v3247 = vmul.f32 1.0, %v3246
    %v3248 = vrcp.pop %v3228
    %v3249 = vmul.f32 1.0, %v3248
    %v3250 = vrcp.pop %v3229
    %v3251 = vmul.f32 1.0, %v3250
    %v3252 = vrcp.pop %v3230
    %v3253 = vmul.f32 1.0, %v3252
    %v3254 = vrcp.pop %v3231
    %v3255 = vmul.f32 1.0, %v3254
    %v3256 = vrcp.pop %v3232
    %v3257 = vmul.f32 1.0, %v3256
    %v3258 = vrcp.pop %v3233
    %v3259 = vmul.f32 1.0, %v3258
    %v3260 = vrcp.pop %v3234
    %v3261 = vmul.f32 1.0, %v3260
    %v3262 = vrcp.pop %v3235
    %v3263 = vmul.f32 1.0, %v3262
    %v3264 = vrcp.pop %v3236
    %v3265 = vmul.f32 1.0, %v3264
    %v3266 = vrcp.pop %v3237
    %v3267 = vmul.f32 1.0, %v3266
    %v3268 = vrcp.pop %v3238
    %v3269 = vmul.f32 1.0, %v3268
    %v3270 = vrcp.pop %v3239
    %v3271 = vmul.f32 1.0, %v3270
    %v3272 = vmul.f32 %v3098, %v3241
    %v3273 = vmul.f32 %v3103, %v3243
    %v3274 = vmul.f32 %v3108, %v3245
    %v3275 = vmul.f32 %v3113, %v3247
    %v3276 = vmul.f32 %v3118, %v3249
    %v3277 = vmul.f32 %v3123, %v3251
    %v3278 = vmul.f32 %v3128, %v3253
    %v3279 = vmul.f32 %v3133, %v3255
    %v3280 = vmul.f32 %v3138, %v3257
    %v3281 = vmul.f32 %v3143, %v3259
    %v3282 = vmul.f32 %v3148, %v3261
    %v3283 = vmul.f32 %v3153, %v3263
    %v3284 = vmul.f32 %v3158, %v3265
    %v3285 = vmul.f32 %v3163, %v3267
    %v3286 = vmul.f32 %v3168, %v3269
    %v3287 = vmul.f32 %v3173, %v3271
    %v3288 = vsel %vm250, %v3272, 0.0
    %3289 = vadd.xlane.f32.xlu0 %v3288
    %v3290 = vpop.xlane.xlu0 %3289
    %v3291 = vsel %vm250, %v3273, 0.0
    %3292 = vadd.xlane.f32.xlu0 %v3291
    %v3293 = vpop.xlane.xlu0 %3292
    %v3294 = vsel %vm250, %v3274, 0.0
    %3295 = vadd.xlane.f32.xlu0 %v3294
    %v3296 = vpop.xlane.xlu0 %3295
    %v3297 = vsel %vm250, %v3275, 0.0
    %3298 = vadd.xlane.f32.xlu0 %v3297
    %v3299 = vpop.xlane.xlu0 %3298
    %v3300 = vsel %vm250, %v3276, 0.0
    %3301 = vadd.xlane.f32.xlu0 %v3300
    %v3302 = vpop.xlane.xlu0 %3301
    %v3303 = vsel %vm250, %v3277, 0.0
    %3304 = vadd.xlane.f32.xlu0 %v3303
    %v3305 = vpop.xlane.xlu0 %3304
    %v3306 = vsel %vm250, %v3278, 0.0
    %3307 = vadd.xlane.f32.xlu0 %v3306
    %v3308 = vpop.xlane.xlu0 %3307
    %v3309 = vsel %vm250, %v3279, 0.0
    %3310 = vadd.xlane.f32.xlu0 %v3309
    %v3311 = vpop.xlane.xlu0 %3310
    %v3312 = vsel %vm250, %v3280, 0.0
    %3313 = vadd.xlane.f32.xlu0 %v3312
    %v3314 = vpop.xlane.xlu0 %3313
    %v3315 = vsel %vm250, %v3281, 0.0
    %3316 = vadd.xlane.f32.xlu0 %v3315
    %v3317 = vpop.xlane.xlu0 %3316
    %v3318 = vsel %vm250, %v3282, 0.0
    %3319 = vadd.xlane.f32.xlu0 %v3318
    %v3320 = vpop.xlane.xlu0 %3319
    %v3321 = vsel %vm250, %v3283, 0.0
    %3322 = vadd.xlane.f32.xlu0 %v3321
    %v3323 = vpop.xlane.xlu0 %3322
    %v3324 = vsel %vm250, %v3284, 0.0
    %3325 = vadd.xlane.f32.xlu0 %v3324
    %v3326 = vpop.xlane.xlu0 %3325
    %v3327 = vsel %vm250, %v3285, 0.0
    %3328 = vadd.xlane.f32.xlu0 %v3327
    %v3329 = vpop.xlane.xlu0 %3328
    %v3330 = vsel %vm250, %v3286, 0.0
    %3331 = vadd.xlane.f32.xlu0 %v3330
    %v3332 = vpop.xlane.xlu0 %3331
    %v3333 = vsel %vm250, %v3287, 0.0
    %3334 = vadd.xlane.f32.xlu0 %v3333
    %v3335 = vpop.xlane.xlu0 %3334
    %v3336 = vmul.f32 %v3290, 0.03125
    %v3337 = vmul.f32 %v3293, 0.03125
    %v3338 = vmul.f32 %v3296, 0.03125
    %v3339 = vmul.f32 %v3299, 0.03125
    %v3340 = vmul.f32 %v3302, 0.03125
    %v3341 = vmul.f32 %v3305, 0.03125
    %v3342 = vmul.f32 %v3308, 0.03125
    %v3343 = vmul.f32 %v3311, 0.03125
    %v3344 = vmul.f32 %v3314, 0.03125
    %v3345 = vmul.f32 %v3317, 0.03125
    %v3346 = vmul.f32 %v3320, 0.03125
    %v3347 = vmul.f32 %v3323, 0.03125
    %v3348 = vmul.f32 %v3326, 0.03125
    %v3349 = vmul.f32 %v3329, 0.03125
    %v3350 = vmul.f32 %v3332, 0.03125
    %v3351 = vmul.f32 %v3335, 0.03125
    %v3352 = vmul.f32 %v3272, %v3272
    %v3353 = vmul.f32 %v3273, %v3273
    %v3354 = vmul.f32 %v3274, %v3274
    %v3355 = vmul.f32 %v3275, %v3275
    %v3356 = vmul.f32 %v3276, %v3276
    %v3357 = vmul.f32 %v3277, %v3277
    %v3358 = vmul.f32 %v3278, %v3278
    %v3359 = vmul.f32 %v3279, %v3279
    %v3360 = vmul.f32 %v3280, %v3280
    %v3361 = vmul.f32 %v3281, %v3281
    %v3362 = vmul.f32 %v3282, %v3282
    %v3363 = vmul.f32 %v3283, %v3283
    %v3364 = vmul.f32 %v3284, %v3284
    %v3365 = vmul.f32 %v3285, %v3285
    %v3366 = vmul.f32 %v3286, %v3286
    %v3367 = vmul.f32 %v3287, %v3287
    %v3368 = vsel %vm250, %v3352, 0.0
    %3369 = vadd.xlane.f32.xlu0 %v3368
    %v3370 = vpop.xlane.xlu0 %3369
    %v3371 = vsel %vm250, %v3353, 0.0
    %3372 = vadd.xlane.f32.xlu0 %v3371
    %v3373 = vpop.xlane.xlu0 %3372
    %v3374 = vsel %vm250, %v3354, 0.0
    %3375 = vadd.xlane.f32.xlu0 %v3374
    %v3376 = vpop.xlane.xlu0 %3375
    %v3377 = vsel %vm250, %v3355, 0.0
    %3378 = vadd.xlane.f32.xlu0 %v3377
    %v3379 = vpop.xlane.xlu0 %3378
    %v3380 = vsel %vm250, %v3356, 0.0
    %3381 = vadd.xlane.f32.xlu0 %v3380
    %v3382 = vpop.xlane.xlu0 %3381
    %v3383 = vsel %vm250, %v3357, 0.0
    %3384 = vadd.xlane.f32.xlu0 %v3383
    %v3385 = vpop.xlane.xlu0 %3384
    %v3386 = vsel %vm250, %v3358, 0.0
    %3387 = vadd.xlane.f32.xlu0 %v3386
    %v3388 = vpop.xlane.xlu0 %3387
    %v3389 = vsel %vm250, %v3359, 0.0
    %3390 = vadd.xlane.f32.xlu0 %v3389
    %v3391 = vpop.xlane.xlu0 %3390
    %v3392 = vsel %vm250, %v3360, 0.0
    %3393 = vadd.xlane.f32.xlu0 %v3392
    %v3394 = vpop.xlane.xlu0 %3393
    %v3395 = vsel %vm250, %v3361, 0.0
    %3396 = vadd.xlane.f32.xlu0 %v3395
    %v3397 = vpop.xlane.xlu0 %3396
    %v3398 = vsel %vm250, %v3362, 0.0
    %3399 = vadd.xlane.f32.xlu0 %v3398
    %v3400 = vpop.xlane.xlu0 %3399
    %v3401 = vsel %vm250, %v3363, 0.0
    %3402 = vadd.xlane.f32.xlu0 %v3401
    %v3403 = vpop.xlane.xlu0 %3402
    %v3404 = vsel %vm250, %v3364, 0.0
    %3405 = vadd.xlane.f32.xlu0 %v3404
    %v3406 = vpop.xlane.xlu0 %3405
    %v3407 = vsel %vm250, %v3365, 0.0
    %3408 = vadd.xlane.f32.xlu0 %v3407
    %v3409 = vpop.xlane.xlu0 %3408
    %v3410 = vsel %vm250, %v3366, 0.0
    %3411 = vadd.xlane.f32.xlu0 %v3410
    %v3412 = vpop.xlane.xlu0 %3411
    %v3413 = vsel %vm250, %v3367, 0.0
    %3414 = vadd.xlane.f32.xlu0 %v3413
    %v3415 = vpop.xlane.xlu0 %3414
    %v3416 = vmul.f32 %v3370, 0.03125
    %v3417 = vmul.f32 %v3373, 0.03125
    %v3418 = vmul.f32 %v3376, 0.03125
    %v3419 = vmul.f32 %v3379, 0.03125
    %v3420 = vmul.f32 %v3382, 0.03125
    %v3421 = vmul.f32 %v3385, 0.03125
    %v3422 = vmul.f32 %v3388, 0.03125
    %v3423 = vmul.f32 %v3391, 0.03125
    %v3424 = vmul.f32 %v3394, 0.03125
    %v3425 = vmul.f32 %v3397, 0.03125
    %v3426 = vmul.f32 %v3400, 0.03125
    %v3427 = vmul.f32 %v3403, 0.03125
    %v3428 = vmul.f32 %v3406, 0.03125
    %v3429 = vmul.f32 %v3409, 0.03125
    %v3430 = vmul.f32 %v3412, 0.03125
    %v3431 = vmul.f32 %v3415, 0.03125
    %3432 = vmatprep.subr.mxu0 0.0
    %3433 = vmatpush1.msra.mxu0 %v3351
    %3434 = vmatprep.subr.mxu0 0.0
    %3435 = vmatpush1.msra.mxu0 %v3350
    %3436 = vmatprep.subr.mxu0 0.0
    %3437 = vmatpush1.msra.mxu0 %v3349
    %3438 = vmatprep.subr.mxu0 0.0
    %3439 = vmatpush1.msra.mxu0 %v3348
    %3440 = vmatprep.subr.mxu0 0.0
    %3441 = vmatpush1.msra.mxu0 %v3347
    %3442 = vmatprep.subr.mxu0 0.0
    %3443 = vmatpush1.msra.mxu0 %v3346
    %3444 = vmatprep.subr.mxu0 0.0
    %3445 = vmatpush1.msra.mxu0 %v3345
    %3446 = vmatprep.subr.mxu0 0.0
    %3447 = vmatpush1.msra.mxu0 %v3344
    %3448 = vmatprep.subr.mxu0 0.0
    %3449 = vmatpush1.msra.mxu0 %v3343
    %3450 = vmatprep.subr.mxu0 0.0
    %3451 = vmatpush1.msra.mxu0 %v3342
    %3452 = vmatprep.subr.mxu0 0.0
    %3453 = vmatpush1.msra.mxu0 %v3341
    %3454 = vmatprep.subr.mxu0 0.0
    %3455 = vmatpush1.msra.mxu0 %v3340
    %3456 = vmatprep.subr.mxu0 0.0
    %3457 = vmatpush1.msra.mxu0 %v3339
    %3458 = vmatprep.subr.mxu0 0.0
    %3459 = vmatpush1.msra.mxu0 %v3338
    %3460 = vmatprep.subr.mxu0 0.0
    %3461 = vmatpush1.msra.mxu0 %v3337
    %3462 = vmatprep.subr.mxu0 0.0
    %3463 = vmatpush1.msra.mxu0 %v3336
    %3464 = vmatprep.subr.mxu0 0.0
    %3465 = vmatpush2.msra.mxu0 0.0
    %3466 = vmatprep.subr.mxu0 0.0
    %3467 = vmatpush2.msra.mxu0 0.0
    %3468 = vmatprep.subr.mxu0 0.0
    %3469 = vmatpush2.msra.mxu0 0.0
    %3470 = vmatprep.subr.mxu0 0.0
    %3471 = vmatpush2.msra.mxu0 0.0
    %3472 = vmatprep.subr.mxu0 0.0
    %3473 = vmatpush2.msra.mxu0 0.0
    %3474 = vmatprep.subr.mxu0 0.0
    %3475 = vmatpush2.msra.mxu0 0.0
    %3476 = vmatprep.subr.mxu0 0.0
    %3477 = vmatpush2.msra.mxu0 0.0
    %3478 = vmatprep.subr.mxu0 0.0
    %3479 = vmatpush2.msra.mxu0 0.0
    %3480 = vmatprep.subr.mxu0 0.0
    %3481 = vmatpush2.msra.mxu0 0.0
    %3482 = vmatprep.subr.mxu0 0.0
    %3483 = vmatpush2.msra.mxu0 0.0
    %3484 = vmatprep.subr.mxu0 0.0
    %3485 = vmatpush2.msra.mxu0 0.0
    %3486 = vmatprep.subr.mxu0 0.0
    %3487 = vmatpush2.msra.mxu0 0.0
    %3488 = vmatprep.subr.mxu0 0.0
    %3489 = vmatpush2.msra.mxu0 0.0
    %3490 = vmatprep.subr.mxu0 0.0
    %3491 = vmatpush2.msra.mxu0 0.0
    %3492 = vmatprep.subr.mxu0 0.0
    %3493 = vmatpush2.msra.mxu0 0.0
    %3494 = vmatprep.subr.mxu0 0.0
    %3495 = vmatpush2.msra.mxu0 0.0
    %3496 = vmatprep.mubr.f32.mxu0 0.0
    %3497 = vmatmul.mubr.f32.gmra.mxu0 %v1072
    %v3498 = vpop.f32.mrf.mxu0
    %v3499 = vadd.f32 0.0, %v3498
    %v3500 = vpop.f32.mrf.mxu0
    %3501 = vmatprep.mubr.f32.mxu0 0.0
    %3502 = vmatmul.mubr.f32.gmra.mxu0 %v1073
    %v3503 = vpop.f32.mrf.mxu0
    %v3504 = vadd.f32 0.0, %v3503
    %v3505 = vpop.f32.mrf.mxu0
    %3506 = vmatprep.mubr.f32.mxu0 0.0
    %3507 = vmatmul.mubr.f32.gmra.mxu0 %v1074
    %v3508 = vpop.f32.mrf.mxu0
    %v3509 = vadd.f32 0.0, %v3508
    %v3510 = vpop.f32.mrf.mxu0
    %3511 = vmatprep.mubr.f32.mxu0 0.0
    %3512 = vmatmul.mubr.f32.gmra.mxu0 %v1075
    %v3513 = vpop.f32.mrf.mxu0
    %v3514 = vadd.f32 0.0, %v3513
    %v3515 = vpop.f32.mrf.mxu0
    %3516 = vmatprep.mubr.f32.mxu0 0.0
    %3517 = vmatmul.mubr.f32.gmra.mxu0 %v1076
    %v3518 = vpop.f32.mrf.mxu0
    %v3519 = vadd.f32 0.0, %v3518
    %v3520 = vpop.f32.mrf.mxu0
    %3521 = vmatprep.mubr.f32.mxu0 0.0
    %3522 = vmatmul.mubr.f32.gmra.mxu0 %v1077
    %v3523 = vpop.f32.mrf.mxu0
    %v3524 = vadd.f32 0.0, %v3523
    %v3525 = vpop.f32.mrf.mxu0
    %3526 = vmatprep.mubr.f32.mxu0 0.0
    %3527 = vmatmul.mubr.f32.gmra.mxu0 %v1078
    %v3528 = vpop.f32.mrf.mxu0
    %v3529 = vadd.f32 0.0, %v3528
    %v3530 = vpop.f32.mrf.mxu0
    %3531 = vmatprep.mubr.f32.mxu0 0.0
    %3532 = vmatmul.mubr.f32.gmra.mxu0 %v1079
    %v3533 = vpop.f32.mrf.mxu0
    %v3534 = vadd.f32 0.0, %v3533
    %v3535 = vpop.f32.mrf.mxu0
    %3536 = vmatprep.mubr.f32.mxu0 0.0
    %3537 = vmatmul.mubr.f32.gmra.mxu0 %v1080
    %v3538 = vpop.f32.mrf.mxu0
    %v3539 = vadd.f32 0.0, %v3538
    %v3540 = vpop.f32.mrf.mxu0
    %3541 = vmatprep.mubr.f32.mxu0 0.0
    %3542 = vmatmul.mubr.f32.gmra.mxu0 %v1081
    %v3543 = vpop.f32.mrf.mxu0
    %v3544 = vadd.f32 0.0, %v3543
    %v3545 = vpop.f32.mrf.mxu0
    %3546 = vmatprep.mubr.f32.mxu0 0.0
    %3547 = vmatmul.mubr.f32.gmra.mxu0 %v1082
    %v3548 = vpop.f32.mrf.mxu0
    %v3549 = vadd.f32 0.0, %v3548
    %v3550 = vpop.f32.mrf.mxu0
    %3551 = vmatprep.mubr.f32.mxu0 0.0
    %3552 = vmatmul.mubr.f32.gmra.mxu0 %v1083
    %v3553 = vpop.f32.mrf.mxu0
    %v3554 = vadd.f32 0.0, %v3553
    %v3555 = vpop.f32.mrf.mxu0
    %3556 = vmatprep.mubr.f32.mxu0 0.0
    %3557 = vmatmul.mubr.f32.gmra.mxu0 %v1084
    %v3558 = vpop.f32.mrf.mxu0
    %v3559 = vadd.f32 0.0, %v3558
    %v3560 = vpop.f32.mrf.mxu0
    %3561 = vmatprep.mubr.f32.mxu0 0.0
    %3562 = vmatmul.mubr.f32.gmra.mxu0 %v1085
    %v3563 = vpop.f32.mrf.mxu0
    %v3564 = vadd.f32 0.0, %v3563
    %v3565 = vpop.f32.mrf.mxu0
    %3566 = vmatprep.mubr.f32.mxu0 0.0
    %3567 = vmatmul.mubr.f32.gmra.mxu0 %v1086
    %v3568 = vpop.f32.mrf.mxu0
    %v3569 = vadd.f32 0.0, %v3568
    %v3570 = vpop.f32.mrf.mxu0
    %3571 = vmatprep.mubr.f32.mxu0 0.0
    %3572 = vmatmul.mubr.f32.gmra.mxu0 %v1087
    %v3573 = vpop.f32.mrf.mxu0
    %v3574 = vadd.f32 0.0, %v3573
    %v3575 = vpop.f32.mrf.mxu0
    %3576 = vdwg.mxu0
    %3577 = vmatprep.subr.mxu0 0.0
    %3578 = vmatpush1.msra.mxu0 %v3431
    %3579 = vmatprep.subr.mxu0 0.0
    %3580 = vmatpush1.msra.mxu0 %v3430
    %3581 = vmatprep.subr.mxu0 0.0
    %3582 = vmatpush1.msra.mxu0 %v3429
    %3583 = vmatprep.subr.mxu0 0.0
    %3584 = vmatpush1.msra.mxu0 %v3428
    %3585 = vmatprep.subr.mxu0 0.0
    %3586 = vmatpush1.msra.mxu0 %v3427
    %3587 = vmatprep.subr.mxu0 0.0
    %3588 = vmatpush1.msra.mxu0 %v3426
    %3589 = vmatprep.subr.mxu0 0.0
    %3590 = vmatpush1.msra.mxu0 %v3425
    %3591 = vmatprep.subr.mxu0 0.0
    %3592 = vmatpush1.msra.mxu0 %v3424
    %3593 = vmatprep.subr.mxu0 0.0
    %3594 = vmatpush1.msra.mxu0 %v3423
    %3595 = vmatprep.subr.mxu0 0.0
    %3596 = vmatpush1.msra.mxu0 %v3422
    %3597 = vmatprep.subr.mxu0 0.0
    %3598 = vmatpush1.msra.mxu0 %v3421
    %3599 = vmatprep.subr.mxu0 0.0
    %3600 = vmatpush1.msra.mxu0 %v3420
    %3601 = vmatprep.subr.mxu0 0.0
    %3602 = vmatpush1.msra.mxu0 %v3419
    %3603 = vmatprep.subr.mxu0 0.0
    %3604 = vmatpush1.msra.mxu0 %v3418
    %3605 = vmatprep.subr.mxu0 0.0
    %3606 = vmatpush1.msra.mxu0 %v3417
    %3607 = vmatprep.subr.mxu0 0.0
    %3608 = vmatpush1.msra.mxu0 %v3416
    %3609 = vmatprep.subr.mxu0 0.0
    %3610 = vmatpush2.msra.mxu0 0.0
    %3611 = vmatprep.subr.mxu0 0.0
    %3612 = vmatpush2.msra.mxu0 0.0
    %3613 = vmatprep.subr.mxu0 0.0
    %3614 = vmatpush2.msra.mxu0 0.0
    %3615 = vmatprep.subr.mxu0 0.0
    %3616 = vmatpush2.msra.mxu0 0.0
    %3617 = vmatprep.subr.mxu0 0.0
    %3618 = vmatpush2.msra.mxu0 0.0
    %3619 = vmatprep.subr.mxu0 0.0
    %3620 = vmatpush2.msra.mxu0 0.0
    %3621 = vmatprep.subr.mxu0 0.0
    %3622 = vmatpush2.msra.mxu0 0.0
    %3623 = vmatprep.subr.mxu0 0.0
    %3624 = vmatpush2.msra.mxu0 0.0
    %3625 = vmatprep.subr.mxu0 0.0
    %3626 = vmatpush2.msra.mxu0 0.0
    %3627 = vmatprep.subr.mxu0 0.0
    %3628 = vmatpush2.msra.mxu0 0.0
    %3629 = vmatprep.subr.mxu0 0.0
    %3630 = vmatpush2.msra.mxu0 0.0
    %3631 = vmatprep.subr.mxu0 0.0
    %3632 = vmatpush2.msra.mxu0 0.0
    %3633 = vmatprep.subr.mxu0 0.0
    %3634 = vmatpush2.msra.mxu0 0.0
    %3635 = vmatprep.subr.mxu0 0.0
    %3636 = vmatpush2.msra.mxu0 0.0
    %3637 = vmatprep.subr.mxu0 0.0
    %3638 = vmatpush2.msra.mxu0 0.0
    %3639 = vmatprep.subr.mxu0 0.0
    %3640 = vmatpush2.msra.mxu0 0.0
    %3641 = vmatprep.mubr.f32.mxu0 0.0
    %3642 = vmatmul.mubr.f32.gmra.mxu0 %v1072
    %v3643 = vpop.f32.mrf.mxu0
    %v3644 = vadd.f32 0.0, %v3643
    %v3645 = vpop.f32.mrf.mxu0
    %3646 = vmatprep.mubr.f32.mxu0 0.0
    %3647 = vmatmul.mubr.f32.gmra.mxu0 %v1073
    %v3648 = vpop.f32.mrf.mxu0
    %v3649 = vadd.f32 0.0, %v3648
    %v3650 = vpop.f32.mrf.mxu0
    %3651 = vmatprep.mubr.f32.mxu0 0.0
    %3652 = vmatmul.mubr.f32.gmra.mxu0 %v1074
    %v3653 = vpop.f32.mrf.mxu0
    %v3654 = vadd.f32 0.0, %v3653
    %v3655 = vpop.f32.mrf.mxu0
    %3656 = vmatprep.mubr.f32.mxu0 0.0
    %3657 = vmatmul.mubr.f32.gmra.mxu0 %v1075
    %v3658 = vpop.f32.mrf.mxu0
    %v3659 = vadd.f32 0.0, %v3658
    %v3660 = vpop.f32.mrf.mxu0
    %3661 = vmatprep.mubr.f32.mxu0 0.0
    %3662 = vmatmul.mubr.f32.gmra.mxu0 %v1076
    %v3663 = vpop.f32.mrf.mxu0
    %v3664 = vadd.f32 0.0, %v3663
    %v3665 = vpop.f32.mrf.mxu0
    %3666 = vmatprep.mubr.f32.mxu0 0.0
    %3667 = vmatmul.mubr.f32.gmra.mxu0 %v1077
    %v3668 = vpop.f32.mrf.mxu0
    %v3669 = vadd.f32 0.0, %v3668
    %v3670 = vpop.f32.mrf.mxu0
    %3671 = vmatprep.mubr.f32.mxu0 0.0
    %3672 = vmatmul.mubr.f32.gmra.mxu0 %v1078
    %v3673 = vpop.f32.mrf.mxu0
    %v3674 = vadd.f32 0.0, %v3673
    %v3675 = vpop.f32.mrf.mxu0
    %3676 = vmatprep.mubr.f32.mxu0 0.0
    %3677 = vmatmul.mubr.f32.gmra.mxu0 %v1079
    %v3678 = vpop.f32.mrf.mxu0
    %v3679 = vadd.f32 0.0, %v3678
    %v3680 = vpop.f32.mrf.mxu0
    %3681 = vmatprep.mubr.f32.mxu0 0.0
    %3682 = vmatmul.mubr.f32.gmra.mxu0 %v1080
    %v3683 = vpop.f32.mrf.mxu0
    %v3684 = vadd.f32 0.0, %v3683
    %v3685 = vpop.f32.mrf.mxu0
    %3686 = vmatprep.mubr.f32.mxu0 0.0
    %3687 = vmatmul.mubr.f32.gmra.mxu0 %v1081
    %v3688 = vpop.f32.mrf.mxu0
    %v3689 = vadd.f32 0.0, %v3688
    %v3690 = vpop.f32.mrf.mxu0
    %3691 = vmatprep.mubr.f32.mxu0 0.0
    %3692 = vmatmul.mubr.f32.gmra.mxu0 %v1082
    %v3693 = vpop.f32.mrf.mxu0
    %v3694 = vadd.f32 0.0, %v3693
    %v3695 = vpop.f32.mrf.mxu0
    %3696 = vmatprep.mubr.f32.mxu0 0.0
    %3697 = vmatmul.mubr.f32.gmra.mxu0 %v1083
    %v3698 = vpop.f32.mrf.mxu0
    %v3699 = vadd.f32 0.0, %v3698
    %v3700 = vpop.f32.mrf.mxu0
    %3701 = vmatprep.mubr.f32.mxu0 0.0
    %3702 = vmatmul.mubr.f32.gmra.mxu0 %v1084
    %v3703 = vpop.f32.mrf.mxu0
    %v3704 = vadd.f32 0.0, %v3703
    %v3705 = vpop.f32.mrf.mxu0
    %3706 = vmatprep.mubr.f32.mxu0 0.0
    %3707 = vmatmul.mubr.f32.gmra.mxu0 %v1085
    %v3708 = vpop.f32.mrf.mxu0
    %v3709 = vadd.f32 0.0, %v3708
    %v3710 = vpop.f32.mrf.mxu0
    %3711 = vmatprep.mubr.f32.mxu0 0.0
    %3712 = vmatmul.mubr.f32.gmra.mxu0 %v1086
    %v3713 = vpop.f32.mrf.mxu0
    %v3714 = vadd.f32 0.0, %v3713
    %v3715 = vpop.f32.mrf.mxu0
    %3716 = vmatprep.mubr.f32.mxu0 0.0
    %3717 = vmatmul.mubr.f32.gmra.mxu0 %v1087
    %v3718 = vpop.f32.mrf.mxu0
    %v3719 = vadd.f32 0.0, %v3718
    %v3720 = vpop.f32.mrf.mxu0
    %3721 = vdwg.mxu0
    %v3722 = vmul.f32 %v3499, %v3499
    %v3723 = vmul.f32 %v3504, %v3504
    %v3724 = vmul.f32 %v3509, %v3509
    %v3725 = vmul.f32 %v3514, %v3514
    %v3726 = vmul.f32 %v3519, %v3519
    %v3727 = vmul.f32 %v3524, %v3524
    %v3728 = vmul.f32 %v3529, %v3529
    %v3729 = vmul.f32 %v3534, %v3534
    %v3730 = vmul.f32 %v3539, %v3539
    %v3731 = vmul.f32 %v3544, %v3544
    %v3732 = vmul.f32 %v3549, %v3549
    %v3733 = vmul.f32 %v3554, %v3554
    %v3734 = vmul.f32 %v3559, %v3559
    %v3735 = vmul.f32 %v3564, %v3564
    %v3736 = vmul.f32 %v3569, %v3569
    %v3737 = vmul.f32 %v3574, %v3574
    %v3738 = vsub.f32 %v3644, %v3722
    %v3739 = vsub.f32 %v3649, %v3723
    %v3740 = vsub.f32 %v3654, %v3724
    %v3741 = vsub.f32 %v3659, %v3725
    %v3742 = vsub.f32 %v3664, %v3726
    %v3743 = vsub.f32 %v3669, %v3727
    %v3744 = vsub.f32 %v3674, %v3728
    %v3745 = vsub.f32 %v3679, %v3729
    %v3746 = vsub.f32 %v3684, %v3730
    %v3747 = vsub.f32 %v3689, %v3731
    %v3748 = vsub.f32 %v3694, %v3732
    %v3749 = vsub.f32 %v3699, %v3733
    %v3750 = vsub.f32 %v3704, %v3734
    %v3751 = vsub.f32 %v3709, %v3735
    %v3752 = vsub.f32 %v3714, %v3736
    %v3753 = vsub.f32 %v3719, %v3737
    %3755 = vset.pattern.permute.xlu0 0
    %3756 = vperm.xlu0 %3755, %v3499
    %v3757 = vpop.permute.xlu0 %3756
    %3760 = vset.pattern.permute.xlu0 0
    %3761 = vperm.xlu0 %3760, %v3504
    %v3762 = vpop.permute.xlu0 %3761
    %3765 = vset.pattern.permute.xlu0 0
    %3766 = vperm.xlu0 %3765, %v3509
    %v3767 = vpop.permute.xlu0 %3766
    %3770 = vset.pattern.permute.xlu0 0
    %3771 = vperm.xlu0 %3770, %v3514
    %v3772 = vpop.permute.xlu0 %3771
    %3775 = vset.pattern.permute.xlu0 0
    %3776 = vperm.xlu0 %3775, %v3519
    %v3777 = vpop.permute.xlu0 %3776
    %3780 = vset.pattern.permute.xlu0 0
    %3781 = vperm.xlu0 %3780, %v3524
    %v3782 = vpop.permute.xlu0 %3781
    %3785 = vset.pattern.permute.xlu0 0
    %3786 = vperm.xlu0 %3785, %v3529
    %v3787 = vpop.permute.xlu0 %3786
    %3790 = vset.pattern.permute.xlu0 0
    %3791 = vperm.xlu0 %3790, %v3534
    %v3792 = vpop.permute.xlu0 %3791
    %3795 = vset.pattern.permute.xlu0 0
    %3796 = vperm.xlu0 %3795, %v3539
    %v3797 = vpop.permute.xlu0 %3796
    %3800 = vset.pattern.permute.xlu0 0
    %3801 = vperm.xlu0 %3800, %v3544
    %v3802 = vpop.permute.xlu0 %3801
    %3805 = vset.pattern.permute.xlu0 0
    %3806 = vperm.xlu0 %3805, %v3549
    %v3807 = vpop.permute.xlu0 %3806
    %3810 = vset.pattern.permute.xlu0 0
    %3811 = vperm.xlu0 %3810, %v3554
    %v3812 = vpop.permute.xlu0 %3811
    %3815 = vset.pattern.permute.xlu0 0
    %3816 = vperm.xlu0 %3815, %v3559
    %v3817 = vpop.permute.xlu0 %3816
    %3820 = vset.pattern.permute.xlu0 0
    %3821 = vperm.xlu0 %3820, %v3564
    %v3822 = vpop.permute.xlu0 %3821
    %3825 = vset.pattern.permute.xlu0 0
    %3826 = vperm.xlu0 %3825, %v3569
    %v3827 = vpop.permute.xlu0 %3826
    %3830 = vset.pattern.permute.xlu0 0
    %3831 = vperm.xlu0 %3830, %v3574
    %v3832 = vpop.permute.xlu0 %3831
    %v3834 = vsub.f32 %v3272, %v3757
    %v3835 = vsub.f32 %v3273, %v3762
    %v3836 = vsub.f32 %v3274, %v3767
    %v3837 = vsub.f32 %v3275, %v3772
    %v3838 = vsub.f32 %v3276, %v3777
    %v3839 = vsub.f32 %v3277, %v3782
    %v3840 = vsub.f32 %v3278, %v3787
    %v3841 = vsub.f32 %v3279, %v3792
    %v3842 = vsub.f32 %v3280, %v3797
    %v3843 = vsub.f32 %v3281, %v3802
    %v3844 = vsub.f32 %v3282, %v3807
    %v3845 = vsub.f32 %v3283, %v3812
    %v3846 = vsub.f32 %v3284, %v3817
    %v3847 = vsub.f32 %v3285, %v3822
    %v3848 = vsub.f32 %v3286, %v3827
    %v3849 = vsub.f32 %v3287, %v3832
    %v3850 = vadd.f32 %v3738, 1e-05
    %v3851 = vadd.f32 %v3739, 1e-05
    %v3852 = vadd.f32 %v3740, 1e-05
    %v3853 = vadd.f32 %v3741, 1e-05
    %v3854 = vadd.f32 %v3742, 1e-05
    %v3855 = vadd.f32 %v3743, 1e-05
    %v3856 = vadd.f32 %v3744, 1e-05
    %v3857 = vadd.f32 %v3745, 1e-05
    %v3858 = vadd.f32 %v3746, 1e-05
    %v3859 = vadd.f32 %v3747, 1e-05
    %v3860 = vadd.f32 %v3748, 1e-05
    %v3861 = vadd.f32 %v3749, 1e-05
    %v3862 = vadd.f32 %v3750, 1e-05
    %v3863 = vadd.f32 %v3751, 1e-05
    %v3864 = vadd.f32 %v3752, 1e-05
    %v3865 = vadd.f32 %v3753, 1e-05
    %v3866 = vrsqrt.pop %v3850
    %v3867 = vrsqrt.pop %v3851
    %v3868 = vrsqrt.pop %v3852
    %v3869 = vrsqrt.pop %v3853
    %v3870 = vrsqrt.pop %v3854
    %v3871 = vrsqrt.pop %v3855
    %v3872 = vrsqrt.pop %v3856
    %v3873 = vrsqrt.pop %v3857
    %v3874 = vrsqrt.pop %v3858
    %v3875 = vrsqrt.pop %v3859
    %v3876 = vrsqrt.pop %v3860
    %v3877 = vrsqrt.pop %v3861
    %v3878 = vrsqrt.pop %v3862
    %v3879 = vrsqrt.pop %v3863
    %v3880 = vrsqrt.pop %v3864
    %v3881 = vrsqrt.pop %v3865
    %3883 = vset.pattern.permute.xlu0 0
    %3884 = vperm.xlu0 %3883, %v3866
    %v3885 = vpop.permute.xlu0 %3884
    %3888 = vset.pattern.permute.xlu0 0
    %3889 = vperm.xlu0 %3888, %v3867
    %v3890 = vpop.permute.xlu0 %3889
    %3893 = vset.pattern.permute.xlu0 0
    %3894 = vperm.xlu0 %3893, %v3868
    %v3895 = vpop.permute.xlu0 %3894
    %3898 = vset.pattern.permute.xlu0 0
    %3899 = vperm.xlu0 %3898, %v3869
    %v3900 = vpop.permute.xlu0 %3899
    %3903 = vset.pattern.permute.xlu0 0
    %3904 = vperm.xlu0 %3903, %v3870
    %v3905 = vpop.permute.xlu0 %3904
    %3908 = vset.pattern.permute.xlu0 0
    %3909 = vperm.xlu0 %3908, %v3871
    %v3910 = vpop.permute.xlu0 %3909
    %3913 = vset.pattern.permute.xlu0 0
    %3914 = vperm.xlu0 %3913, %v3872
    %v3915 = vpop.permute.xlu0 %3914
    %3918 = vset.pattern.permute.xlu0 0
    %3919 = vperm.xlu0 %3918, %v3873
    %v3920 = vpop.permute.xlu0 %3919
    %3923 = vset.pattern.permute.xlu0 0
    %3924 = vperm.xlu0 %3923, %v3874
    %v3925 = vpop.permute.xlu0 %3924
    %3928 = vset.pattern.permute.xlu0 0
    %3929 = vperm.xlu0 %3928, %v3875
    %v3930 = vpop.permute.xlu0 %3929
    %3933 = vset.pattern.permute.xlu0 0
    %3934 = vperm.xlu0 %3933, %v3876
    %v3935 = vpop.permute.xlu0 %3934
    %3938 = vset.pattern.permute.xlu0 0
    %3939 = vperm.xlu0 %3938, %v3877
    %v3940 = vpop.permute.xlu0 %3939
    %3943 = vset.pattern.permute.xlu0 0
    %3944 = vperm.xlu0 %3943, %v3878
    %v3945 = vpop.permute.xlu0 %3944
    %3948 = vset.pattern.permute.xlu0 0
    %3949 = vperm.xlu0 %3948, %v3879
    %v3950 = vpop.permute.xlu0 %3949
    %3953 = vset.pattern.permute.xlu0 0
    %3954 = vperm.xlu0 %3953, %v3880
    %v3955 = vpop.permute.xlu0 %3954
    %3958 = vset.pattern.permute.xlu0 0
    %3959 = vperm.xlu0 %3958, %v3881
    %v3960 = vpop.permute.xlu0 %3959
    %v3962 = vmul.f32 %v3834, %v3885
    %v3963 = vmul.f32 %v3835, %v3890
    %v3964 = vmul.f32 %v3836, %v3895
    %v3965 = vmul.f32 %v3837, %v3900
    %v3966 = vmul.f32 %v3838, %v3905
    %v3967 = vmul.f32 %v3839, %v3910
    %v3968 = vmul.f32 %v3840, %v3915
    %v3969 = vmul.f32 %v3841, %v3920
    %v3970 = vmul.f32 %v3842, %v3925
    %v3971 = vmul.f32 %v3843, %v3930
    %v3972 = vmul.f32 %v3844, %v3935
    %v3973 = vmul.f32 %v3845, %v3940
    %v3974 = vmul.f32 %v3846, %v3945
    %v3975 = vmul.f32 %v3847, %v3950
    %v3976 = vmul.f32 %v3848, %v3955
    %v3977 = vmul.f32 %v3849, %v3960
    %3978 = vset.pattern.permute.xlu0 4
    %3979 = vperm.xlu0 %3978, %v912
    %v3980 = vpop.permute.xlu0 %3979
    %3982 = vset.pattern.permute.xlu0 4
    %3983 = vperm.xlu0 %3982, %v913
    %v3984 = vpop.permute.xlu0 %3983
    %3986 = vset.pattern.permute.xlu0 4
    %3987 = vperm.xlu0 %3986, %v914
    %v3988 = vpop.permute.xlu0 %3987
    %3990 = vset.pattern.permute.xlu0 4
    %3991 = vperm.xlu0 %3990, %v915
    %v3992 = vpop.permute.xlu0 %3991
    %3994 = vset.pattern.permute.xlu0 4
    %3995 = vperm.xlu0 %3994, %v916
    %v3996 = vpop.permute.xlu0 %3995
    %3998 = vset.pattern.permute.xlu0 4
    %3999 = vperm.xlu0 %3998, %v917
    %v4000 = vpop.permute.xlu0 %3999
    %4002 = vset.pattern.permute.xlu0 4
    %4003 = vperm.xlu0 %4002, %v918
    %v4004 = vpop.permute.xlu0 %4003
    %4006 = vset.pattern.permute.xlu0 4
    %4007 = vperm.xlu0 %4006, %v919
    %v4008 = vpop.permute.xlu0 %4007
    %4010 = vset.pattern.permute.xlu0 4
    %4011 = vperm.xlu0 %4010, %v920
    %v4012 = vpop.permute.xlu0 %4011
    %4014 = vset.pattern.permute.xlu0 4
    %4015 = vperm.xlu0 %4014, %v921
    %v4016 = vpop.permute.xlu0 %4015
    %4018 = vset.pattern.permute.xlu0 4
    %4019 = vperm.xlu0 %4018, %v922
    %v4020 = vpop.permute.xlu0 %4019
    %4022 = vset.pattern.permute.xlu0 4
    %4023 = vperm.xlu0 %4022, %v923
    %v4024 = vpop.permute.xlu0 %4023
    %4026 = vset.pattern.permute.xlu0 4
    %4027 = vperm.xlu0 %4026, %v924
    %v4028 = vpop.permute.xlu0 %4027
    %4030 = vset.pattern.permute.xlu0 4
    %4031 = vperm.xlu0 %4030, %v925
    %v4032 = vpop.permute.xlu0 %4031
    %4034 = vset.pattern.permute.xlu0 4
    %4035 = vperm.xlu0 %4034, %v926
    %v4036 = vpop.permute.xlu0 %4035
    %4038 = vset.pattern.permute.xlu0 4
    %4039 = vperm.xlu0 %4038, %v927
    %v4040 = vpop.permute.xlu0 %4039
    %v4042 = vmul.f32 %v3962, %v3980
    %v4043 = vmul.f32 %v3963, %v3984
    %v4044 = vmul.f32 %v3964, %v3988
    %v4045 = vmul.f32 %v3965, %v3992
    %v4046 = vmul.f32 %v3966, %v3996
    %v4047 = vmul.f32 %v3967, %v4000
    %v4048 = vmul.f32 %v3968, %v4004
    %v4049 = vmul.f32 %v3969, %v4008
    %v4050 = vmul.f32 %v3970, %v4012
    %v4051 = vmul.f32 %v3971, %v4016
    %v4052 = vmul.f32 %v3972, %v4020
    %v4053 = vmul.f32 %v3973, %v4024
    %v4054 = vmul.f32 %v3974, %v4028
    %v4055 = vmul.f32 %v3975, %v4032
    %v4056 = vmul.f32 %v3976, %v4036
    %v4057 = vmul.f32 %v3977, %v4040
    %4058 = vset.pattern.permute.xlu0 5
    %4059 = vperm.xlu0 %4058, %v912
    %v4060 = vpop.permute.xlu0 %4059
    %4062 = vset.pattern.permute.xlu0 5
    %4063 = vperm.xlu0 %4062, %v913
    %v4064 = vpop.permute.xlu0 %4063
    %4066 = vset.pattern.permute.xlu0 5
    %4067 = vperm.xlu0 %4066, %v914
    %v4068 = vpop.permute.xlu0 %4067
    %4070 = vset.pattern.permute.xlu0 5
    %4071 = vperm.xlu0 %4070, %v915
    %v4072 = vpop.permute.xlu0 %4071
    %4074 = vset.pattern.permute.xlu0 5
    %4075 = vperm.xlu0 %4074, %v916
    %v4076 = vpop.permute.xlu0 %4075
    %4078 = vset.pattern.permute.xlu0 5
    %4079 = vperm.xlu0 %4078, %v917
    %v4080 = vpop.permute.xlu0 %4079
    %4082 = vset.pattern.permute.xlu0 5
    %4083 = vperm.xlu0 %4082, %v918
    %v4084 = vpop.permute.xlu0 %4083
    %4086 = vset.pattern.permute.xlu0 5
    %4087 = vperm.xlu0 %4086, %v919
    %v4088 = vpop.permute.xlu0 %4087
    %4090 = vset.pattern.permute.xlu0 5
    %4091 = vperm.xlu0 %4090, %v920
    %v4092 = vpop.permute.xlu0 %4091
    %4094 = vset.pattern.permute.xlu0 5
    %4095 = vperm.xlu0 %4094, %v921
    %v4096 = vpop.permute.xlu0 %4095
    %4098 = vset.pattern.permute.xlu0 5
    %4099 = vperm.xlu0 %4098, %v922
    %v4100 = vpop.permute.xlu0 %4099
    %4102 = vset.pattern.permute.xlu0 5
    %4103 = vperm.xlu0 %4102, %v923
    %v4104 = vpop.permute.xlu0 %4103
    %4106 = vset.pattern.permute.xlu0 5
    %4107 = vperm.xlu0 %4106, %v924
    %v4108 = vpop.permute.xlu0 %4107
    %4110 = vset.pattern.permute.xlu0 5
    %4111 = vperm.xlu0 %4110, %v925
    %v4112 = vpop.permute.xlu0 %4111
    %4114 = vset.pattern.permute.xlu0 5
    %4115 = vperm.xlu0 %4114, %v926
    %v4116 = vpop.permute.xlu0 %4115
    %4118 = vset.pattern.permute.xlu0 5
    %4119 = vperm.xlu0 %4118, %v927
    %v4120 = vpop.permute.xlu0 %4119
    %v4122 = vadd.f32 %v4042, %v4060
    %v4123 = vadd.f32 %v4043, %v4064
    %v4124 = vadd.f32 %v4044, %v4068
    %v4125 = vadd.f32 %v4045, %v4072
    %v4126 = vadd.f32 %v4046, %v4076
    %v4127 = vadd.f32 %v4047, %v4080
    %v4128 = vadd.f32 %v4048, %v4084
    %v4129 = vadd.f32 %v4049, %v4088
    %v4130 = vadd.f32 %v4050, %v4092
    %v4131 = vadd.f32 %v4051, %v4096
    %v4132 = vadd.f32 %v4052, %v4100
    %v4133 = vadd.f32 %v4053, %v4104
    %v4134 = vadd.f32 %v4054, %v4108
    %v4135 = vadd.f32 %v4055, %v4112
    %v4136 = vadd.f32 %v4056, %v4116
    %v4137 = vadd.f32 %v4057, %v4120
    %v4138 = vld [vmem:[#allocation10 + $0xa0] sm:$0xff]
    %v4139 = vld [vmem:[#allocation10 + $0xa8] sm:$0xff]
    %v4140 = vld [vmem:[#allocation10 + $0xb0] sm:$0xff]
    %v4141 = vld [vmem:[#allocation10 + $0xb8] sm:$0xff]
    %v4142 = vld [vmem:[%s7 + $0x7] sm:$0x1]
    %v4143 = vlaneseq
    %v4144 = vshrl.u32 %v4143, 7
    %v4145 = vsub.s32 0, %v4144
    %v4146 = vrot.slane %v4142, %v4145
    %v4148 = vsel %vm250, %v4122, 0
    %v4151 = vsel %vm250, %v4123, 0
    %v4154 = vsel %vm250, %v4124, 0
    %v4157 = vsel %vm250, %v4125, 0
    %v4160 = vsel %vm250, %v4126, 0
    %v4163 = vsel %vm250, %v4127, 0
    %v4166 = vsel %vm250, %v4128, 0
    %v4169 = vsel %vm250, %v4129, 0
    %v4172 = vsel %vm250, %v4130, 0
    %v4175 = vsel %vm250, %v4131, 0
    %v4178 = vsel %vm250, %v4132, 0
    %v4181 = vsel %vm250, %v4133, 0
    %v4184 = vsel %vm250, %v4134, 0
    %v4187 = vsel %vm250, %v4135, 0
    %v4190 = vsel %vm250, %v4136, 0
    %v4193 = vsel %vm250, %v4137, 0
    %4195 = vmatprep.subr.mxu0 0.0
    %4196 = vmatpush1.msra.mxu0 0.0
    %4197 = vmatprep.subr.mxu0 0.0
    %4198 = vmatpush1.msra.mxu0 0.0
    %4199 = vmatprep.subr.mxu0 0.0
    %4200 = vmatpush1.msra.mxu0 0.0
    %4201 = vmatprep.subr.mxu0 0.0
    %4202 = vmatpush1.msra.mxu0 0.0
    %4203 = vmatprep.subr.mxu0 0.0
    %4204 = vmatpush1.msra.mxu0 0.0
    %4205 = vmatprep.subr.mxu0 0.0
    %4206 = vmatpush1.msra.mxu0 0.0
    %4207 = vmatprep.subr.mxu0 0.0
    %4208 = vmatpush1.msra.mxu0 0.0
    %4209 = vmatprep.subr.mxu0 0.0
    %4210 = vmatpush1.msra.mxu0 0.0
    %4211 = vmatprep.subr.mxu0 0.0
    %4212 = vmatpush1.msra.mxu0 0.0
    %4213 = vmatprep.subr.mxu0 0.0
    %4214 = vmatpush1.msra.mxu0 0.0
    %4215 = vmatprep.subr.mxu0 0.0
    %4216 = vmatpush1.msra.mxu0 0.0
    %4217 = vmatprep.subr.mxu0 0.0
    %4218 = vmatpush1.msra.mxu0 0.0
    %4219 = vmatprep.subr.mxu0 0.0
    %4220 = vmatpush1.msra.mxu0 %v4141
    %4221 = vmatprep.subr.mxu0 0.0
    %4222 = vmatpush1.msra.mxu0 %v4140
    %4223 = vmatprep.subr.mxu0 0.0
    %4224 = vmatpush1.msra.mxu0 %v4139
    %4225 = vmatprep.subr.mxu0 0.0
    %4226 = vmatpush1.msra.mxu0 %v4138
    %4227 = vmatprep.subr.mxu0 0.0
    %4228 = vmatpush2.msra.mxu0 0.0
    %4229 = vmatprep.subr.mxu0 0.0
    %4230 = vmatpush2.msra.mxu0 0.0
    %4231 = vmatprep.subr.mxu0 0.0
    %4232 = vmatpush2.msra.mxu0 0.0
    %4233 = vmatprep.subr.mxu0 0.0
    %4234 = vmatpush2.msra.mxu0 0.0
    %4235 = vmatprep.subr.mxu0 0.0
    %4236 = vmatpush2.msra.mxu0 0.0
    %4237 = vmatprep.subr.mxu0 0.0
    %4238 = vmatpush2.msra.mxu0 0.0
    %4239 = vmatprep.subr.mxu0 0.0
    %4240 = vmatpush2.msra.mxu0 0.0
    %4241 = vmatprep.subr.mxu0 0.0
    %4242 = vmatpush2.msra.mxu0 0.0
    %4243 = vmatprep.subr.mxu0 0.0
    %4244 = vmatpush2.msra.mxu0 0.0
    %4245 = vmatprep.subr.mxu0 0.0
    %4246 = vmatpush2.msra.mxu0 0.0
    %4247 = vmatprep.subr.mxu0 0.0
    %4248 = vmatpush2.msra.mxu0 0.0
    %4249 = vmatprep.subr.mxu0 0.0
    %4250 = vmatpush2.msra.mxu0 0.0
    %4251 = vmatprep.subr.mxu0 0.0
    %4252 = vmatpush2.msra.mxu0 0.0
    %4253 = vmatprep.subr.mxu0 0.0
    %4254 = vmatpush2.msra.mxu0 0.0
    %4255 = vmatprep.subr.mxu0 0.0
    %4256 = vmatpush2.msra.mxu0 0.0
    %4257 = vmatprep.subr.mxu0 0.0
    %4258 = vmatpush2.msra.mxu0 0.0
    %4259 = vmatprep.mubr.f32.mxu0 0.0
    %4260 = vmatmul.mubr.f32.gmra.mxu0 %v4148
    %v4261 = vpop.f32.mrf.mxu0
    %v4262 = vadd.f32 %v4146, %v4261
    %v4263 = vpop.f32.mrf.mxu0
    %4264 = vmatprep.mubr.f32.mxu0 0.0
    %4265 = vmatmul.mubr.f32.gmra.mxu0 %v4151
    %v4266 = vpop.f32.mrf.mxu0
    %v4267 = vadd.f32 %v4146, %v4266
    %v4268 = vpop.f32.mrf.mxu0
    %4269 = vmatprep.mubr.f32.mxu0 0.0
    %4270 = vmatmul.mubr.f32.gmra.mxu0 %v4154
    %v4271 = vpop.f32.mrf.mxu0
    %v4272 = vadd.f32 %v4146, %v4271
    %v4273 = vpop.f32.mrf.mxu0
    %4274 = vmatprep.mubr.f32.mxu0 0.0
    %4275 = vmatmul.mubr.f32.gmra.mxu0 %v4157
    %v4276 = vpop.f32.mrf.mxu0
    %v4277 = vadd.f32 %v4146, %v4276
    %v4278 = vpop.f32.mrf.mxu0
    %4279 = vmatprep.mubr.f32.mxu0 0.0
    %4280 = vmatmul.mubr.f32.gmra.mxu0 %v4160
    %v4281 = vpop.f32.mrf.mxu0
    %v4282 = vadd.f32 %v4146, %v4281
    %v4283 = vpop.f32.mrf.mxu0
    %4284 = vmatprep.mubr.f32.mxu0 0.0
    %4285 = vmatmul.mubr.f32.gmra.mxu0 %v4163
    %v4286 = vpop.f32.mrf.mxu0
    %v4287 = vadd.f32 %v4146, %v4286
    %v4288 = vpop.f32.mrf.mxu0
    %4289 = vmatprep.mubr.f32.mxu0 0.0
    %4290 = vmatmul.mubr.f32.gmra.mxu0 %v4166
    %v4291 = vpop.f32.mrf.mxu0
    %v4292 = vadd.f32 %v4146, %v4291
    %v4293 = vpop.f32.mrf.mxu0
    %4294 = vmatprep.mubr.f32.mxu0 0.0
    %4295 = vmatmul.mubr.f32.gmra.mxu0 %v4169
    %v4296 = vpop.f32.mrf.mxu0
    %v4297 = vadd.f32 %v4146, %v4296
    %v4298 = vpop.f32.mrf.mxu0
    %4299 = vmatprep.mubr.f32.mxu0 0.0
    %4300 = vmatmul.mubr.f32.gmra.mxu0 %v4172
    %v4301 = vpop.f32.mrf.mxu0
    %v4302 = vadd.f32 %v4146, %v4301
    %v4303 = vpop.f32.mrf.mxu0
    %4304 = vmatprep.mubr.f32.mxu0 0.0
    %4305 = vmatmul.mubr.f32.gmra.mxu0 %v4175
    %v4306 = vpop.f32.mrf.mxu0
    %v4307 = vadd.f32 %v4146, %v4306
    %v4308 = vpop.f32.mrf.mxu0
    %4309 = vmatprep.mubr.f32.mxu0 0.0
    %4310 = vmatmul.mubr.f32.gmra.mxu0 %v4178
    %v4311 = vpop.f32.mrf.mxu0
    %v4312 = vadd.f32 %v4146, %v4311
    %v4313 = vpop.f32.mrf.mxu0
    %4314 = vmatprep.mubr.f32.mxu0 0.0
    %4315 = vmatmul.mubr.f32.gmra.mxu0 %v4181
    %v4316 = vpop.f32.mrf.mxu0
    %v4317 = vadd.f32 %v4146, %v4316
    %v4318 = vpop.f32.mrf.mxu0
    %4319 = vmatprep.mubr.f32.mxu0 0.0
    %4320 = vmatmul.mubr.f32.gmra.mxu0 %v4184
    %v4321 = vpop.f32.mrf.mxu0
    %v4322 = vadd.f32 %v4146, %v4321
    %v4323 = vpop.f32.mrf.mxu0
    %4324 = vmatprep.mubr.f32.mxu0 0.0
    %4325 = vmatmul.mubr.f32.gmra.mxu0 %v4187
    %v4326 = vpop.f32.mrf.mxu0
    %v4327 = vadd.f32 %v4146, %v4326
    %v4328 = vpop.f32.mrf.mxu0
    %4329 = vmatprep.mubr.f32.mxu0 0.0
    %4330 = vmatmul.mubr.f32.gmra.mxu0 %v4190
    %v4331 = vpop.f32.mrf.mxu0
    %v4332 = vadd.f32 %v4146, %v4331
    %v4333 = vpop.f32.mrf.mxu0
    %4334 = vmatprep.mubr.f32.mxu0 0.0
    %4335 = vmatmul.mubr.f32.gmra.mxu0 %v4193
    %v4336 = vpop.f32.mrf.mxu0
    %v4337 = vadd.f32 %v4146, %v4336
    %v4338 = vpop.f32.mrf.mxu0
    %4339 = vdwg.mxu0
    %v4340 = vxor.u32 %v4262, 2147483648
    %v4341 = vxor.u32 %v4267, 2147483648
    %v4342 = vxor.u32 %v4272, 2147483648
    %v4343 = vxor.u32 %v4277, 2147483648
    %v4344 = vxor.u32 %v4282, 2147483648
    %v4345 = vxor.u32 %v4287, 2147483648
    %v4346 = vxor.u32 %v4292, 2147483648
    %v4347 = vxor.u32 %v4297, 2147483648
    %v4348 = vxor.u32 %v4302, 2147483648
    %v4349 = vxor.u32 %v4307, 2147483648
    %v4350 = vxor.u32 %v4312, 2147483648
    %v4351 = vxor.u32 %v4317, 2147483648
    %v4352 = vxor.u32 %v4322, 2147483648
    %v4353 = vxor.u32 %v4327, 2147483648
    %v4354 = vxor.u32 %v4332, 2147483648
    %v4355 = vxor.u32 %v4337, 2147483648
    %v4356 = vmul.f32 %v4340, 1.442695
    %v4357 = vpow.pop %v4356
    %v4358 = vmul.f32 %v4341, 1.442695
    %v4359 = vpow.pop %v4358
    %v4360 = vmul.f32 %v4342, 1.442695
    %v4361 = vpow.pop %v4360
    %v4362 = vmul.f32 %v4343, 1.442695
    %v4363 = vpow.pop %v4362
    %v4364 = vmul.f32 %v4344, 1.442695
    %v4365 = vpow.pop %v4364
    %v4366 = vmul.f32 %v4345, 1.442695
    %v4367 = vpow.pop %v4366
    %v4368 = vmul.f32 %v4346, 1.442695
    %v4369 = vpow.pop %v4368
    %v4370 = vmul.f32 %v4347, 1.442695
    %v4371 = vpow.pop %v4370
    %v4372 = vmul.f32 %v4348, 1.442695
    %v4373 = vpow.pop %v4372
    %v4374 = vmul.f32 %v4349, 1.442695
    %v4375 = vpow.pop %v4374
    %v4376 = vmul.f32 %v4350, 1.442695
    %v4377 = vpow.pop %v4376
    %v4378 = vmul.f32 %v4351, 1.442695
    %v4379 = vpow.pop %v4378
    %v4380 = vmul.f32 %v4352, 1.442695
    %v4381 = vpow.pop %v4380
    %v4382 = vmul.f32 %v4353, 1.442695
    %v4383 = vpow.pop %v4382
    %v4384 = vmul.f32 %v4354, 1.442695
    %v4385 = vpow.pop %v4384
    %v4386 = vmul.f32 %v4355, 1.442695
    %v4387 = vpow.pop %v4386
    %v4388 = vadd.f32 %v4357, 1.0
    %v4389 = vadd.f32 %v4359, 1.0
    %v4390 = vadd.f32 %v4361, 1.0
    %v4391 = vadd.f32 %v4363, 1.0
    %v4392 = vadd.f32 %v4365, 1.0
    %v4393 = vadd.f32 %v4367, 1.0
    %v4394 = vadd.f32 %v4369, 1.0
    %v4395 = vadd.f32 %v4371, 1.0
    %v4396 = vadd.f32 %v4373, 1.0
    %v4397 = vadd.f32 %v4375, 1.0
    %v4398 = vadd.f32 %v4377, 1.0
    %v4399 = vadd.f32 %v4379, 1.0
    %v4400 = vadd.f32 %v4381, 1.0
    %v4401 = vadd.f32 %v4383, 1.0
    %v4402 = vadd.f32 %v4385, 1.0
    %v4403 = vadd.f32 %v4387, 1.0
    %v4404 = vrcp.pop %v4388
    %v4405 = vmul.f32 1.0, %v4404
    %v4406 = vrcp.pop %v4389
    %v4407 = vmul.f32 1.0, %v4406
    %v4408 = vrcp.pop %v4390
    %v4409 = vmul.f32 1.0, %v4408
    %v4410 = vrcp.pop %v4391
    %v4411 = vmul.f32 1.0, %v4410
    %v4412 = vrcp.pop %v4392
    %v4413 = vmul.f32 1.0, %v4412
    %v4414 = vrcp.pop %v4393
    %v4415 = vmul.f32 1.0, %v4414
    %v4416 = vrcp.pop %v4394
    %v4417 = vmul.f32 1.0, %v4416
    %v4418 = vrcp.pop %v4395
    %v4419 = vmul.f32 1.0, %v4418
    %v4420 = vrcp.pop %v4396
    %v4421 = vmul.f32 1.0, %v4420
    %v4422 = vrcp.pop %v4397
    %v4423 = vmul.f32 1.0, %v4422
    %v4424 = vrcp.pop %v4398
    %v4425 = vmul.f32 1.0, %v4424
    %v4426 = vrcp.pop %v4399
    %v4427 = vmul.f32 1.0, %v4426
    %v4428 = vrcp.pop %v4400
    %v4429 = vmul.f32 1.0, %v4428
    %v4430 = vrcp.pop %v4401
    %v4431 = vmul.f32 1.0, %v4430
    %v4432 = vrcp.pop %v4402
    %v4433 = vmul.f32 1.0, %v4432
    %v4434 = vrcp.pop %v4403
    %v4435 = vmul.f32 1.0, %v4434
    %v4436 = vmul.f32 %v4262, %v4405
    %v4437 = vmul.f32 %v4267, %v4407
    %v4438 = vmul.f32 %v4272, %v4409
    %v4439 = vmul.f32 %v4277, %v4411
    %v4440 = vmul.f32 %v4282, %v4413
    %v4441 = vmul.f32 %v4287, %v4415
    %v4442 = vmul.f32 %v4292, %v4417
    %v4443 = vmul.f32 %v4297, %v4419
    %v4444 = vmul.f32 %v4302, %v4421
    %v4445 = vmul.f32 %v4307, %v4423
    %v4446 = vmul.f32 %v4312, %v4425
    %v4447 = vmul.f32 %v4317, %v4427
    %v4448 = vmul.f32 %v4322, %v4429
    %v4449 = vmul.f32 %v4327, %v4431
    %v4450 = vmul.f32 %v4332, %v4433
    %v4451 = vmul.f32 %v4337, %v4435
    %4452 = vmatprep.subr.mxu0 0.0
    %4453 = vmatpush1.msra.mxu0 %v4451
    %4454 = vmatprep.subr.mxu0 0.0
    %4455 = vmatpush1.msra.mxu0 %v4450
    %4456 = vmatprep.subr.mxu0 0.0
    %4457 = vmatpush1.msra.mxu0 %v4449
    %4458 = vmatprep.subr.mxu0 0.0
    %4459 = vmatpush1.msra.mxu0 %v4448
    %4460 = vmatprep.subr.mxu0 0.0
    %4461 = vmatpush1.msra.mxu0 %v4447
    %4462 = vmatprep.subr.mxu0 0.0
    %4463 = vmatpush1.msra.mxu0 %v4446
    %4464 = vmatprep.subr.mxu0 0.0
    %4465 = vmatpush1.msra.mxu0 %v4445
    %4466 = vmatprep.subr.mxu0 0.0
    %4467 = vmatpush1.msra.mxu0 %v4444
    %4468 = vmatprep.subr.mxu0 0.0
    %4469 = vmatpush1.msra.mxu0 %v4443
    %4470 = vmatprep.subr.mxu0 0.0
    %4471 = vmatpush1.msra.mxu0 %v4442
    %4472 = vmatprep.subr.mxu0 0.0
    %4473 = vmatpush1.msra.mxu0 %v4441
    %4474 = vmatprep.subr.mxu0 0.0
    %4475 = vmatpush1.msra.mxu0 %v4440
    %4476 = vmatprep.subr.mxu0 0.0
    %4477 = vmatpush1.msra.mxu0 %v4439
    %4478 = vmatprep.subr.mxu0 0.0
    %4479 = vmatpush1.msra.mxu0 %v4438
    %4480 = vmatprep.subr.mxu0 0.0
    %4481 = vmatpush1.msra.mxu0 %v4437
    %4482 = vmatprep.subr.mxu0 0.0
    %4483 = vmatpush1.msra.mxu0 %v4436
    %4484 = vmatprep.subr.mxu0 0.0
    %4485 = vmatpush2.msra.mxu0 0.0
    %4486 = vmatprep.subr.mxu0 0.0
    %4487 = vmatpush2.msra.mxu0 0.0
    %4488 = vmatprep.subr.mxu0 0.0
    %4489 = vmatpush2.msra.mxu0 0.0
    %4490 = vmatprep.subr.mxu0 0.0
    %4491 = vmatpush2.msra.mxu0 0.0
    %4492 = vmatprep.subr.mxu0 0.0
    %4493 = vmatpush2.msra.mxu0 0.0
    %4494 = vmatprep.subr.mxu0 0.0
    %4495 = vmatpush2.msra.mxu0 0.0
    %4496 = vmatprep.subr.mxu0 0.0
    %4497 = vmatpush2.msra.mxu0 0.0
    %4498 = vmatprep.subr.mxu0 0.0
    %4499 = vmatpush2.msra.mxu0 0.0
    %4500 = vmatprep.subr.mxu0 0.0
    %4501 = vmatpush2.msra.mxu0 0.0
    %4502 = vmatprep.subr.mxu0 0.0
    %4503 = vmatpush2.msra.mxu0 0.0
    %4504 = vmatprep.subr.mxu0 0.0
    %4505 = vmatpush2.msra.mxu0 0.0
    %4506 = vmatprep.subr.mxu0 0.0
    %4507 = vmatpush2.msra.mxu0 0.0
    %4508 = vmatprep.subr.mxu0 0.0
    %4509 = vmatpush2.msra.mxu0 0.0
    %4510 = vmatprep.subr.mxu0 0.0
    %4511 = vmatpush2.msra.mxu0 0.0
    %4512 = vmatprep.subr.mxu0 0.0
    %4513 = vmatpush2.msra.mxu0 0.0
    %4514 = vmatprep.subr.mxu0 0.0
    %4515 = vmatpush2.msra.mxu0 0.0
    %4516 = vmatprep.mubr.f32.mxu0 0.0
    %4517 = vmatmul.mubr.f32.gmra.mxu0 %v135
    %v4518 = vpop.f32.mrf.mxu0
    %v4519 = vadd.f32 0.0, %v4518
    %v4520 = vpop.f32.mrf.mxu0
    %4521 = vmatprep.mubr.f32.mxu0 0.0
    %4522 = vmatmul.mubr.f32.gmra.mxu0 %v136
    %v4523 = vpop.f32.mrf.mxu0
    %v4524 = vadd.f32 0.0, %v4523
    %v4525 = vpop.f32.mrf.mxu0
    %4526 = vdwg.mxu0
    %v4527 = vld [vmem:[#allocation10 + $0xc0] sm:$0xff]
    %v4528 = vld [vmem:[#allocation10 + $0xc8] sm:$0xff]
    %v4529 = vld [vmem:[#allocation10 + $0xd0] sm:$0xf]
    %v4531 = vsel %vm444, %v4529, 0
    %4533 = vmatprep.subr.mxu0 0.0
    %4534 = vmatpush1.msra.mxu0 0.0
    %4535 = vmatprep.subr.mxu0 0.0
    %4536 = vmatpush1.msra.mxu0 0.0
    %4537 = vmatprep.subr.mxu0 0.0
    %4538 = vmatpush1.msra.mxu0 0.0
    %4539 = vmatprep.subr.mxu0 0.0
    %4540 = vmatpush1.msra.mxu0 0.0
    %4541 = vmatprep.subr.mxu0 0.0
    %4542 = vmatpush1.msra.mxu0 0.0
    %4543 = vmatprep.subr.mxu0 0.0
    %4544 = vmatpush1.msra.mxu0 0.0
    %4545 = vmatprep.subr.mxu0 0.0
    %4546 = vmatpush1.msra.mxu0 0.0
    %4547 = vmatprep.subr.mxu0 0.0
    %4548 = vmatpush1.msra.mxu0 0.0
    %4549 = vmatprep.subr.mxu0 0.0
    %4550 = vmatpush1.msra.mxu0 0.0
    %4551 = vmatprep.subr.mxu0 0.0
    %4552 = vmatpush1.msra.mxu0 0.0
    %4553 = vmatprep.subr.mxu0 0.0
    %4554 = vmatpush1.msra.mxu0 0.0
    %4555 = vmatprep.subr.mxu0 0.0
    %4556 = vmatpush1.msra.mxu0 0.0
    %4557 = vmatprep.subr.mxu0 0.0
    %4558 = vmatpush1.msra.mxu0 0.0
    %4559 = vmatprep.subr.mxu0 0.0
    %4560 = vmatpush1.msra.mxu0 0.0
    %4561 = vmatprep.subr.mxu0 0.0
    %4562 = vmatpush1.msra.mxu0 0.0
    %4563 = vmatprep.subr.mxu0 0.0
    %4564 = vmatpush1.msra.mxu0 %v4531
    %4565 = vmatprep.subr.mxu0 0.0
    %4566 = vmatpush2.msra.mxu0 0.0
    %4567 = vmatprep.subr.mxu0 0.0
    %4568 = vmatpush2.msra.mxu0 0.0
    %4569 = vmatprep.subr.mxu0 0.0
    %4570 = vmatpush2.msra.mxu0 0.0
    %4571 = vmatprep.subr.mxu0 0.0
    %4572 = vmatpush2.msra.mxu0 0.0
    %4573 = vmatprep.subr.mxu0 0.0
    %4574 = vmatpush2.msra.mxu0 0.0
    %4575 = vmatprep.subr.mxu0 0.0
    %4576 = vmatpush2.msra.mxu0 0.0
    %4577 = vmatprep.subr.mxu0 0.0
    %4578 = vmatpush2.msra.mxu0 0.0
    %4579 = vmatprep.subr.mxu0 0.0
    %4580 = vmatpush2.msra.mxu0 0.0
    %4581 = vmatprep.subr.mxu0 0.0
    %4582 = vmatpush2.msra.mxu0 0.0
    %4583 = vmatprep.subr.mxu0 0.0
    %4584 = vmatpush2.msra.mxu0 0.0
    %4585 = vmatprep.subr.mxu0 0.0
    %4586 = vmatpush2.msra.mxu0 0.0
    %4587 = vmatprep.subr.mxu0 0.0
    %4588 = vmatpush2.msra.mxu0 0.0
    %4589 = vmatprep.subr.mxu0 0.0
    %4590 = vmatpush2.msra.mxu0 0.0
    %4591 = vmatprep.subr.mxu0 0.0
    %4592 = vmatpush2.msra.mxu0 0.0
    %4593 = vmatprep.subr.mxu0 0.0
    %4594 = vmatpush2.msra.mxu0 0.0
    %4595 = vmatprep.subr.mxu0 0.0
    %4596 = vmatpush2.msra.mxu0 0.0
    %4597 = vmatprep.mubr.f32.mxu0 0.0
    %4598 = vmatmul.mubr.f32.gmra.mxu0 %v439
    %v4599 = vpop.f32.mrf.mxu0
    %v4600 = vadd.f32 0.0, %v4599
    %v4601 = vpop.f32.mrf.mxu0
    %4602 = vmatprep.mubr.f32.mxu0 0.0
    %4603 = vmatmul.mubr.f32.gmra.mxu0 %v442
    %v4604 = vpop.f32.mrf.mxu0
    %v4605 = vadd.f32 0.0, %v4604
    %v4606 = vpop.f32.mrf.mxu0
    %4607 = vdwg.mxu0
    %v4609 = vsel %vm145, %v428, 0
    %v4612 = vsel %vm145, %v433, 0
    %4614 = vmatprep.subr.mxu0 0.0
    %4615 = vmatpush1.msra.mxu0 0.0
    %4616 = vmatprep.subr.mxu0 0.0
    %4617 = vmatpush1.msra.mxu0 0.0
    %4618 = vmatprep.subr.mxu0 0.0
    %4619 = vmatpush1.msra.mxu0 0.0
    %4620 = vmatprep.subr.mxu0 0.0
    %4621 = vmatpush1.msra.mxu0 0.0
    %4622 = vmatprep.subr.mxu0 0.0
    %4623 = vmatpush1.msra.mxu0 0.0
    %4624 = vmatprep.subr.mxu0 0.0
    %4625 = vmatpush1.msra.mxu0 0.0
    %4626 = vmatprep.subr.mxu0 0.0
    %4627 = vmatpush1.msra.mxu0 0.0
    %4628 = vmatprep.subr.mxu0 0.0
    %4629 = vmatpush1.msra.mxu0 0.0
    %4630 = vmatprep.subr.mxu0 0.0
    %4631 = vmatpush1.msra.mxu0 0.0
    %4632 = vmatprep.subr.mxu0 0.0
    %4633 = vmatpush1.msra.mxu0 0.0
    %4634 = vmatprep.subr.mxu0 0.0
    %4635 = vmatpush1.msra.mxu0 0.0
    %4636 = vmatprep.subr.mxu0 0.0
    %4637 = vmatpush1.msra.mxu0 0.0
    %4638 = vmatprep.subr.mxu0 0.0
    %4639 = vmatpush1.msra.mxu0 0.0
    %4640 = vmatprep.subr.mxu0 0.0
    %4641 = vmatpush1.msra.mxu0 0.0
    %4642 = vmatprep.subr.mxu0 0.0
    %4643 = vmatpush1.msra.mxu0 %v4528
    %4644 = vmatprep.subr.mxu0 0.0
    %4645 = vmatpush1.msra.mxu0 %v4527
    %4646 = vmatprep.subr.mxu0 0.0
    %4647 = vmatpush2.msra.mxu0 0.0
    %4648 = vmatprep.subr.mxu0 0.0
    %4649 = vmatpush2.msra.mxu0 0.0
    %4650 = vmatprep.subr.mxu0 0.0
    %4651 = vmatpush2.msra.mxu0 0.0
    %4652 = vmatprep.subr.mxu0 0.0
    %4653 = vmatpush2.msra.mxu0 0.0
    %4654 = vmatprep.subr.mxu0 0.0
    %4655 = vmatpush2.msra.mxu0 0.0
    %4656 = vmatprep.subr.mxu0 0.0
    %4657 = vmatpush2.msra.mxu0 0.0
    %4658 = vmatprep.subr.mxu0 0.0
    %4659 = vmatpush2.msra.mxu0 0.0
    %4660 = vmatprep.subr.mxu0 0.0
    %4661 = vmatpush2.msra.mxu0 0.0
    %4662 = vmatprep.subr.mxu0 0.0
    %4663 = vmatpush2.msra.mxu0 0.0
    %4664 = vmatprep.subr.mxu0 0.0
    %4665 = vmatpush2.msra.mxu0 0.0
    %4666 = vmatprep.subr.mxu0 0.0
    %4667 = vmatpush2.msra.mxu0 0.0
    %4668 = vmatprep.subr.mxu0 0.0
    %4669 = vmatpush2.msra.mxu0 0.0
    %4670 = vmatprep.subr.mxu0 0.0
    %4671 = vmatpush2.msra.mxu0 0.0
    %4672 = vmatprep.subr.mxu0 0.0
    %4673 = vmatpush2.msra.mxu0 0.0
    %4674 = vmatprep.subr.mxu0 0.0
    %4675 = vmatpush2.msra.mxu0 0.0
    %4676 = vmatprep.subr.mxu0 0.0
    %4677 = vmatpush2.msra.mxu0 0.0
    %4678 = vmatprep.mubr.f32.mxu0 0.0
    %4679 = vmatmul.mubr.f32.gmra.mxu0 %v4609
    %v4680 = vpop.f32.mrf.mxu0
    %v4681 = vadd.f32 %v4600, %v4680
    %v4682 = vpop.f32.mrf.mxu0
    %4683 = vmatprep.mubr.f32.mxu0 0.0
    %4684 = vmatmul.mubr.f32.gmra.mxu0 %v4612
    %v4685 = vpop.f32.mrf.mxu0
    %v4686 = vadd.f32 %v4605, %v4685
    %v4687 = vpop.f32.mrf.mxu0
    %4688 = vdwg.mxu0
    %v4689 = vld [vmem:[#allocation10 + $0xd8] sm:$0xff]
    %v4690 = vld [vmem:[#allocation10 + $0xe0] sm:$0xff]
    %v4692 = vsel %vm145, %v4519, 0
    %v4695 = vsel %vm145, %v4524, 0
    %4697 = vmatprep.subr.mxu0 0.0
    %4698 = vmatpush1.msra.mxu0 0.0
    %4699 = vmatprep.subr.mxu0 0.0
    %4700 = vmatpush1.msra.mxu0 0.0
    %4701 = vmatprep.subr.mxu0 0.0
    %4702 = vmatpush1.msra.mxu0 0.0
    %4703 = vmatprep.subr.mxu0 0.0
    %4704 = vmatpush1.msra.mxu0 0.0
    %4705 = vmatprep.subr.mxu0 0.0
    %4706 = vmatpush1.msra.mxu0 0.0
    %4707 = vmatprep.subr.mxu0 0.0
    %4708 = vmatpush1.msra.mxu0 0.0
    %4709 = vmatprep.subr.mxu0 0.0
    %4710 = vmatpush1.msra.mxu0 0.0
    %4711 = vmatprep.subr.mxu0 0.0
    %4712 = vmatpush1.msra.mxu0 0.0
    %4713 = vmatprep.subr.mxu0 0.0
    %4714 = vmatpush1.msra.mxu0 0.0
    %4715 = vmatprep.subr.mxu0 0.0
    %4716 = vmatpush1.msra.mxu0 0.0
    %4717 = vmatprep.subr.mxu0 0.0
    %4718 = vmatpush1.msra.mxu0 0.0
    %4719 = vmatprep.subr.mxu0 0.0
    %4720 = vmatpush1.msra.mxu0 0.0
    %4721 = vmatprep.subr.mxu0 0.0
    %4722 = vmatpush1.msra.mxu0 0.0
    %4723 = vmatprep.subr.mxu0 0.0
    %4724 = vmatpush1.msra.mxu0 0.0
    %4725 = vmatprep.subr.mxu0 0.0
    %4726 = vmatpush1.msra.mxu0 %v4690
    %4727 = vmatprep.subr.mxu0 0.0
    %4728 = vmatpush1.msra.mxu0 %v4689
    %4729 = vmatprep.subr.mxu0 0.0
    %4730 = vmatpush2.msra.mxu0 0.0
    %4731 = vmatprep.subr.mxu0 0.0
    %4732 = vmatpush2.msra.mxu0 0.0
    %4733 = vmatprep.subr.mxu0 0.0
    %4734 = vmatpush2.msra.mxu0 0.0
    %4735 = vmatprep.subr.mxu0 0.0
    %4736 = vmatpush2.msra.mxu0 0.0
    %4737 = vmatprep.subr.mxu0 0.0
    %4738 = vmatpush2.msra.mxu0 0.0
    %4739 = vmatprep.subr.mxu0 0.0
    %4740 = vmatpush2.msra.mxu0 0.0
    %4741 = vmatprep.subr.mxu0 0.0
    %4742 = vmatpush2.msra.mxu0 0.0
    %4743 = vmatprep.subr.mxu0 0.0
    %4744 = vmatpush2.msra.mxu0 0.0
    %4745 = vmatprep.subr.mxu0 0.0
    %4746 = vmatpush2.msra.mxu0 0.0
    %4747 = vmatprep.subr.mxu0 0.0
    %4748 = vmatpush2.msra.mxu0 0.0
    %4749 = vmatprep.subr.mxu0 0.0
    %4750 = vmatpush2.msra.mxu0 0.0
    %4751 = vmatprep.subr.mxu0 0.0
    %4752 = vmatpush2.msra.mxu0 0.0
    %4753 = vmatprep.subr.mxu0 0.0
    %4754 = vmatpush2.msra.mxu0 0.0
    %4755 = vmatprep.subr.mxu0 0.0
    %4756 = vmatpush2.msra.mxu0 0.0
    %4757 = vmatprep.subr.mxu0 0.0
    %4758 = vmatpush2.msra.mxu0 0.0
    %4759 = vmatprep.subr.mxu0 0.0
    %4760 = vmatpush2.msra.mxu0 0.0
    %4761 = vmatprep.mubr.f32.mxu0 0.0
    %4762 = vmatmul.mubr.f32.gmra.mxu0 %v4692
    %v4763 = vpop.f32.mrf.mxu0
    %v4764 = vadd.f32 0.0, %v4763
    %v4765 = vpop.f32.mrf.mxu0
    %4766 = vmatprep.mubr.f32.mxu0 0.0
    %4767 = vmatmul.mubr.f32.gmra.mxu0 %v4695
    %v4768 = vpop.f32.mrf.mxu0
    %v4769 = vadd.f32 0.0, %v4768
    %v4770 = vpop.f32.mrf.mxu0
    %4771 = vdwg.mxu0
    %v4772 = vadd.f32 %v4681, %v4764
    %v4773 = vadd.f32 %v4686, %v4769
    %v4774 = vld [vmem:[%s7 + $0x8] sm:$0x1]
    %v4775 = vlaneseq
    %v4776 = vshrl.u32 %v4775, 7
    %v4777 = vsub.s32 0, %v4776
    %v4778 = vrot.slane %v4774, %v4777
    %v4779 = vadd.f32 %v4772, %v4778
    %v4780 = vadd.f32 %v4773, %v4778
    %v4781 = vxor.u32 %v4779, 2147483648
    %v4782 = vxor.u32 %v4780, 2147483648
    %v4783 = vmul.f32 %v4781, 1.442695
    %v4784 = vpow.pop %v4783
    %v4785 = vmul.f32 %v4782, 1.442695
    %v4786 = vpow.pop %v4785
    %v4787 = vadd.f32 %v4784, 1.0
    %v4788 = vadd.f32 %v4786, 1.0
    %v4789 = vrcp.pop %v4787
    %v4790 = vmul.f32 1.0, %v4789
    %v4791 = vrcp.pop %v4788
    %v4792 = vmul.f32 1.0, %v4791
    %v4793 = vmul.f32 %v4779, %v4790
    %v4794 = vmul.f32 %v4780, %v4792
    %v4795 = vld [vmem:[#allocation10 + $0xe8] sm:$0xff]
    %v4796 = vld [vmem:[#allocation10 + $0xf0] sm:$0xff]
    %v4797 = vld [vmem:[#allocation10 + $0xf8] sm:$0xff]
    %v4798 = vld [vmem:[#allocation10 + $0x100] sm:$0xff]
    %v4799 = vld [vmem:[%s7 + $0xb] sm:$0x1]
    %v4800 = vlaneseq
    %v4801 = vshrl.u32 %v4800, 7
    %v4802 = vsub.s32 0, %v4801
    %v4803 = vrot.slane %v4799, %v4802
    %v4805 = vsel %vm250, %v4793, 0
    %v4808 = vsel %vm250, %v4794, 0
    %4810 = vmatprep.subr.mxu0 0.0
    %4811 = vmatpush1.msra.mxu0 0.0
    %4812 = vmatprep.subr.mxu0 0.0
    %4813 = vmatpush1.msra.mxu0 0.0
    %4814 = vmatprep.subr.mxu0 0.0
    %4815 = vmatpush1.msra.mxu0 0.0
    %4816 = vmatprep.subr.mxu0 0.0
    %4817 = vmatpush1.msra.mxu0 0.0
    %4818 = vmatprep.subr.mxu0 0.0
    %4819 = vmatpush1.msra.mxu0 0.0
    %4820 = vmatprep.subr.mxu0 0.0
    %4821 = vmatpush1.msra.mxu0 0.0
    %4822 = vmatprep.subr.mxu0 0.0
    %4823 = vmatpush1.msra.mxu0 0.0
    %4824 = vmatprep.subr.mxu0 0.0
    %4825 = vmatpush1.msra.mxu0 0.0
    %4826 = vmatprep.subr.mxu0 0.0
    %4827 = vmatpush1.msra.mxu0 0.0
    %4828 = vmatprep.subr.mxu0 0.0
    %4829 = vmatpush1.msra.mxu0 0.0
    %4830 = vmatprep.subr.mxu0 0.0
    %4831 = vmatpush1.msra.mxu0 0.0
    %4832 = vmatprep.subr.mxu0 0.0
    %4833 = vmatpush1.msra.mxu0 0.0
    %4834 = vmatprep.subr.mxu0 0.0
    %4835 = vmatpush1.msra.mxu0 %v4798
    %4836 = vmatprep.subr.mxu0 0.0
    %4837 = vmatpush1.msra.mxu0 %v4797
    %4838 = vmatprep.subr.mxu0 0.0
    %4839 = vmatpush1.msra.mxu0 %v4796
    %4840 = vmatprep.subr.mxu0 0.0
    %4841 = vmatpush1.msra.mxu0 %v4795
    %4842 = vmatprep.subr.mxu0 0.0
    %4843 = vmatpush2.msra.mxu0 0.0
    %4844 = vmatprep.subr.mxu0 0.0
    %4845 = vmatpush2.msra.mxu0 0.0
    %4846 = vmatprep.subr.mxu0 0.0
    %4847 = vmatpush2.msra.mxu0 0.0
    %4848 = vmatprep.subr.mxu0 0.0
    %4849 = vmatpush2.msra.mxu0 0.0
    %4850 = vmatprep.subr.mxu0 0.0
    %4851 = vmatpush2.msra.mxu0 0.0
    %4852 = vmatprep.subr.mxu0 0.0
    %4853 = vmatpush2.msra.mxu0 0.0
    %4854 = vmatprep.subr.mxu0 0.0
    %4855 = vmatpush2.msra.mxu0 0.0
    %4856 = vmatprep.subr.mxu0 0.0
    %4857 = vmatpush2.msra.mxu0 0.0
    %4858 = vmatprep.subr.mxu0 0.0
    %4859 = vmatpush2.msra.mxu0 0.0
    %4860 = vmatprep.subr.mxu0 0.0
    %4861 = vmatpush2.msra.mxu0 0.0
    %4862 = vmatprep.subr.mxu0 0.0
    %4863 = vmatpush2.msra.mxu0 0.0
    %4864 = vmatprep.subr.mxu0 0.0
    %4865 = vmatpush2.msra.mxu0 0.0
    %4866 = vmatprep.subr.mxu0 0.0
    %4867 = vmatpush2.msra.mxu0 0.0
    %4868 = vmatprep.subr.mxu0 0.0
    %4869 = vmatpush2.msra.mxu0 0.0
    %4870 = vmatprep.subr.mxu0 0.0
    %4871 = vmatpush2.msra.mxu0 0.0
    %4872 = vmatprep.subr.mxu0 0.0
    %4873 = vmatpush2.msra.mxu0 0.0
    %4874 = vmatprep.mubr.f32.mxu0 0.0
    %4875 = vmatmul.mubr.f32.gmra.mxu0 %v4805
    %v4876 = vpop.f32.mrf.mxu0
    %v4877 = vadd.f32 %v4803, %v4876
    %v4878 = vpop.f32.mrf.mxu0
    %4879 = vmatprep.mubr.f32.mxu0 0.0
    %4880 = vmatmul.mubr.f32.gmra.mxu0 %v4808
    %v4881 = vpop.f32.mrf.mxu0
    %v4882 = vadd.f32 %v4803, %v4881
    %v4883 = vpop.f32.mrf.mxu0
    %4884 = vdwg.mxu0
    %v4885 = vxor.u32 %v4877, 2147483648
    %v4886 = vxor.u32 %v4882, 2147483648
    %v4887 = vmul.f32 %v4885, 1.442695
    %v4888 = vpow.pop %v4887
    %v4889 = vmul.f32 %v4886, 1.442695
    %v4890 = vpow.pop %v4889
    %v4891 = vadd.f32 %v4888, 1.0
    %v4892 = vadd.f32 %v4890, 1.0
    %v4893 = vrcp.pop %v4891
    %v4894 = vmul.f32 1.0, %v4893
    %v4895 = vrcp.pop %v4892
    %v4896 = vmul.f32 1.0, %v4895
    %v4897 = vmul.f32 %v4877, %v4894
    %v4898 = vmul.f32 %v4882, %v4896
    %v4899 = vld [vmem:[#allocation10 + $0x108] sm:$0xff]
    %v4900 = vld [vmem:[#allocation10 + $0x110] sm:$0xff]
    %v4901 = vld [vmem:[#allocation10 + $0x118] sm:$0xff]
    %v4902 = vld [vmem:[#allocation10 + $0x120] sm:$0xff]
    %v4903 = vld [vmem:[%s7 + $0xc] sm:$0x1]
    %v4904 = vlaneseq
    %v4905 = vshrl.u32 %v4904, 7
    %v4906 = vsub.s32 0, %v4905
    %v4907 = vrot.slane %v4903, %v4906
    %v4909 = vsel %vm250, %v4897, 0
    %v4912 = vsel %vm250, %v4898, 0
    %4914 = vmatprep.subr.mxu0 0.0
    %4915 = vmatpush1.msra.mxu0 0.0
    %4916 = vmatprep.subr.mxu0 0.0
    %4917 = vmatpush1.msra.mxu0 0.0
    %4918 = vmatprep.subr.mxu0 0.0
    %4919 = vmatpush1.msra.mxu0 0.0
    %4920 = vmatprep.subr.mxu0 0.0
    %4921 = vmatpush1.msra.mxu0 0.0
    %4922 = vmatprep.subr.mxu0 0.0
    %4923 = vmatpush1.msra.mxu0 0.0
    %4924 = vmatprep.subr.mxu0 0.0
    %4925 = vmatpush1.msra.mxu0 0.0
    %4926 = vmatprep.subr.mxu0 0.0
    %4927 = vmatpush1.msra.mxu0 0.0
    %4928 = vmatprep.subr.mxu0 0.0
    %4929 = vmatpush1.msra.mxu0 0.0
    %4930 = vmatprep.subr.mxu0 0.0
    %4931 = vmatpush1.msra.mxu0 0.0
    %4932 = vmatprep.subr.mxu0 0.0
    %4933 = vmatpush1.msra.mxu0 0.0
    %4934 = vmatprep.subr.mxu0 0.0
    %4935 = vmatpush1.msra.mxu0 0.0
    %4936 = vmatprep.subr.mxu0 0.0
    %4937 = vmatpush1.msra.mxu0 0.0
    %4938 = vmatprep.subr.mxu0 0.0
    %4939 = vmatpush1.msra.mxu0 %v4902
    %4940 = vmatprep.subr.mxu0 0.0
    %4941 = vmatpush1.msra.mxu0 %v4901
    %4942 = vmatprep.subr.mxu0 0.0
    %4943 = vmatpush1.msra.mxu0 %v4900
    %4944 = vmatprep.subr.mxu0 0.0
    %4945 = vmatpush1.msra.mxu0 %v4899
    %4946 = vmatprep.subr.mxu0 0.0
    %4947 = vmatpush2.msra.mxu0 0.0
    %4948 = vmatprep.subr.mxu0 0.0
    %4949 = vmatpush2.msra.mxu0 0.0
    %4950 = vmatprep.subr.mxu0 0.0
    %4951 = vmatpush2.msra.mxu0 0.0
    %4952 = vmatprep.subr.mxu0 0.0
    %4953 = vmatpush2.msra.mxu0 0.0
    %4954 = vmatprep.subr.mxu0 0.0
    %4955 = vmatpush2.msra.mxu0 0.0
    %4956 = vmatprep.subr.mxu0 0.0
    %4957 = vmatpush2.msra.mxu0 0.0
    %4958 = vmatprep.subr.mxu0 0.0
    %4959 = vmatpush2.msra.mxu0 0.0
    %4960 = vmatprep.subr.mxu0 0.0
    %4961 = vmatpush2.msra.mxu0 0.0
    %4962 = vmatprep.subr.mxu0 0.0
    %4963 = vmatpush2.msra.mxu0 0.0
    %4964 = vmatprep.subr.mxu0 0.0
    %4965 = vmatpush2.msra.mxu0 0.0
    %4966 = vmatprep.subr.mxu0 0.0
    %4967 = vmatpush2.msra.mxu0 0.0
    %4968 = vmatprep.subr.mxu0 0.0
    %4969 = vmatpush2.msra.mxu0 0.0
    %4970 = vmatprep.subr.mxu0 0.0
    %4971 = vmatpush2.msra.mxu0 0.0
    %4972 = vmatprep.subr.mxu0 0.0
    %4973 = vmatpush2.msra.mxu0 0.0
    %4974 = vmatprep.subr.mxu0 0.0
    %4975 = vmatpush2.msra.mxu0 0.0
    %4976 = vmatprep.subr.mxu0 0.0
    %4977 = vmatpush2.msra.mxu0 0.0
    %4978 = vmatprep.mubr.f32.mxu0 0.0
    %4979 = vmatmul.mubr.f32.gmra.mxu0 %v4909
    %v4980 = vpop.f32.mrf.mxu0
    %v4981 = vadd.f32 %v4907, %v4980
    %v4982 = vpop.f32.mrf.mxu0
    %4983 = vmatprep.mubr.f32.mxu0 0.0
    %4984 = vmatmul.mubr.f32.gmra.mxu0 %v4912
    %v4985 = vpop.f32.mrf.mxu0
    %v4986 = vadd.f32 %v4907, %v4985
    %v4987 = vpop.f32.mrf.mxu0
    %4988 = vdwg.mxu0
    %v4989 = vxor.u32 %v4981, 2147483648
    %v4990 = vxor.u32 %v4986, 2147483648
    %v4991 = vmul.f32 %v4989, 1.442695
    %v4992 = vpow.pop %v4991
    %v4993 = vmul.f32 %v4990, 1.442695
    %v4994 = vpow.pop %v4993
    %v4995 = vadd.f32 %v4992, 1.0
    %v4996 = vadd.f32 %v4994, 1.0
    %v4997 = vrcp.pop %v4995
    %v4998 = vmul.f32 1.0, %v4997
    %v4999 = vrcp.pop %v4996
    %v5000 = vmul.f32 1.0, %v4999
    %v5001 = vmul.f32 %v4981, %v4998
    %v5002 = vmul.f32 %v4986, %v5000
    %v5003 = vld [vmem:[#allocation10 + $0x128] sm:$0xff]
    %v5004 = vld [vmem:[#allocation10 + $0x130] sm:$0xff]
    %v5005 = vld [vmem:[#allocation10 + $0x138] sm:$0xff]
    %v5006 = vld [vmem:[#allocation10 + $0x140] sm:$0xff]
    %v5007 = vld [vmem:[%s7 + $0xd] sm:$0x1]
    %v5008 = vlaneseq
    %v5009 = vshrl.u32 %v5008, 7
    %v5010 = vsub.s32 0, %v5009
    %v5011 = vrot.slane %v5007, %v5010
    %v5013 = vsel %vm250, %v5001, 0
    %v5016 = vsel %vm250, %v5002, 0
    %5018 = vmatprep.subr.mxu0 0.0
    %5019 = vmatpush1.msra.mxu0 0.0
    %5020 = vmatprep.subr.mxu0 0.0
    %5021 = vmatpush1.msra.mxu0 0.0
    %5022 = vmatprep.subr.mxu0 0.0
    %5023 = vmatpush1.msra.mxu0 0.0
    %5024 = vmatprep.subr.mxu0 0.0
    %5025 = vmatpush1.msra.mxu0 0.0
    %5026 = vmatprep.subr.mxu0 0.0
    %5027 = vmatpush1.msra.mxu0 0.0
    %5028 = vmatprep.subr.mxu0 0.0
    %5029 = vmatpush1.msra.mxu0 0.0
    %5030 = vmatprep.subr.mxu0 0.0
    %5031 = vmatpush1.msra.mxu0 0.0
    %5032 = vmatprep.subr.mxu0 0.0
    %5033 = vmatpush1.msra.mxu0 0.0
    %5034 = vmatprep.subr.mxu0 0.0
    %5035 = vmatpush1.msra.mxu0 0.0
    %5036 = vmatprep.subr.mxu0 0.0
    %5037 = vmatpush1.msra.mxu0 0.0
    %5038 = vmatprep.subr.mxu0 0.0
    %5039 = vmatpush1.msra.mxu0 0.0
    %5040 = vmatprep.subr.mxu0 0.0
    %5041 = vmatpush1.msra.mxu0 0.0
    %5042 = vmatprep.subr.mxu0 0.0
    %5043 = vmatpush1.msra.mxu0 %v5006
    %5044 = vmatprep.subr.mxu0 0.0
    %5045 = vmatpush1.msra.mxu0 %v5005
    %5046 = vmatprep.subr.mxu0 0.0
    %5047 = vmatpush1.msra.mxu0 %v5004
    %5048 = vmatprep.subr.mxu0 0.0
    %5049 = vmatpush1.msra.mxu0 %v5003
    %5050 = vmatprep.subr.mxu0 0.0
    %5051 = vmatpush2.msra.mxu0 0.0
    %5052 = vmatprep.subr.mxu0 0.0
    %5053 = vmatpush2.msra.mxu0 0.0
    %5054 = vmatprep.subr.mxu0 0.0
    %5055 = vmatpush2.msra.mxu0 0.0
    %5056 = vmatprep.subr.mxu0 0.0
    %5057 = vmatpush2.msra.mxu0 0.0
    %5058 = vmatprep.subr.mxu0 0.0
    %5059 = vmatpush2.msra.mxu0 0.0
    %5060 = vmatprep.subr.mxu0 0.0
    %5061 = vmatpush2.msra.mxu0 0.0
    %5062 = vmatprep.subr.mxu0 0.0
    %5063 = vmatpush2.msra.mxu0 0.0
    %5064 = vmatprep.subr.mxu0 0.0
    %5065 = vmatpush2.msra.mxu0 0.0
    %5066 = vmatprep.subr.mxu0 0.0
    %5067 = vmatpush2.msra.mxu0 0.0
    %5068 = vmatprep.subr.mxu0 0.0
    %5069 = vmatpush2.msra.mxu0 0.0
    %5070 = vmatprep.subr.mxu0 0.0
    %5071 = vmatpush2.msra.mxu0 0.0
    %5072 = vmatprep.subr.mxu0 0.0
    %5073 = vmatpush2.msra.mxu0 0.0
    %5074 = vmatprep.subr.mxu0 0.0
    %5075 = vmatpush2.msra.mxu0 0.0
    %5076 = vmatprep.subr.mxu0 0.0
    %5077 = vmatpush2.msra.mxu0 0.0
    %5078 = vmatprep.subr.mxu0 0.0
    %5079 = vmatpush2.msra.mxu0 0.0
    %5080 = vmatprep.subr.mxu0 0.0
    %5081 = vmatpush2.msra.mxu0 0.0
    %5082 = vmatprep.mubr.f32.mxu0 0.0
    %5083 = vmatmul.mubr.f32.gmra.mxu0 %v5013
    %v5084 = vpop.f32.mrf.mxu0
    %v5085 = vadd.f32 %v5011, %v5084
    %v5086 = vpop.f32.mrf.mxu0
    %5087 = vmatprep.mubr.f32.mxu0 0.0
    %5088 = vmatmul.mubr.f32.gmra.mxu0 %v5016
    %v5089 = vpop.f32.mrf.mxu0
    %v5090 = vadd.f32 %v5011, %v5089
    %v5091 = vpop.f32.mrf.mxu0
    %5092 = vdwg.mxu0
    %v5093 = vxor.u32 %v5085, 2147483648
    %v5094 = vxor.u32 %v5090, 2147483648
    %v5095 = vmul.f32 %v5093, 1.442695
    %v5096 = vpow.pop %v5095
    %v5097 = vmul.f32 %v5094, 1.442695
    %v5098 = vpow.pop %v5097
    %v5099 = vadd.f32 %v5096, 1.0
    %v5100 = vadd.f32 %v5098, 1.0
    %v5101 = vrcp.pop %v5099
    %v5102 = vmul.f32 1.0, %v5101
    %v5103 = vrcp.pop %v5100
    %v5104 = vmul.f32 1.0, %v5103
    %v5105 = vmul.f32 %v5085, %v5102
    %v5106 = vmul.f32 %v5090, %v5104
    %v5107 = vadd.f32 %v115, %v5105
    %v5108 = vadd.f32 %v116, %v5106
    %v5109 = vld [vmem:[#allocation10 + $0x148] sm:$0xf]
    %v5111 = vsel %vm437, %v5107, 0
    %v5114 = vsel %vm437, %v5108, 0
    %v5117 = vsel %vm444, %v5109, 0
    %5119 = vmatprep.subr.mxu0 0.0
    %5120 = vmatpush1.msra.mxu0 0.0
    %5121 = vmatprep.subr.mxu0 0.0
    %5122 = vmatpush1.msra.mxu0 0.0
    %5123 = vmatprep.subr.mxu0 0.0
    %5124 = vmatpush1.msra.mxu0 0.0
    %5125 = vmatprep.subr.mxu0 0.0
    %5126 = vmatpush1.msra.mxu0 0.0
    %5127 = vmatprep.subr.mxu0 0.0
    %5128 = vmatpush1.msra.mxu0 0.0
    %5129 = vmatprep.subr.mxu0 0.0
    %5130 = vmatpush1.msra.mxu0 0.0
    %5131 = vmatprep.subr.mxu0 0.0
    %5132 = vmatpush1.msra.mxu0 0.0
    %5133 = vmatprep.subr.mxu0 0.0
    %5134 = vmatpush1.msra.mxu0 0.0
    %5135 = vmatprep.subr.mxu0 0.0
    %5136 = vmatpush1.msra.mxu0 0.0
    %5137 = vmatprep.subr.mxu0 0.0
    %5138 = vmatpush1.msra.mxu0 0.0
    %5139 = vmatprep.subr.mxu0 0.0
    %5140 = vmatpush1.msra.mxu0 0.0
    %5141 = vmatprep.subr.mxu0 0.0
    %5142 = vmatpush1.msra.mxu0 0.0
    %5143 = vmatprep.subr.mxu0 0.0
    %5144 = vmatpush1.msra.mxu0 0.0
    %5145 = vmatprep.subr.mxu0 0.0
    %5146 = vmatpush1.msra.mxu0 0.0
    %5147 = vmatprep.subr.mxu0 0.0
    %5148 = vmatpush1.msra.mxu0 0.0
    %5149 = vmatprep.subr.mxu0 0.0
    %5150 = vmatpush1.msra.mxu0 %v5117
    %5151 = vmatprep.subr.mxu0 0.0
    %5152 = vmatpush2.msra.mxu0 0.0
    %5153 = vmatprep.subr.mxu0 0.0
    %5154 = vmatpush2.msra.mxu0 0.0
    %5155 = vmatprep.subr.mxu0 0.0
    %5156 = vmatpush2.msra.mxu0 0.0
    %5157 = vmatprep.subr.mxu0 0.0
    %5158 = vmatpush2.msra.mxu0 0.0
    %5159 = vmatprep.subr.mxu0 0.0
    %5160 = vmatpush2.msra.mxu0 0.0
    %5161 = vmatprep.subr.mxu0 0.0
    %5162 = vmatpush2.msra.mxu0 0.0
    %5163 = vmatprep.subr.mxu0 0.0
    %5164 = vmatpush2.msra.mxu0 0.0
    %5165 = vmatprep.subr.mxu0 0.0
    %5166 = vmatpush2.msra.mxu0 0.0
    %5167 = vmatprep.subr.mxu0 0.0
    %5168 = vmatpush2.msra.mxu0 0.0
    %5169 = vmatprep.subr.mxu0 0.0
    %5170 = vmatpush2.msra.mxu0 0.0
    %5171 = vmatprep.subr.mxu0 0.0
    %5172 = vmatpush2.msra.mxu0 0.0
    %5173 = vmatprep.subr.mxu0 0.0
    %5174 = vmatpush2.msra.mxu0 0.0
    %5175 = vmatprep.subr.mxu0 0.0
    %5176 = vmatpush2.msra.mxu0 0.0
    %5177 = vmatprep.subr.mxu0 0.0
    %5178 = vmatpush2.msra.mxu0 0.0
    %5179 = vmatprep.subr.mxu0 0.0
    %5180 = vmatpush2.msra.mxu0 0.0
    %5181 = vmatprep.subr.mxu0 0.0
    %5182 = vmatpush2.msra.mxu0 0.0
    %5183 = vmatprep.mubr.f32.mxu0 0.0
    %5184 = vmatmul.mubr.f32.gmra.mxu0 %v5111
    %v5185 = vpop.f32.mrf.mxu0
    %v5186 = vadd.f32 0.0, %v5185
    %v5187 = vpop.f32.mrf.mxu0
    %5188 = vmatprep.mubr.f32.mxu0 0.0
    %5189 = vmatmul.mubr.f32.gmra.mxu0 %v5114
    %v5190 = vpop.f32.mrf.mxu0
    %v5191 = vadd.f32 0.0, %v5190
    %v5192 = vpop.f32.mrf.mxu0
    %5193 = vdwg.mxu0
    %v5194 = vld [vmem:[#allocation10 + $0x150] sm:$0xf]
    %v5196 = vsel %vm444, %v5194, 0
    %5198 = vmatprep.subr.mxu0 0.0
    %5199 = vmatpush1.msra.mxu0 0.0
    %5200 = vmatprep.subr.mxu0 0.0
    %5201 = vmatpush1.msra.mxu0 0.0
    %5202 = vmatprep.subr.mxu0 0.0
    %5203 = vmatpush1.msra.mxu0 0.0
    %5204 = vmatprep.subr.mxu0 0.0
    %5205 = vmatpush1.msra.mxu0 0.0
    %5206 = vmatprep.subr.mxu0 0.0
    %5207 = vmatpush1.msra.mxu0 0.0
    %5208 = vmatprep.subr.mxu0 0.0
    %5209 = vmatpush1.msra.mxu0 0.0
    %5210 = vmatprep.subr.mxu0 0.0
    %5211 = vmatpush1.msra.mxu0 0.0
    %5212 = vmatprep.subr.mxu0 0.0
    %5213 = vmatpush1.msra.mxu0 0.0
    %5214 = vmatprep.subr.mxu0 0.0
    %5215 = vmatpush1.msra.mxu0 0.0
    %5216 = vmatprep.subr.mxu0 0.0
    %5217 = vmatpush1.msra.mxu0 0.0
    %5218 = vmatprep.subr.mxu0 0.0
    %5219 = vmatpush1.msra.mxu0 0.0
    %5220 = vmatprep.subr.mxu0 0.0
    %5221 = vmatpush1.msra.mxu0 0.0
    %5222 = vmatprep.subr.mxu0 0.0
    %5223 = vmatpush1.msra.mxu0 0.0
    %5224 = vmatprep.subr.mxu0 0.0
    %5225 = vmatpush1.msra.mxu0 0.0
    %5226 = vmatprep.subr.mxu0 0.0
    %5227 = vmatpush1.msra.mxu0 0.0
    %5228 = vmatprep.subr.mxu0 0.0
    %5229 = vmatpush1.msra.mxu0 %v5196
    %5230 = vmatprep.subr.mxu0 0.0
    %5231 = vmatpush2.msra.mxu0 0.0
    %5232 = vmatprep.subr.mxu0 0.0
    %5233 = vmatpush2.msra.mxu0 0.0
    %5234 = vmatprep.subr.mxu0 0.0
    %5235 = vmatpush2.msra.mxu0 0.0
    %5236 = vmatprep.subr.mxu0 0.0
    %5237 = vmatpush2.msra.mxu0 0.0
    %5238 = vmatprep.subr.mxu0 0.0
    %5239 = vmatpush2.msra.mxu0 0.0
    %5240 = vmatprep.subr.mxu0 0.0
    %5241 = vmatpush2.msra.mxu0 0.0
    %5242 = vmatprep.subr.mxu0 0.0
    %5243 = vmatpush2.msra.mxu0 0.0
    %5244 = vmatprep.subr.mxu0 0.0
    %5245 = vmatpush2.msra.mxu0 0.0
    %5246 = vmatprep.subr.mxu0 0.0
    %5247 = vmatpush2.msra.mxu0 0.0
    %5248 = vmatprep.subr.mxu0 0.0
    %5249 = vmatpush2.msra.mxu0 0.0
    %5250 = vmatprep.subr.mxu0 0.0
    %5251 = vmatpush2.msra.mxu0 0.0
    %5252 = vmatprep.subr.mxu0 0.0
    %5253 = vmatpush2.msra.mxu0 0.0
    %5254 = vmatprep.subr.mxu0 0.0
    %5255 = vmatpush2.msra.mxu0 0.0
    %5256 = vmatprep.subr.mxu0 0.0
    %5257 = vmatpush2.msra.mxu0 0.0
    %5258 = vmatprep.subr.mxu0 0.0
    %5259 = vmatpush2.msra.mxu0 0.0
    %5260 = vmatprep.subr.mxu0 0.0
    %5261 = vmatpush2.msra.mxu0 0.0
    %5262 = vmatprep.mubr.f32.mxu0 0.0
    %5263 = vmatmul.mubr.f32.gmra.mxu0 %v5111
    %v5264 = vpop.f32.mrf.mxu0
    %v5265 = vadd.f32 0.0, %v5264
    %v5266 = vpop.f32.mrf.mxu0
    %5267 = vmatprep.mubr.f32.mxu0 0.0
    %5268 = vmatmul.mubr.f32.gmra.mxu0 %v5114
    %v5269 = vpop.f32.mrf.mxu0
    %v5270 = vadd.f32 0.0, %v5269
    %v5271 = vpop.f32.mrf.mxu0
    %5272 = vdwg.mxu0
    %v5273 = vld [vmem:[%s7 + $0xe] sm:$0x1]
    %v5274 = vlaneseq
    %v5275 = vshrl.u32 %v5274, 7
    %v5276 = vsub.s32 0, %v5275
    %v5277 = vrot.slane %v5273, %v5276
    %5278 = vmatprep.subr.mxu0 0.0
    %5279 = vmatpush1.msra.mxu0 0.0
    %5280 = vmatprep.subr.mxu0 0.0
    %5281 = vmatpush1.msra.mxu0 0.0
    %5282 = vmatprep.subr.mxu0 0.0
    %5283 = vmatpush1.msra.mxu0 0.0
    %5284 = vmatprep.subr.mxu0 0.0
    %5285 = vmatpush1.msra.mxu0 0.0
    %5286 = vmatprep.subr.mxu0 0.0
    %5287 = vmatpush1.msra.mxu0 0.0
    %5288 = vmatprep.subr.mxu0 0.0
    %5289 = vmatpush1.msra.mxu0 0.0
    %5290 = vmatprep.subr.mxu0 0.0
    %5291 = vmatpush1.msra.mxu0 0.0
    %5292 = vmatprep.subr.mxu0 0.0
    %5293 = vmatpush1.msra.mxu0 0.0
    %5294 = vmatprep.subr.mxu0 0.0
    %5295 = vmatpush1.msra.mxu0 0.0
    %5296 = vmatprep.subr.mxu0 0.0
    %5297 = vmatpush1.msra.mxu0 0.0
    %5298 = vmatprep.subr.mxu0 0.0
    %5299 = vmatpush1.msra.mxu0 0.0
    %5300 = vmatprep.subr.mxu0 0.0
    %5301 = vmatpush1.msra.mxu0 0.0
    %5302 = vmatprep.subr.mxu0 0.0
    %5303 = vmatpush1.msra.mxu0 %v5270
    %5304 = vmatprep.subr.mxu0 0.0
    %5305 = vmatpush1.msra.mxu0 %v5265
    %5306 = vmatprep.subr.mxu0 0.0
    %5307 = vmatpush1.msra.mxu0 %v5191
    %5308 = vmatprep.subr.mxu0 0.0
    %5309 = vmatpush1.msra.mxu0 %v5186
    %5310 = vmatprep.subr.mxu0 0.0
    %5311 = vmatpush2.msra.mxu0 0.0
    %5312 = vmatprep.subr.mxu0 0.0
    %5313 = vmatpush2.msra.mxu0 0.0
    %5314 = vmatprep.subr.mxu0 0.0
    %5315 = vmatpush2.msra.mxu0 0.0
    %5316 = vmatprep.subr.mxu0 0.0
    %5317 = vmatpush2.msra.mxu0 0.0
    %5318 = vmatprep.subr.mxu0 0.0
    %5319 = vmatpush2.msra.mxu0 0.0
    %5320 = vmatprep.subr.mxu0 0.0
    %5321 = vmatpush2.msra.mxu0 0.0
    %5322 = vmatprep.subr.mxu0 0.0
    %5323 = vmatpush2.msra.mxu0 0.0
    %5324 = vmatprep.subr.mxu0 0.0
    %5325 = vmatpush2.msra.mxu0 0.0
    %5326 = vmatprep.subr.mxu0 0.0
    %5327 = vmatpush2.msra.mxu0 0.0
    %5328 = vmatprep.subr.mxu0 0.0
    %5329 = vmatpush2.msra.mxu0 0.0
    %5330 = vmatprep.subr.mxu0 0.0
    %5331 = vmatpush2.msra.mxu0 0.0
    %5332 = vmatprep.subr.mxu0 0.0
    %5333 = vmatpush2.msra.mxu0 0.0
    %5334 = vmatprep.subr.mxu0 0.0
    %5335 = vmatpush2.msra.mxu0 0.0
    %5336 = vmatprep.subr.mxu0 0.0
    %5337 = vmatpush2.msra.mxu0 0.0
    %5338 = vmatprep.subr.mxu0 0.0
    %5339 = vmatpush2.msra.mxu0 0.0
    %5340 = vmatprep.subr.mxu0 0.0
    %5341 = vmatpush2.msra.mxu0 0.0
    %5342 = vmatprep.mubr.f32.mxu0 0.0
    %5343 = vmatmul.mubr.f32.gmra.mxu0 %v608
    %v5344 = vpop.f32.mrf.mxu0
    %v5345 = vadd.f32 %v5277, %v5344
    %v5346 = vpop.f32.mrf.mxu0
    %5347 = vmatprep.mubr.f32.mxu0 0.0
    %5348 = vmatmul.mubr.f32.gmra.mxu0 %v611
    %v5349 = vpop.f32.mrf.mxu0
    %v5350 = vadd.f32 %v5277, %v5349
    %v5351 = vpop.f32.mrf.mxu0
    %5352 = vmatprep.mubr.f32.mxu0 0.0
    %5353 = vmatmul.mubr.f32.gmra.mxu0 %v614
    %v5354 = vpop.f32.mrf.mxu0
    %v5355 = vadd.f32 %v5277, %v5354
    %v5356 = vpop.f32.mrf.mxu0
    %5357 = vmatprep.mubr.f32.mxu0 0.0
    %5358 = vmatmul.mubr.f32.gmra.mxu0 %v617
    %v5359 = vpop.f32.mrf.mxu0
    %v5360 = vadd.f32 %v5277, %v5359
    %v5361 = vpop.f32.mrf.mxu0
    %5362 = vmatprep.mubr.f32.mxu0 0.0
    %5363 = vmatmul.mubr.f32.gmra.mxu0 %v620
    %v5364 = vpop.f32.mrf.mxu0
    %v5365 = vadd.f32 %v5277, %v5364
    %v5366 = vpop.f32.mrf.mxu0
    %5367 = vmatprep.mubr.f32.mxu0 0.0
    %5368 = vmatmul.mubr.f32.gmra.mxu0 %v623
    %v5369 = vpop.f32.mrf.mxu0
    %v5370 = vadd.f32 %v5277, %v5369
    %v5371 = vpop.f32.mrf.mxu0
    %5372 = vmatprep.mubr.f32.mxu0 0.0
    %5373 = vmatmul.mubr.f32.gmra.mxu0 %v626
    %v5374 = vpop.f32.mrf.mxu0
    %v5375 = vadd.f32 %v5277, %v5374
    %v5376 = vpop.f32.mrf.mxu0
    %5377 = vmatprep.mubr.f32.mxu0 0.0
    %5378 = vmatmul.mubr.f32.gmra.mxu0 %v629
    %v5379 = vpop.f32.mrf.mxu0
    %v5380 = vadd.f32 %v5277, %v5379
    %v5381 = vpop.f32.mrf.mxu0
    %5382 = vmatprep.mubr.f32.mxu0 0.0
    %5383 = vmatmul.mubr.f32.gmra.mxu0 %v632
    %v5384 = vpop.f32.mrf.mxu0
    %v5385 = vadd.f32 %v5277, %v5384
    %v5386 = vpop.f32.mrf.mxu0
    %5387 = vmatprep.mubr.f32.mxu0 0.0
    %5388 = vmatmul.mubr.f32.gmra.mxu0 %v635
    %v5389 = vpop.f32.mrf.mxu0
    %v5390 = vadd.f32 %v5277, %v5389
    %v5391 = vpop.f32.mrf.mxu0
    %5392 = vmatprep.mubr.f32.mxu0 0.0
    %5393 = vmatmul.mubr.f32.gmra.mxu0 %v638
    %v5394 = vpop.f32.mrf.mxu0
    %v5395 = vadd.f32 %v5277, %v5394
    %v5396 = vpop.f32.mrf.mxu0
    %5397 = vmatprep.mubr.f32.mxu0 0.0
    %5398 = vmatmul.mubr.f32.gmra.mxu0 %v641
    %v5399 = vpop.f32.mrf.mxu0
    %v5400 = vadd.f32 %v5277, %v5399
    %v5401 = vpop.f32.mrf.mxu0
    %5402 = vmatprep.mubr.f32.mxu0 0.0
    %5403 = vmatmul.mubr.f32.gmra.mxu0 %v644
    %v5404 = vpop.f32.mrf.mxu0
    %v5405 = vadd.f32 %v5277, %v5404
    %v5406 = vpop.f32.mrf.mxu0
    %5407 = vmatprep.mubr.f32.mxu0 0.0
    %5408 = vmatmul.mubr.f32.gmra.mxu0 %v647
    %v5409 = vpop.f32.mrf.mxu0
    %v5410 = vadd.f32 %v5277, %v5409
    %v5411 = vpop.f32.mrf.mxu0
    %5412 = vmatprep.mubr.f32.mxu0 0.0
    %5413 = vmatmul.mubr.f32.gmra.mxu0 %v650
    %v5414 = vpop.f32.mrf.mxu0
    %v5415 = vadd.f32 %v5277, %v5414
    %v5416 = vpop.f32.mrf.mxu0
    %5417 = vmatprep.mubr.f32.mxu0 0.0
    %5418 = vmatmul.mubr.f32.gmra.mxu0 %v653
    %v5419 = vpop.f32.mrf.mxu0
    %v5420 = vadd.f32 %v5277, %v5419
    %v5421 = vpop.f32.mrf.mxu0
    %5422 = vdwg.mxu0
    %v5423 = vxor.u32 %v5345, 2147483648
    %v5424 = vxor.u32 %v5350, 2147483648
    %v5425 = vxor.u32 %v5355, 2147483648
    %v5426 = vxor.u32 %v5360, 2147483648
    %v5427 = vxor.u32 %v5365, 2147483648
    %v5428 = vxor.u32 %v5370, 2147483648
    %v5429 = vxor.u32 %v5375, 2147483648
    %v5430 = vxor.u32 %v5380, 2147483648
    %v5431 = vxor.u32 %v5385, 2147483648
    %v5432 = vxor.u32 %v5390, 2147483648
    %v5433 = vxor.u32 %v5395, 2147483648
    %v5434 = vxor.u32 %v5400, 2147483648
    %v5435 = vxor.u32 %v5405, 2147483648
    %v5436 = vxor.u32 %v5410, 2147483648
    %v5437 = vxor.u32 %v5415, 2147483648
    %v5438 = vxor.u32 %v5420, 2147483648
    %v5439 = vmul.f32 %v5423, 1.442695
    %v5440 = vpow.pop %v5439
    %v5441 = vmul.f32 %v5424, 1.442695
    %v5442 = vpow.pop %v5441
    %v5443 = vmul.f32 %v5425, 1.442695
    %v5444 = vpow.pop %v5443
    %v5445 = vmul.f32 %v5426, 1.442695
    %v5446 = vpow.pop %v5445
    %v5447 = vmul.f32 %v5427, 1.442695
    %v5448 = vpow.pop %v5447
    %v5449 = vmul.f32 %v5428, 1.442695
    %v5450 = vpow.pop %v5449
    %v5451 = vmul.f32 %v5429, 1.442695
    %v5452 = vpow.pop %v5451
    %v5453 = vmul.f32 %v5430, 1.442695
    %v5454 = vpow.pop %v5453
    %v5455 = vmul.f32 %v5431, 1.442695
    %v5456 = vpow.pop %v5455
    %v5457 = vmul.f32 %v5432, 1.442695
    %v5458 = vpow.pop %v5457
    %v5459 = vmul.f32 %v5433, 1.442695
    %v5460 = vpow.pop %v5459
    %v5461 = vmul.f32 %v5434, 1.442695
    %v5462 = vpow.pop %v5461
    %v5463 = vmul.f32 %v5435, 1.442695
    %v5464 = vpow.pop %v5463
    %v5465 = vmul.f32 %v5436, 1.442695
    %v5466 = vpow.pop %v5465
    %v5467 = vmul.f32 %v5437, 1.442695
    %v5468 = vpow.pop %v5467
    %v5469 = vmul.f32 %v5438, 1.442695
    %v5470 = vpow.pop %v5469
    %v5471 = vadd.f32 %v5440, 1.0
    %v5472 = vadd.f32 %v5442, 1.0
    %v5473 = vadd.f32 %v5444, 1.0
    %v5474 = vadd.f32 %v5446, 1.0
    %v5475 = vadd.f32 %v5448, 1.0
    %v5476 = vadd.f32 %v5450, 1.0
    %v5477 = vadd.f32 %v5452, 1.0
    %v5478 = vadd.f32 %v5454, 1.0
    %v5479 = vadd.f32 %v5456, 1.0
    %v5480 = vadd.f32 %v5458, 1.0
    %v5481 = vadd.f32 %v5460, 1.0
    %v5482 = vadd.f32 %v5462, 1.0
    %v5483 = vadd.f32 %v5464, 1.0
    %v5484 = vadd.f32 %v5466, 1.0
    %v5485 = vadd.f32 %v5468, 1.0
    %v5486 = vadd.f32 %v5470, 1.0
    %v5487 = vrcp.pop %v5471
    %v5488 = vmul.f32 1.0, %v5487
    %v5489 = vrcp.pop %v5472
    %v5490 = vmul.f32 1.0, %v5489
    %v5491 = vrcp.pop %v5473
    %v5492 = vmul.f32 1.0, %v5491
    %v5493 = vrcp.pop %v5474
    %v5494 = vmul.f32 1.0, %v5493
    %v5495 = vrcp.pop %v5475
    %v5496 = vmul.f32 1.0, %v5495
    %v5497 = vrcp.pop %v5476
    %v5498 = vmul.f32 1.0, %v5497
    %v5499 = vrcp.pop %v5477
    %v5500 = vmul.f32 1.0, %v5499
    %v5501 = vrcp.pop %v5478
    %v5502 = vmul.f32 1.0, %v5501
    %v5503 = vrcp.pop %v5479
    %v5504 = vmul.f32 1.0, %v5503
    %v5505 = vrcp.pop %v5480
    %v5506 = vmul.f32 1.0, %v5505
    %v5507 = vrcp.pop %v5481
    %v5508 = vmul.f32 1.0, %v5507
    %v5509 = vrcp.pop %v5482
    %v5510 = vmul.f32 1.0, %v5509
    %v5511 = vrcp.pop %v5483
    %v5512 = vmul.f32 1.0, %v5511
    %v5513 = vrcp.pop %v5484
    %v5514 = vmul.f32 1.0, %v5513
    %v5515 = vrcp.pop %v5485
    %v5516 = vmul.f32 1.0, %v5515
    %v5517 = vrcp.pop %v5486
    %v5518 = vmul.f32 1.0, %v5517
    %v5519 = vmul.f32 %v5345, %v5488
    %v5520 = vmul.f32 %v5350, %v5490
    %v5521 = vmul.f32 %v5355, %v5492
    %v5522 = vmul.f32 %v5360, %v5494
    %v5523 = vmul.f32 %v5365, %v5496
    %v5524 = vmul.f32 %v5370, %v5498
    %v5525 = vmul.f32 %v5375, %v5500
    %v5526 = vmul.f32 %v5380, %v5502
    %v5527 = vmul.f32 %v5385, %v5504
    %v5528 = vmul.f32 %v5390, %v5506
    %v5529 = vmul.f32 %v5395, %v5508
    %v5530 = vmul.f32 %v5400, %v5510
    %v5531 = vmul.f32 %v5405, %v5512
    %v5532 = vmul.f32 %v5410, %v5514
    %v5533 = vmul.f32 %v5415, %v5516
    %v5534 = vmul.f32 %v5420, %v5518
    %v5535 = vsel %vm250, %v5519, 0.0
    %5536 = vadd.xlane.f32.xlu0 %v5535
    %v5537 = vpop.xlane.xlu0 %5536
    %v5538 = vsel %vm250, %v5520, 0.0
    %5539 = vadd.xlane.f32.xlu0 %v5538
    %v5540 = vpop.xlane.xlu0 %5539
    %v5541 = vsel %vm250, %v5521, 0.0
    %5542 = vadd.xlane.f32.xlu0 %v5541
    %v5543 = vpop.xlane.xlu0 %5542
    %v5544 = vsel %vm250, %v5522, 0.0
    %5545 = vadd.xlane.f32.xlu0 %v5544
    %v5546 = vpop.xlane.xlu0 %5545
    %v5547 = vsel %vm250, %v5523, 0.0
    %5548 = vadd.xlane.f32.xlu0 %v5547
    %v5549 = vpop.xlane.xlu0 %5548
    %v5550 = vsel %vm250, %v5524, 0.0
    %5551 = vadd.xlane.f32.xlu0 %v5550
    %v5552 = vpop.xlane.xlu0 %5551
    %v5553 = vsel %vm250, %v5525, 0.0
    %5554 = vadd.xlane.f32.xlu0 %v5553
    %v5555 = vpop.xlane.xlu0 %5554
    %v5556 = vsel %vm250, %v5526, 0.0
    %5557 = vadd.xlane.f32.xlu0 %v5556
    %v5558 = vpop.xlane.xlu0 %5557
    %v5559 = vsel %vm250, %v5527, 0.0
    %5560 = vadd.xlane.f32.xlu0 %v5559
    %v5561 = vpop.xlane.xlu0 %5560
    %v5562 = vsel %vm250, %v5528, 0.0
    %5563 = vadd.xlane.f32.xlu0 %v5562
    %v5564 = vpop.xlane.xlu0 %5563
    %v5565 = vsel %vm250, %v5529, 0.0
    %5566 = vadd.xlane.f32.xlu0 %v5565
    %v5567 = vpop.xlane.xlu0 %5566
    %v5568 = vsel %vm250, %v5530, 0.0
    %5569 = vadd.xlane.f32.xlu0 %v5568
    %v5570 = vpop.xlane.xlu0 %5569
    %v5571 = vsel %vm250, %v5531, 0.0
    %5572 = vadd.xlane.f32.xlu0 %v5571
    %v5573 = vpop.xlane.xlu0 %5572
    %v5574 = vsel %vm250, %v5532, 0.0
    %5575 = vadd.xlane.f32.xlu0 %v5574
    %v5576 = vpop.xlane.xlu0 %5575
    %v5577 = vsel %vm250, %v5533, 0.0
    %5578 = vadd.xlane.f32.xlu0 %v5577
    %v5579 = vpop.xlane.xlu0 %5578
    %v5580 = vsel %vm250, %v5534, 0.0
    %5581 = vadd.xlane.f32.xlu0 %v5580
    %v5582 = vpop.xlane.xlu0 %5581
    %v5583 = vmul.f32 %v5537, 0.03125
    %v5584 = vmul.f32 %v5540, 0.03125
    %v5585 = vmul.f32 %v5543, 0.03125
    %v5586 = vmul.f32 %v5546, 0.03125
    %v5587 = vmul.f32 %v5549, 0.03125
    %v5588 = vmul.f32 %v5552, 0.03125
    %v5589 = vmul.f32 %v5555, 0.03125
    %v5590 = vmul.f32 %v5558, 0.03125
    %v5591 = vmul.f32 %v5561, 0.03125
    %v5592 = vmul.f32 %v5564, 0.03125
    %v5593 = vmul.f32 %v5567, 0.03125
    %v5594 = vmul.f32 %v5570, 0.03125
    %v5595 = vmul.f32 %v5573, 0.03125
    %v5596 = vmul.f32 %v5576, 0.03125
    %v5597 = vmul.f32 %v5579, 0.03125
    %v5598 = vmul.f32 %v5582, 0.03125
    %v5599 = vmul.f32 %v5519, %v5519
    %v5600 = vmul.f32 %v5520, %v5520
    %v5601 = vmul.f32 %v5521, %v5521
    %v5602 = vmul.f32 %v5522, %v5522
    %v5603 = vmul.f32 %v5523, %v5523
    %v5604 = vmul.f32 %v5524, %v5524
    %v5605 = vmul.f32 %v5525, %v5525
    %v5606 = vmul.f32 %v5526, %v5526
    %v5607 = vmul.f32 %v5527, %v5527
    %v5608 = vmul.f32 %v5528, %v5528
    %v5609 = vmul.f32 %v5529, %v5529
    %v5610 = vmul.f32 %v5530, %v5530
    %v5611 = vmul.f32 %v5531, %v5531
    %v5612 = vmul.f32 %v5532, %v5532
    %v5613 = vmul.f32 %v5533, %v5533
    %v5614 = vmul.f32 %v5534, %v5534
    %v5615 = vsel %vm250, %v5599, 0.0
    %5616 = vadd.xlane.f32.xlu0 %v5615
    %v5617 = vpop.xlane.xlu0 %5616
    %v5618 = vsel %vm250, %v5600, 0.0
    %5619 = vadd.xlane.f32.xlu0 %v5618
    %v5620 = vpop.xlane.xlu0 %5619
    %v5621 = vsel %vm250, %v5601, 0.0
    %5622 = vadd.xlane.f32.xlu0 %v5621
    %v5623 = vpop.xlane.xlu0 %5622
    %v5624 = vsel %vm250, %v5602, 0.0
    %5625 = vadd.xlane.f32.xlu0 %v5624
    %v5626 = vpop.xlane.xlu0 %5625
    %v5627 = vsel %vm250, %v5603, 0.0
    %5628 = vadd.xlane.f32.xlu0 %v5627
    %v5629 = vpop.xlane.xlu0 %5628
    %v5630 = vsel %vm250, %v5604, 0.0
    %5631 = vadd.xlane.f32.xlu0 %v5630
    %v5632 = vpop.xlane.xlu0 %5631
    %v5633 = vsel %vm250, %v5605, 0.0
    %5634 = vadd.xlane.f32.xlu0 %v5633
    %v5635 = vpop.xlane.xlu0 %5634
    %v5636 = vsel %vm250, %v5606, 0.0
    %5637 = vadd.xlane.f32.xlu0 %v5636
    %v5638 = vpop.xlane.xlu0 %5637
    %v5639 = vsel %vm250, %v5607, 0.0
    %5640 = vadd.xlane.f32.xlu0 %v5639
    %v5641 = vpop.xlane.xlu0 %5640
    %v5642 = vsel %vm250, %v5608, 0.0
    %5643 = vadd.xlane.f32.xlu0 %v5642
    %v5644 = vpop.xlane.xlu0 %5643
    %v5645 = vsel %vm250, %v5609, 0.0
    %5646 = vadd.xlane.f32.xlu0 %v5645
    %v5647 = vpop.xlane.xlu0 %5646
    %v5648 = vsel %vm250, %v5610, 0.0
    %5649 = vadd.xlane.f32.xlu0 %v5648
    %v5650 = vpop.xlane.xlu0 %5649
    %v5651 = vsel %vm250, %v5611, 0.0
    %5652 = vadd.xlane.f32.xlu0 %v5651
    %v5653 = vpop.xlane.xlu0 %5652
    %v5654 = vsel %vm250, %v5612, 0.0
    %5655 = vadd.xlane.f32.xlu0 %v5654
    %v5656 = vpop.xlane.xlu0 %5655
    %v5657 = vsel %vm250, %v5613, 0.0
    %5658 = vadd.xlane.f32.xlu0 %v5657
    %v5659 = vpop.xlane.xlu0 %5658
    %v5660 = vsel %vm250, %v5614, 0.0
    %5661 = vadd.xlane.f32.xlu0 %v5660
    %v5662 = vpop.xlane.xlu0 %5661
    %v5663 = vmul.f32 %v5617, 0.03125
    %v5664 = vmul.f32 %v5620, 0.03125
    %v5665 = vmul.f32 %v5623, 0.03125
    %v5666 = vmul.f32 %v5626, 0.03125
    %v5667 = vmul.f32 %v5629, 0.03125
    %v5668 = vmul.f32 %v5632, 0.03125
    %v5669 = vmul.f32 %v5635, 0.03125
    %v5670 = vmul.f32 %v5638, 0.03125
    %v5671 = vmul.f32 %v5641, 0.03125
    %v5672 = vmul.f32 %v5644, 0.03125
    %v5673 = vmul.f32 %v5647, 0.03125
    %v5674 = vmul.f32 %v5650, 0.03125
    %v5675 = vmul.f32 %v5653, 0.03125
    %v5676 = vmul.f32 %v5656, 0.03125
    %v5677 = vmul.f32 %v5659, 0.03125
    %v5678 = vmul.f32 %v5662, 0.03125
    %5679 = vmatprep.subr.mxu0 0.0
    %5680 = vmatpush1.msra.mxu0 %v5598
    %5681 = vmatprep.subr.mxu0 0.0
    %5682 = vmatpush1.msra.mxu0 %v5597
    %5683 = vmatprep.subr.mxu0 0.0
    %5684 = vmatpush1.msra.mxu0 %v5596
    %5685 = vmatprep.subr.mxu0 0.0
    %5686 = vmatpush1.msra.mxu0 %v5595
    %5687 = vmatprep.subr.mxu0 0.0
    %5688 = vmatpush1.msra.mxu0 %v5594
    %5689 = vmatprep.subr.mxu0 0.0
    %5690 = vmatpush1.msra.mxu0 %v5593
    %5691 = vmatprep.subr.mxu0 0.0
    %5692 = vmatpush1.msra.mxu0 %v5592
    %5693 = vmatprep.subr.mxu0 0.0
    %5694 = vmatpush1.msra.mxu0 %v5591
    %5695 = vmatprep.subr.mxu0 0.0
    %5696 = vmatpush1.msra.mxu0 %v5590
    %5697 = vmatprep.subr.mxu0 0.0
    %5698 = vmatpush1.msra.mxu0 %v5589
    %5699 = vmatprep.subr.mxu0 0.0
    %5700 = vmatpush1.msra.mxu0 %v5588
    %5701 = vmatprep.subr.mxu0 0.0
    %5702 = vmatpush1.msra.mxu0 %v5587
    %5703 = vmatprep.subr.mxu0 0.0
    %5704 = vmatpush1.msra.mxu0 %v5586
    %5705 = vmatprep.subr.mxu0 0.0
    %5706 = vmatpush1.msra.mxu0 %v5585
    %5707 = vmatprep.subr.mxu0 0.0
    %5708 = vmatpush1.msra.mxu0 %v5584
    %5709 = vmatprep.subr.mxu0 0.0
    %5710 = vmatpush1.msra.mxu0 %v5583
    %5711 = vmatprep.subr.mxu0 0.0
    %5712 = vmatpush2.msra.mxu0 0.0
    %5713 = vmatprep.subr.mxu0 0.0
    %5714 = vmatpush2.msra.mxu0 0.0
    %5715 = vmatprep.subr.mxu0 0.0
    %5716 = vmatpush2.msra.mxu0 0.0
    %5717 = vmatprep.subr.mxu0 0.0
    %5718 = vmatpush2.msra.mxu0 0.0
    %5719 = vmatprep.subr.mxu0 0.0
    %5720 = vmatpush2.msra.mxu0 0.0
    %5721 = vmatprep.subr.mxu0 0.0
    %5722 = vmatpush2.msra.mxu0 0.0
    %5723 = vmatprep.subr.mxu0 0.0
    %5724 = vmatpush2.msra.mxu0 0.0
    %5725 = vmatprep.subr.mxu0 0.0
    %5726 = vmatpush2.msra.mxu0 0.0
    %5727 = vmatprep.subr.mxu0 0.0
    %5728 = vmatpush2.msra.mxu0 0.0
    %5729 = vmatprep.subr.mxu0 0.0
    %5730 = vmatpush2.msra.mxu0 0.0
    %5731 = vmatprep.subr.mxu0 0.0
    %5732 = vmatpush2.msra.mxu0 0.0
    %5733 = vmatprep.subr.mxu0 0.0
    %5734 = vmatpush2.msra.mxu0 0.0
    %5735 = vmatprep.subr.mxu0 0.0
    %5736 = vmatpush2.msra.mxu0 0.0
    %5737 = vmatprep.subr.mxu0 0.0
    %5738 = vmatpush2.msra.mxu0 0.0
    %5739 = vmatprep.subr.mxu0 0.0
    %5740 = vmatpush2.msra.mxu0 0.0
    %5741 = vmatprep.subr.mxu0 0.0
    %5742 = vmatpush2.msra.mxu0 0.0
    %5743 = vmatprep.mubr.f32.mxu0 0.0
    %5744 = vmatmul.mubr.f32.gmra.mxu0 %v1072
    %v5745 = vpop.f32.mrf.mxu0
    %v5746 = vadd.f32 0.0, %v5745
    %v5747 = vpop.f32.mrf.mxu0
    %5748 = vmatprep.mubr.f32.mxu0 0.0
    %5749 = vmatmul.mubr.f32.gmra.mxu0 %v1073
    %v5750 = vpop.f32.mrf.mxu0
    %v5751 = vadd.f32 0.0, %v5750
    %v5752 = vpop.f32.mrf.mxu0
    %5753 = vmatprep.mubr.f32.mxu0 0.0
    %5754 = vmatmul.mubr.f32.gmra.mxu0 %v1074
    %v5755 = vpop.f32.mrf.mxu0
    %v5756 = vadd.f32 0.0, %v5755
    %v5757 = vpop.f32.mrf.mxu0
    %5758 = vmatprep.mubr.f32.mxu0 0.0
    %5759 = vmatmul.mubr.f32.gmra.mxu0 %v1075
    %v5760 = vpop.f32.mrf.mxu0
    %v5761 = vadd.f32 0.0, %v5760
    %v5762 = vpop.f32.mrf.mxu0
    %5763 = vmatprep.mubr.f32.mxu0 0.0
    %5764 = vmatmul.mubr.f32.gmra.mxu0 %v1076
    %v5765 = vpop.f32.mrf.mxu0
    %v5766 = vadd.f32 0.0, %v5765
    %v5767 = vpop.f32.mrf.mxu0
    %5768 = vmatprep.mubr.f32.mxu0 0.0
    %5769 = vmatmul.mubr.f32.gmra.mxu0 %v1077
    %v5770 = vpop.f32.mrf.mxu0
    %v5771 = vadd.f32 0.0, %v5770
    %v5772 = vpop.f32.mrf.mxu0
    %5773 = vmatprep.mubr.f32.mxu0 0.0
    %5774 = vmatmul.mubr.f32.gmra.mxu0 %v1078
    %v5775 = vpop.f32.mrf.mxu0
    %v5776 = vadd.f32 0.0, %v5775
    %v5777 = vpop.f32.mrf.mxu0
    %5778 = vmatprep.mubr.f32.mxu0 0.0
    %5779 = vmatmul.mubr.f32.gmra.mxu0 %v1079
    %v5780 = vpop.f32.mrf.mxu0
    %v5781 = vadd.f32 0.0, %v5780
    %v5782 = vpop.f32.mrf.mxu0
    %5783 = vmatprep.mubr.f32.mxu0 0.0
    %5784 = vmatmul.mubr.f32.gmra.mxu0 %v1080
    %v5785 = vpop.f32.mrf.mxu0
    %v5786 = vadd.f32 0.0, %v5785
    %v5787 = vpop.f32.mrf.mxu0
    %5788 = vmatprep.mubr.f32.mxu0 0.0
    %5789 = vmatmul.mubr.f32.gmra.mxu0 %v1081
    %v5790 = vpop.f32.mrf.mxu0
    %v5791 = vadd.f32 0.0, %v5790
    %v5792 = vpop.f32.mrf.mxu0
    %5793 = vmatprep.mubr.f32.mxu0 0.0
    %5794 = vmatmul.mubr.f32.gmra.mxu0 %v1082
    %v5795 = vpop.f32.mrf.mxu0
    %v5796 = vadd.f32 0.0, %v5795
    %v5797 = vpop.f32.mrf.mxu0
    %5798 = vmatprep.mubr.f32.mxu0 0.0
    %5799 = vmatmul.mubr.f32.gmra.mxu0 %v1083
    %v5800 = vpop.f32.mrf.mxu0
    %v5801 = vadd.f32 0.0, %v5800
    %v5802 = vpop.f32.mrf.mxu0
    %5803 = vmatprep.mubr.f32.mxu0 0.0
    %5804 = vmatmul.mubr.f32.gmra.mxu0 %v1084
    %v5805 = vpop.f32.mrf.mxu0
    %v5806 = vadd.f32 0.0, %v5805
    %v5807 = vpop.f32.mrf.mxu0
    %5808 = vmatprep.mubr.f32.mxu0 0.0
    %5809 = vmatmul.mubr.f32.gmra.mxu0 %v1085
    %v5810 = vpop.f32.mrf.mxu0
    %v5811 = vadd.f32 0.0, %v5810
    %v5812 = vpop.f32.mrf.mxu0
    %5813 = vmatprep.mubr.f32.mxu0 0.0
    %5814 = vmatmul.mubr.f32.gmra.mxu0 %v1086
    %v5815 = vpop.f32.mrf.mxu0
    %v5816 = vadd.f32 0.0, %v5815
    %v5817 = vpop.f32.mrf.mxu0
    %5818 = vmatprep.mubr.f32.mxu0 0.0
    %5819 = vmatmul.mubr.f32.gmra.mxu0 %v1087
    %v5820 = vpop.f32.mrf.mxu0
    %v5821 = vadd.f32 0.0, %v5820
    %v5822 = vpop.f32.mrf.mxu0
    %5823 = vdwg.mxu0
    %5824 = vmatprep.subr.mxu0 0.0
    %5825 = vmatpush1.msra.mxu0 %v5678
    %5826 = vmatprep.subr.mxu0 0.0
    %5827 = vmatpush1.msra.mxu0 %v5677
    %5828 = vmatprep.subr.mxu0 0.0
    %5829 = vmatpush1.msra.mxu0 %v5676
    %5830 = vmatprep.subr.mxu0 0.0
    %5831 = vmatpush1.msra.mxu0 %v5675
    %5832 = vmatprep.subr.mxu0 0.0
    %5833 = vmatpush1.msra.mxu0 %v5674
    %5834 = vmatprep.subr.mxu0 0.0
    %5835 = vmatpush1.msra.mxu0 %v5673
    %5836 = vmatprep.subr.mxu0 0.0
    %5837 = vmatpush1.msra.mxu0 %v5672
    %5838 = vmatprep.subr.mxu0 0.0
    %5839 = vmatpush1.msra.mxu0 %v5671
    %5840 = vmatprep.subr.mxu0 0.0
    %5841 = vmatpush1.msra.mxu0 %v5670
    %5842 = vmatprep.subr.mxu0 0.0
    %5843 = vmatpush1.msra.mxu0 %v5669
    %5844 = vmatprep.subr.mxu0 0.0
    %5845 = vmatpush1.msra.mxu0 %v5668
    %5846 = vmatprep.subr.mxu0 0.0
    %5847 = vmatpush1.msra.mxu0 %v5667
    %5848 = vmatprep.subr.mxu0 0.0
    %5849 = vmatpush1.msra.mxu0 %v5666
    %5850 = vmatprep.subr.mxu0 0.0
    %5851 = vmatpush1.msra.mxu0 %v5665
    %5852 = vmatprep.subr.mxu0 0.0
    %5853 = vmatpush1.msra.mxu0 %v5664
    %5854 = vmatprep.subr.mxu0 0.0
    %5855 = vmatpush1.msra.mxu0 %v5663
    %5856 = vmatprep.subr.mxu0 0.0
    %5857 = vmatpush2.msra.mxu0 0.0
    %5858 = vmatprep.subr.mxu0 0.0
    %5859 = vmatpush2.msra.mxu0 0.0
    %5860 = vmatprep.subr.mxu0 0.0
    %5861 = vmatpush2.msra.mxu0 0.0
    %5862 = vmatprep.subr.mxu0 0.0
    %5863 = vmatpush2.msra.mxu0 0.0
    %5864 = vmatprep.subr.mxu0 0.0
    %5865 = vmatpush2.msra.mxu0 0.0
    %5866 = vmatprep.subr.mxu0 0.0
    %5867 = vmatpush2.msra.mxu0 0.0
    %5868 = vmatprep.subr.mxu0 0.0
    %5869 = vmatpush2.msra.mxu0 0.0
    %5870 = vmatprep.subr.mxu0 0.0
    %5871 = vmatpush2.msra.mxu0 0.0
    %5872 = vmatprep.subr.mxu0 0.0
    %5873 = vmatpush2.msra.mxu0 0.0
    %5874 = vmatprep.subr.mxu0 0.0
    %5875 = vmatpush2.msra.mxu0 0.0
    %5876 = vmatprep.subr.mxu0 0.0
    %5877 = vmatpush2.msra.mxu0 0.0
    %5878 = vmatprep.subr.mxu0 0.0
    %5879 = vmatpush2.msra.mxu0 0.0
    %5880 = vmatprep.subr.mxu0 0.0
    %5881 = vmatpush2.msra.mxu0 0.0
    %5882 = vmatprep.subr.mxu0 0.0
    %5883 = vmatpush2.msra.mxu0 0.0
    %5884 = vmatprep.subr.mxu0 0.0
    %5885 = vmatpush2.msra.mxu0 0.0
    %5886 = vmatprep.subr.mxu0 0.0
    %5887 = vmatpush2.msra.mxu0 0.0
    %5888 = vmatprep.mubr.f32.mxu0 0.0
    %5889 = vmatmul.mubr.f32.gmra.mxu0 %v1072
    %v5890 = vpop.f32.mrf.mxu0
    %v5891 = vadd.f32 0.0, %v5890
    %v5892 = vpop.f32.mrf.mxu0
    %5893 = vmatprep.mubr.f32.mxu0 0.0
    %5894 = vmatmul.mubr.f32.gmra.mxu0 %v1073
    %v5895 = vpop.f32.mrf.mxu0
    %v5896 = vadd.f32 0.0, %v5895
    %v5897 = vpop.f32.mrf.mxu0
    %5898 = vmatprep.mubr.f32.mxu0 0.0
    %5899 = vmatmul.mubr.f32.gmra.mxu0 %v1074
    %v5900 = vpop.f32.mrf.mxu0
    %v5901 = vadd.f32 0.0, %v5900
    %v5902 = vpop.f32.mrf.mxu0
    %5903 = vmatprep.mubr.f32.mxu0 0.0
    %5904 = vmatmul.mubr.f32.gmra.mxu0 %v1075
    %v5905 = vpop.f32.mrf.mxu0
    %v5906 = vadd.f32 0.0, %v5905
    %v5907 = vpop.f32.mrf.mxu0
    %5908 = vmatprep.mubr.f32.mxu0 0.0
    %5909 = vmatmul.mubr.f32.gmra.mxu0 %v1076
    %v5910 = vpop.f32.mrf.mxu0
    %v5911 = vadd.f32 0.0, %v5910
    %v5912 = vpop.f32.mrf.mxu0
    %5913 = vmatprep.mubr.f32.mxu0 0.0
    %5914 = vmatmul.mubr.f32.gmra.mxu0 %v1077
    %v5915 = vpop.f32.mrf.mxu0
    %v5916 = vadd.f32 0.0, %v5915
    %v5917 = vpop.f32.mrf.mxu0
    %5918 = vmatprep.mubr.f32.mxu0 0.0
    %5919 = vmatmul.mubr.f32.gmra.mxu0 %v1078
    %v5920 = vpop.f32.mrf.mxu0
    %v5921 = vadd.f32 0.0, %v5920
    %v5922 = vpop.f32.mrf.mxu0
    %5923 = vmatprep.mubr.f32.mxu0 0.0
    %5924 = vmatmul.mubr.f32.gmra.mxu0 %v1079
    %v5925 = vpop.f32.mrf.mxu0
    %v5926 = vadd.f32 0.0, %v5925
    %v5927 = vpop.f32.mrf.mxu0
    %5928 = vmatprep.mubr.f32.mxu0 0.0
    %5929 = vmatmul.mubr.f32.gmra.mxu0 %v1080
    %v5930 = vpop.f32.mrf.mxu0
    %v5931 = vadd.f32 0.0, %v5930
    %v5932 = vpop.f32.mrf.mxu0
    %5933 = vmatprep.mubr.f32.mxu0 0.0
    %5934 = vmatmul.mubr.f32.gmra.mxu0 %v1081
    %v5935 = vpop.f32.mrf.mxu0
    %v5936 = vadd.f32 0.0, %v5935
    %v5937 = vpop.f32.mrf.mxu0
    %5938 = vmatprep.mubr.f32.mxu0 0.0
    %5939 = vmatmul.mubr.f32.gmra.mxu0 %v1082
    %v5940 = vpop.f32.mrf.mxu0
    %v5941 = vadd.f32 0.0, %v5940
    %v5942 = vpop.f32.mrf.mxu0
    %5943 = vmatprep.mubr.f32.mxu0 0.0
    %5944 = vmatmul.mubr.f32.gmra.mxu0 %v1083
    %v5945 = vpop.f32.mrf.mxu0
    %v5946 = vadd.f32 0.0, %v5945
    %v5947 = vpop.f32.mrf.mxu0
    %5948 = vmatprep.mubr.f32.mxu0 0.0
    %5949 = vmatmul.mubr.f32.gmra.mxu0 %v1084
    %v5950 = vpop.f32.mrf.mxu0
    %v5951 = vadd.f32 0.0, %v5950
    %v5952 = vpop.f32.mrf.mxu0
    %5953 = vmatprep.mubr.f32.mxu0 0.0
    %5954 = vmatmul.mubr.f32.gmra.mxu0 %v1085
    %v5955 = vpop.f32.mrf.mxu0
    %v5956 = vadd.f32 0.0, %v5955
    %v5957 = vpop.f32.mrf.mxu0
    %5958 = vmatprep.mubr.f32.mxu0 0.0
    %5959 = vmatmul.mubr.f32.gmra.mxu0 %v1086
    %v5960 = vpop.f32.mrf.mxu0
    %v5961 = vadd.f32 0.0, %v5960
    %v5962 = vpop.f32.mrf.mxu0
    %5963 = vmatprep.mubr.f32.mxu0 0.0
    %5964 = vmatmul.mubr.f32.gmra.mxu0 %v1087
    %v5965 = vpop.f32.mrf.mxu0
    %v5966 = vadd.f32 0.0, %v5965
    %v5967 = vpop.f32.mrf.mxu0
    %5968 = vdwg.mxu0
    %v5969 = vmul.f32 %v5746, %v5746
    %v5970 = vmul.f32 %v5751, %v5751
    %v5971 = vmul.f32 %v5756, %v5756
    %v5972 = vmul.f32 %v5761, %v5761
    %v5973 = vmul.f32 %v5766, %v5766
    %v5974 = vmul.f32 %v5771, %v5771
    %v5975 = vmul.f32 %v5776, %v5776
    %v5976 = vmul.f32 %v5781, %v5781
    %v5977 = vmul.f32 %v5786, %v5786
    %v5978 = vmul.f32 %v5791, %v5791
    %v5979 = vmul.f32 %v5796, %v5796
    %v5980 = vmul.f32 %v5801, %v5801
    %v5981 = vmul.f32 %v5806, %v5806
    %v5982 = vmul.f32 %v5811, %v5811
    %v5983 = vmul.f32 %v5816, %v5816
    %v5984 = vmul.f32 %v5821, %v5821
    %v5985 = vsub.f32 %v5891, %v5969
    %v5986 = vsub.f32 %v5896, %v5970
    %v5987 = vsub.f32 %v5901, %v5971
    %v5988 = vsub.f32 %v5906, %v5972
    %v5989 = vsub.f32 %v5911, %v5973
    %v5990 = vsub.f32 %v5916, %v5974
    %v5991 = vsub.f32 %v5921, %v5975
    %v5992 = vsub.f32 %v5926, %v5976
    %v5993 = vsub.f32 %v5931, %v5977
    %v5994 = vsub.f32 %v5936, %v5978
    %v5995 = vsub.f32 %v5941, %v5979
    %v5996 = vsub.f32 %v5946, %v5980
    %v5997 = vsub.f32 %v5951, %v5981
    %v5998 = vsub.f32 %v5956, %v5982
    %v5999 = vsub.f32 %v5961, %v5983
    %v6000 = vsub.f32 %v5966, %v5984
    %6002 = vset.pattern.permute.xlu0 0
    %6003 = vperm.xlu0 %6002, %v5746
    %v6004 = vpop.permute.xlu0 %6003
    %6007 = vset.pattern.permute.xlu0 0
    %6008 = vperm.xlu0 %6007, %v5751
    %v6009 = vpop.permute.xlu0 %6008
    %6012 = vset.pattern.permute.xlu0 0
    %6013 = vperm.xlu0 %6012, %v5756
    %v6014 = vpop.permute.xlu0 %6013
    %6017 = vset.pattern.permute.xlu0 0
    %6018 = vperm.xlu0 %6017, %v5761
    %v6019 = vpop.permute.xlu0 %6018
    %6022 = vset.pattern.permute.xlu0 0
    %6023 = vperm.xlu0 %6022, %v5766
    %v6024 = vpop.permute.xlu0 %6023
    %6027 = vset.pattern.permute.xlu0 0
    %6028 = vperm.xlu0 %6027, %v5771
    %v6029 = vpop.permute.xlu0 %6028
    %6032 = vset.pattern.permute.xlu0 0
    %6033 = vperm.xlu0 %6032, %v5776
    %v6034 = vpop.permute.xlu0 %6033
    %6037 = vset.pattern.permute.xlu0 0
    %6038 = vperm.xlu0 %6037, %v5781
    %v6039 = vpop.permute.xlu0 %6038
    %6042 = vset.pattern.permute.xlu0 0
    %6043 = vperm.xlu0 %6042, %v5786
    %v6044 = vpop.permute.xlu0 %6043
    %6047 = vset.pattern.permute.xlu0 0
    %6048 = vperm.xlu0 %6047, %v5791
    %v6049 = vpop.permute.xlu0 %6048
    %6052 = vset.pattern.permute.xlu0 0
    %6053 = vperm.xlu0 %6052, %v5796
    %v6054 = vpop.permute.xlu0 %6053
    %6057 = vset.pattern.permute.xlu0 0
    %6058 = vperm.xlu0 %6057, %v5801
    %v6059 = vpop.permute.xlu0 %6058
    %6062 = vset.pattern.permute.xlu0 0
    %6063 = vperm.xlu0 %6062, %v5806
    %v6064 = vpop.permute.xlu0 %6063
    %6067 = vset.pattern.permute.xlu0 0
    %6068 = vperm.xlu0 %6067, %v5811
    %v6069 = vpop.permute.xlu0 %6068
    %6072 = vset.pattern.permute.xlu0 0
    %6073 = vperm.xlu0 %6072, %v5816
    %v6074 = vpop.permute.xlu0 %6073
    %6077 = vset.pattern.permute.xlu0 0
    %6078 = vperm.xlu0 %6077, %v5821
    %v6079 = vpop.permute.xlu0 %6078
    %v6081 = vsub.f32 %v5519, %v6004
    %v6082 = vsub.f32 %v5520, %v6009
    %v6083 = vsub.f32 %v5521, %v6014
    %v6084 = vsub.f32 %v5522, %v6019
    %v6085 = vsub.f32 %v5523, %v6024
    %v6086 = vsub.f32 %v5524, %v6029
    %v6087 = vsub.f32 %v5525, %v6034
    %v6088 = vsub.f32 %v5526, %v6039
    %v6089 = vsub.f32 %v5527, %v6044
    %v6090 = vsub.f32 %v5528, %v6049
    %v6091 = vsub.f32 %v5529, %v6054
    %v6092 = vsub.f32 %v5530, %v6059
    %v6093 = vsub.f32 %v5531, %v6064
    %v6094 = vsub.f32 %v5532, %v6069
    %v6095 = vsub.f32 %v5533, %v6074
    %v6096 = vsub.f32 %v5534, %v6079
    %v6097 = vadd.f32 %v5985, 1e-05
    %v6098 = vadd.f32 %v5986, 1e-05
    %v6099 = vadd.f32 %v5987, 1e-05
    %v6100 = vadd.f32 %v5988, 1e-05
    %v6101 = vadd.f32 %v5989, 1e-05
    %v6102 = vadd.f32 %v5990, 1e-05
    %v6103 = vadd.f32 %v5991, 1e-05
    %v6104 = vadd.f32 %v5992, 1e-05
    %v6105 = vadd.f32 %v5993, 1e-05
    %v6106 = vadd.f32 %v5994, 1e-05
    %v6107 = vadd.f32 %v5995, 1e-05
    %v6108 = vadd.f32 %v5996, 1e-05
    %v6109 = vadd.f32 %v5997, 1e-05
    %v6110 = vadd.f32 %v5998, 1e-05
    %v6111 = vadd.f32 %v5999, 1e-05
    %v6112 = vadd.f32 %v6000, 1e-05
    %v6113 = vrsqrt.pop %v6097
    %v6114 = vrsqrt.pop %v6098
    %v6115 = vrsqrt.pop %v6099
    %v6116 = vrsqrt.pop %v6100
    %v6117 = vrsqrt.pop %v6101
    %v6118 = vrsqrt.pop %v6102
    %v6119 = vrsqrt.pop %v6103
    %v6120 = vrsqrt.pop %v6104
    %v6121 = vrsqrt.pop %v6105
    %v6122 = vrsqrt.pop %v6106
    %v6123 = vrsqrt.pop %v6107
    %v6124 = vrsqrt.pop %v6108
    %v6125 = vrsqrt.pop %v6109
    %v6126 = vrsqrt.pop %v6110
    %v6127 = vrsqrt.pop %v6111
    %v6128 = vrsqrt.pop %v6112
    %6130 = vset.pattern.permute.xlu0 0
    %6131 = vperm.xlu0 %6130, %v6113
    %v6132 = vpop.permute.xlu0 %6131
    %6135 = vset.pattern.permute.xlu0 0
    %6136 = vperm.xlu0 %6135, %v6114
    %v6137 = vpop.permute.xlu0 %6136
    %6140 = vset.pattern.permute.xlu0 0
    %6141 = vperm.xlu0 %6140, %v6115
    %v6142 = vpop.permute.xlu0 %6141
    %6145 = vset.pattern.permute.xlu0 0
    %6146 = vperm.xlu0 %6145, %v6116
    %v6147 = vpop.permute.xlu0 %6146
    %6150 = vset.pattern.permute.xlu0 0
    %6151 = vperm.xlu0 %6150, %v6117
    %v6152 = vpop.permute.xlu0 %6151
    %6155 = vset.pattern.permute.xlu0 0
    %6156 = vperm.xlu0 %6155, %v6118
    %v6157 = vpop.permute.xlu0 %6156
    %6160 = vset.pattern.permute.xlu0 0
    %6161 = vperm.xlu0 %6160, %v6119
    %v6162 = vpop.permute.xlu0 %6161
    %6165 = vset.pattern.permute.xlu0 0
    %6166 = vperm.xlu0 %6165, %v6120
    %v6167 = vpop.permute.xlu0 %6166
    %6170 = vset.pattern.permute.xlu0 0
    %6171 = vperm.xlu0 %6170, %v6121
    %v6172 = vpop.permute.xlu0 %6171
    %6175 = vset.pattern.permute.xlu0 0
    %6176 = vperm.xlu0 %6175, %v6122
    %v6177 = vpop.permute.xlu0 %6176
    %6180 = vset.pattern.permute.xlu0 0
    %6181 = vperm.xlu0 %6180, %v6123
    %v6182 = vpop.permute.xlu0 %6181
    %6185 = vset.pattern.permute.xlu0 0
    %6186 = vperm.xlu0 %6185, %v6124
    %v6187 = vpop.permute.xlu0 %6186
    %6190 = vset.pattern.permute.xlu0 0
    %6191 = vperm.xlu0 %6190, %v6125
    %v6192 = vpop.permute.xlu0 %6191
    %6195 = vset.pattern.permute.xlu0 0
    %6196 = vperm.xlu0 %6195, %v6126
    %v6197 = vpop.permute.xlu0 %6196
    %6200 = vset.pattern.permute.xlu0 0
    %6201 = vperm.xlu0 %6200, %v6127
    %v6202 = vpop.permute.xlu0 %6201
    %6205 = vset.pattern.permute.xlu0 0
    %6206 = vperm.xlu0 %6205, %v6128
    %v6207 = vpop.permute.xlu0 %6206
    %v6209 = vmul.f32 %v6081, %v6132
    %v6210 = vmul.f32 %v6082, %v6137
    %v6211 = vmul.f32 %v6083, %v6142
    %v6212 = vmul.f32 %v6084, %v6147
    %v6213 = vmul.f32 %v6085, %v6152
    %v6214 = vmul.f32 %v6086, %v6157
    %v6215 = vmul.f32 %v6087, %v6162
    %v6216 = vmul.f32 %v6088, %v6167
    %v6217 = vmul.f32 %v6089, %v6172
    %v6218 = vmul.f32 %v6090, %v6177
    %v6219 = vmul.f32 %v6091, %v6182
    %v6220 = vmul.f32 %v6092, %v6187
    %v6221 = vmul.f32 %v6093, %v6192
    %v6222 = vmul.f32 %v6094, %v6197
    %v6223 = vmul.f32 %v6095, %v6202
    %v6224 = vmul.f32 %v6096, %v6207
    %6225 = vset.pattern.permute.xlu0 6
    %6226 = vperm.xlu0 %6225, %v912
    %v6227 = vpop.permute.xlu0 %6226
    %6229 = vset.pattern.permute.xlu0 6
    %6230 = vperm.xlu0 %6229, %v913
    %v6231 = vpop.permute.xlu0 %6230
    %6233 = vset.pattern.permute.xlu0 6
    %6234 = vperm.xlu0 %6233, %v914
    %v6235 = vpop.permute.xlu0 %6234
    %6237 = vset.pattern.permute.xlu0 6
    %6238 = vperm.xlu0 %6237, %v915
    %v6239 = vpop.permute.xlu0 %6238
    %6241 = vset.pattern.permute.xlu0 6
    %6242 = vperm.xlu0 %6241, %v916
    %v6243 = vpop.permute.xlu0 %6242
    %6245 = vset.pattern.permute.xlu0 6
    %6246 = vperm.xlu0 %6245, %v917
    %v6247 = vpop.permute.xlu0 %6246
    %6249 = vset.pattern.permute.xlu0 6
    %6250 = vperm.xlu0 %6249, %v918
    %v6251 = vpop.permute.xlu0 %6250
    %6253 = vset.pattern.permute.xlu0 6
    %6254 = vperm.xlu0 %6253, %v919
    %v6255 = vpop.permute.xlu0 %6254
    %6257 = vset.pattern.permute.xlu0 6
    %6258 = vperm.xlu0 %6257, %v920
    %v6259 = vpop.permute.xlu0 %6258
    %6261 = vset.pattern.permute.xlu0 6
    %6262 = vperm.xlu0 %6261, %v921
    %v6263 = vpop.permute.xlu0 %6262
    %6265 = vset.pattern.permute.xlu0 6
    %6266 = vperm.xlu0 %6265, %v922
    %v6267 = vpop.permute.xlu0 %6266
    %6269 = vset.pattern.permute.xlu0 6
    %6270 = vperm.xlu0 %6269, %v923
    %v6271 = vpop.permute.xlu0 %6270
    %6273 = vset.pattern.permute.xlu0 6
    %6274 = vperm.xlu0 %6273, %v924
    %v6275 = vpop.permute.xlu0 %6274
    %6277 = vset.pattern.permute.xlu0 6
    %6278 = vperm.xlu0 %6277, %v925
    %v6279 = vpop.permute.xlu0 %6278
    %6281 = vset.pattern.permute.xlu0 6
    %6282 = vperm.xlu0 %6281, %v926
    %v6283 = vpop.permute.xlu0 %6282
    %6285 = vset.pattern.permute.xlu0 6
    %6286 = vperm.xlu0 %6285, %v927
    %v6287 = vpop.permute.xlu0 %6286
    %v6289 = vmul.f32 %v6209, %v6227
    %v6290 = vmul.f32 %v6210, %v6231
    %v6291 = vmul.f32 %v6211, %v6235
    %v6292 = vmul.f32 %v6212, %v6239
    %v6293 = vmul.f32 %v6213, %v6243
    %v6294 = vmul.f32 %v6214, %v6247
    %v6295 = vmul.f32 %v6215, %v6251
    %v6296 = vmul.f32 %v6216, %v6255
    %v6297 = vmul.f32 %v6217, %v6259
    %v6298 = vmul.f32 %v6218, %v6263
    %v6299 = vmul.f32 %v6219, %v6267
    %v6300 = vmul.f32 %v6220, %v6271
    %v6301 = vmul.f32 %v6221, %v6275
    %v6302 = vmul.f32 %v6222, %v6279
    %v6303 = vmul.f32 %v6223, %v6283
    %v6304 = vmul.f32 %v6224, %v6287
    %6305 = vset.pattern.permute.xlu0 7
    %6306 = vperm.xlu0 %6305, %v912
    %v6307 = vpop.permute.xlu0 %6306
    %6309 = vset.pattern.permute.xlu0 7
    %6310 = vperm.xlu0 %6309, %v913
    %v6311 = vpop.permute.xlu0 %6310
    %6313 = vset.pattern.permute.xlu0 7
    %6314 = vperm.xlu0 %6313, %v914
    %v6315 = vpop.permute.xlu0 %6314
    %6317 = vset.pattern.permute.xlu0 7
    %6318 = vperm.xlu0 %6317, %v915
    %v6319 = vpop.permute.xlu0 %6318
    %6321 = vset.pattern.permute.xlu0 7
    %6322 = vperm.xlu0 %6321, %v916
    %v6323 = vpop.permute.xlu0 %6322
    %6325 = vset.pattern.permute.xlu0 7
    %6326 = vperm.xlu0 %6325, %v917
    %v6327 = vpop.permute.xlu0 %6326
    %6329 = vset.pattern.permute.xlu0 7
    %6330 = vperm.xlu0 %6329, %v918
    %v6331 = vpop.permute.xlu0 %6330
    %6333 = vset.pattern.permute.xlu0 7
    %6334 = vperm.xlu0 %6333, %v919
    %v6335 = vpop.permute.xlu0 %6334
    %6337 = vset.pattern.permute.xlu0 7
    %6338 = vperm.xlu0 %6337, %v920
    %v6339 = vpop.permute.xlu0 %6338
    %6341 = vset.pattern.permute.xlu0 7
    %6342 = vperm.xlu0 %6341, %v921
    %v6343 = vpop.permute.xlu0 %6342
    %6345 = vset.pattern.permute.xlu0 7
    %6346 = vperm.xlu0 %6345, %v922
    %v6347 = vpop.permute.xlu0 %6346
    %6349 = vset.pattern.permute.xlu0 7
    %6350 = vperm.xlu0 %6349, %v923
    %v6351 = vpop.permute.xlu0 %6350
    %6353 = vset.pattern.permute.xlu0 7
    %6354 = vperm.xlu0 %6353, %v924
    %v6355 = vpop.permute.xlu0 %6354
    %6357 = vset.pattern.permute.xlu0 7
    %6358 = vperm.xlu0 %6357, %v925
    %v6359 = vpop.permute.xlu0 %6358
    %6361 = vset.pattern.permute.xlu0 7
    %6362 = vperm.xlu0 %6361, %v926
    %v6363 = vpop.permute.xlu0 %6362
    %6365 = vset.pattern.permute.xlu0 7
    %6366 = vperm.xlu0 %6365, %v927
    %v6367 = vpop.permute.xlu0 %6366
    %v6369 = vadd.f32 %v6289, %v6307
    %v6370 = vadd.f32 %v6290, %v6311
    %v6371 = vadd.f32 %v6291, %v6315
    %v6372 = vadd.f32 %v6292, %v6319
    %v6373 = vadd.f32 %v6293, %v6323
    %v6374 = vadd.f32 %v6294, %v6327
    %v6375 = vadd.f32 %v6295, %v6331
    %v6376 = vadd.f32 %v6296, %v6335
    %v6377 = vadd.f32 %v6297, %v6339
    %v6378 = vadd.f32 %v6298, %v6343
    %v6379 = vadd.f32 %v6299, %v6347
    %v6380 = vadd.f32 %v6300, %v6351
    %v6381 = vadd.f32 %v6301, %v6355
    %v6382 = vadd.f32 %v6302, %v6359
    %v6383 = vadd.f32 %v6303, %v6363
    %v6384 = vadd.f32 %v6304, %v6367
    %v6385 = vld [vmem:[#allocation10 + $0x158] sm:$0xff]
    %v6386 = vld [vmem:[#allocation10 + $0x160] sm:$0xff]
    %v6387 = vld [vmem:[#allocation10 + $0x168] sm:$0xff]
    %v6388 = vld [vmem:[#allocation10 + $0x170] sm:$0xff]
    %v6389 = vld [vmem:[%s7 + $0x10] sm:$0x1]
    %v6390 = vlaneseq
    %v6391 = vshrl.u32 %v6390, 7
    %v6392 = vsub.s32 0, %v6391
    %v6393 = vrot.slane %v6389, %v6392
    %v6395 = vsel %vm250, %v6369, 0
    %v6398 = vsel %vm250, %v6370, 0
    %v6401 = vsel %vm250, %v6371, 0
    %v6404 = vsel %vm250, %v6372, 0
    %v6407 = vsel %vm250, %v6373, 0
    %v6410 = vsel %vm250, %v6374, 0
    %v6413 = vsel %vm250, %v6375, 0
    %v6416 = vsel %vm250, %v6376, 0
    %v6419 = vsel %vm250, %v6377, 0
    %v6422 = vsel %vm250, %v6378, 0
    %v6425 = vsel %vm250, %v6379, 0
    %v6428 = vsel %vm250, %v6380, 0
    %v6431 = vsel %vm250, %v6381, 0
    %v6434 = vsel %vm250, %v6382, 0
    %v6437 = vsel %vm250, %v6383, 0
    %v6440 = vsel %vm250, %v6384, 0
    %6442 = vmatprep.subr.mxu0 0.0
    %6443 = vmatpush1.msra.mxu0 0.0
    %6444 = vmatprep.subr.mxu0 0.0
    %6445 = vmatpush1.msra.mxu0 0.0
    %6446 = vmatprep.subr.mxu0 0.0
    %6447 = vmatpush1.msra.mxu0 0.0
    %6448 = vmatprep.subr.mxu0 0.0
    %6449 = vmatpush1.msra.mxu0 0.0
    %6450 = vmatprep.subr.mxu0 0.0
    %6451 = vmatpush1.msra.mxu0 0.0
    %6452 = vmatprep.subr.mxu0 0.0
    %6453 = vmatpush1.msra.mxu0 0.0
    %6454 = vmatprep.subr.mxu0 0.0
    %6455 = vmatpush1.msra.mxu0 0.0
    %6456 = vmatprep.subr.mxu0 0.0
    %6457 = vmatpush1.msra.mxu0 0.0
    %6458 = vmatprep.subr.mxu0 0.0
    %6459 = vmatpush1.msra.mxu0 0.0
    %6460 = vmatprep.subr.mxu0 0.0
    %6461 = vmatpush1.msra.mxu0 0.0
    %6462 = vmatprep.subr.mxu0 0.0
    %6463 = vmatpush1.msra.mxu0 0.0
    %6464 = vmatprep.subr.mxu0 0.0
    %6465 = vmatpush1.msra.mxu0 0.0
    %6466 = vmatprep.subr.mxu0 0.0
    %6467 = vmatpush1.msra.mxu0 %v6388
    %6468 = vmatprep.subr.mxu0 0.0
    %6469 = vmatpush1.msra.mxu0 %v6387
    %6470 = vmatprep.subr.mxu0 0.0
    %6471 = vmatpush1.msra.mxu0 %v6386
    %6472 = vmatprep.subr.mxu0 0.0
    %6473 = vmatpush1.msra.mxu0 %v6385
    %6474 = vmatprep.subr.mxu0 0.0
    %6475 = vmatpush2.msra.mxu0 0.0
    %6476 = vmatprep.subr.mxu0 0.0
    %6477 = vmatpush2.msra.mxu0 0.0
    %6478 = vmatprep.subr.mxu0 0.0
    %6479 = vmatpush2.msra.mxu0 0.0
    %6480 = vmatprep.subr.mxu0 0.0
    %6481 = vmatpush2.msra.mxu0 0.0
    %6482 = vmatprep.subr.mxu0 0.0
    %6483 = vmatpush2.msra.mxu0 0.0
    %6484 = vmatprep.subr.mxu0 0.0
    %6485 = vmatpush2.msra.mxu0 0.0
    %6486 = vmatprep.subr.mxu0 0.0
    %6487 = vmatpush2.msra.mxu0 0.0
    %6488 = vmatprep.subr.mxu0 0.0
    %6489 = vmatpush2.msra.mxu0 0.0
    %6490 = vmatprep.subr.mxu0 0.0
    %6491 = vmatpush2.msra.mxu0 0.0
    %6492 = vmatprep.subr.mxu0 0.0
    %6493 = vmatpush2.msra.mxu0 0.0
    %6494 = vmatprep.subr.mxu0 0.0
    %6495 = vmatpush2.msra.mxu0 0.0
    %6496 = vmatprep.subr.mxu0 0.0
    %6497 = vmatpush2.msra.mxu0 0.0
    %6498 = vmatprep.subr.mxu0 0.0
    %6499 = vmatpush2.msra.mxu0 0.0
    %6500 = vmatprep.subr.mxu0 0.0
    %6501 = vmatpush2.msra.mxu0 0.0
    %6502 = vmatprep.subr.mxu0 0.0
    %6503 = vmatpush2.msra.mxu0 0.0
    %6504 = vmatprep.subr.mxu0 0.0
    %6505 = vmatpush2.msra.mxu0 0.0
    %6506 = vmatprep.mubr.f32.mxu0 0.0
    %6507 = vmatmul.mubr.f32.gmra.mxu0 %v6395
    %v6508 = vpop.f32.mrf.mxu0
    %v6509 = vadd.f32 %v6393, %v6508
    %v6510 = vpop.f32.mrf.mxu0
    %6511 = vmatprep.mubr.f32.mxu0 0.0
    %6512 = vmatmul.mubr.f32.gmra.mxu0 %v6398
    %v6513 = vpop.f32.mrf.mxu0
    %v6514 = vadd.f32 %v6393, %v6513
    %v6515 = vpop.f32.mrf.mxu0
    %6516 = vmatprep.mubr.f32.mxu0 0.0
    %6517 = vmatmul.mubr.f32.gmra.mxu0 %v6401
    %v6518 = vpop.f32.mrf.mxu0
    %v6519 = vadd.f32 %v6393, %v6518
    %v6520 = vpop.f32.mrf.mxu0
    %6521 = vmatprep.mubr.f32.mxu0 0.0
    %6522 = vmatmul.mubr.f32.gmra.mxu0 %v6404
    %v6523 = vpop.f32.mrf.mxu0
    %v6524 = vadd.f32 %v6393, %v6523
    %v6525 = vpop.f32.mrf.mxu0
    %6526 = vmatprep.mubr.f32.mxu0 0.0
    %6527 = vmatmul.mubr.f32.gmra.mxu0 %v6407
    %v6528 = vpop.f32.mrf.mxu0
    %v6529 = vadd.f32 %v6393, %v6528
    %v6530 = vpop.f32.mrf.mxu0
    %6531 = vmatprep.mubr.f32.mxu0 0.0
    %6532 = vmatmul.mubr.f32.gmra.mxu0 %v6410
    %v6533 = vpop.f32.mrf.mxu0
    %v6534 = vadd.f32 %v6393, %v6533
    %v6535 = vpop.f32.mrf.mxu0
    %6536 = vmatprep.mubr.f32.mxu0 0.0
    %6537 = vmatmul.mubr.f32.gmra.mxu0 %v6413
    %v6538 = vpop.f32.mrf.mxu0
    %v6539 = vadd.f32 %v6393, %v6538
    %v6540 = vpop.f32.mrf.mxu0
    %6541 = vmatprep.mubr.f32.mxu0 0.0
    %6542 = vmatmul.mubr.f32.gmra.mxu0 %v6416
    %v6543 = vpop.f32.mrf.mxu0
    %v6544 = vadd.f32 %v6393, %v6543
    %v6545 = vpop.f32.mrf.mxu0
    %6546 = vmatprep.mubr.f32.mxu0 0.0
    %6547 = vmatmul.mubr.f32.gmra.mxu0 %v6419
    %v6548 = vpop.f32.mrf.mxu0
    %v6549 = vadd.f32 %v6393, %v6548
    %v6550 = vpop.f32.mrf.mxu0
    %6551 = vmatprep.mubr.f32.mxu0 0.0
    %6552 = vmatmul.mubr.f32.gmra.mxu0 %v6422
    %v6553 = vpop.f32.mrf.mxu0
    %v6554 = vadd.f32 %v6393, %v6553
    %v6555 = vpop.f32.mrf.mxu0
    %6556 = vmatprep.mubr.f32.mxu0 0.0
    %6557 = vmatmul.mubr.f32.gmra.mxu0 %v6425
    %v6558 = vpop.f32.mrf.mxu0
    %v6559 = vadd.f32 %v6393, %v6558
    %v6560 = vpop.f32.mrf.mxu0
    %6561 = vmatprep.mubr.f32.mxu0 0.0
    %6562 = vmatmul.mubr.f32.gmra.mxu0 %v6428
    %v6563 = vpop.f32.mrf.mxu0
    %v6564 = vadd.f32 %v6393, %v6563
    %v6565 = vpop.f32.mrf.mxu0
    %6566 = vmatprep.mubr.f32.mxu0 0.0
    %6567 = vmatmul.mubr.f32.gmra.mxu0 %v6431
    %v6568 = vpop.f32.mrf.mxu0
    %v6569 = vadd.f32 %v6393, %v6568
    %v6570 = vpop.f32.mrf.mxu0
    %6571 = vmatprep.mubr.f32.mxu0 0.0
    %6572 = vmatmul.mubr.f32.gmra.mxu0 %v6434
    %v6573 = vpop.f32.mrf.mxu0
    %v6574 = vadd.f32 %v6393, %v6573
    %v6575 = vpop.f32.mrf.mxu0
    %6576 = vmatprep.mubr.f32.mxu0 0.0
    %6577 = vmatmul.mubr.f32.gmra.mxu0 %v6437
    %v6578 = vpop.f32.mrf.mxu0
    %v6579 = vadd.f32 %v6393, %v6578
    %v6580 = vpop.f32.mrf.mxu0
    %6581 = vmatprep.mubr.f32.mxu0 0.0
    %6582 = vmatmul.mubr.f32.gmra.mxu0 %v6440
    %v6583 = vpop.f32.mrf.mxu0
    %v6584 = vadd.f32 %v6393, %v6583
    %v6585 = vpop.f32.mrf.mxu0
    %6586 = vdwg.mxu0
    %v6587 = vxor.u32 %v6509, 2147483648
    %v6588 = vxor.u32 %v6514, 2147483648
    %v6589 = vxor.u32 %v6519, 2147483648
    %v6590 = vxor.u32 %v6524, 2147483648
    %v6591 = vxor.u32 %v6529, 2147483648
    %v6592 = vxor.u32 %v6534, 2147483648
    %v6593 = vxor.u32 %v6539, 2147483648
    %v6594 = vxor.u32 %v6544, 2147483648
    %v6595 = vxor.u32 %v6549, 2147483648
    %v6596 = vxor.u32 %v6554, 2147483648
    %v6597 = vxor.u32 %v6559, 2147483648
    %v6598 = vxor.u32 %v6564, 2147483648
    %v6599 = vxor.u32 %v6569, 2147483648
    %v6600 = vxor.u32 %v6574, 2147483648
    %v6601 = vxor.u32 %v6579, 2147483648
    %v6602 = vxor.u32 %v6584, 2147483648
    %v6603 = vmul.f32 %v6587, 1.442695
    %v6604 = vpow.pop %v6603
    %v6605 = vmul.f32 %v6588, 1.442695
    %v6606 = vpow.pop %v6605
    %v6607 = vmul.f32 %v6589, 1.442695
    %v6608 = vpow.pop %v6607
    %v6609 = vmul.f32 %v6590, 1.442695
    %v6610 = vpow.pop %v6609
    %v6611 = vmul.f32 %v6591, 1.442695
    %v6612 = vpow.pop %v6611
    %v6613 = vmul.f32 %v6592, 1.442695
    %v6614 = vpow.pop %v6613
    %v6615 = vmul.f32 %v6593, 1.442695
    %v6616 = vpow.pop %v6615
    %v6617 = vmul.f32 %v6594, 1.442695
    %v6618 = vpow.pop %v6617
    %v6619 = vmul.f32 %v6595, 1.442695
    %v6620 = vpow.pop %v6619
    %v6621 = vmul.f32 %v6596, 1.442695
    %v6622 = vpow.pop %v6621
    %v6623 = vmul.f32 %v6597, 1.442695
    %v6624 = vpow.pop %v6623
    %v6625 = vmul.f32 %v6598, 1.442695
    %v6626 = vpow.pop %v6625
    %v6627 = vmul.f32 %v6599, 1.442695
    %v6628 = vpow.pop %v6627
    %v6629 = vmul.f32 %v6600, 1.442695
    %v6630 = vpow.pop %v6629
    %v6631 = vmul.f32 %v6601, 1.442695
    %v6632 = vpow.pop %v6631
    %v6633 = vmul.f32 %v6602, 1.442695
    %v6634 = vpow.pop %v6633
    %v6635 = vadd.f32 %v6604, 1.0
    %v6636 = vadd.f32 %v6606, 1.0
    %v6637 = vadd.f32 %v6608, 1.0
    %v6638 = vadd.f32 %v6610, 1.0
    %v6639 = vadd.f32 %v6612, 1.0
    %v6640 = vadd.f32 %v6614, 1.0
    %v6641 = vadd.f32 %v6616, 1.0
    %v6642 = vadd.f32 %v6618, 1.0
    %v6643 = vadd.f32 %v6620, 1.0
    %v6644 = vadd.f32 %v6622, 1.0
    %v6645 = vadd.f32 %v6624, 1.0
    %v6646 = vadd.f32 %v6626, 1.0
    %v6647 = vadd.f32 %v6628, 1.0
    %v6648 = vadd.f32 %v6630, 1.0
    %v6649 = vadd.f32 %v6632, 1.0
    %v6650 = vadd.f32 %v6634, 1.0
    %v6651 = vrcp.pop %v6635
    %v6652 = vmul.f32 1.0, %v6651
    %v6653 = vrcp.pop %v6636
    %v6654 = vmul.f32 1.0, %v6653
    %v6655 = vrcp.pop %v6637
    %v6656 = vmul.f32 1.0, %v6655
    %v6657 = vrcp.pop %v6638
    %v6658 = vmul.f32 1.0, %v6657
    %v6659 = vrcp.pop %v6639
    %v6660 = vmul.f32 1.0, %v6659
    %v6661 = vrcp.pop %v6640
    %v6662 = vmul.f32 1.0, %v6661
    %v6663 = vrcp.pop %v6641
    %v6664 = vmul.f32 1.0, %v6663
    %v6665 = vrcp.pop %v6642
    %v6666 = vmul.f32 1.0, %v6665
    %v6667 = vrcp.pop %v6643
    %v6668 = vmul.f32 1.0, %v6667
    %v6669 = vrcp.pop %v6644
    %v6670 = vmul.f32 1.0, %v6669
    %v6671 = vrcp.pop %v6645
    %v6672 = vmul.f32 1.0, %v6671
    %v6673 = vrcp.pop %v6646
    %v6674 = vmul.f32 1.0, %v6673
    %v6675 = vrcp.pop %v6647
    %v6676 = vmul.f32 1.0, %v6675
    %v6677 = vrcp.pop %v6648
    %v6678 = vmul.f32 1.0, %v6677
    %v6679 = vrcp.pop %v6649
    %v6680 = vmul.f32 1.0, %v6679
    %v6681 = vrcp.pop %v6650
    %v6682 = vmul.f32 1.0, %v6681
    %v6683 = vmul.f32 %v6509, %v6652
    %v6684 = vmul.f32 %v6514, %v6654
    %v6685 = vmul.f32 %v6519, %v6656
    %v6686 = vmul.f32 %v6524, %v6658
    %v6687 = vmul.f32 %v6529, %v6660
    %v6688 = vmul.f32 %v6534, %v6662
    %v6689 = vmul.f32 %v6539, %v6664
    %v6690 = vmul.f32 %v6544, %v6666
    %v6691 = vmul.f32 %v6549, %v6668
    %v6692 = vmul.f32 %v6554, %v6670
    %v6693 = vmul.f32 %v6559, %v6672
    %v6694 = vmul.f32 %v6564, %v6674
    %v6695 = vmul.f32 %v6569, %v6676
    %v6696 = vmul.f32 %v6574, %v6678
    %v6697 = vmul.f32 %v6579, %v6680
    %v6698 = vmul.f32 %v6584, %v6682
    %v6699 = vsel %vm250, %v6683, 0.0
    %6700 = vadd.xlane.f32.xlu0 %v6699
    %v6701 = vpop.xlane.xlu0 %6700
    %v6702 = vsel %vm250, %v6684, 0.0
    %6703 = vadd.xlane.f32.xlu0 %v6702
    %v6704 = vpop.xlane.xlu0 %6703
    %v6705 = vsel %vm250, %v6685, 0.0
    %6706 = vadd.xlane.f32.xlu0 %v6705
    %v6707 = vpop.xlane.xlu0 %6706
    %v6708 = vsel %vm250, %v6686, 0.0
    %6709 = vadd.xlane.f32.xlu0 %v6708
    %v6710 = vpop.xlane.xlu0 %6709
    %v6711 = vsel %vm250, %v6687, 0.0
    %6712 = vadd.xlane.f32.xlu0 %v6711
    %v6713 = vpop.xlane.xlu0 %6712
    %v6714 = vsel %vm250, %v6688, 0.0
    %6715 = vadd.xlane.f32.xlu0 %v6714
    %v6716 = vpop.xlane.xlu0 %6715
    %v6717 = vsel %vm250, %v6689, 0.0
    %6718 = vadd.xlane.f32.xlu0 %v6717
    %v6719 = vpop.xlane.xlu0 %6718
    %v6720 = vsel %vm250, %v6690, 0.0
    %6721 = vadd.xlane.f32.xlu0 %v6720
    %v6722 = vpop.xlane.xlu0 %6721
    %v6723 = vsel %vm250, %v6691, 0.0
    %6724 = vadd.xlane.f32.xlu0 %v6723
    %v6725 = vpop.xlane.xlu0 %6724
    %v6726 = vsel %vm250, %v6692, 0.0
    %6727 = vadd.xlane.f32.xlu0 %v6726
    %v6728 = vpop.xlane.xlu0 %6727
    %v6729 = vsel %vm250, %v6693, 0.0
    %6730 = vadd.xlane.f32.xlu0 %v6729
    %v6731 = vpop.xlane.xlu0 %6730
    %v6732 = vsel %vm250, %v6694, 0.0
    %6733 = vadd.xlane.f32.xlu0 %v6732
    %v6734 = vpop.xlane.xlu0 %6733
    %v6735 = vsel %vm250, %v6695, 0.0
    %6736 = vadd.xlane.f32.xlu0 %v6735
    %v6737 = vpop.xlane.xlu0 %6736
    %v6738 = vsel %vm250, %v6696, 0.0
    %6739 = vadd.xlane.f32.xlu0 %v6738
    %v6740 = vpop.xlane.xlu0 %6739
    %v6741 = vsel %vm250, %v6697, 0.0
    %6742 = vadd.xlane.f32.xlu0 %v6741
    %v6743 = vpop.xlane.xlu0 %6742
    %v6744 = vsel %vm250, %v6698, 0.0
    %6745 = vadd.xlane.f32.xlu0 %v6744
    %v6746 = vpop.xlane.xlu0 %6745
    %v6747 = vmul.f32 %v6701, 0.03125
    %v6748 = vmul.f32 %v6704, 0.03125
    %v6749 = vmul.f32 %v6707, 0.03125
    %v6750 = vmul.f32 %v6710, 0.03125
    %v6751 = vmul.f32 %v6713, 0.03125
    %v6752 = vmul.f32 %v6716, 0.03125
    %v6753 = vmul.f32 %v6719, 0.03125
    %v6754 = vmul.f32 %v6722, 0.03125
    %v6755 = vmul.f32 %v6725, 0.03125
    %v6756 = vmul.f32 %v6728, 0.03125
    %v6757 = vmul.f32 %v6731, 0.03125
    %v6758 = vmul.f32 %v6734, 0.03125
    %v6759 = vmul.f32 %v6737, 0.03125
    %v6760 = vmul.f32 %v6740, 0.03125
    %v6761 = vmul.f32 %v6743, 0.03125
    %v6762 = vmul.f32 %v6746, 0.03125
    %v6763 = vmul.f32 %v6683, %v6683
    %v6764 = vmul.f32 %v6684, %v6684
    %v6765 = vmul.f32 %v6685, %v6685
    %v6766 = vmul.f32 %v6686, %v6686
    %v6767 = vmul.f32 %v6687, %v6687
    %v6768 = vmul.f32 %v6688, %v6688
    %v6769 = vmul.f32 %v6689, %v6689
    %v6770 = vmul.f32 %v6690, %v6690
    %v6771 = vmul.f32 %v6691, %v6691
    %v6772 = vmul.f32 %v6692, %v6692
    %v6773 = vmul.f32 %v6693, %v6693
    %v6774 = vmul.f32 %v6694, %v6694
    %v6775 = vmul.f32 %v6695, %v6695
    %v6776 = vmul.f32 %v6696, %v6696
    %v6777 = vmul.f32 %v6697, %v6697
    %v6778 = vmul.f32 %v6698, %v6698
    %v6779 = vsel %vm250, %v6763, 0.0
    %6780 = vadd.xlane.f32.xlu0 %v6779
    %v6781 = vpop.xlane.xlu0 %6780
    %v6782 = vsel %vm250, %v6764, 0.0
    %6783 = vadd.xlane.f32.xlu0 %v6782
    %v6784 = vpop.xlane.xlu0 %6783
    %v6785 = vsel %vm250, %v6765, 0.0
    %6786 = vadd.xlane.f32.xlu0 %v6785
    %v6787 = vpop.xlane.xlu0 %6786
    %v6788 = vsel %vm250, %v6766, 0.0
    %6789 = vadd.xlane.f32.xlu0 %v6788
    %v6790 = vpop.xlane.xlu0 %6789
    %v6791 = vsel %vm250, %v6767, 0.0
    %6792 = vadd.xlane.f32.xlu0 %v6791
    %v6793 = vpop.xlane.xlu0 %6792
    %v6794 = vsel %vm250, %v6768, 0.0
    %6795 = vadd.xlane.f32.xlu0 %v6794
    %v6796 = vpop.xlane.xlu0 %6795
    %v6797 = vsel %vm250, %v6769, 0.0
    %6798 = vadd.xlane.f32.xlu0 %v6797
    %v6799 = vpop.xlane.xlu0 %6798
    %v6800 = vsel %vm250, %v6770, 0.0
    %6801 = vadd.xlane.f32.xlu0 %v6800
    %v6802 = vpop.xlane.xlu0 %6801
    %v6803 = vsel %vm250, %v6771, 0.0
    %6804 = vadd.xlane.f32.xlu0 %v6803
    %v6805 = vpop.xlane.xlu0 %6804
    %v6806 = vsel %vm250, %v6772, 0.0
    %6807 = vadd.xlane.f32.xlu0 %v6806
    %v6808 = vpop.xlane.xlu0 %6807
    %v6809 = vsel %vm250, %v6773, 0.0
    %6810 = vadd.xlane.f32.xlu0 %v6809
    %v6811 = vpop.xlane.xlu0 %6810
    %v6812 = vsel %vm250, %v6774, 0.0
    %6813 = vadd.xlane.f32.xlu0 %v6812
    %v6814 = vpop.xlane.xlu0 %6813
    %v6815 = vsel %vm250, %v6775, 0.0
    %6816 = vadd.xlane.f32.xlu0 %v6815
    %v6817 = vpop.xlane.xlu0 %6816
    %v6818 = vsel %vm250, %v6776, 0.0
    %6819 = vadd.xlane.f32.xlu0 %v6818
    %v6820 = vpop.xlane.xlu0 %6819
    %v6821 = vsel %vm250, %v6777, 0.0
    %6822 = vadd.xlane.f32.xlu0 %v6821
    %v6823 = vpop.xlane.xlu0 %6822
    %v6824 = vsel %vm250, %v6778, 0.0
    %6825 = vadd.xlane.f32.xlu0 %v6824
    %v6826 = vpop.xlane.xlu0 %6825
    %v6827 = vmul.f32 %v6781, 0.03125
    %v6828 = vmul.f32 %v6784, 0.03125
    %v6829 = vmul.f32 %v6787, 0.03125
    %v6830 = vmul.f32 %v6790, 0.03125
    %v6831 = vmul.f32 %v6793, 0.03125
    %v6832 = vmul.f32 %v6796, 0.03125
    %v6833 = vmul.f32 %v6799, 0.03125
    %v6834 = vmul.f32 %v6802, 0.03125
    %v6835 = vmul.f32 %v6805, 0.03125
    %v6836 = vmul.f32 %v6808, 0.03125
    %v6837 = vmul.f32 %v6811, 0.03125
    %v6838 = vmul.f32 %v6814, 0.03125
    %v6839 = vmul.f32 %v6817, 0.03125
    %v6840 = vmul.f32 %v6820, 0.03125
    %v6841 = vmul.f32 %v6823, 0.03125
    %v6842 = vmul.f32 %v6826, 0.03125
    %6843 = vmatprep.subr.mxu0 0.0
    %6844 = vmatpush1.msra.mxu0 %v6762
    %6845 = vmatprep.subr.mxu0 0.0
    %6846 = vmatpush1.msra.mxu0 %v6761
    %6847 = vmatprep.subr.mxu0 0.0
    %6848 = vmatpush1.msra.mxu0 %v6760
    %6849 = vmatprep.subr.mxu0 0.0
    %6850 = vmatpush1.msra.mxu0 %v6759
    %6851 = vmatprep.subr.mxu0 0.0
    %6852 = vmatpush1.msra.mxu0 %v6758
    %6853 = vmatprep.subr.mxu0 0.0
    %6854 = vmatpush1.msra.mxu0 %v6757
    %6855 = vmatprep.subr.mxu0 0.0
    %6856 = vmatpush1.msra.mxu0 %v6756
    %6857 = vmatprep.subr.mxu0 0.0
    %6858 = vmatpush1.msra.mxu0 %v6755
    %6859 = vmatprep.subr.mxu0 0.0
    %6860 = vmatpush1.msra.mxu0 %v6754
    %6861 = vmatprep.subr.mxu0 0.0
    %6862 = vmatpush1.msra.mxu0 %v6753
    %6863 = vmatprep.subr.mxu0 0.0
    %6864 = vmatpush1.msra.mxu0 %v6752
    %6865 = vmatprep.subr.mxu0 0.0
    %6866 = vmatpush1.msra.mxu0 %v6751
    %6867 = vmatprep.subr.mxu0 0.0
    %6868 = vmatpush1.msra.mxu0 %v6750
    %6869 = vmatprep.subr.mxu0 0.0
    %6870 = vmatpush1.msra.mxu0 %v6749
    %6871 = vmatprep.subr.mxu0 0.0
    %6872 = vmatpush1.msra.mxu0 %v6748
    %6873 = vmatprep.subr.mxu0 0.0
    %6874 = vmatpush1.msra.mxu0 %v6747
    %6875 = vmatprep.subr.mxu0 0.0
    %6876 = vmatpush2.msra.mxu0 0.0
    %6877 = vmatprep.subr.mxu0 0.0
    %6878 = vmatpush2.msra.mxu0 0.0
    %6879 = vmatprep.subr.mxu0 0.0
    %6880 = vmatpush2.msra.mxu0 0.0
    %6881 = vmatprep.subr.mxu0 0.0
    %6882 = vmatpush2.msra.mxu0 0.0
    %6883 = vmatprep.subr.mxu0 0.0
    %6884 = vmatpush2.msra.mxu0 0.0
    %6885 = vmatprep.subr.mxu0 0.0
    %6886 = vmatpush2.msra.mxu0 0.0
    %6887 = vmatprep.subr.mxu0 0.0
    %6888 = vmatpush2.msra.mxu0 0.0
    %6889 = vmatprep.subr.mxu0 0.0
    %6890 = vmatpush2.msra.mxu0 0.0
    %6891 = vmatprep.subr.mxu0 0.0
    %6892 = vmatpush2.msra.mxu0 0.0
    %6893 = vmatprep.subr.mxu0 0.0
    %6894 = vmatpush2.msra.mxu0 0.0
    %6895 = vmatprep.subr.mxu0 0.0
    %6896 = vmatpush2.msra.mxu0 0.0
    %6897 = vmatprep.subr.mxu0 0.0
    %6898 = vmatpush2.msra.mxu0 0.0
    %6899 = vmatprep.subr.mxu0 0.0
    %6900 = vmatpush2.msra.mxu0 0.0
    %6901 = vmatprep.subr.mxu0 0.0
    %6902 = vmatpush2.msra.mxu0 0.0
    %6903 = vmatprep.subr.mxu0 0.0
    %6904 = vmatpush2.msra.mxu0 0.0
    %6905 = vmatprep.subr.mxu0 0.0
    %6906 = vmatpush2.msra.mxu0 0.0
    %6907 = vmatprep.mubr.f32.mxu0 0.0
    %6908 = vmatmul.mubr.f32.gmra.mxu0 %v1072
    %v6909 = vpop.f32.mrf.mxu0
    %v6910 = vadd.f32 0.0, %v6909
    %v6911 = vpop.f32.mrf.mxu0
    %6912 = vmatprep.mubr.f32.mxu0 0.0
    %6913 = vmatmul.mubr.f32.gmra.mxu0 %v1073
    %v6914 = vpop.f32.mrf.mxu0
    %v6915 = vadd.f32 0.0, %v6914
    %v6916 = vpop.f32.mrf.mxu0
    %6917 = vmatprep.mubr.f32.mxu0 0.0
    %6918 = vmatmul.mubr.f32.gmra.mxu0 %v1074
    %v6919 = vpop.f32.mrf.mxu0
    %v6920 = vadd.f32 0.0, %v6919
    %v6921 = vpop.f32.mrf.mxu0
    %6922 = vmatprep.mubr.f32.mxu0 0.0
    %6923 = vmatmul.mubr.f32.gmra.mxu0 %v1075
    %v6924 = vpop.f32.mrf.mxu0
    %v6925 = vadd.f32 0.0, %v6924
    %v6926 = vpop.f32.mrf.mxu0
    %6927 = vmatprep.mubr.f32.mxu0 0.0
    %6928 = vmatmul.mubr.f32.gmra.mxu0 %v1076
    %v6929 = vpop.f32.mrf.mxu0
    %v6930 = vadd.f32 0.0, %v6929
    %v6931 = vpop.f32.mrf.mxu0
    %6932 = vmatprep.mubr.f32.mxu0 0.0
    %6933 = vmatmul.mubr.f32.gmra.mxu0 %v1077
    %v6934 = vpop.f32.mrf.mxu0
    %v6935 = vadd.f32 0.0, %v6934
    %v6936 = vpop.f32.mrf.mxu0
    %6937 = vmatprep.mubr.f32.mxu0 0.0
    %6938 = vmatmul.mubr.f32.gmra.mxu0 %v1078
    %v6939 = vpop.f32.mrf.mxu0
    %v6940 = vadd.f32 0.0, %v6939
    %v6941 = vpop.f32.mrf.mxu0
    %6942 = vmatprep.mubr.f32.mxu0 0.0
    %6943 = vmatmul.mubr.f32.gmra.mxu0 %v1079
    %v6944 = vpop.f32.mrf.mxu0
    %v6945 = vadd.f32 0.0, %v6944
    %v6946 = vpop.f32.mrf.mxu0
    %6947 = vmatprep.mubr.f32.mxu0 0.0
    %6948 = vmatmul.mubr.f32.gmra.mxu0 %v1080
    %v6949 = vpop.f32.mrf.mxu0
    %v6950 = vadd.f32 0.0, %v6949
    %v6951 = vpop.f32.mrf.mxu0
    %6952 = vmatprep.mubr.f32.mxu0 0.0
    %6953 = vmatmul.mubr.f32.gmra.mxu0 %v1081
    %v6954 = vpop.f32.mrf.mxu0
    %v6955 = vadd.f32 0.0, %v6954
    %v6956 = vpop.f32.mrf.mxu0
    %6957 = vmatprep.mubr.f32.mxu0 0.0
    %6958 = vmatmul.mubr.f32.gmra.mxu0 %v1082
    %v6959 = vpop.f32.mrf.mxu0
    %v6960 = vadd.f32 0.0, %v6959
    %v6961 = vpop.f32.mrf.mxu0
    %6962 = vmatprep.mubr.f32.mxu0 0.0
    %6963 = vmatmul.mubr.f32.gmra.mxu0 %v1083
    %v6964 = vpop.f32.mrf.mxu0
    %v6965 = vadd.f32 0.0, %v6964
    %v6966 = vpop.f32.mrf.mxu0
    %6967 = vmatprep.mubr.f32.mxu0 0.0
    %6968 = vmatmul.mubr.f32.gmra.mxu0 %v1084
    %v6969 = vpop.f32.mrf.mxu0
    %v6970 = vadd.f32 0.0, %v6969
    %v6971 = vpop.f32.mrf.mxu0
    %6972 = vmatprep.mubr.f32.mxu0 0.0
    %6973 = vmatmul.mubr.f32.gmra.mxu0 %v1085
    %v6974 = vpop.f32.mrf.mxu0
    %v6975 = vadd.f32 0.0, %v6974
    %v6976 = vpop.f32.mrf.mxu0
    %6977 = vmatprep.mubr.f32.mxu0 0.0
    %6978 = vmatmul.mubr.f32.gmra.mxu0 %v1086
    %v6979 = vpop.f32.mrf.mxu0
    %v6980 = vadd.f32 0.0, %v6979
    %v6981 = vpop.f32.mrf.mxu0
    %6982 = vmatprep.mubr.f32.mxu0 0.0
    %6983 = vmatmul.mubr.f32.gmra.mxu0 %v1087
    %v6984 = vpop.f32.mrf.mxu0
    %v6985 = vadd.f32 0.0, %v6984
    %v6986 = vpop.f32.mrf.mxu0
    %6987 = vdwg.mxu0
    %6988 = vmatprep.subr.mxu0 0.0
    %6989 = vmatpush1.msra.mxu0 %v6842
    %6990 = vmatprep.subr.mxu0 0.0
    %6991 = vmatpush1.msra.mxu0 %v6841
    %6992 = vmatprep.subr.mxu0 0.0
    %6993 = vmatpush1.msra.mxu0 %v6840
    %6994 = vmatprep.subr.mxu0 0.0
    %6995 = vmatpush1.msra.mxu0 %v6839
    %6996 = vmatprep.subr.mxu0 0.0
    %6997 = vmatpush1.msra.mxu0 %v6838
    %6998 = vmatprep.subr.mxu0 0.0
    %6999 = vmatpush1.msra.mxu0 %v6837
    %7000 = vmatprep.subr.mxu0 0.0
    %7001 = vmatpush1.msra.mxu0 %v6836
    %7002 = vmatprep.subr.mxu0 0.0
    %7003 = vmatpush1.msra.mxu0 %v6835
    %7004 = vmatprep.subr.mxu0 0.0
    %7005 = vmatpush1.msra.mxu0 %v6834
    %7006 = vmatprep.subr.mxu0 0.0
    %7007 = vmatpush1.msra.mxu0 %v6833
    %7008 = vmatprep.subr.mxu0 0.0
    %7009 = vmatpush1.msra.mxu0 %v6832
    %7010 = vmatprep.subr.mxu0 0.0
    %7011 = vmatpush1.msra.mxu0 %v6831
    %7012 = vmatprep.subr.mxu0 0.0
    %7013 = vmatpush1.msra.mxu0 %v6830
    %7014 = vmatprep.subr.mxu0 0.0
    %7015 = vmatpush1.msra.mxu0 %v6829
    %7016 = vmatprep.subr.mxu0 0.0
    %7017 = vmatpush1.msra.mxu0 %v6828
    %7018 = vmatprep.subr.mxu0 0.0
    %7019 = vmatpush1.msra.mxu0 %v6827
    %7020 = vmatprep.subr.mxu0 0.0
    %7021 = vmatpush2.msra.mxu0 0.0
    %7022 = vmatprep.subr.mxu0 0.0
    %7023 = vmatpush2.msra.mxu0 0.0
    %7024 = vmatprep.subr.mxu0 0.0
    %7025 = vmatpush2.msra.mxu0 0.0
    %7026 = vmatprep.subr.mxu0 0.0
    %7027 = vmatpush2.msra.mxu0 0.0
    %7028 = vmatprep.subr.mxu0 0.0
    %7029 = vmatpush2.msra.mxu0 0.0
    %7030 = vmatprep.subr.mxu0 0.0
    %7031 = vmatpush2.msra.mxu0 0.0
    %7032 = vmatprep.subr.mxu0 0.0
    %7033 = vmatpush2.msra.mxu0 0.0
    %7034 = vmatprep.subr.mxu0 0.0
    %7035 = vmatpush2.msra.mxu0 0.0
    %7036 = vmatprep.subr.mxu0 0.0
    %7037 = vmatpush2.msra.mxu0 0.0
    %7038 = vmatprep.subr.mxu0 0.0
    %7039 = vmatpush2.msra.mxu0 0.0
    %7040 = vmatprep.subr.mxu0 0.0
    %7041 = vmatpush2.msra.mxu0 0.0
    %7042 = vmatprep.subr.mxu0 0.0
    %7043 = vmatpush2.msra.mxu0 0.0
    %7044 = vmatprep.subr.mxu0 0.0
    %7045 = vmatpush2.msra.mxu0 0.0
    %7046 = vmatprep.subr.mxu0 0.0
    %7047 = vmatpush2.msra.mxu0 0.0
    %7048 = vmatprep.subr.mxu0 0.0
    %7049 = vmatpush2.msra.mxu0 0.0
    %7050 = vmatprep.subr.mxu0 0.0
    %7051 = vmatpush2.msra.mxu0 0.0
    %7052 = vmatprep.mubr.f32.mxu0 0.0
    %7053 = vmatmul.mubr.f32.gmra.mxu0 %v1072
    %v7054 = vpop.f32.mrf.mxu0
    %v7055 = vadd.f32 0.0, %v7054
    %v7056 = vpop.f32.mrf.mxu0
    %7057 = vmatprep.mubr.f32.mxu0 0.0
    %7058 = vmatmul.mubr.f32.gmra.mxu0 %v1073
    %v7059 = vpop.f32.mrf.mxu0
    %v7060 = vadd.f32 0.0, %v7059
    %v7061 = vpop.f32.mrf.mxu0
    %7062 = vmatprep.mubr.f32.mxu0 0.0
    %7063 = vmatmul.mubr.f32.gmra.mxu0 %v1074
    %v7064 = vpop.f32.mrf.mxu0
    %v7065 = vadd.f32 0.0, %v7064
    %v7066 = vpop.f32.mrf.mxu0
    %7067 = vmatprep.mubr.f32.mxu0 0.0
    %7068 = vmatmul.mubr.f32.gmra.mxu0 %v1075
    %v7069 = vpop.f32.mrf.mxu0
    %v7070 = vadd.f32 0.0, %v7069
    %v7071 = vpop.f32.mrf.mxu0
    %7072 = vmatprep.mubr.f32.mxu0 0.0
    %7073 = vmatmul.mubr.f32.gmra.mxu0 %v1076
    %v7074 = vpop.f32.mrf.mxu0
    %v7075 = vadd.f32 0.0, %v7074
    %v7076 = vpop.f32.mrf.mxu0
    %7077 = vmatprep.mubr.f32.mxu0 0.0
    %7078 = vmatmul.mubr.f32.gmra.mxu0 %v1077
    %v7079 = vpop.f32.mrf.mxu0
    %v7080 = vadd.f32 0.0, %v7079
    %v7081 = vpop.f32.mrf.mxu0
    %7082 = vmatprep.mubr.f32.mxu0 0.0
    %7083 = vmatmul.mubr.f32.gmra.mxu0 %v1078
    %v7084 = vpop.f32.mrf.mxu0
    %v7085 = vadd.f32 0.0, %v7084
    %v7086 = vpop.f32.mrf.mxu0
    %7087 = vmatprep.mubr.f32.mxu0 0.0
    %7088 = vmatmul.mubr.f32.gmra.mxu0 %v1079
    %v7089 = vpop.f32.mrf.mxu0
    %v7090 = vadd.f32 0.0, %v7089
    %v7091 = vpop.f32.mrf.mxu0
    %7092 = vmatprep.mubr.f32.mxu0 0.0
    %7093 = vmatmul.mubr.f32.gmra.mxu0 %v1080
    %v7094 = vpop.f32.mrf.mxu0
    %v7095 = vadd.f32 0.0, %v7094
    %v7096 = vpop.f32.mrf.mxu0
    %7097 = vmatprep.mubr.f32.mxu0 0.0
    %7098 = vmatmul.mubr.f32.gmra.mxu0 %v1081
    %v7099 = vpop.f32.mrf.mxu0
    %v7100 = vadd.f32 0.0, %v7099
    %v7101 = vpop.f32.mrf.mxu0
    %7102 = vmatprep.mubr.f32.mxu0 0.0
    %7103 = vmatmul.mubr.f32.gmra.mxu0 %v1082
    %v7104 = vpop.f32.mrf.mxu0
    %v7105 = vadd.f32 0.0, %v7104
    %v7106 = vpop.f32.mrf.mxu0
    %7107 = vmatprep.mubr.f32.mxu0 0.0
    %7108 = vmatmul.mubr.f32.gmra.mxu0 %v1083
    %v7109 = vpop.f32.mrf.mxu0
    %v7110 = vadd.f32 0.0, %v7109
    %v7111 = vpop.f32.mrf.mxu0
    %7112 = vmatprep.mubr.f32.mxu0 0.0
    %7113 = vmatmul.mubr.f32.gmra.mxu0 %v1084
    %v7114 = vpop.f32.mrf.mxu0
    %v7115 = vadd.f32 0.0, %v7114
    %v7116 = vpop.f32.mrf.mxu0
    %7117 = vmatprep.mubr.f32.mxu0 0.0
    %7118 = vmatmul.mubr.f32.gmra.mxu0 %v1085
    %v7119 = vpop.f32.mrf.mxu0
    %v7120 = vadd.f32 0.0, %v7119
    %v7121 = vpop.f32.mrf.mxu0
    %7122 = vmatprep.mubr.f32.mxu0 0.0
    %7123 = vmatmul.mubr.f32.gmra.mxu0 %v1086
    %v7124 = vpop.f32.mrf.mxu0
    %v7125 = vadd.f32 0.0, %v7124
    %v7126 = vpop.f32.mrf.mxu0
    %7127 = vmatprep.mubr.f32.mxu0 0.0
    %7128 = vmatmul.mubr.f32.gmra.mxu0 %v1087
    %v7129 = vpop.f32.mrf.mxu0
    %v7130 = vadd.f32 0.0, %v7129
    %v7131 = vpop.f32.mrf.mxu0
    %7132 = vdwg.mxu0
    %v7133 = vmul.f32 %v6910, %v6910
    %v7134 = vmul.f32 %v6915, %v6915
    %v7135 = vmul.f32 %v6920, %v6920
    %v7136 = vmul.f32 %v6925, %v6925
    %v7137 = vmul.f32 %v6930, %v6930
    %v7138 = vmul.f32 %v6935, %v6935
    %v7139 = vmul.f32 %v6940, %v6940
    %v7140 = vmul.f32 %v6945, %v6945
    %v7141 = vmul.f32 %v6950, %v6950
    %v7142 = vmul.f32 %v6955, %v6955
    %v7143 = vmul.f32 %v6960, %v6960
    %v7144 = vmul.f32 %v6965, %v6965
    %v7145 = vmul.f32 %v6970, %v6970
    %v7146 = vmul.f32 %v6975, %v6975
    %v7147 = vmul.f32 %v6980, %v6980
    %v7148 = vmul.f32 %v6985, %v6985
    %v7149 = vsub.f32 %v7055, %v7133
    %v7150 = vsub.f32 %v7060, %v7134
    %v7151 = vsub.f32 %v7065, %v7135
    %v7152 = vsub.f32 %v7070, %v7136
    %v7153 = vsub.f32 %v7075, %v7137
    %v7154 = vsub.f32 %v7080, %v7138
    %v7155 = vsub.f32 %v7085, %v7139
    %v7156 = vsub.f32 %v7090, %v7140
    %v7157 = vsub.f32 %v7095, %v7141
    %v7158 = vsub.f32 %v7100, %v7142
    %v7159 = vsub.f32 %v7105, %v7143
    %v7160 = vsub.f32 %v7110, %v7144
    %v7161 = vsub.f32 %v7115, %v7145
    %v7162 = vsub.f32 %v7120, %v7146
    %v7163 = vsub.f32 %v7125, %v7147
    %v7164 = vsub.f32 %v7130, %v7148
    %7166 = vset.pattern.permute.xlu0 0
    %7167 = vperm.xlu0 %7166, %v6910
    %v7168 = vpop.permute.xlu0 %7167
    %7171 = vset.pattern.permute.xlu0 0
    %7172 = vperm.xlu0 %7171, %v6915
    %v7173 = vpop.permute.xlu0 %7172
    %7176 = vset.pattern.permute.xlu0 0
    %7177 = vperm.xlu0 %7176, %v6920
    %v7178 = vpop.permute.xlu0 %7177
    %7181 = vset.pattern.permute.xlu0 0
    %7182 = vperm.xlu0 %7181, %v6925
    %v7183 = vpop.permute.xlu0 %7182
    %7186 = vset.pattern.permute.xlu0 0
    %7187 = vperm.xlu0 %7186, %v6930
    %v7188 = vpop.permute.xlu0 %7187
    %7191 = vset.pattern.permute.xlu0 0
    %7192 = vperm.xlu0 %7191, %v6935
    %v7193 = vpop.permute.xlu0 %7192
    %7196 = vset.pattern.permute.xlu0 0
    %7197 = vperm.xlu0 %7196, %v6940
    %v7198 = vpop.permute.xlu0 %7197
    %7201 = vset.pattern.permute.xlu0 0
    %7202 = vperm.xlu0 %7201, %v6945
    %v7203 = vpop.permute.xlu0 %7202
    %7206 = vset.pattern.permute.xlu0 0
    %7207 = vperm.xlu0 %7206, %v6950
    %v7208 = vpop.permute.xlu0 %7207
    %7211 = vset.pattern.permute.xlu0 0
    %7212 = vperm.xlu0 %7211, %v6955
    %v7213 = vpop.permute.xlu0 %7212
    %7216 = vset.pattern.permute.xlu0 0
    %7217 = vperm.xlu0 %7216, %v6960
    %v7218 = vpop.permute.xlu0 %7217
    %7221 = vset.pattern.permute.xlu0 0
    %7222 = vperm.xlu0 %7221, %v6965
    %v7223 = vpop.permute.xlu0 %7222
    %7226 = vset.pattern.permute.xlu0 0
    %7227 = vperm.xlu0 %7226, %v6970
    %v7228 = vpop.permute.xlu0 %7227
    %7231 = vset.pattern.permute.xlu0 0
    %7232 = vperm.xlu0 %7231, %v6975
    %v7233 = vpop.permute.xlu0 %7232
    %7236 = vset.pattern.permute.xlu0 0
    %7237 = vperm.xlu0 %7236, %v6980
    %v7238 = vpop.permute.xlu0 %7237
    %7241 = vset.pattern.permute.xlu0 0
    %7242 = vperm.xlu0 %7241, %v6985
    %v7243 = vpop.permute.xlu0 %7242
    %v7245 = vsub.f32 %v6683, %v7168
    %v7246 = vsub.f32 %v6684, %v7173
    %v7247 = vsub.f32 %v6685, %v7178
    %v7248 = vsub.f32 %v6686, %v7183
    %v7249 = vsub.f32 %v6687, %v7188
    %v7250 = vsub.f32 %v6688, %v7193
    %v7251 = vsub.f32 %v6689, %v7198
    %v7252 = vsub.f32 %v6690, %v7203
    %v7253 = vsub.f32 %v6691, %v7208
    %v7254 = vsub.f32 %v6692, %v7213
    %v7255 = vsub.f32 %v6693, %v7218
    %v7256 = vsub.f32 %v6694, %v7223
    %v7257 = vsub.f32 %v6695, %v7228
    %v7258 = vsub.f32 %v6696, %v7233
    %v7259 = vsub.f32 %v6697, %v7238
    %v7260 = vsub.f32 %v6698, %v7243
    %v7261 = vadd.f32 %v7149, 1e-05
    %v7262 = vadd.f32 %v7150, 1e-05
    %v7263 = vadd.f32 %v7151, 1e-05
    %v7264 = vadd.f32 %v7152, 1e-05
    %v7265 = vadd.f32 %v7153, 1e-05
    %v7266 = vadd.f32 %v7154, 1e-05
    %v7267 = vadd.f32 %v7155, 1e-05
    %v7268 = vadd.f32 %v7156, 1e-05
    %v7269 = vadd.f32 %v7157, 1e-05
    %v7270 = vadd.f32 %v7158, 1e-05
    %v7271 = vadd.f32 %v7159, 1e-05
    %v7272 = vadd.f32 %v7160, 1e-05
    %v7273 = vadd.f32 %v7161, 1e-05
    %v7274 = vadd.f32 %v7162, 1e-05
    %v7275 = vadd.f32 %v7163, 1e-05
    %v7276 = vadd.f32 %v7164, 1e-05
    %v7277 = vrsqrt.pop %v7261
    %v7278 = vrsqrt.pop %v7262
    %v7279 = vrsqrt.pop %v7263
    %v7280 = vrsqrt.pop %v7264
    %v7281 = vrsqrt.pop %v7265
    %v7282 = vrsqrt.pop %v7266
    %v7283 = vrsqrt.pop %v7267
    %v7284 = vrsqrt.pop %v7268
    %v7285 = vrsqrt.pop %v7269
    %v7286 = vrsqrt.pop %v7270
    %v7287 = vrsqrt.pop %v7271
    %v7288 = vrsqrt.pop %v7272
    %v7289 = vrsqrt.pop %v7273
    %v7290 = vrsqrt.pop %v7274
    %v7291 = vrsqrt.pop %v7275
    %v7292 = vrsqrt.pop %v7276
    %7294 = vset.pattern.permute.xlu0 0
    %7295 = vperm.xlu0 %7294, %v7277
    %v7296 = vpop.permute.xlu0 %7295
    %7299 = vset.pattern.permute.xlu0 0
    %7300 = vperm.xlu0 %7299, %v7278
    %v7301 = vpop.permute.xlu0 %7300
    %7304 = vset.pattern.permute.xlu0 0
    %7305 = vperm.xlu0 %7304, %v7279
    %v7306 = vpop.permute.xlu0 %7305
    %7309 = vset.pattern.permute.xlu0 0
    %7310 = vperm.xlu0 %7309, %v7280
    %v7311 = vpop.permute.xlu0 %7310
    %7314 = vset.pattern.permute.xlu0 0
    %7315 = vperm.xlu0 %7314, %v7281
    %v7316 = vpop.permute.xlu0 %7315
    %7319 = vset.pattern.permute.xlu0 0
    %7320 = vperm.xlu0 %7319, %v7282
    %v7321 = vpop.permute.xlu0 %7320
    %7324 = vset.pattern.permute.xlu0 0
    %7325 = vperm.xlu0 %7324, %v7283
    %v7326 = vpop.permute.xlu0 %7325
    %7329 = vset.pattern.permute.xlu0 0
    %7330 = vperm.xlu0 %7329, %v7284
    %v7331 = vpop.permute.xlu0 %7330
    %7334 = vset.pattern.permute.xlu0 0
    %7335 = vperm.xlu0 %7334, %v7285
    %v7336 = vpop.permute.xlu0 %7335
    %7339 = vset.pattern.permute.xlu0 0
    %7340 = vperm.xlu0 %7339, %v7286
    %v7341 = vpop.permute.xlu0 %7340
    %7344 = vset.pattern.permute.xlu0 0
    %7345 = vperm.xlu0 %7344, %v7287
    %v7346 = vpop.permute.xlu0 %7345
    %7349 = vset.pattern.permute.xlu0 0
    %7350 = vperm.xlu0 %7349, %v7288
    %v7351 = vpop.permute.xlu0 %7350
    %7354 = vset.pattern.permute.xlu0 0
    %7355 = vperm.xlu0 %7354, %v7289
    %v7356 = vpop.permute.xlu0 %7355
    %7359 = vset.pattern.permute.xlu0 0
    %7360 = vperm.xlu0 %7359, %v7290
    %v7361 = vpop.permute.xlu0 %7360
    %7364 = vset.pattern.permute.xlu0 0
    %7365 = vperm.xlu0 %7364, %v7291
    %v7366 = vpop.permute.xlu0 %7365
    %7369 = vset.pattern.permute.xlu0 0
    %7370 = vperm.xlu0 %7369, %v7292
    %v7371 = vpop.permute.xlu0 %7370
    %v7373 = vmul.f32 %v7245, %v7296
    %v7374 = vmul.f32 %v7246, %v7301
    %v7375 = vmul.f32 %v7247, %v7306
    %v7376 = vmul.f32 %v7248, %v7311
    %v7377 = vmul.f32 %v7249, %v7316
    %v7378 = vmul.f32 %v7250, %v7321
    %v7379 = vmul.f32 %v7251, %v7326
    %v7380 = vmul.f32 %v7252, %v7331
    %v7381 = vmul.f32 %v7253, %v7336
    %v7382 = vmul.f32 %v7254, %v7341
    %v7383 = vmul.f32 %v7255, %v7346
    %v7384 = vmul.f32 %v7256, %v7351
    %v7385 = vmul.f32 %v7257, %v7356
    %v7386 = vmul.f32 %v7258, %v7361
    %v7387 = vmul.f32 %v7259, %v7366
    %v7388 = vmul.f32 %v7260, %v7371
    %7389 = vset.pattern.permute.xlu0 8
    %7390 = vperm.xlu0 %7389, %v912
    %v7391 = vpop.permute.xlu0 %7390
    %7393 = vset.pattern.permute.xlu0 8
    %7394 = vperm.xlu0 %7393, %v913
    %v7395 = vpop.permute.xlu0 %7394
    %7397 = vset.pattern.permute.xlu0 8
    %7398 = vperm.xlu0 %7397, %v914
    %v7399 = vpop.permute.xlu0 %7398
    %7401 = vset.pattern.permute.xlu0 8
    %7402 = vperm.xlu0 %7401, %v915
    %v7403 = vpop.permute.xlu0 %7402
    %7405 = vset.pattern.permute.xlu0 8
    %7406 = vperm.xlu0 %7405, %v916
    %v7407 = vpop.permute.xlu0 %7406
    %7409 = vset.pattern.permute.xlu0 8
    %7410 = vperm.xlu0 %7409, %v917
    %v7411 = vpop.permute.xlu0 %7410
    %7413 = vset.pattern.permute.xlu0 8
    %7414 = vperm.xlu0 %7413, %v918
    %v7415 = vpop.permute.xlu0 %7414
    %7417 = vset.pattern.permute.xlu0 8
    %7418 = vperm.xlu0 %7417, %v919
    %v7419 = vpop.permute.xlu0 %7418
    %7421 = vset.pattern.permute.xlu0 8
    %7422 = vperm.xlu0 %7421, %v920
    %v7423 = vpop.permute.xlu0 %7422
    %7425 = vset.pattern.permute.xlu0 8
    %7426 = vperm.xlu0 %7425, %v921
    %v7427 = vpop.permute.xlu0 %7426
    %7429 = vset.pattern.permute.xlu0 8
    %7430 = vperm.xlu0 %7429, %v922
    %v7431 = vpop.permute.xlu0 %7430
    %7433 = vset.pattern.permute.xlu0 8
    %7434 = vperm.xlu0 %7433, %v923
    %v7435 = vpop.permute.xlu0 %7434
    %7437 = vset.pattern.permute.xlu0 8
    %7438 = vperm.xlu0 %7437, %v924
    %v7439 = vpop.permute.xlu0 %7438
    %7441 = vset.pattern.permute.xlu0 8
    %7442 = vperm.xlu0 %7441, %v925
    %v7443 = vpop.permute.xlu0 %7442
    %7445 = vset.pattern.permute.xlu0 8
    %7446 = vperm.xlu0 %7445, %v926
    %v7447 = vpop.permute.xlu0 %7446
    %7449 = vset.pattern.permute.xlu0 8
    %7450 = vperm.xlu0 %7449, %v927
    %v7451 = vpop.permute.xlu0 %7450
    %v7453 = vmul.f32 %v7373, %v7391
    %v7454 = vmul.f32 %v7374, %v7395
    %v7455 = vmul.f32 %v7375, %v7399
    %v7456 = vmul.f32 %v7376, %v7403
    %v7457 = vmul.f32 %v7377, %v7407
    %v7458 = vmul.f32 %v7378, %v7411
    %v7459 = vmul.f32 %v7379, %v7415
    %v7460 = vmul.f32 %v7380, %v7419
    %v7461 = vmul.f32 %v7381, %v7423
    %v7462 = vmul.f32 %v7382, %v7427
    %v7463 = vmul.f32 %v7383, %v7431
    %v7464 = vmul.f32 %v7384, %v7435
    %v7465 = vmul.f32 %v7385, %v7439
    %v7466 = vmul.f32 %v7386, %v7443
    %v7467 = vmul.f32 %v7387, %v7447
    %v7468 = vmul.f32 %v7388, %v7451
    %7469 = vset.pattern.permute.xlu0 9
    %7470 = vperm.xlu0 %7469, %v912
    %v7471 = vpop.permute.xlu0 %7470
    %7473 = vset.pattern.permute.xlu0 9
    %7474 = vperm.xlu0 %7473, %v913
    %v7475 = vpop.permute.xlu0 %7474
    %7477 = vset.pattern.permute.xlu0 9
    %7478 = vperm.xlu0 %7477, %v914
    %v7479 = vpop.permute.xlu0 %7478
    %7481 = vset.pattern.permute.xlu0 9
    %7482 = vperm.xlu0 %7481, %v915
    %v7483 = vpop.permute.xlu0 %7482
    %7485 = vset.pattern.permute.xlu0 9
    %7486 = vperm.xlu0 %7485, %v916
    %v7487 = vpop.permute.xlu0 %7486
    %7489 = vset.pattern.permute.xlu0 9
    %7490 = vperm.xlu0 %7489, %v917
    %v7491 = vpop.permute.xlu0 %7490
    %7493 = vset.pattern.permute.xlu0 9
    %7494 = vperm.xlu0 %7493, %v918
    %v7495 = vpop.permute.xlu0 %7494
    %7497 = vset.pattern.permute.xlu0 9
    %7498 = vperm.xlu0 %7497, %v919
    %v7499 = vpop.permute.xlu0 %7498
    %7501 = vset.pattern.permute.xlu0 9
    %7502 = vperm.xlu0 %7501, %v920
    %v7503 = vpop.permute.xlu0 %7502
    %7505 = vset.pattern.permute.xlu0 9
    %7506 = vperm.xlu0 %7505, %v921
    %v7507 = vpop.permute.xlu0 %7506
    %7509 = vset.pattern.permute.xlu0 9
    %7510 = vperm.xlu0 %7509, %v922
    %v7511 = vpop.permute.xlu0 %7510
    %7513 = vset.pattern.permute.xlu0 9
    %7514 = vperm.xlu0 %7513, %v923
    %v7515 = vpop.permute.xlu0 %7514
    %7517 = vset.pattern.permute.xlu0 9
    %7518 = vperm.xlu0 %7517, %v924
    %v7519 = vpop.permute.xlu0 %7518
    %7521 = vset.pattern.permute.xlu0 9
    %7522 = vperm.xlu0 %7521, %v925
    %v7523 = vpop.permute.xlu0 %7522
    %7525 = vset.pattern.permute.xlu0 9
    %7526 = vperm.xlu0 %7525, %v926
    %v7527 = vpop.permute.xlu0 %7526
    %7529 = vset.pattern.permute.xlu0 9
    %7530 = vperm.xlu0 %7529, %v927
    %v7531 = vpop.permute.xlu0 %7530
    %v7533 = vadd.f32 %v7453, %v7471
    %v7534 = vadd.f32 %v7454, %v7475
    %v7535 = vadd.f32 %v7455, %v7479
    %v7536 = vadd.f32 %v7456, %v7483
    %v7537 = vadd.f32 %v7457, %v7487
    %v7538 = vadd.f32 %v7458, %v7491
    %v7539 = vadd.f32 %v7459, %v7495
    %v7540 = vadd.f32 %v7460, %v7499
    %v7541 = vadd.f32 %v7461, %v7503
    %v7542 = vadd.f32 %v7462, %v7507
    %v7543 = vadd.f32 %v7463, %v7511
    %v7544 = vadd.f32 %v7464, %v7515
    %v7545 = vadd.f32 %v7465, %v7519
    %v7546 = vadd.f32 %v7466, %v7523
    %v7547 = vadd.f32 %v7467, %v7527
    %v7548 = vadd.f32 %v7468, %v7531
    %v7549 = vld [vmem:[#allocation10 + $0x178] sm:$0xff]
    %v7550 = vld [vmem:[#allocation10 + $0x180] sm:$0xff]
    %v7551 = vld [vmem:[#allocation10 + $0x188] sm:$0xff]
    %v7552 = vld [vmem:[#allocation10 + $0x190] sm:$0xff]
    %v7553 = vld [vmem:[%s7 + $0x11] sm:$0x1]
    %v7554 = vlaneseq
    %v7555 = vshrl.u32 %v7554, 7
    %v7556 = vsub.s32 0, %v7555
    %v7557 = vrot.slane %v7553, %v7556
    %v7559 = vsel %vm250, %v7533, 0
    %v7562 = vsel %vm250, %v7534, 0
    %v7565 = vsel %vm250, %v7535, 0
    %v7568 = vsel %vm250, %v7536, 0
    %v7571 = vsel %vm250, %v7537, 0
    %v7574 = vsel %vm250, %v7538, 0
    %v7577 = vsel %vm250, %v7539, 0
    %v7580 = vsel %vm250, %v7540, 0
    %v7583 = vsel %vm250, %v7541, 0
    %v7586 = vsel %vm250, %v7542, 0
    %v7589 = vsel %vm250, %v7543, 0
    %v7592 = vsel %vm250, %v7544, 0
    %v7595 = vsel %vm250, %v7545, 0
    %v7598 = vsel %vm250, %v7546, 0
    %v7601 = vsel %vm250, %v7547, 0
    %v7604 = vsel %vm250, %v7548, 0
    %7606 = vmatprep.subr.mxu0 0.0
    %7607 = vmatpush1.msra.mxu0 0.0
    %7608 = vmatprep.subr.mxu0 0.0
    %7609 = vmatpush1.msra.mxu0 0.0
    %7610 = vmatprep.subr.mxu0 0.0
    %7611 = vmatpush1.msra.mxu0 0.0
    %7612 = vmatprep.subr.mxu0 0.0
    %7613 = vmatpush1.msra.mxu0 0.0
    %7614 = vmatprep.subr.mxu0 0.0
    %7615 = vmatpush1.msra.mxu0 0.0
    %7616 = vmatprep.subr.mxu0 0.0
    %7617 = vmatpush1.msra.mxu0 0.0
    %7618 = vmatprep.subr.mxu0 0.0
    %7619 = vmatpush1.msra.mxu0 0.0
    %7620 = vmatprep.subr.mxu0 0.0
    %7621 = vmatpush1.msra.mxu0 0.0
    %7622 = vmatprep.subr.mxu0 0.0
    %7623 = vmatpush1.msra.mxu0 0.0
    %7624 = vmatprep.subr.mxu0 0.0
    %7625 = vmatpush1.msra.mxu0 0.0
    %7626 = vmatprep.subr.mxu0 0.0
    %7627 = vmatpush1.msra.mxu0 0.0
    %7628 = vmatprep.subr.mxu0 0.0
    %7629 = vmatpush1.msra.mxu0 0.0
    %7630 = vmatprep.subr.mxu0 0.0
    %7631 = vmatpush1.msra.mxu0 %v7552
    %7632 = vmatprep.subr.mxu0 0.0
    %7633 = vmatpush1.msra.mxu0 %v7551
    %7634 = vmatprep.subr.mxu0 0.0
    %7635 = vmatpush1.msra.mxu0 %v7550
    %7636 = vmatprep.subr.mxu0 0.0
    %7637 = vmatpush1.msra.mxu0 %v7549
    %7638 = vmatprep.subr.mxu0 0.0
    %7639 = vmatpush2.msra.mxu0 0.0
    %7640 = vmatprep.subr.mxu0 0.0
    %7641 = vmatpush2.msra.mxu0 0.0
    %7642 = vmatprep.subr.mxu0 0.0
    %7643 = vmatpush2.msra.mxu0 0.0
    %7644 = vmatprep.subr.mxu0 0.0
    %7645 = vmatpush2.msra.mxu0 0.0
    %7646 = vmatprep.subr.mxu0 0.0
    %7647 = vmatpush2.msra.mxu0 0.0
    %7648 = vmatprep.subr.mxu0 0.0
    %7649 = vmatpush2.msra.mxu0 0.0
    %7650 = vmatprep.subr.mxu0 0.0
    %7651 = vmatpush2.msra.mxu0 0.0
    %7652 = vmatprep.subr.mxu0 0.0
    %7653 = vmatpush2.msra.mxu0 0.0
    %7654 = vmatprep.subr.mxu0 0.0
    %7655 = vmatpush2.msra.mxu0 0.0
    %7656 = vmatprep.subr.mxu0 0.0
    %7657 = vmatpush2.msra.mxu0 0.0
    %7658 = vmatprep.subr.mxu0 0.0
    %7659 = vmatpush2.msra.mxu0 0.0
    %7660 = vmatprep.subr.mxu0 0.0
    %7661 = vmatpush2.msra.mxu0 0.0
    %7662 = vmatprep.subr.mxu0 0.0
    %7663 = vmatpush2.msra.mxu0 0.0
    %7664 = vmatprep.subr.mxu0 0.0
    %7665 = vmatpush2.msra.mxu0 0.0
    %7666 = vmatprep.subr.mxu0 0.0
    %7667 = vmatpush2.msra.mxu0 0.0
    %7668 = vmatprep.subr.mxu0 0.0
    %7669 = vmatpush2.msra.mxu0 0.0
    %7670 = vmatprep.mubr.f32.mxu0 0.0
    %7671 = vmatmul.mubr.f32.gmra.mxu0 %v7559
    %v7672 = vpop.f32.mrf.mxu0
    %v7673 = vadd.f32 %v7557, %v7672
    %v7674 = vpop.f32.mrf.mxu0
    %7675 = vmatprep.mubr.f32.mxu0 0.0
    %7676 = vmatmul.mubr.f32.gmra.mxu0 %v7562
    %v7677 = vpop.f32.mrf.mxu0
    %v7678 = vadd.f32 %v7557, %v7677
    %v7679 = vpop.f32.mrf.mxu0
    %7680 = vmatprep.mubr.f32.mxu0 0.0
    %7681 = vmatmul.mubr.f32.gmra.mxu0 %v7565
    %v7682 = vpop.f32.mrf.mxu0
    %v7683 = vadd.f32 %v7557, %v7682
    %v7684 = vpop.f32.mrf.mxu0
    %7685 = vmatprep.mubr.f32.mxu0 0.0
    %7686 = vmatmul.mubr.f32.gmra.mxu0 %v7568
    %v7687 = vpop.f32.mrf.mxu0
    %v7688 = vadd.f32 %v7557, %v7687
    %v7689 = vpop.f32.mrf.mxu0
    %7690 = vmatprep.mubr.f32.mxu0 0.0
    %7691 = vmatmul.mubr.f32.gmra.mxu0 %v7571
    %v7692 = vpop.f32.mrf.mxu0
    %v7693 = vadd.f32 %v7557, %v7692
    %v7694 = vpop.f32.mrf.mxu0
    %7695 = vmatprep.mubr.f32.mxu0 0.0
    %7696 = vmatmul.mubr.f32.gmra.mxu0 %v7574
    %v7697 = vpop.f32.mrf.mxu0
    %v7698 = vadd.f32 %v7557, %v7697
    %v7699 = vpop.f32.mrf.mxu0
    %7700 = vmatprep.mubr.f32.mxu0 0.0
    %7701 = vmatmul.mubr.f32.gmra.mxu0 %v7577
    %v7702 = vpop.f32.mrf.mxu0
    %v7703 = vadd.f32 %v7557, %v7702
    %v7704 = vpop.f32.mrf.mxu0
    %7705 = vmatprep.mubr.f32.mxu0 0.0
    %7706 = vmatmul.mubr.f32.gmra.mxu0 %v7580
    %v7707 = vpop.f32.mrf.mxu0
    %v7708 = vadd.f32 %v7557, %v7707
    %v7709 = vpop.f32.mrf.mxu0
    %7710 = vmatprep.mubr.f32.mxu0 0.0
    %7711 = vmatmul.mubr.f32.gmra.mxu0 %v7583
    %v7712 = vpop.f32.mrf.mxu0
    %v7713 = vadd.f32 %v7557, %v7712
    %v7714 = vpop.f32.mrf.mxu0
    %7715 = vmatprep.mubr.f32.mxu0 0.0
    %7716 = vmatmul.mubr.f32.gmra.mxu0 %v7586
    %v7717 = vpop.f32.mrf.mxu0
    %v7718 = vadd.f32 %v7557, %v7717
    %v7719 = vpop.f32.mrf.mxu0
    %7720 = vmatprep.mubr.f32.mxu0 0.0
    %7721 = vmatmul.mubr.f32.gmra.mxu0 %v7589
    %v7722 = vpop.f32.mrf.mxu0
    %v7723 = vadd.f32 %v7557, %v7722
    %v7724 = vpop.f32.mrf.mxu0
    %7725 = vmatprep.mubr.f32.mxu0 0.0
    %7726 = vmatmul.mubr.f32.gmra.mxu0 %v7592
    %v7727 = vpop.f32.mrf.mxu0
    %v7728 = vadd.f32 %v7557, %v7727
    %v7729 = vpop.f32.mrf.mxu0
    %7730 = vmatprep.mubr.f32.mxu0 0.0
    %7731 = vmatmul.mubr.f32.gmra.mxu0 %v7595
    %v7732 = vpop.f32.mrf.mxu0
    %v7733 = vadd.f32 %v7557, %v7732
    %v7734 = vpop.f32.mrf.mxu0
    %7735 = vmatprep.mubr.f32.mxu0 0.0
    %7736 = vmatmul.mubr.f32.gmra.mxu0 %v7598
    %v7737 = vpop.f32.mrf.mxu0
    %v7738 = vadd.f32 %v7557, %v7737
    %v7739 = vpop.f32.mrf.mxu0
    %7740 = vmatprep.mubr.f32.mxu0 0.0
    %7741 = vmatmul.mubr.f32.gmra.mxu0 %v7601
    %v7742 = vpop.f32.mrf.mxu0
    %v7743 = vadd.f32 %v7557, %v7742
    %v7744 = vpop.f32.mrf.mxu0
    %7745 = vmatprep.mubr.f32.mxu0 0.0
    %7746 = vmatmul.mubr.f32.gmra.mxu0 %v7604
    %v7747 = vpop.f32.mrf.mxu0
    %v7748 = vadd.f32 %v7557, %v7747
    %v7749 = vpop.f32.mrf.mxu0
    %7750 = vdwg.mxu0
    %v7751 = vxor.u32 %v7673, 2147483648
    %v7752 = vxor.u32 %v7678, 2147483648
    %v7753 = vxor.u32 %v7683, 2147483648
    %v7754 = vxor.u32 %v7688, 2147483648
    %v7755 = vxor.u32 %v7693, 2147483648
    %v7756 = vxor.u32 %v7698, 2147483648
    %v7757 = vxor.u32 %v7703, 2147483648
    %v7758 = vxor.u32 %v7708, 2147483648
    %v7759 = vxor.u32 %v7713, 2147483648
    %v7760 = vxor.u32 %v7718, 2147483648
    %v7761 = vxor.u32 %v7723, 2147483648
    %v7762 = vxor.u32 %v7728, 2147483648
    %v7763 = vxor.u32 %v7733, 2147483648
    %v7764 = vxor.u32 %v7738, 2147483648
    %v7765 = vxor.u32 %v7743, 2147483648
    %v7766 = vxor.u32 %v7748, 2147483648
    %v7767 = vmul.f32 %v7751, 1.442695
    %v7768 = vpow.pop %v7767
    %v7769 = vmul.f32 %v7752, 1.442695
    %v7770 = vpow.pop %v7769
    %v7771 = vmul.f32 %v7753, 1.442695
    %v7772 = vpow.pop %v7771
    %v7773 = vmul.f32 %v7754, 1.442695
    %v7774 = vpow.pop %v7773
    %v7775 = vmul.f32 %v7755, 1.442695
    %v7776 = vpow.pop %v7775
    %v7777 = vmul.f32 %v7756, 1.442695
    %v7778 = vpow.pop %v7777
    %v7779 = vmul.f32 %v7757, 1.442695
    %v7780 = vpow.pop %v7779
    %v7781 = vmul.f32 %v7758, 1.442695
    %v7782 = vpow.pop %v7781
    %v7783 = vmul.f32 %v7759, 1.442695
    %v7784 = vpow.pop %v7783
    %v7785 = vmul.f32 %v7760, 1.442695
    %v7786 = vpow.pop %v7785
    %v7787 = vmul.f32 %v7761, 1.442695
    %v7788 = vpow.pop %v7787
    %v7789 = vmul.f32 %v7762, 1.442695
    %v7790 = vpow.pop %v7789
    %v7791 = vmul.f32 %v7763, 1.442695
    %v7792 = vpow.pop %v7791
    %v7793 = vmul.f32 %v7764, 1.442695
    %v7794 = vpow.pop %v7793
    %v7795 = vmul.f32 %v7765, 1.442695
    %v7796 = vpow.pop %v7795
    %v7797 = vmul.f32 %v7766, 1.442695
    %v7798 = vpow.pop %v7797
    %v7799 = vadd.f32 %v7768, 1.0
    %v7800 = vadd.f32 %v7770, 1.0
    %v7801 = vadd.f32 %v7772, 1.0
    %v7802 = vadd.f32 %v7774, 1.0
    %v7803 = vadd.f32 %v7776, 1.0
    %v7804 = vadd.f32 %v7778, 1.0
    %v7805 = vadd.f32 %v7780, 1.0
    %v7806 = vadd.f32 %v7782, 1.0
    %v7807 = vadd.f32 %v7784, 1.0
    %v7808 = vadd.f32 %v7786, 1.0
    %v7809 = vadd.f32 %v7788, 1.0
    %v7810 = vadd.f32 %v7790, 1.0
    %v7811 = vadd.f32 %v7792, 1.0
    %v7812 = vadd.f32 %v7794, 1.0
    %v7813 = vadd.f32 %v7796, 1.0
    %v7814 = vadd.f32 %v7798, 1.0
    %v7815 = vrcp.pop %v7799
    %v7816 = vmul.f32 1.0, %v7815
    %v7817 = vrcp.pop %v7800
    %v7818 = vmul.f32 1.0, %v7817
    %v7819 = vrcp.pop %v7801
    %v7820 = vmul.f32 1.0, %v7819
    %v7821 = vrcp.pop %v7802
    %v7822 = vmul.f32 1.0, %v7821
    %v7823 = vrcp.pop %v7803
    %v7824 = vmul.f32 1.0, %v7823
    %v7825 = vrcp.pop %v7804
    %v7826 = vmul.f32 1.0, %v7825
    %v7827 = vrcp.pop %v7805
    %v7828 = vmul.f32 1.0, %v7827
    %v7829 = vrcp.pop %v7806
    %v7830 = vmul.f32 1.0, %v7829
    %v7831 = vrcp.pop %v7807
    %v7832 = vmul.f32 1.0, %v7831
    %v7833 = vrcp.pop %v7808
    %v7834 = vmul.f32 1.0, %v7833
    %v7835 = vrcp.pop %v7809
    %v7836 = vmul.f32 1.0, %v7835
    %v7837 = vrcp.pop %v7810
    %v7838 = vmul.f32 1.0, %v7837
    %v7839 = vrcp.pop %v7811
    %v7840 = vmul.f32 1.0, %v7839
    %v7841 = vrcp.pop %v7812
    %v7842 = vmul.f32 1.0, %v7841
    %v7843 = vrcp.pop %v7813
    %v7844 = vmul.f32 1.0, %v7843
    %v7845 = vrcp.pop %v7814
    %v7846 = vmul.f32 1.0, %v7845
    %v7847 = vmul.f32 %v7673, %v7816
    %v7848 = vmul.f32 %v7678, %v7818
    %v7849 = vmul.f32 %v7683, %v7820
    %v7850 = vmul.f32 %v7688, %v7822
    %v7851 = vmul.f32 %v7693, %v7824
    %v7852 = vmul.f32 %v7698, %v7826
    %v7853 = vmul.f32 %v7703, %v7828
    %v7854 = vmul.f32 %v7708, %v7830
    %v7855 = vmul.f32 %v7713, %v7832
    %v7856 = vmul.f32 %v7718, %v7834
    %v7857 = vmul.f32 %v7723, %v7836
    %v7858 = vmul.f32 %v7728, %v7838
    %v7859 = vmul.f32 %v7733, %v7840
    %v7860 = vmul.f32 %v7738, %v7842
    %v7861 = vmul.f32 %v7743, %v7844
    %v7862 = vmul.f32 %v7748, %v7846
    %v7863 = vsel %vm250, %v7847, 0.0
    %7864 = vadd.xlane.f32.xlu0 %v7863
    %v7865 = vpop.xlane.xlu0 %7864
    %v7866 = vsel %vm250, %v7848, 0.0
    %7867 = vadd.xlane.f32.xlu0 %v7866
    %v7868 = vpop.xlane.xlu0 %7867
    %v7869 = vsel %vm250, %v7849, 0.0
    %7870 = vadd.xlane.f32.xlu0 %v7869
    %v7871 = vpop.xlane.xlu0 %7870
    %v7872 = vsel %vm250, %v7850, 0.0
    %7873 = vadd.xlane.f32.xlu0 %v7872
    %v7874 = vpop.xlane.xlu0 %7873
    %v7875 = vsel %vm250, %v7851, 0.0
    %7876 = vadd.xlane.f32.xlu0 %v7875
    %v7877 = vpop.xlane.xlu0 %7876
    %v7878 = vsel %vm250, %v7852, 0.0
    %7879 = vadd.xlane.f32.xlu0 %v7878
    %v7880 = vpop.xlane.xlu0 %7879
    %v7881 = vsel %vm250, %v7853, 0.0
    %7882 = vadd.xlane.f32.xlu0 %v7881
    %v7883 = vpop.xlane.xlu0 %7882
    %v7884 = vsel %vm250, %v7854, 0.0
    %7885 = vadd.xlane.f32.xlu0 %v7884
    %v7886 = vpop.xlane.xlu0 %7885
    %v7887 = vsel %vm250, %v7855, 0.0
    %7888 = vadd.xlane.f32.xlu0 %v7887
    %v7889 = vpop.xlane.xlu0 %7888
    %v7890 = vsel %vm250, %v7856, 0.0
    %7891 = vadd.xlane.f32.xlu0 %v7890
    %v7892 = vpop.xlane.xlu0 %7891
    %v7893 = vsel %vm250, %v7857, 0.0
    %7894 = vadd.xlane.f32.xlu0 %v7893
    %v7895 = vpop.xlane.xlu0 %7894
    %v7896 = vsel %vm250, %v7858, 0.0
    %7897 = vadd.xlane.f32.xlu0 %v7896
    %v7898 = vpop.xlane.xlu0 %7897
    %v7899 = vsel %vm250, %v7859, 0.0
    %7900 = vadd.xlane.f32.xlu0 %v7899
    %v7901 = vpop.xlane.xlu0 %7900
    %v7902 = vsel %vm250, %v7860, 0.0
    %7903 = vadd.xlane.f32.xlu0 %v7902
    %v7904 = vpop.xlane.xlu0 %7903
    %v7905 = vsel %vm250, %v7861, 0.0
    %7906 = vadd.xlane.f32.xlu0 %v7905
    %v7907 = vpop.xlane.xlu0 %7906
    %v7908 = vsel %vm250, %v7862, 0.0
    %7909 = vadd.xlane.f32.xlu0 %v7908
    %v7910 = vpop.xlane.xlu0 %7909
    %v7911 = vmul.f32 %v7865, 0.03125
    %v7912 = vmul.f32 %v7868, 0.03125
    %v7913 = vmul.f32 %v7871, 0.03125
    %v7914 = vmul.f32 %v7874, 0.03125
    %v7915 = vmul.f32 %v7877, 0.03125
    %v7916 = vmul.f32 %v7880, 0.03125
    %v7917 = vmul.f32 %v7883, 0.03125
    %v7918 = vmul.f32 %v7886, 0.03125
    %v7919 = vmul.f32 %v7889, 0.03125
    %v7920 = vmul.f32 %v7892, 0.03125
    %v7921 = vmul.f32 %v7895, 0.03125
    %v7922 = vmul.f32 %v7898, 0.03125
    %v7923 = vmul.f32 %v7901, 0.03125
    %v7924 = vmul.f32 %v7904, 0.03125
    %v7925 = vmul.f32 %v7907, 0.03125
    %v7926 = vmul.f32 %v7910, 0.03125
    %v7927 = vmul.f32 %v7847, %v7847
    %v7928 = vmul.f32 %v7848, %v7848
    %v7929 = vmul.f32 %v7849, %v7849
    %v7930 = vmul.f32 %v7850, %v7850
    %v7931 = vmul.f32 %v7851, %v7851
    %v7932 = vmul.f32 %v7852, %v7852
    %v7933 = vmul.f32 %v7853, %v7853
    %v7934 = vmul.f32 %v7854, %v7854
    %v7935 = vmul.f32 %v7855, %v7855
    %v7936 = vmul.f32 %v7856, %v7856
    %v7937 = vmul.f32 %v7857, %v7857
    %v7938 = vmul.f32 %v7858, %v7858
    %v7939 = vmul.f32 %v7859, %v7859
    %v7940 = vmul.f32 %v7860, %v7860
    %v7941 = vmul.f32 %v7861, %v7861
    %v7942 = vmul.f32 %v7862, %v7862
    %v7943 = vsel %vm250, %v7927, 0.0
    %7944 = vadd.xlane.f32.xlu0 %v7943
    %v7945 = vpop.xlane.xlu0 %7944
    %v7946 = vsel %vm250, %v7928, 0.0
    %7947 = vadd.xlane.f32.xlu0 %v7946
    %v7948 = vpop.xlane.xlu0 %7947
    %v7949 = vsel %vm250, %v7929, 0.0
    %7950 = vadd.xlane.f32.xlu0 %v7949
    %v7951 = vpop.xlane.xlu0 %7950
    %v7952 = vsel %vm250, %v7930, 0.0
    %7953 = vadd.xlane.f32.xlu0 %v7952
    %v7954 = vpop.xlane.xlu0 %7953
    %v7955 = vsel %vm250, %v7931, 0.0
    %7956 = vadd.xlane.f32.xlu0 %v7955
    %v7957 = vpop.xlane.xlu0 %7956
    %v7958 = vsel %vm250, %v7932, 0.0
    %7959 = vadd.xlane.f32.xlu0 %v7958
    %v7960 = vpop.xlane.xlu0 %7959
    %v7961 = vsel %vm250, %v7933, 0.0
    %7962 = vadd.xlane.f32.xlu0 %v7961
    %v7963 = vpop.xlane.xlu0 %7962
    %v7964 = vsel %vm250, %v7934, 0.0
    %7965 = vadd.xlane.f32.xlu0 %v7964
    %v7966 = vpop.xlane.xlu0 %7965
    %v7967 = vsel %vm250, %v7935, 0.0
    %7968 = vadd.xlane.f32.xlu0 %v7967
    %v7969 = vpop.xlane.xlu0 %7968
    %v7970 = vsel %vm250, %v7936, 0.0
    %7971 = vadd.xlane.f32.xlu0 %v7970
    %v7972 = vpop.xlane.xlu0 %7971
    %v7973 = vsel %vm250, %v7937, 0.0
    %7974 = vadd.xlane.f32.xlu0 %v7973
    %v7975 = vpop.xlane.xlu0 %7974
    %v7976 = vsel %vm250, %v7938, 0.0
    %7977 = vadd.xlane.f32.xlu0 %v7976
    %v7978 = vpop.xlane.xlu0 %7977
    %v7979 = vsel %vm250, %v7939, 0.0
    %7980 = vadd.xlane.f32.xlu0 %v7979
    %v7981 = vpop.xlane.xlu0 %7980
    %v7982 = vsel %vm250, %v7940, 0.0
    %7983 = vadd.xlane.f32.xlu0 %v7982
    %v7984 = vpop.xlane.xlu0 %7983
    %v7985 = vsel %vm250, %v7941, 0.0
    %7986 = vadd.xlane.f32.xlu0 %v7985
    %v7987 = vpop.xlane.xlu0 %7986
    %v7988 = vsel %vm250, %v7942, 0.0
    %7989 = vadd.xlane.f32.xlu0 %v7988
    %v7990 = vpop.xlane.xlu0 %7989
    %v7991 = vmul.f32 %v7945, 0.03125
    %v7992 = vmul.f32 %v7948, 0.03125
    %v7993 = vmul.f32 %v7951, 0.03125
    %v7994 = vmul.f32 %v7954, 0.03125
    %v7995 = vmul.f32 %v7957, 0.03125
    %v7996 = vmul.f32 %v7960, 0.03125
    %v7997 = vmul.f32 %v7963, 0.03125
    %v7998 = vmul.f32 %v7966, 0.03125
    %v7999 = vmul.f32 %v7969, 0.03125
    %v8000 = vmul.f32 %v7972, 0.03125
    %v8001 = vmul.f32 %v7975, 0.03125
    %v8002 = vmul.f32 %v7978, 0.03125
    %v8003 = vmul.f32 %v7981, 0.03125
    %v8004 = vmul.f32 %v7984, 0.03125
    %v8005 = vmul.f32 %v7987, 0.03125
    %v8006 = vmul.f32 %v7990, 0.03125
    %8007 = vmatprep.subr.mxu0 0.0
    %8008 = vmatpush1.msra.mxu0 %v7926
    %8009 = vmatprep.subr.mxu0 0.0
    %8010 = vmatpush1.msra.mxu0 %v7925
    %8011 = vmatprep.subr.mxu0 0.0
    %8012 = vmatpush1.msra.mxu0 %v7924
    %8013 = vmatprep.subr.mxu0 0.0
    %8014 = vmatpush1.msra.mxu0 %v7923
    %8015 = vmatprep.subr.mxu0 0.0
    %8016 = vmatpush1.msra.mxu0 %v7922
    %8017 = vmatprep.subr.mxu0 0.0
    %8018 = vmatpush1.msra.mxu0 %v7921
    %8019 = vmatprep.subr.mxu0 0.0
    %8020 = vmatpush1.msra.mxu0 %v7920
    %8021 = vmatprep.subr.mxu0 0.0
    %8022 = vmatpush1.msra.mxu0 %v7919
    %8023 = vmatprep.subr.mxu0 0.0
    %8024 = vmatpush1.msra.mxu0 %v7918
    %8025 = vmatprep.subr.mxu0 0.0
    %8026 = vmatpush1.msra.mxu0 %v7917
    %8027 = vmatprep.subr.mxu0 0.0
    %8028 = vmatpush1.msra.mxu0 %v7916
    %8029 = vmatprep.subr.mxu0 0.0
    %8030 = vmatpush1.msra.mxu0 %v7915
    %8031 = vmatprep.subr.mxu0 0.0
    %8032 = vmatpush1.msra.mxu0 %v7914
    %8033 = vmatprep.subr.mxu0 0.0
    %8034 = vmatpush1.msra.mxu0 %v7913
    %8035 = vmatprep.subr.mxu0 0.0
    %8036 = vmatpush1.msra.mxu0 %v7912
    %8037 = vmatprep.subr.mxu0 0.0
    %8038 = vmatpush1.msra.mxu0 %v7911
    %8039 = vmatprep.subr.mxu0 0.0
    %8040 = vmatpush2.msra.mxu0 0.0
    %8041 = vmatprep.subr.mxu0 0.0
    %8042 = vmatpush2.msra.mxu0 0.0
    %8043 = vmatprep.subr.mxu0 0.0
    %8044 = vmatpush2.msra.mxu0 0.0
    %8045 = vmatprep.subr.mxu0 0.0
    %8046 = vmatpush2.msra.mxu0 0.0
    %8047 = vmatprep.subr.mxu0 0.0
    %8048 = vmatpush2.msra.mxu0 0.0
    %8049 = vmatprep.subr.mxu0 0.0
    %8050 = vmatpush2.msra.mxu0 0.0
    %8051 = vmatprep.subr.mxu0 0.0
    %8052 = vmatpush2.msra.mxu0 0.0
    %8053 = vmatprep.subr.mxu0 0.0
    %8054 = vmatpush2.msra.mxu0 0.0
    %8055 = vmatprep.subr.mxu0 0.0
    %8056 = vmatpush2.msra.mxu0 0.0
    %8057 = vmatprep.subr.mxu0 0.0
    %8058 = vmatpush2.msra.mxu0 0.0
    %8059 = vmatprep.subr.mxu0 0.0
    %8060 = vmatpush2.msra.mxu0 0.0
    %8061 = vmatprep.subr.mxu0 0.0
    %8062 = vmatpush2.msra.mxu0 0.0
    %8063 = vmatprep.subr.mxu0 0.0
    %8064 = vmatpush2.msra.mxu0 0.0
    %8065 = vmatprep.subr.mxu0 0.0
    %8066 = vmatpush2.msra.mxu0 0.0
    %8067 = vmatprep.subr.mxu0 0.0
    %8068 = vmatpush2.msra.mxu0 0.0
    %8069 = vmatprep.subr.mxu0 0.0
    %8070 = vmatpush2.msra.mxu0 0.0
    %8071 = vmatprep.mubr.f32.mxu0 0.0
    %8072 = vmatmul.mubr.f32.gmra.mxu0 %v1072
    %v8073 = vpop.f32.mrf.mxu0
    %v8074 = vadd.f32 0.0, %v8073
    %v8075 = vpop.f32.mrf.mxu0
    %8076 = vmatprep.mubr.f32.mxu0 0.0
    %8077 = vmatmul.mubr.f32.gmra.mxu0 %v1073
    %v8078 = vpop.f32.mrf.mxu0
    %v8079 = vadd.f32 0.0, %v8078
    %v8080 = vpop.f32.mrf.mxu0
    %8081 = vmatprep.mubr.f32.mxu0 0.0
    %8082 = vmatmul.mubr.f32.gmra.mxu0 %v1074
    %v8083 = vpop.f32.mrf.mxu0
    %v8084 = vadd.f32 0.0, %v8083
    %v8085 = vpop.f32.mrf.mxu0
    %8086 = vmatprep.mubr.f32.mxu0 0.0
    %8087 = vmatmul.mubr.f32.gmra.mxu0 %v1075
    %v8088 = vpop.f32.mrf.mxu0
    %v8089 = vadd.f32 0.0, %v8088
    %v8090 = vpop.f32.mrf.mxu0
    %8091 = vmatprep.mubr.f32.mxu0 0.0
    %8092 = vmatmul.mubr.f32.gmra.mxu0 %v1076
    %v8093 = vpop.f32.mrf.mxu0
    %v8094 = vadd.f32 0.0, %v8093
    %v8095 = vpop.f32.mrf.mxu0
    %8096 = vmatprep.mubr.f32.mxu0 0.0
    %8097 = vmatmul.mubr.f32.gmra.mxu0 %v1077
    %v8098 = vpop.f32.mrf.mxu0
    %v8099 = vadd.f32 0.0, %v8098
    %v8100 = vpop.f32.mrf.mxu0
    %8101 = vmatprep.mubr.f32.mxu0 0.0
    %8102 = vmatmul.mubr.f32.gmra.mxu0 %v1078
    %v8103 = vpop.f32.mrf.mxu0
    %v8104 = vadd.f32 0.0, %v8103
    %v8105 = vpop.f32.mrf.mxu0
    %8106 = vmatprep.mubr.f32.mxu0 0.0
    %8107 = vmatmul.mubr.f32.gmra.mxu0 %v1079
    %v8108 = vpop.f32.mrf.mxu0
    %v8109 = vadd.f32 0.0, %v8108
    %v8110 = vpop.f32.mrf.mxu0
    %8111 = vmatprep.mubr.f32.mxu0 0.0
    %8112 = vmatmul.mubr.f32.gmra.mxu0 %v1080
    %v8113 = vpop.f32.mrf.mxu0
    %v8114 = vadd.f32 0.0, %v8113
    %v8115 = vpop.f32.mrf.mxu0
    %8116 = vmatprep.mubr.f32.mxu0 0.0
    %8117 = vmatmul.mubr.f32.gmra.mxu0 %v1081
    %v8118 = vpop.f32.mrf.mxu0
    %v8119 = vadd.f32 0.0, %v8118
    %v8120 = vpop.f32.mrf.mxu0
    %8121 = vmatprep.mubr.f32.mxu0 0.0
    %8122 = vmatmul.mubr.f32.gmra.mxu0 %v1082
    %v8123 = vpop.f32.mrf.mxu0
    %v8124 = vadd.f32 0.0, %v8123
    %v8125 = vpop.f32.mrf.mxu0
    %8126 = vmatprep.mubr.f32.mxu0 0.0
    %8127 = vmatmul.mubr.f32.gmra.mxu0 %v1083
    %v8128 = vpop.f32.mrf.mxu0
    %v8129 = vadd.f32 0.0, %v8128
    %v8130 = vpop.f32.mrf.mxu0
    %8131 = vmatprep.mubr.f32.mxu0 0.0
    %8132 = vmatmul.mubr.f32.gmra.mxu0 %v1084
    %v8133 = vpop.f32.mrf.mxu0
    %v8134 = vadd.f32 0.0, %v8133
    %v8135 = vpop.f32.mrf.mxu0
    %8136 = vmatprep.mubr.f32.mxu0 0.0
    %8137 = vmatmul.mubr.f32.gmra.mxu0 %v1085
    %v8138 = vpop.f32.mrf.mxu0
    %v8139 = vadd.f32 0.0, %v8138
    %v8140 = vpop.f32.mrf.mxu0
    %8141 = vmatprep.mubr.f32.mxu0 0.0
    %8142 = vmatmul.mubr.f32.gmra.mxu0 %v1086
    %v8143 = vpop.f32.mrf.mxu0
    %v8144 = vadd.f32 0.0, %v8143
    %v8145 = vpop.f32.mrf.mxu0
    %8146 = vmatprep.mubr.f32.mxu0 0.0
    %8147 = vmatmul.mubr.f32.gmra.mxu0 %v1087
    %v8148 = vpop.f32.mrf.mxu0
    %v8149 = vadd.f32 0.0, %v8148
    %v8150 = vpop.f32.mrf.mxu0
    %8151 = vdwg.mxu0
    %8152 = vmatprep.subr.mxu0 0.0
    %8153 = vmatpush1.msra.mxu0 %v8006
    %8154 = vmatprep.subr.mxu0 0.0
    %8155 = vmatpush1.msra.mxu0 %v8005
    %8156 = vmatprep.subr.mxu0 0.0
    %8157 = vmatpush1.msra.mxu0 %v8004
    %8158 = vmatprep.subr.mxu0 0.0
    %8159 = vmatpush1.msra.mxu0 %v8003
    %8160 = vmatprep.subr.mxu0 0.0
    %8161 = vmatpush1.msra.mxu0 %v8002
    %8162 = vmatprep.subr.mxu0 0.0
    %8163 = vmatpush1.msra.mxu0 %v8001
    %8164 = vmatprep.subr.mxu0 0.0
    %8165 = vmatpush1.msra.mxu0 %v8000
    %8166 = vmatprep.subr.mxu0 0.0
    %8167 = vmatpush1.msra.mxu0 %v7999
    %8168 = vmatprep.subr.mxu0 0.0
    %8169 = vmatpush1.msra.mxu0 %v7998
    %8170 = vmatprep.subr.mxu0 0.0
    %8171 = vmatpush1.msra.mxu0 %v7997
    %8172 = vmatprep.subr.mxu0 0.0
    %8173 = vmatpush1.msra.mxu0 %v7996
    %8174 = vmatprep.subr.mxu0 0.0
    %8175 = vmatpush1.msra.mxu0 %v7995
    %8176 = vmatprep.subr.mxu0 0.0
    %8177 = vmatpush1.msra.mxu0 %v7994
    %8178 = vmatprep.subr.mxu0 0.0
    %8179 = vmatpush1.msra.mxu0 %v7993
    %8180 = vmatprep.subr.mxu0 0.0
    %8181 = vmatpush1.msra.mxu0 %v7992
    %8182 = vmatprep.subr.mxu0 0.0
    %8183 = vmatpush1.msra.mxu0 %v7991
    %8184 = vmatprep.subr.mxu0 0.0
    %8185 = vmatpush2.msra.mxu0 0.0
    %8186 = vmatprep.subr.mxu0 0.0
    %8187 = vmatpush2.msra.mxu0 0.0
    %8188 = vmatprep.subr.mxu0 0.0
    %8189 = vmatpush2.msra.mxu0 0.0
    %8190 = vmatprep.subr.mxu0 0.0
    %8191 = vmatpush2.msra.mxu0 0.0
    %8192 = vmatprep.subr.mxu0 0.0
    %8193 = vmatpush2.msra.mxu0 0.0
    %8194 = vmatprep.subr.mxu0 0.0
    %8195 = vmatpush2.msra.mxu0 0.0
    %8196 = vmatprep.subr.mxu0 0.0
    %8197 = vmatpush2.msra.mxu0 0.0
    %8198 = vmatprep.subr.mxu0 0.0
    %8199 = vmatpush2.msra.mxu0 0.0
    %8200 = vmatprep.subr.mxu0 0.0
    %8201 = vmatpush2.msra.mxu0 0.0
    %8202 = vmatprep.subr.mxu0 0.0
    %8203 = vmatpush2.msra.mxu0 0.0
    %8204 = vmatprep.subr.mxu0 0.0
    %8205 = vmatpush2.msra.mxu0 0.0
    %8206 = vmatprep.subr.mxu0 0.0
    %8207 = vmatpush2.msra.mxu0 0.0
    %8208 = vmatprep.subr.mxu0 0.0
    %8209 = vmatpush2.msra.mxu0 0.0
    %8210 = vmatprep.subr.mxu0 0.0
    %8211 = vmatpush2.msra.mxu0 0.0
    %8212 = vmatprep.subr.mxu0 0.0
    %8213 = vmatpush2.msra.mxu0 0.0
    %8214 = vmatprep.subr.mxu0 0.0
    %8215 = vmatpush2.msra.mxu0 0.0
    %8216 = vmatprep.mubr.f32.mxu0 0.0
    %8217 = vmatmul.mubr.f32.gmra.mxu0 %v1072
    %v8218 = vpop.f32.mrf.mxu0
    %v8219 = vadd.f32 0.0, %v8218
    %v8220 = vpop.f32.mrf.mxu0
    %8221 = vmatprep.mubr.f32.mxu0 0.0
    %8222 = vmatmul.mubr.f32.gmra.mxu0 %v1073
    %v8223 = vpop.f32.mrf.mxu0
    %v8224 = vadd.f32 0.0, %v8223
    %v8225 = vpop.f32.mrf.mxu0
    %8226 = vmatprep.mubr.f32.mxu0 0.0
    %8227 = vmatmul.mubr.f32.gmra.mxu0 %v1074
    %v8228 = vpop.f32.mrf.mxu0
    %v8229 = vadd.f32 0.0, %v8228
    %v8230 = vpop.f32.mrf.mxu0
    %8231 = vmatprep.mubr.f32.mxu0 0.0
    %8232 = vmatmul.mubr.f32.gmra.mxu0 %v1075
    %v8233 = vpop.f32.mrf.mxu0
    %v8234 = vadd.f32 0.0, %v8233
    %v8235 = vpop.f32.mrf.mxu0
    %8236 = vmatprep.mubr.f32.mxu0 0.0
    %8237 = vmatmul.mubr.f32.gmra.mxu0 %v1076
    %v8238 = vpop.f32.mrf.mxu0
    %v8239 = vadd.f32 0.0, %v8238
    %v8240 = vpop.f32.mrf.mxu0
    %8241 = vmatprep.mubr.f32.mxu0 0.0
    %8242 = vmatmul.mubr.f32.gmra.mxu0 %v1077
    %v8243 = vpop.f32.mrf.mxu0
    %v8244 = vadd.f32 0.0, %v8243
    %v8245 = vpop.f32.mrf.mxu0
    %8246 = vmatprep.mubr.f32.mxu0 0.0
    %8247 = vmatmul.mubr.f32.gmra.mxu0 %v1078
    %v8248 = vpop.f32.mrf.mxu0
    %v8249 = vadd.f32 0.0, %v8248
    %v8250 = vpop.f32.mrf.mxu0
    %8251 = vmatprep.mubr.f32.mxu0 0.0
    %8252 = vmatmul.mubr.f32.gmra.mxu0 %v1079
    %v8253 = vpop.f32.mrf.mxu0
    %v8254 = vadd.f32 0.0, %v8253
    %v8255 = vpop.f32.mrf.mxu0
    %8256 = vmatprep.mubr.f32.mxu0 0.0
    %8257 = vmatmul.mubr.f32.gmra.mxu0 %v1080
    %v8258 = vpop.f32.mrf.mxu0
    %v8259 = vadd.f32 0.0, %v8258
    %v8260 = vpop.f32.mrf.mxu0
    %8261 = vmatprep.mubr.f32.mxu0 0.0
    %8262 = vmatmul.mubr.f32.gmra.mxu0 %v1081
    %v8263 = vpop.f32.mrf.mxu0
    %v8264 = vadd.f32 0.0, %v8263
    %v8265 = vpop.f32.mrf.mxu0
    %8266 = vmatprep.mubr.f32.mxu0 0.0
    %8267 = vmatmul.mubr.f32.gmra.mxu0 %v1082
    %v8268 = vpop.f32.mrf.mxu0
    %v8269 = vadd.f32 0.0, %v8268
    %v8270 = vpop.f32.mrf.mxu0
    %8271 = vmatprep.mubr.f32.mxu0 0.0
    %8272 = vmatmul.mubr.f32.gmra.mxu0 %v1083
    %v8273 = vpop.f32.mrf.mxu0
    %v8274 = vadd.f32 0.0, %v8273
    %v8275 = vpop.f32.mrf.mxu0
    %8276 = vmatprep.mubr.f32.mxu0 0.0
    %8277 = vmatmul.mubr.f32.gmra.mxu0 %v1084
    %v8278 = vpop.f32.mrf.mxu0
    %v8279 = vadd.f32 0.0, %v8278
    %v8280 = vpop.f32.mrf.mxu0
    %8281 = vmatprep.mubr.f32.mxu0 0.0
    %8282 = vmatmul.mubr.f32.gmra.mxu0 %v1085
    %v8283 = vpop.f32.mrf.mxu0
    %v8284 = vadd.f32 0.0, %v8283
    %v8285 = vpop.f32.mrf.mxu0
    %8286 = vmatprep.mubr.f32.mxu0 0.0
    %8287 = vmatmul.mubr.f32.gmra.mxu0 %v1086
    %v8288 = vpop.f32.mrf.mxu0
    %v8289 = vadd.f32 0.0, %v8288
    %v8290 = vpop.f32.mrf.mxu0
    %8291 = vmatprep.mubr.f32.mxu0 0.0
    %8292 = vmatmul.mubr.f32.gmra.mxu0 %v1087
    %v8293 = vpop.f32.mrf.mxu0
    %v8294 = vadd.f32 0.0, %v8293
    %v8295 = vpop.f32.mrf.mxu0
    %8296 = vdwg.mxu0
    %v8297 = vmul.f32 %v8074, %v8074
    %v8298 = vmul.f32 %v8079, %v8079
    %v8299 = vmul.f32 %v8084, %v8084
    %v8300 = vmul.f32 %v8089, %v8089
    %v8301 = vmul.f32 %v8094, %v8094
    %v8302 = vmul.f32 %v8099, %v8099
    %v8303 = vmul.f32 %v8104, %v8104
    %v8304 = vmul.f32 %v8109, %v8109
    %v8305 = vmul.f32 %v8114, %v8114
    %v8306 = vmul.f32 %v8119, %v8119
    %v8307 = vmul.f32 %v8124, %v8124
    %v8308 = vmul.f32 %v8129, %v8129
    %v8309 = vmul.f32 %v8134, %v8134
    %v8310 = vmul.f32 %v8139, %v8139
    %v8311 = vmul.f32 %v8144, %v8144
    %v8312 = vmul.f32 %v8149, %v8149
    %v8313 = vsub.f32 %v8219, %v8297
    %v8314 = vsub.f32 %v8224, %v8298
    %v8315 = vsub.f32 %v8229, %v8299
    %v8316 = vsub.f32 %v8234, %v8300
    %v8317 = vsub.f32 %v8239, %v8301
    %v8318 = vsub.f32 %v8244, %v8302
    %v8319 = vsub.f32 %v8249, %v8303
    %v8320 = vsub.f32 %v8254, %v8304
    %v8321 = vsub.f32 %v8259, %v8305
    %v8322 = vsub.f32 %v8264, %v8306
    %v8323 = vsub.f32 %v8269, %v8307
    %v8324 = vsub.f32 %v8274, %v8308
    %v8325 = vsub.f32 %v8279, %v8309
    %v8326 = vsub.f32 %v8284, %v8310
    %v8327 = vsub.f32 %v8289, %v8311
    %v8328 = vsub.f32 %v8294, %v8312
    %8330 = vset.pattern.permute.xlu0 0
    %8331 = vperm.xlu0 %8330, %v8074
    %v8332 = vpop.permute.xlu0 %8331
    %8335 = vset.pattern.permute.xlu0 0
    %8336 = vperm.xlu0 %8335, %v8079
    %v8337 = vpop.permute.xlu0 %8336
    %8340 = vset.pattern.permute.xlu0 0
    %8341 = vperm.xlu0 %8340, %v8084
    %v8342 = vpop.permute.xlu0 %8341
    %8345 = vset.pattern.permute.xlu0 0
    %8346 = vperm.xlu0 %8345, %v8089
    %v8347 = vpop.permute.xlu0 %8346
    %8350 = vset.pattern.permute.xlu0 0
    %8351 = vperm.xlu0 %8350, %v8094
    %v8352 = vpop.permute.xlu0 %8351
    %8355 = vset.pattern.permute.xlu0 0
    %8356 = vperm.xlu0 %8355, %v8099
    %v8357 = vpop.permute.xlu0 %8356
    %8360 = vset.pattern.permute.xlu0 0
    %8361 = vperm.xlu0 %8360, %v8104
    %v8362 = vpop.permute.xlu0 %8361
    %8365 = vset.pattern.permute.xlu0 0
    %8366 = vperm.xlu0 %8365, %v8109
    %v8367 = vpop.permute.xlu0 %8366
    %8370 = vset.pattern.permute.xlu0 0
    %8371 = vperm.xlu0 %8370, %v8114
    %v8372 = vpop.permute.xlu0 %8371
    %8375 = vset.pattern.permute.xlu0 0
    %8376 = vperm.xlu0 %8375, %v8119
    %v8377 = vpop.permute.xlu0 %8376
    %8380 = vset.pattern.permute.xlu0 0
    %8381 = vperm.xlu0 %8380, %v8124
    %v8382 = vpop.permute.xlu0 %8381
    %8385 = vset.pattern.permute.xlu0 0
    %8386 = vperm.xlu0 %8385, %v8129
    %v8387 = vpop.permute.xlu0 %8386
    %8390 = vset.pattern.permute.xlu0 0
    %8391 = vperm.xlu0 %8390, %v8134
    %v8392 = vpop.permute.xlu0 %8391
    %8395 = vset.pattern.permute.xlu0 0
    %8396 = vperm.xlu0 %8395, %v8139
    %v8397 = vpop.permute.xlu0 %8396
    %8400 = vset.pattern.permute.xlu0 0
    %8401 = vperm.xlu0 %8400, %v8144
    %v8402 = vpop.permute.xlu0 %8401
    %8405 = vset.pattern.permute.xlu0 0
    %8406 = vperm.xlu0 %8405, %v8149
    %v8407 = vpop.permute.xlu0 %8406
    %v8409 = vsub.f32 %v7847, %v8332
    %v8410 = vsub.f32 %v7848, %v8337
    %v8411 = vsub.f32 %v7849, %v8342
    %v8412 = vsub.f32 %v7850, %v8347
    %v8413 = vsub.f32 %v7851, %v8352
    %v8414 = vsub.f32 %v7852, %v8357
    %v8415 = vsub.f32 %v7853, %v8362
    %v8416 = vsub.f32 %v7854, %v8367
    %v8417 = vsub.f32 %v7855, %v8372
    %v8418 = vsub.f32 %v7856, %v8377
    %v8419 = vsub.f32 %v7857, %v8382
    %v8420 = vsub.f32 %v7858, %v8387
    %v8421 = vsub.f32 %v7859, %v8392
    %v8422 = vsub.f32 %v7860, %v8397
    %v8423 = vsub.f32 %v7861, %v8402
    %v8424 = vsub.f32 %v7862, %v8407
    %v8425 = vadd.f32 %v8313, 1e-05
    %v8426 = vadd.f32 %v8314, 1e-05
    %v8427 = vadd.f32 %v8315, 1e-05
    %v8428 = vadd.f32 %v8316, 1e-05
    %v8429 = vadd.f32 %v8317, 1e-05
    %v8430 = vadd.f32 %v8318, 1e-05
    %v8431 = vadd.f32 %v8319, 1e-05
    %v8432 = vadd.f32 %v8320, 1e-05
    %v8433 = vadd.f32 %v8321, 1e-05
    %v8434 = vadd.f32 %v8322, 1e-05
    %v8435 = vadd.f32 %v8323, 1e-05
    %v8436 = vadd.f32 %v8324, 1e-05
    %v8437 = vadd.f32 %v8325, 1e-05
    %v8438 = vadd.f32 %v8326, 1e-05
    %v8439 = vadd.f32 %v8327, 1e-05
    %v8440 = vadd.f32 %v8328, 1e-05
    %v8441 = vrsqrt.pop %v8425
    %v8442 = vrsqrt.pop %v8426
    %v8443 = vrsqrt.pop %v8427
    %v8444 = vrsqrt.pop %v8428
    %v8445 = vrsqrt.pop %v8429
    %v8446 = vrsqrt.pop %v8430
    %v8447 = vrsqrt.pop %v8431
    %v8448 = vrsqrt.pop %v8432
    %v8449 = vrsqrt.pop %v8433
    %v8450 = vrsqrt.pop %v8434
    %v8451 = vrsqrt.pop %v8435
    %v8452 = vrsqrt.pop %v8436
    %v8453 = vrsqrt.pop %v8437
    %v8454 = vrsqrt.pop %v8438
    %v8455 = vrsqrt.pop %v8439
    %v8456 = vrsqrt.pop %v8440
    %8458 = vset.pattern.permute.xlu0 0
    %8459 = vperm.xlu0 %8458, %v8441
    %v8460 = vpop.permute.xlu0 %8459
    %8463 = vset.pattern.permute.xlu0 0
    %8464 = vperm.xlu0 %8463, %v8442
    %v8465 = vpop.permute.xlu0 %8464
    %8468 = vset.pattern.permute.xlu0 0
    %8469 = vperm.xlu0 %8468, %v8443
    %v8470 = vpop.permute.xlu0 %8469
    %8473 = vset.pattern.permute.xlu0 0
    %8474 = vperm.xlu0 %8473, %v8444
    %v8475 = vpop.permute.xlu0 %8474
    %8478 = vset.pattern.permute.xlu0 0
    %8479 = vperm.xlu0 %8478, %v8445
    %v8480 = vpop.permute.xlu0 %8479
    %8483 = vset.pattern.permute.xlu0 0
    %8484 = vperm.xlu0 %8483, %v8446
    %v8485 = vpop.permute.xlu0 %8484
    %8488 = vset.pattern.permute.xlu0 0
    %8489 = vperm.xlu0 %8488, %v8447
    %v8490 = vpop.permute.xlu0 %8489
    %8493 = vset.pattern.permute.xlu0 0
    %8494 = vperm.xlu0 %8493, %v8448
    %v8495 = vpop.permute.xlu0 %8494
    %8498 = vset.pattern.permute.xlu0 0
    %8499 = vperm.xlu0 %8498, %v8449
    %v8500 = vpop.permute.xlu0 %8499
    %8503 = vset.pattern.permute.xlu0 0
    %8504 = vperm.xlu0 %8503, %v8450
    %v8505 = vpop.permute.xlu0 %8504
    %8508 = vset.pattern.permute.xlu0 0
    %8509 = vperm.xlu0 %8508, %v8451
    %v8510 = vpop.permute.xlu0 %8509
    %8513 = vset.pattern.permute.xlu0 0
    %8514 = vperm.xlu0 %8513, %v8452
    %v8515 = vpop.permute.xlu0 %8514
    %8518 = vset.pattern.permute.xlu0 0
    %8519 = vperm.xlu0 %8518, %v8453
    %v8520 = vpop.permute.xlu0 %8519
    %8523 = vset.pattern.permute.xlu0 0
    %8524 = vperm.xlu0 %8523, %v8454
    %v8525 = vpop.permute.xlu0 %8524
    %8528 = vset.pattern.permute.xlu0 0
    %8529 = vperm.xlu0 %8528, %v8455
    %v8530 = vpop.permute.xlu0 %8529
    %8533 = vset.pattern.permute.xlu0 0
    %8534 = vperm.xlu0 %8533, %v8456
    %v8535 = vpop.permute.xlu0 %8534
    %v8537 = vmul.f32 %v8409, %v8460
    %v8538 = vmul.f32 %v8410, %v8465
    %v8539 = vmul.f32 %v8411, %v8470
    %v8540 = vmul.f32 %v8412, %v8475
    %v8541 = vmul.f32 %v8413, %v8480
    %v8542 = vmul.f32 %v8414, %v8485
    %v8543 = vmul.f32 %v8415, %v8490
    %v8544 = vmul.f32 %v8416, %v8495
    %v8545 = vmul.f32 %v8417, %v8500
    %v8546 = vmul.f32 %v8418, %v8505
    %v8547 = vmul.f32 %v8419, %v8510
    %v8548 = vmul.f32 %v8420, %v8515
    %v8549 = vmul.f32 %v8421, %v8520
    %v8550 = vmul.f32 %v8422, %v8525
    %v8551 = vmul.f32 %v8423, %v8530
    %v8552 = vmul.f32 %v8424, %v8535
    %8553 = vset.pattern.permute.xlu0 10
    %8554 = vperm.xlu0 %8553, %v912
    %v8555 = vpop.permute.xlu0 %8554
    %8557 = vset.pattern.permute.xlu0 10
    %8558 = vperm.xlu0 %8557, %v913
    %v8559 = vpop.permute.xlu0 %8558
    %8561 = vset.pattern.permute.xlu0 10
    %8562 = vperm.xlu0 %8561, %v914
    %v8563 = vpop.permute.xlu0 %8562
    %8565 = vset.pattern.permute.xlu0 10
    %8566 = vperm.xlu0 %8565, %v915
    %v8567 = vpop.permute.xlu0 %8566
    %8569 = vset.pattern.permute.xlu0 10
    %8570 = vperm.xlu0 %8569, %v916
    %v8571 = vpop.permute.xlu0 %8570
    %8573 = vset.pattern.permute.xlu0 10
    %8574 = vperm.xlu0 %8573, %v917
    %v8575 = vpop.permute.xlu0 %8574
    %8577 = vset.pattern.permute.xlu0 10
    %8578 = vperm.xlu0 %8577, %v918
    %v8579 = vpop.permute.xlu0 %8578
    %8581 = vset.pattern.permute.xlu0 10
    %8582 = vperm.xlu0 %8581, %v919
    %v8583 = vpop.permute.xlu0 %8582
    %8585 = vset.pattern.permute.xlu0 10
    %8586 = vperm.xlu0 %8585, %v920
    %v8587 = vpop.permute.xlu0 %8586
    %8589 = vset.pattern.permute.xlu0 10
    %8590 = vperm.xlu0 %8589, %v921
    %v8591 = vpop.permute.xlu0 %8590
    %8593 = vset.pattern.permute.xlu0 10
    %8594 = vperm.xlu0 %8593, %v922
    %v8595 = vpop.permute.xlu0 %8594
    %8597 = vset.pattern.permute.xlu0 10
    %8598 = vperm.xlu0 %8597, %v923
    %v8599 = vpop.permute.xlu0 %8598
    %8601 = vset.pattern.permute.xlu0 10
    %8602 = vperm.xlu0 %8601, %v924
    %v8603 = vpop.permute.xlu0 %8602
    %8605 = vset.pattern.permute.xlu0 10
    %8606 = vperm.xlu0 %8605, %v925
    %v8607 = vpop.permute.xlu0 %8606
    %8609 = vset.pattern.permute.xlu0 10
    %8610 = vperm.xlu0 %8609, %v926
    %v8611 = vpop.permute.xlu0 %8610
    %8613 = vset.pattern.permute.xlu0 10
    %8614 = vperm.xlu0 %8613, %v927
    %v8615 = vpop.permute.xlu0 %8614
    %v8617 = vmul.f32 %v8537, %v8555
    %v8618 = vmul.f32 %v8538, %v8559
    %v8619 = vmul.f32 %v8539, %v8563
    %v8620 = vmul.f32 %v8540, %v8567
    %v8621 = vmul.f32 %v8541, %v8571
    %v8622 = vmul.f32 %v8542, %v8575
    %v8623 = vmul.f32 %v8543, %v8579
    %v8624 = vmul.f32 %v8544, %v8583
    %v8625 = vmul.f32 %v8545, %v8587
    %v8626 = vmul.f32 %v8546, %v8591
    %v8627 = vmul.f32 %v8547, %v8595
    %v8628 = vmul.f32 %v8548, %v8599
    %v8629 = vmul.f32 %v8549, %v8603
    %v8630 = vmul.f32 %v8550, %v8607
    %v8631 = vmul.f32 %v8551, %v8611
    %v8632 = vmul.f32 %v8552, %v8615
    %8633 = vset.pattern.permute.xlu0 11
    %8634 = vperm.xlu0 %8633, %v912
    %v8635 = vpop.permute.xlu0 %8634
    %8637 = vset.pattern.permute.xlu0 11
    %8638 = vperm.xlu0 %8637, %v913
    %v8639 = vpop.permute.xlu0 %8638
    %8641 = vset.pattern.permute.xlu0 11
    %8642 = vperm.xlu0 %8641, %v914
    %v8643 = vpop.permute.xlu0 %8642
    %8645 = vset.pattern.permute.xlu0 11
    %8646 = vperm.xlu0 %8645, %v915
    %v8647 = vpop.permute.xlu0 %8646
    %8649 = vset.pattern.permute.xlu0 11
    %8650 = vperm.xlu0 %8649, %v916
    %v8651 = vpop.permute.xlu0 %8650
    %8653 = vset.pattern.permute.xlu0 11
    %8654 = vperm.xlu0 %8653, %v917
    %v8655 = vpop.permute.xlu0 %8654
    %8657 = vset.pattern.permute.xlu0 11
    %8658 = vperm.xlu0 %8657, %v918
    %v8659 = vpop.permute.xlu0 %8658
    %8661 = vset.pattern.permute.xlu0 11
    %8662 = vperm.xlu0 %8661, %v919
    %v8663 = vpop.permute.xlu0 %8662
    %8665 = vset.pattern.permute.xlu0 11
    %8666 = vperm.xlu0 %8665, %v920
    %v8667 = vpop.permute.xlu0 %8666
    %8669 = vset.pattern.permute.xlu0 11
    %8670 = vperm.xlu0 %8669, %v921
    %v8671 = vpop.permute.xlu0 %8670
    %8673 = vset.pattern.permute.xlu0 11
    %8674 = vperm.xlu0 %8673, %v922
    %v8675 = vpop.permute.xlu0 %8674
    %8677 = vset.pattern.permute.xlu0 11
    %8678 = vperm.xlu0 %8677, %v923
    %v8679 = vpop.permute.xlu0 %8678
    %8681 = vset.pattern.permute.xlu0 11
    %8682 = vperm.xlu0 %8681, %v924
    %v8683 = vpop.permute.xlu0 %8682
    %8685 = vset.pattern.permute.xlu0 11
    %8686 = vperm.xlu0 %8685, %v925
    %v8687 = vpop.permute.xlu0 %8686
    %8689 = vset.pattern.permute.xlu0 11
    %8690 = vperm.xlu0 %8689, %v926
    %v8691 = vpop.permute.xlu0 %8690
    %8693 = vset.pattern.permute.xlu0 11
    %8694 = vperm.xlu0 %8693, %v927
    %v8695 = vpop.permute.xlu0 %8694
    %v8697 = vadd.f32 %v8617, %v8635
    %v8698 = vadd.f32 %v8618, %v8639
    %v8699 = vadd.f32 %v8619, %v8643
    %v8700 = vadd.f32 %v8620, %v8647
    %v8701 = vadd.f32 %v8621, %v8651
    %v8702 = vadd.f32 %v8622, %v8655
    %v8703 = vadd.f32 %v8623, %v8659
    %v8704 = vadd.f32 %v8624, %v8663
    %v8705 = vadd.f32 %v8625, %v8667
    %v8706 = vadd.f32 %v8626, %v8671
    %v8707 = vadd.f32 %v8627, %v8675
    %v8708 = vadd.f32 %v8628, %v8679
    %v8709 = vadd.f32 %v8629, %v8683
    %v8710 = vadd.f32 %v8630, %v8687
    %v8711 = vadd.f32 %v8631, %v8691
    %v8712 = vadd.f32 %v8632, %v8695
    %v8713 = vld [vmem:[#allocation10 + $0x198] sm:$0xff]
    %v8714 = vld [vmem:[#allocation10 + $0x1a0] sm:$0xff]
    %v8715 = vld [vmem:[#allocation10 + $0x1a8] sm:$0xff]
    %v8716 = vld [vmem:[#allocation10 + $0x1b0] sm:$0xff]
    %v8717 = vld [vmem:[%s7 + $0x12] sm:$0x1]
    %v8718 = vlaneseq
    %v8719 = vshrl.u32 %v8718, 7
    %v8720 = vsub.s32 0, %v8719
    %v8721 = vrot.slane %v8717, %v8720
    %v8723 = vsel %vm250, %v8697, 0
    %v8726 = vsel %vm250, %v8698, 0
    %v8729 = vsel %vm250, %v8699, 0
    %v8732 = vsel %vm250, %v8700, 0
    %v8735 = vsel %vm250, %v8701, 0
    %v8738 = vsel %vm250, %v8702, 0
    %v8741 = vsel %vm250, %v8703, 0
    %v8744 = vsel %vm250, %v8704, 0
    %v8747 = vsel %vm250, %v8705, 0
    %v8750 = vsel %vm250, %v8706, 0
    %v8753 = vsel %vm250, %v8707, 0
    %v8756 = vsel %vm250, %v8708, 0
    %v8759 = vsel %vm250, %v8709, 0
    %v8762 = vsel %vm250, %v8710, 0
    %v8765 = vsel %vm250, %v8711, 0
    %v8768 = vsel %vm250, %v8712, 0
    %8770 = vmatprep.subr.mxu0 0.0
    %8771 = vmatpush1.msra.mxu0 0.0
    %8772 = vmatprep.subr.mxu0 0.0
    %8773 = vmatpush1.msra.mxu0 0.0
    %8774 = vmatprep.subr.mxu0 0.0
    %8775 = vmatpush1.msra.mxu0 0.0
    %8776 = vmatprep.subr.mxu0 0.0
    %8777 = vmatpush1.msra.mxu0 0.0
    %8778 = vmatprep.subr.mxu0 0.0
    %8779 = vmatpush1.msra.mxu0 0.0
    %8780 = vmatprep.subr.mxu0 0.0
    %8781 = vmatpush1.msra.mxu0 0.0
    %8782 = vmatprep.subr.mxu0 0.0
    %8783 = vmatpush1.msra.mxu0 0.0
    %8784 = vmatprep.subr.mxu0 0.0
    %8785 = vmatpush1.msra.mxu0 0.0
    %8786 = vmatprep.subr.mxu0 0.0
    %8787 = vmatpush1.msra.mxu0 0.0
    %8788 = vmatprep.subr.mxu0 0.0
    %8789 = vmatpush1.msra.mxu0 0.0
    %8790 = vmatprep.subr.mxu0 0.0
    %8791 = vmatpush1.msra.mxu0 0.0
    %8792 = vmatprep.subr.mxu0 0.0
    %8793 = vmatpush1.msra.mxu0 0.0
    %8794 = vmatprep.subr.mxu0 0.0
    %8795 = vmatpush1.msra.mxu0 %v8716
    %8796 = vmatprep.subr.mxu0 0.0
    %8797 = vmatpush1.msra.mxu0 %v8715
    %8798 = vmatprep.subr.mxu0 0.0
    %8799 = vmatpush1.msra.mxu0 %v8714
    %8800 = vmatprep.subr.mxu0 0.0
    %8801 = vmatpush1.msra.mxu0 %v8713
    %8802 = vmatprep.subr.mxu0 0.0
    %8803 = vmatpush2.msra.mxu0 0.0
    %8804 = vmatprep.subr.mxu0 0.0
    %8805 = vmatpush2.msra.mxu0 0.0
    %8806 = vmatprep.subr.mxu0 0.0
    %8807 = vmatpush2.msra.mxu0 0.0
    %8808 = vmatprep.subr.mxu0 0.0
    %8809 = vmatpush2.msra.mxu0 0.0
    %8810 = vmatprep.subr.mxu0 0.0
    %8811 = vmatpush2.msra.mxu0 0.0
    %8812 = vmatprep.subr.mxu0 0.0
    %8813 = vmatpush2.msra.mxu0 0.0
    %8814 = vmatprep.subr.mxu0 0.0
    %8815 = vmatpush2.msra.mxu0 0.0
    %8816 = vmatprep.subr.mxu0 0.0
    %8817 = vmatpush2.msra.mxu0 0.0
    %8818 = vmatprep.subr.mxu0 0.0
    %8819 = vmatpush2.msra.mxu0 0.0
    %8820 = vmatprep.subr.mxu0 0.0
    %8821 = vmatpush2.msra.mxu0 0.0
    %8822 = vmatprep.subr.mxu0 0.0
    %8823 = vmatpush2.msra.mxu0 0.0
    %8824 = vmatprep.subr.mxu0 0.0
    %8825 = vmatpush2.msra.mxu0 0.0
    %8826 = vmatprep.subr.mxu0 0.0
    %8827 = vmatpush2.msra.mxu0 0.0
    %8828 = vmatprep.subr.mxu0 0.0
    %8829 = vmatpush2.msra.mxu0 0.0
    %8830 = vmatprep.subr.mxu0 0.0
    %8831 = vmatpush2.msra.mxu0 0.0
    %8832 = vmatprep.subr.mxu0 0.0
    %8833 = vmatpush2.msra.mxu0 0.0
    %8834 = vmatprep.mubr.f32.mxu0 0.0
    %8835 = vmatmul.mubr.f32.gmra.mxu0 %v8723
    %v8836 = vpop.f32.mrf.mxu0
    %v8837 = vadd.f32 %v8721, %v8836
    %v8838 = vpop.f32.mrf.mxu0
    %8839 = vmatprep.mubr.f32.mxu0 0.0
    %8840 = vmatmul.mubr.f32.gmra.mxu0 %v8726
    %v8841 = vpop.f32.mrf.mxu0
    %v8842 = vadd.f32 %v8721, %v8841
    %v8843 = vpop.f32.mrf.mxu0
    %8844 = vmatprep.mubr.f32.mxu0 0.0
    %8845 = vmatmul.mubr.f32.gmra.mxu0 %v8729
    %v8846 = vpop.f32.mrf.mxu0
    %v8847 = vadd.f32 %v8721, %v8846
    %v8848 = vpop.f32.mrf.mxu0
    %8849 = vmatprep.mubr.f32.mxu0 0.0
    %8850 = vmatmul.mubr.f32.gmra.mxu0 %v8732
    %v8851 = vpop.f32.mrf.mxu0
    %v8852 = vadd.f32 %v8721, %v8851
    %v8853 = vpop.f32.mrf.mxu0
    %8854 = vmatprep.mubr.f32.mxu0 0.0
    %8855 = vmatmul.mubr.f32.gmra.mxu0 %v8735
    %v8856 = vpop.f32.mrf.mxu0
    %v8857 = vadd.f32 %v8721, %v8856
    %v8858 = vpop.f32.mrf.mxu0
    %8859 = vmatprep.mubr.f32.mxu0 0.0
    %8860 = vmatmul.mubr.f32.gmra.mxu0 %v8738
    %v8861 = vpop.f32.mrf.mxu0
    %v8862 = vadd.f32 %v8721, %v8861
    %v8863 = vpop.f32.mrf.mxu0
    %8864 = vmatprep.mubr.f32.mxu0 0.0
    %8865 = vmatmul.mubr.f32.gmra.mxu0 %v8741
    %v8866 = vpop.f32.mrf.mxu0
    %v8867 = vadd.f32 %v8721, %v8866
    %v8868 = vpop.f32.mrf.mxu0
    %8869 = vmatprep.mubr.f32.mxu0 0.0
    %8870 = vmatmul.mubr.f32.gmra.mxu0 %v8744
    %v8871 = vpop.f32.mrf.mxu0
    %v8872 = vadd.f32 %v8721, %v8871
    %v8873 = vpop.f32.mrf.mxu0
    %8874 = vmatprep.mubr.f32.mxu0 0.0
    %8875 = vmatmul.mubr.f32.gmra.mxu0 %v8747
    %v8876 = vpop.f32.mrf.mxu0
    %v8877 = vadd.f32 %v8721, %v8876
    %v8878 = vpop.f32.mrf.mxu0
    %8879 = vmatprep.mubr.f32.mxu0 0.0
    %8880 = vmatmul.mubr.f32.gmra.mxu0 %v8750
    %v8881 = vpop.f32.mrf.mxu0
    %v8882 = vadd.f32 %v8721, %v8881
    %v8883 = vpop.f32.mrf.mxu0
    %8884 = vmatprep.mubr.f32.mxu0 0.0
    %8885 = vmatmul.mubr.f32.gmra.mxu0 %v8753
    %v8886 = vpop.f32.mrf.mxu0
    %v8887 = vadd.f32 %v8721, %v8886
    %v8888 = vpop.f32.mrf.mxu0
    %8889 = vmatprep.mubr.f32.mxu0 0.0
    %8890 = vmatmul.mubr.f32.gmra.mxu0 %v8756
    %v8891 = vpop.f32.mrf.mxu0
    %v8892 = vadd.f32 %v8721, %v8891
    %v8893 = vpop.f32.mrf.mxu0
    %8894 = vmatprep.mubr.f32.mxu0 0.0
    %8895 = vmatmul.mubr.f32.gmra.mxu0 %v8759
    %v8896 = vpop.f32.mrf.mxu0
    %v8897 = vadd.f32 %v8721, %v8896
    %v8898 = vpop.f32.mrf.mxu0
    %8899 = vmatprep.mubr.f32.mxu0 0.0
    %8900 = vmatmul.mubr.f32.gmra.mxu0 %v8762
    %v8901 = vpop.f32.mrf.mxu0
    %v8902 = vadd.f32 %v8721, %v8901
    %v8903 = vpop.f32.mrf.mxu0
    %8904 = vmatprep.mubr.f32.mxu0 0.0
    %8905 = vmatmul.mubr.f32.gmra.mxu0 %v8765
    %v8906 = vpop.f32.mrf.mxu0
    %v8907 = vadd.f32 %v8721, %v8906
    %v8908 = vpop.f32.mrf.mxu0
    %8909 = vmatprep.mubr.f32.mxu0 0.0
    %8910 = vmatmul.mubr.f32.gmra.mxu0 %v8768
    %v8911 = vpop.f32.mrf.mxu0
    %v8912 = vadd.f32 %v8721, %v8911
    %v8913 = vpop.f32.mrf.mxu0
    %8914 = vdwg.mxu0
    %v8915 = vxor.u32 %v8837, 2147483648
    %v8916 = vxor.u32 %v8842, 2147483648
    %v8917 = vxor.u32 %v8847, 2147483648
    %v8918 = vxor.u32 %v8852, 2147483648
    %v8919 = vxor.u32 %v8857, 2147483648
    %v8920 = vxor.u32 %v8862, 2147483648
    %v8921 = vxor.u32 %v8867, 2147483648
    %v8922 = vxor.u32 %v8872, 2147483648
    %v8923 = vxor.u32 %v8877, 2147483648
    %v8924 = vxor.u32 %v8882, 2147483648
    %v8925 = vxor.u32 %v8887, 2147483648
    %v8926 = vxor.u32 %v8892, 2147483648
    %v8927 = vxor.u32 %v8897, 2147483648
    %v8928 = vxor.u32 %v8902, 2147483648
    %v8929 = vxor.u32 %v8907, 2147483648
    %v8930 = vxor.u32 %v8912, 2147483648
    %v8931 = vmul.f32 %v8915, 1.442695
    %v8932 = vpow.pop %v8931
    %v8933 = vmul.f32 %v8916, 1.442695
    %v8934 = vpow.pop %v8933
    %v8935 = vmul.f32 %v8917, 1.442695
    %v8936 = vpow.pop %v8935
    %v8937 = vmul.f32 %v8918, 1.442695
    %v8938 = vpow.pop %v8937
    %v8939 = vmul.f32 %v8919, 1.442695
    %v8940 = vpow.pop %v8939
    %v8941 = vmul.f32 %v8920, 1.442695
    %v8942 = vpow.pop %v8941
    %v8943 = vmul.f32 %v8921, 1.442695
    %v8944 = vpow.pop %v8943
    %v8945 = vmul.f32 %v8922, 1.442695
    %v8946 = vpow.pop %v8945
    %v8947 = vmul.f32 %v8923, 1.442695
    %v8948 = vpow.pop %v8947
    %v8949 = vmul.f32 %v8924, 1.442695
    %v8950 = vpow.pop %v8949
    %v8951 = vmul.f32 %v8925, 1.442695
    %v8952 = vpow.pop %v8951
    %v8953 = vmul.f32 %v8926, 1.442695
    %v8954 = vpow.pop %v8953
    %v8955 = vmul.f32 %v8927, 1.442695
    %v8956 = vpow.pop %v8955
    %v8957 = vmul.f32 %v8928, 1.442695
    %v8958 = vpow.pop %v8957
    %v8959 = vmul.f32 %v8929, 1.442695
    %v8960 = vpow.pop %v8959
    %v8961 = vmul.f32 %v8930, 1.442695
    %v8962 = vpow.pop %v8961
    %v8963 = vadd.f32 %v8932, 1.0
    %v8964 = vadd.f32 %v8934, 1.0
    %v8965 = vadd.f32 %v8936, 1.0
    %v8966 = vadd.f32 %v8938, 1.0
    %v8967 = vadd.f32 %v8940, 1.0
    %v8968 = vadd.f32 %v8942, 1.0
    %v8969 = vadd.f32 %v8944, 1.0
    %v8970 = vadd.f32 %v8946, 1.0
    %v8971 = vadd.f32 %v8948, 1.0
    %v8972 = vadd.f32 %v8950, 1.0
    %v8973 = vadd.f32 %v8952, 1.0
    %v8974 = vadd.f32 %v8954, 1.0
    %v8975 = vadd.f32 %v8956, 1.0
    %v8976 = vadd.f32 %v8958, 1.0
    %v8977 = vadd.f32 %v8960, 1.0
    %v8978 = vadd.f32 %v8962, 1.0
    %v8979 = vrcp.pop %v8963
    %v8980 = vmul.f32 1.0, %v8979
    %v8981 = vrcp.pop %v8964
    %v8982 = vmul.f32 1.0, %v8981
    %v8983 = vrcp.pop %v8965
    %v8984 = vmul.f32 1.0, %v8983
    %v8985 = vrcp.pop %v8966
    %v8986 = vmul.f32 1.0, %v8985
    %v8987 = vrcp.pop %v8967
    %v8988 = vmul.f32 1.0, %v8987
    %v8989 = vrcp.pop %v8968
    %v8990 = vmul.f32 1.0, %v8989
    %v8991 = vrcp.pop %v8969
    %v8992 = vmul.f32 1.0, %v8991
    %v8993 = vrcp.pop %v8970
    %v8994 = vmul.f32 1.0, %v8993
    %v8995 = vrcp.pop %v8971
    %v8996 = vmul.f32 1.0, %v8995
    %v8997 = vrcp.pop %v8972
    %v8998 = vmul.f32 1.0, %v8997
    %v8999 = vrcp.pop %v8973
    %v9000 = vmul.f32 1.0, %v8999
    %v9001 = vrcp.pop %v8974
    %v9002 = vmul.f32 1.0, %v9001
    %v9003 = vrcp.pop %v8975
    %v9004 = vmul.f32 1.0, %v9003
    %v9005 = vrcp.pop %v8976
    %v9006 = vmul.f32 1.0, %v9005
    %v9007 = vrcp.pop %v8977
    %v9008 = vmul.f32 1.0, %v9007
    %v9009 = vrcp.pop %v8978
    %v9010 = vmul.f32 1.0, %v9009
    %v9011 = vmul.f32 %v8837, %v8980
    %v9012 = vmul.f32 %v8842, %v8982
    %v9013 = vmul.f32 %v8847, %v8984
    %v9014 = vmul.f32 %v8852, %v8986
    %v9015 = vmul.f32 %v8857, %v8988
    %v9016 = vmul.f32 %v8862, %v8990
    %v9017 = vmul.f32 %v8867, %v8992
    %v9018 = vmul.f32 %v8872, %v8994
    %v9019 = vmul.f32 %v8877, %v8996
    %v9020 = vmul.f32 %v8882, %v8998
    %v9021 = vmul.f32 %v8887, %v9000
    %v9022 = vmul.f32 %v8892, %v9002
    %v9023 = vmul.f32 %v8897, %v9004
    %v9024 = vmul.f32 %v8902, %v9006
    %v9025 = vmul.f32 %v8907, %v9008
    %v9026 = vmul.f32 %v8912, %v9010
    %9027 = vmatprep.subr.mxu0 0.0
    %9028 = vmatpush1.msra.mxu0 %v9026
    %9029 = vmatprep.subr.mxu0 0.0
    %9030 = vmatpush1.msra.mxu0 %v9025
    %9031 = vmatprep.subr.mxu0 0.0
    %9032 = vmatpush1.msra.mxu0 %v9024
    %9033 = vmatprep.subr.mxu0 0.0
    %9034 = vmatpush1.msra.mxu0 %v9023
    %9035 = vmatprep.subr.mxu0 0.0
    %9036 = vmatpush1.msra.mxu0 %v9022
    %9037 = vmatprep.subr.mxu0 0.0
    %9038 = vmatpush1.msra.mxu0 %v9021
    %9039 = vmatprep.subr.mxu0 0.0
    %9040 = vmatpush1.msra.mxu0 %v9020
    %9041 = vmatprep.subr.mxu0 0.0
    %9042 = vmatpush1.msra.mxu0 %v9019
    %9043 = vmatprep.subr.mxu0 0.0
    %9044 = vmatpush1.msra.mxu0 %v9018
    %9045 = vmatprep.subr.mxu0 0.0
    %9046 = vmatpush1.msra.mxu0 %v9017
    %9047 = vmatprep.subr.mxu0 0.0
    %9048 = vmatpush1.msra.mxu0 %v9016
    %9049 = vmatprep.subr.mxu0 0.0
    %9050 = vmatpush1.msra.mxu0 %v9015
    %9051 = vmatprep.subr.mxu0 0.0
    %9052 = vmatpush1.msra.mxu0 %v9014
    %9053 = vmatprep.subr.mxu0 0.0
    %9054 = vmatpush1.msra.mxu0 %v9013
    %9055 = vmatprep.subr.mxu0 0.0
    %9056 = vmatpush1.msra.mxu0 %v9012
    %9057 = vmatprep.subr.mxu0 0.0
    %9058 = vmatpush1.msra.mxu0 %v9011
    %9059 = vmatprep.subr.mxu0 0.0
    %9060 = vmatpush2.msra.mxu0 0.0
    %9061 = vmatprep.subr.mxu0 0.0
    %9062 = vmatpush2.msra.mxu0 0.0
    %9063 = vmatprep.subr.mxu0 0.0
    %9064 = vmatpush2.msra.mxu0 0.0
    %9065 = vmatprep.subr.mxu0 0.0
    %9066 = vmatpush2.msra.mxu0 0.0
    %9067 = vmatprep.subr.mxu0 0.0
    %9068 = vmatpush2.msra.mxu0 0.0
    %9069 = vmatprep.subr.mxu0 0.0
    %9070 = vmatpush2.msra.mxu0 0.0
    %9071 = vmatprep.subr.mxu0 0.0
    %9072 = vmatpush2.msra.mxu0 0.0
    %9073 = vmatprep.subr.mxu0 0.0
    %9074 = vmatpush2.msra.mxu0 0.0
    %9075 = vmatprep.subr.mxu0 0.0
    %9076 = vmatpush2.msra.mxu0 0.0
    %9077 = vmatprep.subr.mxu0 0.0
    %9078 = vmatpush2.msra.mxu0 0.0
    %9079 = vmatprep.subr.mxu0 0.0
    %9080 = vmatpush2.msra.mxu0 0.0
    %9081 = vmatprep.subr.mxu0 0.0
    %9082 = vmatpush2.msra.mxu0 0.0
    %9083 = vmatprep.subr.mxu0 0.0
    %9084 = vmatpush2.msra.mxu0 0.0
    %9085 = vmatprep.subr.mxu0 0.0
    %9086 = vmatpush2.msra.mxu0 0.0
    %9087 = vmatprep.subr.mxu0 0.0
    %9088 = vmatpush2.msra.mxu0 0.0
    %9089 = vmatprep.subr.mxu0 0.0
    %9090 = vmatpush2.msra.mxu0 0.0
    %9091 = vmatprep.mubr.f32.mxu0 0.0
    %9092 = vmatmul.mubr.f32.gmra.mxu0 %v135
    %v9093 = vpop.f32.mrf.mxu0
    %v9094 = vadd.f32 0.0, %v9093
    %v9095 = vpop.f32.mrf.mxu0
    %9096 = vmatprep.mubr.f32.mxu0 0.0
    %9097 = vmatmul.mubr.f32.gmra.mxu0 %v136
    %v9098 = vpop.f32.mrf.mxu0
    %v9099 = vadd.f32 0.0, %v9098
    %v9100 = vpop.f32.mrf.mxu0
    %9101 = vdwg.mxu0
    %v9102 = vld [vmem:[#allocation10 + $0x1b8] sm:$0xff]
    %v9103 = vld [vmem:[#allocation10 + $0x1c0] sm:$0xff]
    %v9104 = vld [vmem:[#allocation10 + $0x1c8] sm:$0xf]
    %v9106 = vsel %vm444, %v9104, 0
    %9108 = vmatprep.subr.mxu0 0.0
    %9109 = vmatpush1.msra.mxu0 0.0
    %9110 = vmatprep.subr.mxu0 0.0
    %9111 = vmatpush1.msra.mxu0 0.0
    %9112 = vmatprep.subr.mxu0 0.0
    %9113 = vmatpush1.msra.mxu0 0.0
    %9114 = vmatprep.subr.mxu0 0.0
    %9115 = vmatpush1.msra.mxu0 0.0
    %9116 = vmatprep.subr.mxu0 0.0
    %9117 = vmatpush1.msra.mxu0 0.0
    %9118 = vmatprep.subr.mxu0 0.0
    %9119 = vmatpush1.msra.mxu0 0.0
    %9120 = vmatprep.subr.mxu0 0.0
    %9121 = vmatpush1.msra.mxu0 0.0
    %9122 = vmatprep.subr.mxu0 0.0
    %9123 = vmatpush1.msra.mxu0 0.0
    %9124 = vmatprep.subr.mxu0 0.0
    %9125 = vmatpush1.msra.mxu0 0.0
    %9126 = vmatprep.subr.mxu0 0.0
    %9127 = vmatpush1.msra.mxu0 0.0
    %9128 = vmatprep.subr.mxu0 0.0
    %9129 = vmatpush1.msra.mxu0 0.0
    %9130 = vmatprep.subr.mxu0 0.0
    %9131 = vmatpush1.msra.mxu0 0.0
    %9132 = vmatprep.subr.mxu0 0.0
    %9133 = vmatpush1.msra.mxu0 0.0
    %9134 = vmatprep.subr.mxu0 0.0
    %9135 = vmatpush1.msra.mxu0 0.0
    %9136 = vmatprep.subr.mxu0 0.0
    %9137 = vmatpush1.msra.mxu0 0.0
    %9138 = vmatprep.subr.mxu0 0.0
    %9139 = vmatpush1.msra.mxu0 %v9106
    %9140 = vmatprep.subr.mxu0 0.0
    %9141 = vmatpush2.msra.mxu0 0.0
    %9142 = vmatprep.subr.mxu0 0.0
    %9143 = vmatpush2.msra.mxu0 0.0
    %9144 = vmatprep.subr.mxu0 0.0
    %9145 = vmatpush2.msra.mxu0 0.0
    %9146 = vmatprep.subr.mxu0 0.0
    %9147 = vmatpush2.msra.mxu0 0.0
    %9148 = vmatprep.subr.mxu0 0.0
    %9149 = vmatpush2.msra.mxu0 0.0
    %9150 = vmatprep.subr.mxu0 0.0
    %9151 = vmatpush2.msra.mxu0 0.0
    %9152 = vmatprep.subr.mxu0 0.0
    %9153 = vmatpush2.msra.mxu0 0.0
    %9154 = vmatprep.subr.mxu0 0.0
    %9155 = vmatpush2.msra.mxu0 0.0
    %9156 = vmatprep.subr.mxu0 0.0
    %9157 = vmatpush2.msra.mxu0 0.0
    %9158 = vmatprep.subr.mxu0 0.0
    %9159 = vmatpush2.msra.mxu0 0.0
    %9160 = vmatprep.subr.mxu0 0.0
    %9161 = vmatpush2.msra.mxu0 0.0
    %9162 = vmatprep.subr.mxu0 0.0
    %9163 = vmatpush2.msra.mxu0 0.0
    %9164 = vmatprep.subr.mxu0 0.0
    %9165 = vmatpush2.msra.mxu0 0.0
    %9166 = vmatprep.subr.mxu0 0.0
    %9167 = vmatpush2.msra.mxu0 0.0
    %9168 = vmatprep.subr.mxu0 0.0
    %9169 = vmatpush2.msra.mxu0 0.0
    %9170 = vmatprep.subr.mxu0 0.0
    %9171 = vmatpush2.msra.mxu0 0.0
    %9172 = vmatprep.mubr.f32.mxu0 0.0
    %9173 = vmatmul.mubr.f32.gmra.mxu0 %v5111
    %v9174 = vpop.f32.mrf.mxu0
    %v9175 = vadd.f32 0.0, %v9174
    %v9176 = vpop.f32.mrf.mxu0
    %9177 = vmatprep.mubr.f32.mxu0 0.0
    %9178 = vmatmul.mubr.f32.gmra.mxu0 %v5114
    %v9179 = vpop.f32.mrf.mxu0
    %v9180 = vadd.f32 0.0, %v9179
    %v9181 = vpop.f32.mrf.mxu0
    %9182 = vdwg.mxu0
    %9183 = vmatprep.subr.mxu0 0.0
    %9184 = vmatpush1.msra.mxu0 0.0
    %9185 = vmatprep.subr.mxu0 0.0
    %9186 = vmatpush1.msra.mxu0 0.0
    %9187 = vmatprep.subr.mxu0 0.0
    %9188 = vmatpush1.msra.mxu0 0.0
    %9189 = vmatprep.subr.mxu0 0.0
    %9190 = vmatpush1.msra.mxu0 0.0
    %9191 = vmatprep.subr.mxu0 0.0
    %9192 = vmatpush1.msra.mxu0 0.0
    %9193 = vmatprep.subr.mxu0 0.0
    %9194 = vmatpush1.msra.mxu0 0.0
    %9195 = vmatprep.subr.mxu0 0.0
    %9196 = vmatpush1.msra.mxu0 0.0
    %9197 = vmatprep.subr.mxu0 0.0
    %9198 = vmatpush1.msra.mxu0 0.0
    %9199 = vmatprep.subr.mxu0 0.0
    %9200 = vmatpush1.msra.mxu0 0.0
    %9201 = vmatprep.subr.mxu0 0.0
    %9202 = vmatpush1.msra.mxu0 0.0
    %9203 = vmatprep.subr.mxu0 0.0
    %9204 = vmatpush1.msra.mxu0 0.0
    %9205 = vmatprep.subr.mxu0 0.0
    %9206 = vmatpush1.msra.mxu0 0.0
    %9207 = vmatprep.subr.mxu0 0.0
    %9208 = vmatpush1.msra.mxu0 0.0
    %9209 = vmatprep.subr.mxu0 0.0
    %9210 = vmatpush1.msra.mxu0 0.0
    %9211 = vmatprep.subr.mxu0 0.0
    %9212 = vmatpush1.msra.mxu0 %v9103
    %9213 = vmatprep.subr.mxu0 0.0
    %9214 = vmatpush1.msra.mxu0 %v9102
    %9215 = vmatprep.subr.mxu0 0.0
    %9216 = vmatpush2.msra.mxu0 0.0
    %9217 = vmatprep.subr.mxu0 0.0
    %9218 = vmatpush2.msra.mxu0 0.0
    %9219 = vmatprep.subr.mxu0 0.0
    %9220 = vmatpush2.msra.mxu0 0.0
    %9221 = vmatprep.subr.mxu0 0.0
    %9222 = vmatpush2.msra.mxu0 0.0
    %9223 = vmatprep.subr.mxu0 0.0
    %9224 = vmatpush2.msra.mxu0 0.0
    %9225 = vmatprep.subr.mxu0 0.0
    %9226 = vmatpush2.msra.mxu0 0.0
    %9227 = vmatprep.subr.mxu0 0.0
    %9228 = vmatpush2.msra.mxu0 0.0
    %9229 = vmatprep.subr.mxu0 0.0
    %9230 = vmatpush2.msra.mxu0 0.0
    %9231 = vmatprep.subr.mxu0 0.0
    %9232 = vmatpush2.msra.mxu0 0.0
    %9233 = vmatprep.subr.mxu0 0.0
    %9234 = vmatpush2.msra.mxu0 0.0
    %9235 = vmatprep.subr.mxu0 0.0
    %9236 = vmatpush2.msra.mxu0 0.0
    %9237 = vmatprep.subr.mxu0 0.0
    %9238 = vmatpush2.msra.mxu0 0.0
    %9239 = vmatprep.subr.mxu0 0.0
    %9240 = vmatpush2.msra.mxu0 0.0
    %9241 = vmatprep.subr.mxu0 0.0
    %9242 = vmatpush2.msra.mxu0 0.0
    %9243 = vmatprep.subr.mxu0 0.0
    %9244 = vmatpush2.msra.mxu0 0.0
    %9245 = vmatprep.subr.mxu0 0.0
    %9246 = vmatpush2.msra.mxu0 0.0
    %9247 = vmatprep.mubr.f32.mxu0 0.0
    %9248 = vmatmul.mubr.f32.gmra.mxu0 %v4609
    %v9249 = vpop.f32.mrf.mxu0
    %v9250 = vadd.f32 %v9175, %v9249
    %v9251 = vpop.f32.mrf.mxu0
    %9252 = vmatprep.mubr.f32.mxu0 0.0
    %9253 = vmatmul.mubr.f32.gmra.mxu0 %v4612
    %v9254 = vpop.f32.mrf.mxu0
    %v9255 = vadd.f32 %v9180, %v9254
    %v9256 = vpop.f32.mrf.mxu0
    %9257 = vdwg.mxu0
    %v9258 = vld [vmem:[#allocation10 + $0x1d0] sm:$0xff]
    %v9259 = vld [vmem:[#allocation10 + $0x1d8] sm:$0xff]
    %v9261 = vsel %vm145, %v9094, 0
    %v9264 = vsel %vm145, %v9099, 0
    %9266 = vmatprep.subr.mxu0 0.0
    %9267 = vmatpush1.msra.mxu0 0.0
    %9268 = vmatprep.subr.mxu0 0.0
    %9269 = vmatpush1.msra.mxu0 0.0
    %9270 = vmatprep.subr.mxu0 0.0
    %9271 = vmatpush1.msra.mxu0 0.0
    %9272 = vmatprep.subr.mxu0 0.0
    %9273 = vmatpush1.msra.mxu0 0.0
    %9274 = vmatprep.subr.mxu0 0.0
    %9275 = vmatpush1.msra.mxu0 0.0
    %9276 = vmatprep.subr.mxu0 0.0
    %9277 = vmatpush1.msra.mxu0 0.0
    %9278 = vmatprep.subr.mxu0 0.0
    %9279 = vmatpush1.msra.mxu0 0.0
    %9280 = vmatprep.subr.mxu0 0.0
    %9281 = vmatpush1.msra.mxu0 0.0
    %9282 = vmatprep.subr.mxu0 0.0
    %9283 = vmatpush1.msra.mxu0 0.0
    %9284 = vmatprep.subr.mxu0 0.0
    %9285 = vmatpush1.msra.mxu0 0.0
    %9286 = vmatprep.subr.mxu0 0.0
    %9287 = vmatpush1.msra.mxu0 0.0
    %9288 = vmatprep.subr.mxu0 0.0
    %9289 = vmatpush1.msra.mxu0 0.0
    %9290 = vmatprep.subr.mxu0 0.0
    %9291 = vmatpush1.msra.mxu0 0.0
    %9292 = vmatprep.subr.mxu0 0.0
    %9293 = vmatpush1.msra.mxu0 0.0
    %9294 = vmatprep.subr.mxu0 0.0
    %9295 = vmatpush1.msra.mxu0 %v9259
    %9296 = vmatprep.subr.mxu0 0.0
    %9297 = vmatpush1.msra.mxu0 %v9258
    %9298 = vmatprep.subr.mxu0 0.0
    %9299 = vmatpush2.msra.mxu0 0.0
    %9300 = vmatprep.subr.mxu0 0.0
    %9301 = vmatpush2.msra.mxu0 0.0
    %9302 = vmatprep.subr.mxu0 0.0
    %9303 = vmatpush2.msra.mxu0 0.0
    %9304 = vmatprep.subr.mxu0 0.0
    %9305 = vmatpush2.msra.mxu0 0.0
    %9306 = vmatprep.subr.mxu0 0.0
    %9307 = vmatpush2.msra.mxu0 0.0
    %9308 = vmatprep.subr.mxu0 0.0
    %9309 = vmatpush2.msra.mxu0 0.0
    %9310 = vmatprep.subr.mxu0 0.0
    %9311 = vmatpush2.msra.mxu0 0.0
    %9312 = vmatprep.subr.mxu0 0.0
    %9313 = vmatpush2.msra.mxu0 0.0
    %9314 = vmatprep.subr.mxu0 0.0
    %9315 = vmatpush2.msra.mxu0 0.0
    %9316 = vmatprep.subr.mxu0 0.0
    %9317 = vmatpush2.msra.mxu0 0.0
    %9318 = vmatprep.subr.mxu0 0.0
    %9319 = vmatpush2.msra.mxu0 0.0
    %9320 = vmatprep.subr.mxu0 0.0
    %9321 = vmatpush2.msra.mxu0 0.0
    %9322 = vmatprep.subr.mxu0 0.0
    %9323 = vmatpush2.msra.mxu0 0.0
    %9324 = vmatprep.subr.mxu0 0.0
    %9325 = vmatpush2.msra.mxu0 0.0
    %9326 = vmatprep.subr.mxu0 0.0
    %9327 = vmatpush2.msra.mxu0 0.0
    %9328 = vmatprep.subr.mxu0 0.0
    %9329 = vmatpush2.msra.mxu0 0.0
    %9330 = vmatprep.mubr.f32.mxu0 0.0
    %9331 = vmatmul.mubr.f32.gmra.mxu0 %v9261
    %v9332 = vpop.f32.mrf.mxu0
    %v9333 = vadd.f32 0.0, %v9332
    %v9334 = vpop.f32.mrf.mxu0
    %9335 = vmatprep.mubr.f32.mxu0 0.0
    %9336 = vmatmul.mubr.f32.gmra.mxu0 %v9264
    %v9337 = vpop.f32.mrf.mxu0
    %v9338 = vadd.f32 0.0, %v9337
    %v9339 = vpop.f32.mrf.mxu0
    %9340 = vdwg.mxu0
    %v9341 = vadd.f32 %v9250, %v9333
    %v9342 = vadd.f32 %v9255, %v9338
    %v9343 = vld [vmem:[%s7 + $0x13] sm:$0x1]
    %v9344 = vlaneseq
    %v9345 = vshrl.u32 %v9344, 7
    %v9346 = vsub.s32 0, %v9345
    %v9347 = vrot.slane %v9343, %v9346
    %v9348 = vadd.f32 %v9341, %v9347
    %v9349 = vadd.f32 %v9342, %v9347
    %v9350 = vxor.u32 %v9348, 2147483648
    %v9351 = vxor.u32 %v9349, 2147483648
    %v9352 = vmul.f32 %v9350, 1.442695
    %v9353 = vpow.pop %v9352
    %v9354 = vmul.f32 %v9351, 1.442695
    %v9355 = vpow.pop %v9354
    %v9356 = vadd.f32 %v9353, 1.0
    %v9357 = vadd.f32 %v9355, 1.0
    %v9358 = vrcp.pop %v9356
    %v9359 = vmul.f32 1.0, %v9358
    %v9360 = vrcp.pop %v9357
    %v9361 = vmul.f32 1.0, %v9360
    %v9362 = vmul.f32 %v9348, %v9359
    %v9363 = vmul.f32 %v9349, %v9361
    %v9364 = vld [vmem:[#allocation10 + $0x1e0] sm:$0xff]
    %v9365 = vld [vmem:[#allocation10 + $0x1e8] sm:$0xff]
    %v9366 = vld [vmem:[#allocation10 + $0x1f0] sm:$0xff]
    %v9367 = vld [vmem:[#allocation10 + $0x1f8] sm:$0xff]
    %v9368 = vld [vmem:[%s7 + $0x16] sm:$0x1]
    %v9369 = vlaneseq
    %v9370 = vshrl.u32 %v9369, 7
    %v9371 = vsub.s32 0, %v9370
    %v9372 = vrot.slane %v9368, %v9371
    %v9374 = vsel %vm250, %v9362, 0
    %v9377 = vsel %vm250, %v9363, 0
    %9379 = vmatprep.subr.mxu0 0.0
    %9380 = vmatpush1.msra.mxu0 0.0
    %9381 = vmatprep.subr.mxu0 0.0
    %9382 = vmatpush1.msra.mxu0 0.0
    %9383 = vmatprep.subr.mxu0 0.0
    %9384 = vmatpush1.msra.mxu0 0.0
    %9385 = vmatprep.subr.mxu0 0.0
    %9386 = vmatpush1.msra.mxu0 0.0
    %9387 = vmatprep.subr.mxu0 0.0
    %9388 = vmatpush1.msra.mxu0 0.0
    %9389 = vmatprep.subr.mxu0 0.0
    %9390 = vmatpush1.msra.mxu0 0.0
    %9391 = vmatprep.subr.mxu0 0.0
    %9392 = vmatpush1.msra.mxu0 0.0
    %9393 = vmatprep.subr.mxu0 0.0
    %9394 = vmatpush1.msra.mxu0 0.0
    %9395 = vmatprep.subr.mxu0 0.0
    %9396 = vmatpush1.msra.mxu0 0.0
    %9397 = vmatprep.subr.mxu0 0.0
    %9398 = vmatpush1.msra.mxu0 0.0
    %9399 = vmatprep.subr.mxu0 0.0
    %9400 = vmatpush1.msra.mxu0 0.0
    %9401 = vmatprep.subr.mxu0 0.0
    %9402 = vmatpush1.msra.mxu0 0.0
    %9403 = vmatprep.subr.mxu0 0.0
    %9404 = vmatpush1.msra.mxu0 %v9367
    %9405 = vmatprep.subr.mxu0 0.0
    %9406 = vmatpush1.msra.mxu0 %v9366
    %9407 = vmatprep.subr.mxu0 0.0
    %9408 = vmatpush1.msra.mxu0 %v9365
    %9409 = vmatprep.subr.mxu0 0.0
    %9410 = vmatpush1.msra.mxu0 %v9364
    %9411 = vmatprep.subr.mxu0 0.0
    %9412 = vmatpush2.msra.mxu0 0.0
    %9413 = vmatprep.subr.mxu0 0.0
    %9414 = vmatpush2.msra.mxu0 0.0
    %9415 = vmatprep.subr.mxu0 0.0
    %9416 = vmatpush2.msra.mxu0 0.0
    %9417 = vmatprep.subr.mxu0 0.0
    %9418 = vmatpush2.msra.mxu0 0.0
    %9419 = vmatprep.subr.mxu0 0.0
    %9420 = vmatpush2.msra.mxu0 0.0
    %9421 = vmatprep.subr.mxu0 0.0
    %9422 = vmatpush2.msra.mxu0 0.0
    %9423 = vmatprep.subr.mxu0 0.0
    %9424 = vmatpush2.msra.mxu0 0.0
    %9425 = vmatprep.subr.mxu0 0.0
    %9426 = vmatpush2.msra.mxu0 0.0
    %9427 = vmatprep.subr.mxu0 0.0
    %9428 = vmatpush2.msra.mxu0 0.0
    %9429 = vmatprep.subr.mxu0 0.0
    %9430 = vmatpush2.msra.mxu0 0.0
    %9431 = vmatprep.subr.mxu0 0.0
    %9432 = vmatpush2.msra.mxu0 0.0
    %9433 = vmatprep.subr.mxu0 0.0
    %9434 = vmatpush2.msra.mxu0 0.0
    %9435 = vmatprep.subr.mxu0 0.0
    %9436 = vmatpush2.msra.mxu0 0.0
    %9437 = vmatprep.subr.mxu0 0.0
    %9438 = vmatpush2.msra.mxu0 0.0
    %9439 = vmatprep.subr.mxu0 0.0
    %9440 = vmatpush2.msra.mxu0 0.0
    %9441 = vmatprep.subr.mxu0 0.0
    %9442 = vmatpush2.msra.mxu0 0.0
    %9443 = vmatprep.mubr.f32.mxu0 0.0
    %9444 = vmatmul.mubr.f32.gmra.mxu0 %v9374
    %v9445 = vpop.f32.mrf.mxu0
    %v9446 = vadd.f32 %v9372, %v9445
    %v9447 = vpop.f32.mrf.mxu0
    %9448 = vmatprep.mubr.f32.mxu0 0.0
    %9449 = vmatmul.mubr.f32.gmra.mxu0 %v9377
    %v9450 = vpop.f32.mrf.mxu0
    %v9451 = vadd.f32 %v9372, %v9450
    %v9452 = vpop.f32.mrf.mxu0
    %9453 = vdwg.mxu0
    %v9454 = vxor.u32 %v9446, 2147483648
    %v9455 = vxor.u32 %v9451, 2147483648
    %v9456 = vmul.f32 %v9454, 1.442695
    %v9457 = vpow.pop %v9456
    %v9458 = vmul.f32 %v9455, 1.442695
    %v9459 = vpow.pop %v9458
    %v9460 = vadd.f32 %v9457, 1.0
    %v9461 = vadd.f32 %v9459, 1.0
    %v9462 = vrcp.pop %v9460
    %v9463 = vmul.f32 1.0, %v9462
    %v9464 = vrcp.pop %v9461
    %v9465 = vmul.f32 1.0, %v9464
    %v9466 = vmul.f32 %v9446, %v9463
    %v9467 = vmul.f32 %v9451, %v9465
    %v9468 = vld [vmem:[#allocation10 + $0x200] sm:$0xff]
    %v9469 = vld [vmem:[#allocation10 + $0x208] sm:$0xff]
    %v9470 = vld [vmem:[#allocation10 + $0x210] sm:$0xff]
    %v9471 = vld [vmem:[#allocation10 + $0x218] sm:$0xff]
    %v9472 = vld [vmem:[%s7 + $0x17] sm:$0x1]
    %v9473 = vlaneseq
    %v9474 = vshrl.u32 %v9473, 7
    %v9475 = vsub.s32 0, %v9474
    %v9476 = vrot.slane %v9472, %v9475
    %v9478 = vsel %vm250, %v9466, 0
    %v9481 = vsel %vm250, %v9467, 0
    %9483 = vmatprep.subr.mxu0 0.0
    %9484 = vmatpush1.msra.mxu0 0.0
    %9485 = vmatprep.subr.mxu0 0.0
    %9486 = vmatpush1.msra.mxu0 0.0
    %9487 = vmatprep.subr.mxu0 0.0
    %9488 = vmatpush1.msra.mxu0 0.0
    %9489 = vmatprep.subr.mxu0 0.0
    %9490 = vmatpush1.msra.mxu0 0.0
    %9491 = vmatprep.subr.mxu0 0.0
    %9492 = vmatpush1.msra.mxu0 0.0
    %9493 = vmatprep.subr.mxu0 0.0
    %9494 = vmatpush1.msra.mxu0 0.0
    %9495 = vmatprep.subr.mxu0 0.0
    %9496 = vmatpush1.msra.mxu0 0.0
    %9497 = vmatprep.subr.mxu0 0.0
    %9498 = vmatpush1.msra.mxu0 0.0
    %9499 = vmatprep.subr.mxu0 0.0
    %9500 = vmatpush1.msra.mxu0 0.0
    %9501 = vmatprep.subr.mxu0 0.0
    %9502 = vmatpush1.msra.mxu0 0.0
    %9503 = vmatprep.subr.mxu0 0.0
    %9504 = vmatpush1.msra.mxu0 0.0
    %9505 = vmatprep.subr.mxu0 0.0
    %9506 = vmatpush1.msra.mxu0 0.0
    %9507 = vmatprep.subr.mxu0 0.0
    %9508 = vmatpush1.msra.mxu0 %v9471
    %9509 = vmatprep.subr.mxu0 0.0
    %9510 = vmatpush1.msra.mxu0 %v9470
    %9511 = vmatprep.subr.mxu0 0.0
    %9512 = vmatpush1.msra.mxu0 %v9469
    %9513 = vmatprep.subr.mxu0 0.0
    %9514 = vmatpush1.msra.mxu0 %v9468
    %9515 = vmatprep.subr.mxu0 0.0
    %9516 = vmatpush2.msra.mxu0 0.0
    %9517 = vmatprep.subr.mxu0 0.0
    %9518 = vmatpush2.msra.mxu0 0.0
    %9519 = vmatprep.subr.mxu0 0.0
    %9520 = vmatpush2.msra.mxu0 0.0
    %9521 = vmatprep.subr.mxu0 0.0
    %9522 = vmatpush2.msra.mxu0 0.0
    %9523 = vmatprep.subr.mxu0 0.0
    %9524 = vmatpush2.msra.mxu0 0.0
    %9525 = vmatprep.subr.mxu0 0.0
    %9526 = vmatpush2.msra.mxu0 0.0
    %9527 = vmatprep.subr.mxu0 0.0
    %9528 = vmatpush2.msra.mxu0 0.0
    %9529 = vmatprep.subr.mxu0 0.0
    %9530 = vmatpush2.msra.mxu0 0.0
    %9531 = vmatprep.subr.mxu0 0.0
    %9532 = vmatpush2.msra.mxu0 0.0
    %9533 = vmatprep.subr.mxu0 0.0
    %9534 = vmatpush2.msra.mxu0 0.0
    %9535 = vmatprep.subr.mxu0 0.0
    %9536 = vmatpush2.msra.mxu0 0.0
    %9537 = vmatprep.subr.mxu0 0.0
    %9538 = vmatpush2.msra.mxu0 0.0
    %9539 = vmatprep.subr.mxu0 0.0
    %9540 = vmatpush2.msra.mxu0 0.0
    %9541 = vmatprep.subr.mxu0 0.0
    %9542 = vmatpush2.msra.mxu0 0.0
    %9543 = vmatprep.subr.mxu0 0.0
    %9544 = vmatpush2.msra.mxu0 0.0
    %9545 = vmatprep.subr.mxu0 0.0
    %9546 = vmatpush2.msra.mxu0 0.0
    %9547 = vmatprep.mubr.f32.mxu0 0.0
    %9548 = vmatmul.mubr.f32.gmra.mxu0 %v9478
    %v9549 = vpop.f32.mrf.mxu0
    %v9550 = vadd.f32 %v9476, %v9549
    %v9551 = vpop.f32.mrf.mxu0
    %9552 = vmatprep.mubr.f32.mxu0 0.0
    %9553 = vmatmul.mubr.f32.gmra.mxu0 %v9481
    %v9554 = vpop.f32.mrf.mxu0
    %v9555 = vadd.f32 %v9476, %v9554
    %v9556 = vpop.f32.mrf.mxu0
    %9557 = vdwg.mxu0
    %v9558 = vxor.u32 %v9550, 2147483648
    %v9559 = vxor.u32 %v9555, 2147483648
    %v9560 = vmul.f32 %v9558, 1.442695
    %v9561 = vpow.pop %v9560
    %v9562 = vmul.f32 %v9559, 1.442695
    %v9563 = vpow.pop %v9562
    %v9564 = vadd.f32 %v9561, 1.0
    %v9565 = vadd.f32 %v9563, 1.0
    %v9566 = vrcp.pop %v9564
    %v9567 = vmul.f32 1.0, %v9566
    %v9568 = vrcp.pop %v9565
    %v9569 = vmul.f32 1.0, %v9568
    %v9570 = vmul.f32 %v9550, %v9567
    %v9571 = vmul.f32 %v9555, %v9569
    %v9572 = vld [vmem:[#allocation10 + $0x220] sm:$0xff]
    %v9573 = vld [vmem:[#allocation10 + $0x228] sm:$0xff]
    %v9574 = vld [vmem:[#allocation10 + $0x230] sm:$0xff]
    %v9575 = vld [vmem:[#allocation10 + $0x238] sm:$0xff]
    %v9576 = vld [vmem:[%s7 + $0x18] sm:$0x1]
    %v9577 = vlaneseq
    %v9578 = vshrl.u32 %v9577, 7
    %v9579 = vsub.s32 0, %v9578
    %v9580 = vrot.slane %v9576, %v9579
    %v9582 = vsel %vm250, %v9570, 0
    %v9585 = vsel %vm250, %v9571, 0
    %9587 = vmatprep.subr.mxu0 0.0
    %9588 = vmatpush1.msra.mxu0 0.0
    %9589 = vmatprep.subr.mxu0 0.0
    %9590 = vmatpush1.msra.mxu0 0.0
    %9591 = vmatprep.subr.mxu0 0.0
    %9592 = vmatpush1.msra.mxu0 0.0
    %9593 = vmatprep.subr.mxu0 0.0
    %9594 = vmatpush1.msra.mxu0 0.0
    %9595 = vmatprep.subr.mxu0 0.0
    %9596 = vmatpush1.msra.mxu0 0.0
    %9597 = vmatprep.subr.mxu0 0.0
    %9598 = vmatpush1.msra.mxu0 0.0
    %9599 = vmatprep.subr.mxu0 0.0
    %9600 = vmatpush1.msra.mxu0 0.0
    %9601 = vmatprep.subr.mxu0 0.0
    %9602 = vmatpush1.msra.mxu0 0.0
    %9603 = vmatprep.subr.mxu0 0.0
    %9604 = vmatpush1.msra.mxu0 0.0
    %9605 = vmatprep.subr.mxu0 0.0
    %9606 = vmatpush1.msra.mxu0 0.0
    %9607 = vmatprep.subr.mxu0 0.0
    %9608 = vmatpush1.msra.mxu0 0.0
    %9609 = vmatprep.subr.mxu0 0.0
    %9610 = vmatpush1.msra.mxu0 0.0
    %9611 = vmatprep.subr.mxu0 0.0
    %9612 = vmatpush1.msra.mxu0 %v9575
    %9613 = vmatprep.subr.mxu0 0.0
    %9614 = vmatpush1.msra.mxu0 %v9574
    %9615 = vmatprep.subr.mxu0 0.0
    %9616 = vmatpush1.msra.mxu0 %v9573
    %9617 = vmatprep.subr.mxu0 0.0
    %9618 = vmatpush1.msra.mxu0 %v9572
    %9619 = vmatprep.subr.mxu0 0.0
    %9620 = vmatpush2.msra.mxu0 0.0
    %9621 = vmatprep.subr.mxu0 0.0
    %9622 = vmatpush2.msra.mxu0 0.0
    %9623 = vmatprep.subr.mxu0 0.0
    %9624 = vmatpush2.msra.mxu0 0.0
    %9625 = vmatprep.subr.mxu0 0.0
    %9626 = vmatpush2.msra.mxu0 0.0
    %9627 = vmatprep.subr.mxu0 0.0
    %9628 = vmatpush2.msra.mxu0 0.0
    %9629 = vmatprep.subr.mxu0 0.0
    %9630 = vmatpush2.msra.mxu0 0.0
    %9631 = vmatprep.subr.mxu0 0.0
    %9632 = vmatpush2.msra.mxu0 0.0
    %9633 = vmatprep.subr.mxu0 0.0
    %9634 = vmatpush2.msra.mxu0 0.0
    %9635 = vmatprep.subr.mxu0 0.0
    %9636 = vmatpush2.msra.mxu0 0.0
    %9637 = vmatprep.subr.mxu0 0.0
    %9638 = vmatpush2.msra.mxu0 0.0
    %9639 = vmatprep.subr.mxu0 0.0
    %9640 = vmatpush2.msra.mxu0 0.0
    %9641 = vmatprep.subr.mxu0 0.0
    %9642 = vmatpush2.msra.mxu0 0.0
    %9643 = vmatprep.subr.mxu0 0.0
    %9644 = vmatpush2.msra.mxu0 0.0
    %9645 = vmatprep.subr.mxu0 0.0
    %9646 = vmatpush2.msra.mxu0 0.0
    %9647 = vmatprep.subr.mxu0 0.0
    %9648 = vmatpush2.msra.mxu0 0.0
    %9649 = vmatprep.subr.mxu0 0.0
    %9650 = vmatpush2.msra.mxu0 0.0
    %9651 = vmatprep.mubr.f32.mxu0 0.0
    %9652 = vmatmul.mubr.f32.gmra.mxu0 %v9582
    %v9653 = vpop.f32.mrf.mxu0
    %v9654 = vadd.f32 %v9580, %v9653
    %v9655 = vpop.f32.mrf.mxu0
    %9656 = vmatprep.mubr.f32.mxu0 0.0
    %9657 = vmatmul.mubr.f32.gmra.mxu0 %v9585
    %v9658 = vpop.f32.mrf.mxu0
    %v9659 = vadd.f32 %v9580, %v9658
    %v9660 = vpop.f32.mrf.mxu0
    %9661 = vdwg.mxu0
    %v9662 = vxor.u32 %v9654, 2147483648
    %v9663 = vxor.u32 %v9659, 2147483648
    %v9664 = vmul.f32 %v9662, 1.442695
    %v9665 = vpow.pop %v9664
    %v9666 = vmul.f32 %v9663, 1.442695
    %v9667 = vpow.pop %v9666
    %v9668 = vadd.f32 %v9665, 1.0
    %v9669 = vadd.f32 %v9667, 1.0
    %v9670 = vrcp.pop %v9668
    %v9671 = vmul.f32 1.0, %v9670
    %v9672 = vrcp.pop %v9669
    %v9673 = vmul.f32 1.0, %v9672
    %v9674 = vmul.f32 %v9654, %v9671
    %v9675 = vmul.f32 %v9659, %v9673
    %v9676 = vadd.f32 %v5107, %v9674
    %v9677 = vadd.f32 %v5108, %v9675
    %v9678 = vld [vmem:[#allocation10 + $0x240] sm:$0xf]
    %v9679 = vld [vmem:[%s7 + $0x19] sm:$0x1]
    %v9680 = vlaneseq
    %v9681 = vshrl.u32 %v9680, 7
    %v9682 = vsub.s32 0, %v9681
    %v9683 = vrot.slane %v9679, %v9682
    %v9685 = vsel %vm437, %v9676, 0
    %v9688 = vsel %vm437, %v9677, 0
    %v9691 = vsel %vm444, %v9678, 0
    %9693 = vmatprep.subr.mxu0 0.0
    %9694 = vmatpush1.msra.mxu0 0.0
    %9695 = vmatprep.subr.mxu0 0.0
    %9696 = vmatpush1.msra.mxu0 0.0
    %9697 = vmatprep.subr.mxu0 0.0
    %9698 = vmatpush1.msra.mxu0 0.0
    %9699 = vmatprep.subr.mxu0 0.0
    %9700 = vmatpush1.msra.mxu0 0.0
    %9701 = vmatprep.subr.mxu0 0.0
    %9702 = vmatpush1.msra.mxu0 0.0
    %9703 = vmatprep.subr.mxu0 0.0
    %9704 = vmatpush1.msra.mxu0 0.0
    %9705 = vmatprep.subr.mxu0 0.0
    %9706 = vmatpush1.msra.mxu0 0.0
    %9707 = vmatprep.subr.mxu0 0.0
    %9708 = vmatpush1.msra.mxu0 0.0
    %9709 = vmatprep.subr.mxu0 0.0
    %9710 = vmatpush1.msra.mxu0 0.0
    %9711 = vmatprep.subr.mxu0 0.0
    %9712 = vmatpush1.msra.mxu0 0.0
    %9713 = vmatprep.subr.mxu0 0.0
    %9714 = vmatpush1.msra.mxu0 0.0
    %9715 = vmatprep.subr.mxu0 0.0
    %9716 = vmatpush1.msra.mxu0 0.0
    %9717 = vmatprep.subr.mxu0 0.0
    %9718 = vmatpush1.msra.mxu0 0.0
    %9719 = vmatprep.subr.mxu0 0.0
    %9720 = vmatpush1.msra.mxu0 0.0
    %9721 = vmatprep.subr.mxu0 0.0
    %9722 = vmatpush1.msra.mxu0 0.0
    %9723 = vmatprep.subr.mxu0 0.0
    %9724 = vmatpush1.msra.mxu0 %v9691
    %9725 = vmatprep.subr.mxu0 0.0
    %9726 = vmatpush2.msra.mxu0 0.0
    %9727 = vmatprep.subr.mxu0 0.0
    %9728 = vmatpush2.msra.mxu0 0.0
    %9729 = vmatprep.subr.mxu0 0.0
    %9730 = vmatpush2.msra.mxu0 0.0
    %9731 = vmatprep.subr.mxu0 0.0
    %9732 = vmatpush2.msra.mxu0 0.0
    %9733 = vmatprep.subr.mxu0 0.0
    %9734 = vmatpush2.msra.mxu0 0.0
    %9735 = vmatprep.subr.mxu0 0.0
    %9736 = vmatpush2.msra.mxu0 0.0
    %9737 = vmatprep.subr.mxu0 0.0
    %9738 = vmatpush2.msra.mxu0 0.0
    %9739 = vmatprep.subr.mxu0 0.0
    %9740 = vmatpush2.msra.mxu0 0.0
    %9741 = vmatprep.subr.mxu0 0.0
    %9742 = vmatpush2.msra.mxu0 0.0
    %9743 = vmatprep.subr.mxu0 0.0
    %9744 = vmatpush2.msra.mxu0 0.0
    %9745 = vmatprep.subr.mxu0 0.0
    %9746 = vmatpush2.msra.mxu0 0.0
    %9747 = vmatprep.subr.mxu0 0.0
    %9748 = vmatpush2.msra.mxu0 0.0
    %9749 = vmatprep.subr.mxu0 0.0
    %9750 = vmatpush2.msra.mxu0 0.0
    %9751 = vmatprep.subr.mxu0 0.0
    %9752 = vmatpush2.msra.mxu0 0.0
    %9753 = vmatprep.subr.mxu0 0.0
    %9754 = vmatpush2.msra.mxu0 0.0
    %9755 = vmatprep.subr.mxu0 0.0
    %9756 = vmatpush2.msra.mxu0 0.0
    %9757 = vmatprep.mubr.f32.mxu0 0.0
    %9758 = vmatmul.mubr.f32.gmra.mxu0 %v9685
    %v9759 = vpop.f32.mrf.mxu0
    %v9760 = vadd.f32 %v9683, %v9759
    %v9761 = vpop.f32.mrf.mxu0
    %9762 = vmatprep.mubr.f32.mxu0 0.0
    %9763 = vmatmul.mubr.f32.gmra.mxu0 %v9688
    %v9764 = vpop.f32.mrf.mxu0
    %v9765 = vadd.f32 %v9683, %v9764
    %v9766 = vpop.f32.mrf.mxu0
    %9767 = vdwg.mxu0
    %v9768 = vxor.u32 %v9760, 2147483648
    %v9769 = vxor.u32 %v9765, 2147483648
    %v9770 = vmul.f32 %v9768, 1.442695
    %v9771 = vpow.pop %v9770
    %v9772 = vmul.f32 %v9769, 1.442695
    %v9773 = vpow.pop %v9772
    %v9774 = vadd.f32 %v9771, 1.0
    %v9775 = vadd.f32 %v9773, 1.0
    %v9776 = vrcp.pop %v9774
    %v9777 = vmul.f32 1.0, %v9776
    %v9778 = vrcp.pop %v9775
    %v9779 = vmul.f32 1.0, %v9778
    %v9780 = vmul.f32 %v9760, %v9777
    %v9781 = vmul.f32 %v9765, %v9779
    %v9782 = vld [vmem:[#allocation10 + $0x248] sm:$0xff]
    %v9783 = vld [vmem:[#allocation10 + $0x250] sm:$0xff]
    %v9784 = vld [vmem:[#allocation10 + $0x258] sm:$0xff]
    %v9785 = vld [vmem:[#allocation10 + $0x260] sm:$0xff]
    %v9786 = vld [vmem:[%s7 + $0x1a] sm:$0x1]
    %v9787 = vlaneseq
    %v9788 = vshrl.u32 %v9787, 7
    %v9789 = vsub.s32 0, %v9788
    %v9790 = vrot.slane %v9786, %v9789
    %v9792 = vsel %vm250, %v9780, 0
    %v9795 = vsel %vm250, %v9781, 0
    %9797 = vmatprep.subr.mxu0 0.0
    %9798 = vmatpush1.msra.mxu0 0.0
    %9799 = vmatprep.subr.mxu0 0.0
    %9800 = vmatpush1.msra.mxu0 0.0
    %9801 = vmatprep.subr.mxu0 0.0
    %9802 = vmatpush1.msra.mxu0 0.0
    %9803 = vmatprep.subr.mxu0 0.0
    %9804 = vmatpush1.msra.mxu0 0.0
    %9805 = vmatprep.subr.mxu0 0.0
    %9806 = vmatpush1.msra.mxu0 0.0
    %9807 = vmatprep.subr.mxu0 0.0
    %9808 = vmatpush1.msra.mxu0 0.0
    %9809 = vmatprep.subr.mxu0 0.0
    %9810 = vmatpush1.msra.mxu0 0.0
    %9811 = vmatprep.subr.mxu0 0.0
    %9812 = vmatpush1.msra.mxu0 0.0
    %9813 = vmatprep.subr.mxu0 0.0
    %9814 = vmatpush1.msra.mxu0 0.0
    %9815 = vmatprep.subr.mxu0 0.0
    %9816 = vmatpush1.msra.mxu0 0.0
    %9817 = vmatprep.subr.mxu0 0.0
    %9818 = vmatpush1.msra.mxu0 0.0
    %9819 = vmatprep.subr.mxu0 0.0
    %9820 = vmatpush1.msra.mxu0 0.0
    %9821 = vmatprep.subr.mxu0 0.0
    %9822 = vmatpush1.msra.mxu0 %v9785
    %9823 = vmatprep.subr.mxu0 0.0
    %9824 = vmatpush1.msra.mxu0 %v9784
    %9825 = vmatprep.subr.mxu0 0.0
    %9826 = vmatpush1.msra.mxu0 %v9783
    %9827 = vmatprep.subr.mxu0 0.0
    %9828 = vmatpush1.msra.mxu0 %v9782
    %9829 = vmatprep.subr.mxu0 0.0
    %9830 = vmatpush2.msra.mxu0 0.0
    %9831 = vmatprep.subr.mxu0 0.0
    %9832 = vmatpush2.msra.mxu0 0.0
    %9833 = vmatprep.subr.mxu0 0.0
    %9834 = vmatpush2.msra.mxu0 0.0
    %9835 = vmatprep.subr.mxu0 0.0
    %9836 = vmatpush2.msra.mxu0 0.0
    %9837 = vmatprep.subr.mxu0 0.0
    %9838 = vmatpush2.msra.mxu0 0.0
    %9839 = vmatprep.subr.mxu0 0.0
    %9840 = vmatpush2.msra.mxu0 0.0
    %9841 = vmatprep.subr.mxu0 0.0
    %9842 = vmatpush2.msra.mxu0 0.0
    %9843 = vmatprep.subr.mxu0 0.0
    %9844 = vmatpush2.msra.mxu0 0.0
    %9845 = vmatprep.subr.mxu0 0.0
    %9846 = vmatpush2.msra.mxu0 0.0
    %9847 = vmatprep.subr.mxu0 0.0
    %9848 = vmatpush2.msra.mxu0 0.0
    %9849 = vmatprep.subr.mxu0 0.0
    %9850 = vmatpush2.msra.mxu0 0.0
    %9851 = vmatprep.subr.mxu0 0.0
    %9852 = vmatpush2.msra.mxu0 0.0
    %9853 = vmatprep.subr.mxu0 0.0
    %9854 = vmatpush2.msra.mxu0 0.0
    %9855 = vmatprep.subr.mxu0 0.0
    %9856 = vmatpush2.msra.mxu0 0.0
    %9857 = vmatprep.subr.mxu0 0.0
    %9858 = vmatpush2.msra.mxu0 0.0
    %9859 = vmatprep.subr.mxu0 0.0
    %9860 = vmatpush2.msra.mxu0 0.0
    %9861 = vmatprep.mubr.f32.mxu0 0.0
    %9862 = vmatmul.mubr.f32.gmra.mxu0 %v9792
    %v9863 = vpop.f32.mrf.mxu0
    %v9864 = vadd.f32 %v9790, %v9863
    %v9865 = vpop.f32.mrf.mxu0
    %9866 = vmatprep.mubr.f32.mxu0 0.0
    %9867 = vmatmul.mubr.f32.gmra.mxu0 %v9795
    %v9868 = vpop.f32.mrf.mxu0
    %v9869 = vadd.f32 %v9790, %v9868
    %v9870 = vpop.f32.mrf.mxu0
    %9871 = vdwg.mxu0
    %v9872 = vxor.u32 %v9864, 2147483648
    %v9873 = vxor.u32 %v9869, 2147483648
    %v9874 = vmul.f32 %v9872, 1.442695
    %v9875 = vpow.pop %v9874
    %v9876 = vmul.f32 %v9873, 1.442695
    %v9877 = vpow.pop %v9876
    %v9878 = vadd.f32 %v9875, 1.0
    %v9879 = vadd.f32 %v9877, 1.0
    %v9880 = vrcp.pop %v9878
    %v9881 = vmul.f32 1.0, %v9880
    %v9882 = vrcp.pop %v9879
    %v9883 = vmul.f32 1.0, %v9882
    %v9884 = vmul.f32 %v9864, %v9881
    %v9885 = vmul.f32 %v9869, %v9883
    %v9886 = vld [vmem:[#allocation10 + $0x268] sm:$0xff]
    %v9887 = vld [vmem:[#allocation10 + $0x270] sm:$0xff]
    %v9888 = vld [vmem:[#allocation10 + $0x278] sm:$0xff]
    %v9889 = vld [vmem:[#allocation10 + $0x280] sm:$0xff]
    %v9890 = vld [vmem:[%s7 + $0x1b] sm:$0x1]
    %v9891 = vlaneseq
    %v9892 = vshrl.u32 %v9891, 7
    %v9893 = vsub.s32 0, %v9892
    %v9894 = vrot.slane %v9890, %v9893
    %v9896 = vsel %vm250, %v9884, 0
    %v9899 = vsel %vm250, %v9885, 0
    %9901 = vmatprep.subr.mxu0 0.0
    %9902 = vmatpush1.msra.mxu0 0.0
    %9903 = vmatprep.subr.mxu0 0.0
    %9904 = vmatpush1.msra.mxu0 0.0
    %9905 = vmatprep.subr.mxu0 0.0
    %9906 = vmatpush1.msra.mxu0 0.0
    %9907 = vmatprep.subr.mxu0 0.0
    %9908 = vmatpush1.msra.mxu0 0.0
    %9909 = vmatprep.subr.mxu0 0.0
    %9910 = vmatpush1.msra.mxu0 0.0
    %9911 = vmatprep.subr.mxu0 0.0
    %9912 = vmatpush1.msra.mxu0 0.0
    %9913 = vmatprep.subr.mxu0 0.0
    %9914 = vmatpush1.msra.mxu0 0.0
    %9915 = vmatprep.subr.mxu0 0.0
    %9916 = vmatpush1.msra.mxu0 0.0
    %9917 = vmatprep.subr.mxu0 0.0
    %9918 = vmatpush1.msra.mxu0 0.0
    %9919 = vmatprep.subr.mxu0 0.0
    %9920 = vmatpush1.msra.mxu0 0.0
    %9921 = vmatprep.subr.mxu0 0.0
    %9922 = vmatpush1.msra.mxu0 0.0
    %9923 = vmatprep.subr.mxu0 0.0
    %9924 = vmatpush1.msra.mxu0 0.0
    %9925 = vmatprep.subr.mxu0 0.0
    %9926 = vmatpush1.msra.mxu0 %v9889
    %9927 = vmatprep.subr.mxu0 0.0
    %9928 = vmatpush1.msra.mxu0 %v9888
    %9929 = vmatprep.subr.mxu0 0.0
    %9930 = vmatpush1.msra.mxu0 %v9887
    %9931 = vmatprep.subr.mxu0 0.0
    %9932 = vmatpush1.msra.mxu0 %v9886
    %9933 = vmatprep.subr.mxu0 0.0
    %9934 = vmatpush2.msra.mxu0 0.0
    %9935 = vmatprep.subr.mxu0 0.0
    %9936 = vmatpush2.msra.mxu0 0.0
    %9937 = vmatprep.subr.mxu0 0.0
    %9938 = vmatpush2.msra.mxu0 0.0
    %9939 = vmatprep.subr.mxu0 0.0
    %9940 = vmatpush2.msra.mxu0 0.0
    %9941 = vmatprep.subr.mxu0 0.0
    %9942 = vmatpush2.msra.mxu0 0.0
    %9943 = vmatprep.subr.mxu0 0.0
    %9944 = vmatpush2.msra.mxu0 0.0
    %9945 = vmatprep.subr.mxu0 0.0
    %9946 = vmatpush2.msra.mxu0 0.0
    %9947 = vmatprep.subr.mxu0 0.0
    %9948 = vmatpush2.msra.mxu0 0.0
    %9949 = vmatprep.subr.mxu0 0.0
    %9950 = vmatpush2.msra.mxu0 0.0
    %9951 = vmatprep.subr.mxu0 0.0
    %9952 = vmatpush2.msra.mxu0 0.0
    %9953 = vmatprep.subr.mxu0 0.0
    %9954 = vmatpush2.msra.mxu0 0.0
    %9955 = vmatprep.subr.mxu0 0.0
    %9956 = vmatpush2.msra.mxu0 0.0
    %9957 = vmatprep.subr.mxu0 0.0
    %9958 = vmatpush2.msra.mxu0 0.0
    %9959 = vmatprep.subr.mxu0 0.0
    %9960 = vmatpush2.msra.mxu0 0.0
    %9961 = vmatprep.subr.mxu0 0.0
    %9962 = vmatpush2.msra.mxu0 0.0
    %9963 = vmatprep.subr.mxu0 0.0
    %9964 = vmatpush2.msra.mxu0 0.0
    %9965 = vmatprep.mubr.f32.mxu0 0.0
    %9966 = vmatmul.mubr.f32.gmra.mxu0 %v9896
    %v9967 = vpop.f32.mrf.mxu0
    %v9968 = vadd.f32 %v9894, %v9967
    %v9969 = vpop.f32.mrf.mxu0
    %9970 = vmatprep.mubr.f32.mxu0 0.0
    %9971 = vmatmul.mubr.f32.gmra.mxu0 %v9899
    %v9972 = vpop.f32.mrf.mxu0
    %v9973 = vadd.f32 %v9894, %v9972
    %v9974 = vpop.f32.mrf.mxu0
    %9975 = vdwg.mxu0
    %v9976 = vxor.u32 %v9968, 2147483648
    %v9977 = vxor.u32 %v9973, 2147483648
    %v9978 = vmul.f32 %v9976, 1.442695
    %v9979 = vpow.pop %v9978
    %v9980 = vmul.f32 %v9977, 1.442695
    %v9981 = vpow.pop %v9980
    %v9982 = vadd.f32 %v9979, 1.0
    %v9983 = vadd.f32 %v9981, 1.0
    %v9984 = vrcp.pop %v9982
    %v9985 = vmul.f32 1.0, %v9984
    %v9986 = vrcp.pop %v9983
    %v9987 = vmul.f32 1.0, %v9986
    %v9988 = vmul.f32 %v9968, %v9985
    %v9989 = vmul.f32 %v9973, %v9987
    %v9990 = vld [vmem:[#allocation10 + $0x288] sm:$0xff]
    %v9991 = vld [vmem:[#allocation10 + $0x290] sm:$0xff]
    %v9992 = vld [vmem:[#allocation10 + $0x298] sm:$0xff]
    %v9993 = vld [vmem:[#allocation10 + $0x2a0] sm:$0xff]
    %v9994 = vld [vmem:[%s7 + $0x1c] sm:$0x1]
    %v9995 = vlaneseq
    %v9996 = vshrl.u32 %v9995, 7
    %v9997 = vsub.s32 0, %v9996
    %v9998 = vrot.slane %v9994, %v9997
    %v10000 = vsel %vm250, %v9988, 0
    %v10003 = vsel %vm250, %v9989, 0
    %10005 = vmatprep.subr.mxu0 0.0
    %10006 = vmatpush1.msra.mxu0 0.0
    %10007 = vmatprep.subr.mxu0 0.0
    %10008 = vmatpush1.msra.mxu0 0.0
    %10009 = vmatprep.subr.mxu0 0.0
    %10010 = vmatpush1.msra.mxu0 0.0
    %10011 = vmatprep.subr.mxu0 0.0
    %10012 = vmatpush1.msra.mxu0 0.0
    %10013 = vmatprep.subr.mxu0 0.0
    %10014 = vmatpush1.msra.mxu0 0.0
    %10015 = vmatprep.subr.mxu0 0.0
    %10016 = vmatpush1.msra.mxu0 0.0
    %10017 = vmatprep.subr.mxu0 0.0
    %10018 = vmatpush1.msra.mxu0 0.0
    %10019 = vmatprep.subr.mxu0 0.0
    %10020 = vmatpush1.msra.mxu0 0.0
    %10021 = vmatprep.subr.mxu0 0.0
    %10022 = vmatpush1.msra.mxu0 0.0
    %10023 = vmatprep.subr.mxu0 0.0
    %10024 = vmatpush1.msra.mxu0 0.0
    %10025 = vmatprep.subr.mxu0 0.0
    %10026 = vmatpush1.msra.mxu0 0.0
    %10027 = vmatprep.subr.mxu0 0.0
    %10028 = vmatpush1.msra.mxu0 0.0
    %10029 = vmatprep.subr.mxu0 0.0
    %10030 = vmatpush1.msra.mxu0 %v9993
    %10031 = vmatprep.subr.mxu0 0.0
    %10032 = vmatpush1.msra.mxu0 %v9992
    %10033 = vmatprep.subr.mxu0 0.0
    %10034 = vmatpush1.msra.mxu0 %v9991
    %10035 = vmatprep.subr.mxu0 0.0
    %10036 = vmatpush1.msra.mxu0 %v9990
    %10037 = vmatprep.subr.mxu0 0.0
    %10038 = vmatpush2.msra.mxu0 0.0
    %10039 = vmatprep.subr.mxu0 0.0
    %10040 = vmatpush2.msra.mxu0 0.0
    %10041 = vmatprep.subr.mxu0 0.0
    %10042 = vmatpush2.msra.mxu0 0.0
    %10043 = vmatprep.subr.mxu0 0.0
    %10044 = vmatpush2.msra.mxu0 0.0
    %10045 = vmatprep.subr.mxu0 0.0
    %10046 = vmatpush2.msra.mxu0 0.0
    %10047 = vmatprep.subr.mxu0 0.0
    %10048 = vmatpush2.msra.mxu0 0.0
    %10049 = vmatprep.subr.mxu0 0.0
    %10050 = vmatpush2.msra.mxu0 0.0
    %10051 = vmatprep.subr.mxu0 0.0
    %10052 = vmatpush2.msra.mxu0 0.0
    %10053 = vmatprep.subr.mxu0 0.0
    %10054 = vmatpush2.msra.mxu0 0.0
    %10055 = vmatprep.subr.mxu0 0.0
    %10056 = vmatpush2.msra.mxu0 0.0
    %10057 = vmatprep.subr.mxu0 0.0
    %10058 = vmatpush2.msra.mxu0 0.0
    %10059 = vmatprep.subr.mxu0 0.0
    %10060 = vmatpush2.msra.mxu0 0.0
    %10061 = vmatprep.subr.mxu0 0.0
    %10062 = vmatpush2.msra.mxu0 0.0
    %10063 = vmatprep.subr.mxu0 0.0
    %10064 = vmatpush2.msra.mxu0 0.0
    %10065 = vmatprep.subr.mxu0 0.0
    %10066 = vmatpush2.msra.mxu0 0.0
    %10067 = vmatprep.subr.mxu0 0.0
    %10068 = vmatpush2.msra.mxu0 0.0
    %10069 = vmatprep.mubr.f32.mxu0 0.0
    %10070 = vmatmul.mubr.f32.gmra.mxu0 %v10000
    %v10071 = vpop.f32.mrf.mxu0
    %v10072 = vadd.f32 %v9998, %v10071
    %v10073 = vpop.f32.mrf.mxu0
    %10074 = vmatprep.mubr.f32.mxu0 0.0
    %10075 = vmatmul.mubr.f32.gmra.mxu0 %v10003
    %v10076 = vpop.f32.mrf.mxu0
    %v10077 = vadd.f32 %v9998, %v10076
    %v10078 = vpop.f32.mrf.mxu0
    %10079 = vdwg.mxu0
    %v10080 = vld [vmem:[#allocation10 + $0x2a8] sm:$0xff]
    %v10081 = vld [vmem:[#allocation10 + $0x2b0] sm:$0xff]
    %v10082 = vld [vmem:[%s7 + $0x1d] sm:$0x1]
    %v10083 = vlaneseq
    %v10084 = vshrl.u32 %v10083, 7
    %v10085 = vsub.s32 0, %v10084
    %v10086 = vrot.slane %v10082, %v10085
    %v10088 = vsel %vm145, %v10072, 0
    %v10091 = vsel %vm145, %v10077, 0
    %10093 = vmatprep.subr.mxu0 0.0
    %10094 = vmatpush1.msra.mxu0 0.0
    %10095 = vmatprep.subr.mxu0 0.0
    %10096 = vmatpush1.msra.mxu0 0.0
    %10097 = vmatprep.subr.mxu0 0.0
    %10098 = vmatpush1.msra.mxu0 0.0
    %10099 = vmatprep.subr.mxu0 0.0
    %10100 = vmatpush1.msra.mxu0 0.0
    %10101 = vmatprep.subr.mxu0 0.0
    %10102 = vmatpush1.msra.mxu0 0.0
    %10103 = vmatprep.subr.mxu0 0.0
    %10104 = vmatpush1.msra.mxu0 0.0
    %10105 = vmatprep.subr.mxu0 0.0
    %10106 = vmatpush1.msra.mxu0 0.0
    %10107 = vmatprep.subr.mxu0 0.0
    %10108 = vmatpush1.msra.mxu0 0.0
    %10109 = vmatprep.subr.mxu0 0.0
    %10110 = vmatpush1.msra.mxu0 0.0
    %10111 = vmatprep.subr.mxu0 0.0
    %10112 = vmatpush1.msra.mxu0 0.0
    %10113 = vmatprep.subr.mxu0 0.0
    %10114 = vmatpush1.msra.mxu0 0.0
    %10115 = vmatprep.subr.mxu0 0.0
    %10116 = vmatpush1.msra.mxu0 0.0
    %10117 = vmatprep.subr.mxu0 0.0
    %10118 = vmatpush1.msra.mxu0 0.0
    %10119 = vmatprep.subr.mxu0 0.0
    %10120 = vmatpush1.msra.mxu0 0.0
    %10121 = vmatprep.subr.mxu0 0.0
    %10122 = vmatpush1.msra.mxu0 %v10081
    %10123 = vmatprep.subr.mxu0 0.0
    %10124 = vmatpush1.msra.mxu0 %v10080
    %10125 = vmatprep.subr.mxu0 0.0
    %10126 = vmatpush2.msra.mxu0 0.0
    %10127 = vmatprep.subr.mxu0 0.0
    %10128 = vmatpush2.msra.mxu0 0.0
    %10129 = vmatprep.subr.mxu0 0.0
    %10130 = vmatpush2.msra.mxu0 0.0
    %10131 = vmatprep.subr.mxu0 0.0
    %10132 = vmatpush2.msra.mxu0 0.0
    %10133 = vmatprep.subr.mxu0 0.0
    %10134 = vmatpush2.msra.mxu0 0.0
    %10135 = vmatprep.subr.mxu0 0.0
    %10136 = vmatpush2.msra.mxu0 0.0
    %10137 = vmatprep.subr.mxu0 0.0
    %10138 = vmatpush2.msra.mxu0 0.0
    %10139 = vmatprep.subr.mxu0 0.0
    %10140 = vmatpush2.msra.mxu0 0.0
    %10141 = vmatprep.subr.mxu0 0.0
    %10142 = vmatpush2.msra.mxu0 0.0
    %10143 = vmatprep.subr.mxu0 0.0
    %10144 = vmatpush2.msra.mxu0 0.0
    %10145 = vmatprep.subr.mxu0 0.0
    %10146 = vmatpush2.msra.mxu0 0.0
    %10147 = vmatprep.subr.mxu0 0.0
    %10148 = vmatpush2.msra.mxu0 0.0
    %10149 = vmatprep.subr.mxu0 0.0
    %10150 = vmatpush2.msra.mxu0 0.0
    %10151 = vmatprep.subr.mxu0 0.0
    %10152 = vmatpush2.msra.mxu0 0.0
    %10153 = vmatprep.subr.mxu0 0.0
    %10154 = vmatpush2.msra.mxu0 0.0
    %10155 = vmatprep.subr.mxu0 0.0
    %10156 = vmatpush2.msra.mxu0 0.0
    %10157 = vmatprep.mubr.f32.mxu0 0.0
    %10158 = vmatmul.mubr.f32.gmra.mxu0 %v10088
    %v10159 = vpop.f32.mrf.mxu0
    %v10160 = vadd.f32 %v10086, %v10159
    %v10161 = vpop.f32.mrf.mxu0
    %10162 = vmatprep.mubr.f32.mxu0 0.0
    %10163 = vmatmul.mubr.f32.gmra.mxu0 %v10091
    %v10164 = vpop.f32.mrf.mxu0
    %v10165 = vadd.f32 %v10086, %v10164
    %v10166 = vpop.f32.mrf.mxu0
    %10167 = vdwg.mxu0
    %v10168 = vxor.u32 %v10160, 2147483648
    %v10169 = vxor.u32 %v10165, 2147483648
    %v10170 = vmul.f32 %v10168, 1.442695
    %v10171 = vpow.pop %v10170
    %v10172 = vmul.f32 %v10169, 1.442695
    %v10173 = vpow.pop %v10172
    %v10174 = vadd.f32 %v10171, 1.0
    %v10175 = vadd.f32 %v10173, 1.0
    %v10176 = vrcp.pop %v10174
    %v10177 = vmul.f32 1.0, %v10176
    %v10178 = vrcp.pop %v10175
    %v10179 = vmul.f32 1.0, %v10178
    %v10180 = vmul.f32 %v10160, %v10177
    %v10181 = vmul.f32 %v10165, %v10179
    %v10182 = vld [vmem:[#allocation10 + $0x2b8] sm:$0xff]
    %v10183 = vld [vmem:[#allocation10 + $0x2c0] sm:$0xff]
    %v10184 = vld [vmem:[#allocation10 + $0x2c8] sm:$0xff]
    %v10185 = vld [vmem:[#allocation10 + $0x2d0] sm:$0xff]
    %v10186 = vld [vmem:[%s7 + $0x1e] sm:$0x1]
    %v10187 = vlaneseq
    %v10188 = vshrl.u32 %v10187, 7
    %v10189 = vsub.s32 0, %v10188
    %v10190 = vrot.slane %v10186, %v10189
    %v10192 = vsel %vm250, %v10180, 0
    %v10195 = vsel %vm250, %v10181, 0
    %10197 = vmatprep.subr.mxu0 0.0
    %10198 = vmatpush1.msra.mxu0 0.0
    %10199 = vmatprep.subr.mxu0 0.0
    %10200 = vmatpush1.msra.mxu0 0.0
    %10201 = vmatprep.subr.mxu0 0.0
    %10202 = vmatpush1.msra.mxu0 0.0
    %10203 = vmatprep.subr.mxu0 0.0
    %10204 = vmatpush1.msra.mxu0 0.0
    %10205 = vmatprep.subr.mxu0 0.0
    %10206 = vmatpush1.msra.mxu0 0.0
    %10207 = vmatprep.subr.mxu0 0.0
    %10208 = vmatpush1.msra.mxu0 0.0
    %10209 = vmatprep.subr.mxu0 0.0
    %10210 = vmatpush1.msra.mxu0 0.0
    %10211 = vmatprep.subr.mxu0 0.0
    %10212 = vmatpush1.msra.mxu0 0.0
    %10213 = vmatprep.subr.mxu0 0.0
    %10214 = vmatpush1.msra.mxu0 0.0
    %10215 = vmatprep.subr.mxu0 0.0
    %10216 = vmatpush1.msra.mxu0 0.0
    %10217 = vmatprep.subr.mxu0 0.0
    %10218 = vmatpush1.msra.mxu0 0.0
    %10219 = vmatprep.subr.mxu0 0.0
    %10220 = vmatpush1.msra.mxu0 0.0
    %10221 = vmatprep.subr.mxu0 0.0
    %10222 = vmatpush1.msra.mxu0 %v10185
    %10223 = vmatprep.subr.mxu0 0.0
    %10224 = vmatpush1.msra.mxu0 %v10184
    %10225 = vmatprep.subr.mxu0 0.0
    %10226 = vmatpush1.msra.mxu0 %v10183
    %10227 = vmatprep.subr.mxu0 0.0
    %10228 = vmatpush1.msra.mxu0 %v10182
    %10229 = vmatprep.subr.mxu0 0.0
    %10230 = vmatpush2.msra.mxu0 0.0
    %10231 = vmatprep.subr.mxu0 0.0
    %10232 = vmatpush2.msra.mxu0 0.0
    %10233 = vmatprep.subr.mxu0 0.0
    %10234 = vmatpush2.msra.mxu0 0.0
    %10235 = vmatprep.subr.mxu0 0.0
    %10236 = vmatpush2.msra.mxu0 0.0
    %10237 = vmatprep.subr.mxu0 0.0
    %10238 = vmatpush2.msra.mxu0 0.0
    %10239 = vmatprep.subr.mxu0 0.0
    %10240 = vmatpush2.msra.mxu0 0.0
    %10241 = vmatprep.subr.mxu0 0.0
    %10242 = vmatpush2.msra.mxu0 0.0
    %10243 = vmatprep.subr.mxu0 0.0
    %10244 = vmatpush2.msra.mxu0 0.0
    %10245 = vmatprep.subr.mxu0 0.0
    %10246 = vmatpush2.msra.mxu0 0.0
    %10247 = vmatprep.subr.mxu0 0.0
    %10248 = vmatpush2.msra.mxu0 0.0
    %10249 = vmatprep.subr.mxu0 0.0
    %10250 = vmatpush2.msra.mxu0 0.0
    %10251 = vmatprep.subr.mxu0 0.0
    %10252 = vmatpush2.msra.mxu0 0.0
    %10253 = vmatprep.subr.mxu0 0.0
    %10254 = vmatpush2.msra.mxu0 0.0
    %10255 = vmatprep.subr.mxu0 0.0
    %10256 = vmatpush2.msra.mxu0 0.0
    %10257 = vmatprep.subr.mxu0 0.0
    %10258 = vmatpush2.msra.mxu0 0.0
    %10259 = vmatprep.subr.mxu0 0.0
    %10260 = vmatpush2.msra.mxu0 0.0
    %10261 = vmatprep.mubr.f32.mxu0 0.0
    %10262 = vmatmul.mubr.f32.gmra.mxu0 %v10192
    %v10263 = vpop.f32.mrf.mxu0
    %v10264 = vadd.f32 %v10190, %v10263
    %v10265 = vpop.f32.mrf.mxu0
    %10266 = vmatprep.mubr.f32.mxu0 0.0
    %10267 = vmatmul.mubr.f32.gmra.mxu0 %v10195
    %v10268 = vpop.f32.mrf.mxu0
    %v10269 = vadd.f32 %v10190, %v10268
    %v10270 = vpop.f32.mrf.mxu0
    %10271 = vdwg.mxu0
    %10273 = vset.pattern.permute.xlu0 0
    %10274 = vperm.xlu0 %10273, %v10264
    %v10275 = vpop.permute.xlu0 %10274
    %10278 = vset.pattern.permute.xlu0 0
    %10279 = vperm.xlu0 %10278, %v10269
    %v10280 = vpop.permute.xlu0 %10279
    %v10282 = vmul.f32 %v428, %v10275
    %v10283 = vmul.f32 %v433, %v10280
    %v10285 = vsel %vm145, %v137, 0
    %10287 = vmatprep.subr.mxu0 0.0
    %10288 = vmatpush1.msra.mxu0 0.0
    %10289 = vmatprep.subr.mxu0 0.0
    %10290 = vmatpush1.msra.mxu0 0.0
    %10291 = vmatprep.subr.mxu0 0.0
    %10292 = vmatpush1.msra.mxu0 0.0
    %10293 = vmatprep.subr.mxu0 0.0
    %10294 = vmatpush1.msra.mxu0 0.0
    %10295 = vmatprep.subr.mxu0 0.0
    %10296 = vmatpush1.msra.mxu0 0.0
    %10297 = vmatprep.subr.mxu0 0.0
    %10298 = vmatpush1.msra.mxu0 0.0
    %10299 = vmatprep.subr.mxu0 0.0
    %10300 = vmatpush1.msra.mxu0 0.0
    %10301 = vmatprep.subr.mxu0 0.0
    %10302 = vmatpush1.msra.mxu0 0.0
    %10303 = vmatprep.subr.mxu0 0.0
    %10304 = vmatpush1.msra.mxu0 0.0
    %10305 = vmatprep.subr.mxu0 0.0
    %10306 = vmatpush1.msra.mxu0 0.0
    %10307 = vmatprep.subr.mxu0 0.0
    %10308 = vmatpush1.msra.mxu0 0.0
    %10309 = vmatprep.subr.mxu0 0.0
    %10310 = vmatpush1.msra.mxu0 0.0
    %10311 = vmatprep.subr.mxu0 0.0
    %10312 = vmatpush1.msra.mxu0 0.0
    %10313 = vmatprep.subr.mxu0 0.0
    %10314 = vmatpush1.msra.mxu0 0.0
    %10315 = vmatprep.subr.mxu0 0.0
    %10316 = vmatpush1.msra.mxu0 %v10283
    %10317 = vmatprep.subr.mxu0 0.0
    %10318 = vmatpush1.msra.mxu0 %v10282
    %10319 = vmatprep.subr.mxu0 0.0
    %10320 = vmatpush2.msra.mxu0 0.0
    %10321 = vmatprep.subr.mxu0 0.0
    %10322 = vmatpush2.msra.mxu0 0.0
    %10323 = vmatprep.subr.mxu0 0.0
    %10324 = vmatpush2.msra.mxu0 0.0
    %10325 = vmatprep.subr.mxu0 0.0
    %10326 = vmatpush2.msra.mxu0 0.0
    %10327 = vmatprep.subr.mxu0 0.0
    %10328 = vmatpush2.msra.mxu0 0.0
    %10329 = vmatprep.subr.mxu0 0.0
    %10330 = vmatpush2.msra.mxu0 0.0
    %10331 = vmatprep.subr.mxu0 0.0
    %10332 = vmatpush2.msra.mxu0 0.0
    %10333 = vmatprep.subr.mxu0 0.0
    %10334 = vmatpush2.msra.mxu0 0.0
    %10335 = vmatprep.subr.mxu0 0.0
    %10336 = vmatpush2.msra.mxu0 0.0
    %10337 = vmatprep.subr.mxu0 0.0
    %10338 = vmatpush2.msra.mxu0 0.0
    %10339 = vmatprep.subr.mxu0 0.0
    %10340 = vmatpush2.msra.mxu0 0.0
    %10341 = vmatprep.subr.mxu0 0.0
    %10342 = vmatpush2.msra.mxu0 0.0
    %10343 = vmatprep.subr.mxu0 0.0
    %10344 = vmatpush2.msra.mxu0 0.0
    %10345 = vmatprep.subr.mxu0 0.0
    %10346 = vmatpush2.msra.mxu0 0.0
    %10347 = vmatprep.subr.mxu0 0.0
    %10348 = vmatpush2.msra.mxu0 0.0
    %10349 = vmatprep.subr.mxu0 0.0
    %10350 = vmatpush2.msra.mxu0 0.0
    %10351 = vmatprep.mubr.f32.mxu0 0.0
    %10352 = vmatmul.mubr.f32.gmra.mxu0 %v10285
    %v10353 = vpop.f32.mrf.mxu0
    %v10354 = vadd.f32 0.0, %v10353
    %v10355 = vpop.f32.mrf.mxu0
    %10356 = vdwg.mxu0
    %vm10357 = vcmask 123904
    %10358 = vst.msk [vmem:[#allocation13] sm:$0x3] %vm10357, %v10354
    // Predicated region
    $region62: #{forward.1} parent=1 // pred_check
      _
    $region63: #{forward.1} parent=1 // pred_check_branch
      %10360 = sbr.rel (0) target = $region65
    $region64: #{forward.1} parent=1 // pred_region
      %s10362 = ssub.s32 32, 32
      %10363 = vsyncadd [#allocation4], %s10362
      %s10365 = sshll.u32 [#allocation13], 4
      %s10366 = int_to_ptr.vmem [resolvable:$true] %s10365
      %10368 = dma.vmem_to_hbm [thread:$0]  %s10366, 32, %s9, [#allocation4]
    $region65: #{forward.1} parent=1 // pred_fallthru
      _
    // Predicated region
    $region66: #{forward.1} parent=1 // pred_check
      _
    $region67: #{forward.1} parent=1 // pred_check_branch
      %10370 = sbr.rel (0) target = $region69
    $region68: #{forward.1} parent=1 // pred_region
      %10371 = dma.done [#allocation4], 32
    $region69: #{forward.1} parent=1 // pred_fallthru
      _
    %10372 = vsyncpa [#allocation3], 1
    %10373 = vsyncpa [#allocation6], 1
    %10374 = vsyncpa [#allocation9], 1
    %10375 = vsyncpa [#allocation12], 1
    %10376 = vsyncpa [#allocation4], 1

</llo_original>
